<compile_context>
chip_gen: v5e
topology: v5e:2x2
jax: 0.10.0
libtpu: 0.0.40
codegen_flags: <defaults>
</compile_context>

<pallas_src>
import jax
import jax.numpy as jnp
from jax.experimental import pallas as pl
from jax.experimental.pallas import tpu as pltpu

_LANE = 128
_SUBLANE = 8
_TM_MAX = 512


def _round_up(v, m):
    return (v + m - 1) // m * m


def _vmem_capacity():
    try:
        return int(pltpu.get_tpu_info().vmem_capacity_bytes)
    except Exception:
        return 64 * 1024 * 1024          # v7x per-TC VMEM: safe lower bound for all gens


def _vmem_limit_bytes():
    return min(int(_vmem_capacity() * 3 // 4), 96 * 1024 * 1024)


def _pad_vec(v, n):
    v = v.astype(jnp.float32)
    pad = n - v.shape[0]
    return jnp.pad(v, (0, pad)) if pad > 0 else v


# --------------------------------------------------------------------------------------
# Fused stride-1 3x3 binary conv: in-kernel windowing (no im2col patch tensor in HBM)
# --------------------------------------------------------------------------------------
def _conv3x3_bn_kernel(x0_ref, x1_ref, x2_ref, w_ref, s_ref, b_ref, o_ref):
    # x*_ref: (W+2, C) bf16 slab of padded/binarized input row y+dy; w_ref: (9, C, Coutp).
    wo = o_ref.shape[0]
    acc = jnp.zeros(o_ref.shape, jnp.float32)
    for dy, xr in enumerate((x0_ref, x1_ref, x2_ref)):
        slab = xr[...]
        for dx in range(3):
            acc = acc + jnp.dot(slab[dx:dx + wo, :], w_ref[dy * 3 + dx],
                                preferred_element_type=jnp.float32)
    o_ref[...] = (acc * s_ref[...] + b_ref[...]).astype(o_ref.dtype)


def _conv3x3_bn_res_rprelu_kernel(x0_ref, x1_ref, x2_ref, w_ref, s_ref, b_ref,
                                  res_ref, slope_ref, zeta_ref, o_ref):
    wo = o_ref.shape[0]
    acc = jnp.zeros(o_ref.shape, jnp.float32)
    for dy, xr in enumerate((x0_ref, x1_ref, x2_ref)):
        slab = xr[...]
        for dx in range(3):
            acc = acc + jnp.dot(slab[dx:dx + wo, :], w_ref[dy * 3 + dx],
                                preferred_element_type=jnp.float32)
    y = acc * s_ref[...] + b_ref[...] + res_ref[...].astype(jnp.float32)
    o_ref[...] = (jnp.where(y > 0, y, slope_ref[...] * y) + zeta_ref[...]).astype(o_ref.dtype)


def _conv3x3_s1(xb_pad, wtaps, scale, bias, res=None, slope=None, zeta=None,
                out_dtype=jnp.bfloat16):
    """xb_pad: (B, H+2, W+2, C) bf16 {-1,0,+1}; wtaps: (9, C, Coutp) bf16; vecs len Coutp."""
    B, Hp2, Wp2, C = xb_pad.shape
    Ho, Wo = Hp2 - 2, Wp2 - 2
    Coutp = wtaps.shape[-1]

    # Three BlockSpecs on the SAME padded array, shifted by dy in the row dim (row block
    # size 1 -> block index == element index, so the +dy halo offset is expressible).
    def shifted_spec(dy):
        return pl.BlockSpec((None, None, Wp2, C),
                            lambda b, y, dy=dy: (b, y + dy, 0, 0))

    w_spec = pl.BlockSpec((9, C, Coutp), lambda b, y: (0, 0, 0))        # resident
    vec_spec = pl.BlockSpec((1, Coutp), lambda b, y: (0, 0))            # resident
    out_spec = pl.BlockSpec((None, None, Wo, Coutp), lambda b, y: (b, y, 0, 0))

    cparams = pltpu.CompilerParams(
        dimension_semantics=("parallel", "parallel"),
        vmem_limit_bytes=_vmem_limit_bytes(),
    )
    scale2 = scale.reshape(1, Coutp)
    bias2 = bias.reshape(1, Coutp)

    if res is None:
        return pl.pallas_call(
            _conv3x3_bn_kernel,
            out_shape=jax.ShapeDtypeStruct((B, Ho, Wo, Coutp), out_dtype),
            grid=(B, Ho),
            in_specs=[shifted_spec(0), shifted_spec(1), shifted_spec(2),
                      w_spec, vec_spec, vec_spec],
            out_specs=out_spec,
            compiler_params=cparams,
        )(xb_pad, xb_pad, xb_pad, wtaps, scale2, bias2)

    res_spec = pl.BlockSpec((None, None, Wo, Coutp), lambda b, y: (b, y, 0, 0))
    return pl.pallas_call(
        _conv3x3_bn_res_rprelu_kernel,
        out_shape=jax.ShapeDtypeStruct((B, Ho, Wo, Coutp), out_dtype),
        grid=(B, Ho),
        in_specs=[shifted_spec(0), shifted_spec(1), shifted_spec(2),
                  w_spec, vec_spec, vec_spec, res_spec, vec_spec, vec_spec],
        out_specs=out_spec,
        compiler_params=cparams,
    )(xb_pad, xb_pad, xb_pad, wtaps, scale2, bias2,
      res, slope.reshape(1, Coutp), zeta.reshape(1, Coutp))


# --------------------------------------------------------------------------------------
# im2col + tiled GEMM path (only the two stride-2 convs of stage 0 use this)
# --------------------------------------------------------------------------------------
def _gemm_bn_kernel(p_ref, w_ref, s_ref, b_ref, o_ref):
    acc = jnp.dot(p_ref[...], w_ref[...], preferred_element_type=jnp.float32)
    o_ref[...] = (acc * s_ref[...] + b_ref[...]).astype(o_ref.dtype)


def _gemm_bn_res_rprelu_kernel(p_ref, w_ref, s_ref, b_ref, res_ref,
                               slope_ref, zeta_ref, o_ref):
    acc = jnp.dot(p_ref[...], w_ref[...], preferred_element_type=jnp.float32)
    y = acc * s_ref[...] + b_ref[...] + res_ref[...].astype(jnp.float32)
    o_ref[...] = (jnp.where(y > 0, y, slope_ref[...] * y) + zeta_ref[...]).astype(o_ref.dtype)


def _tile_vmem_bytes(tm, kp, np_, with_res):
    by = 2 * tm * kp * 2           # double-buffered bf16 patch tile
    by += 2 * tm * np_ * 2         # double-buffered bf16 output tile
    by += 2 * kp * np_ * 2         # resident bf16 weight (charged as 2 buffers)
    by += 4 * 2 * np_ * 4          # per-channel (1, Np) vectors
    if with_res:
        by += 2 * tm * np_ * 2     # double-buffered bf16 residual tile
    return by


def _bconv_gemm(patches, wm, scale, bias, res=None, slope=None, zeta=None,
                out_dtype=jnp.bfloat16):
    """patches: (M, K) bf16 {-1,0,+1}; wm: (K, Np) bf16; vecs already length Np."""
    M, K = patches.shape
    Np = wm.shape[1]
    Kp = _round_up(K, _LANE)
    with_res = res is not None
    budget = int(_vmem_capacity() * 0.45)

    tm = min(_TM_MAX, _round_up(M, _SUBLANE))
    while tm > _SUBLANE and _tile_vmem_bytes(tm, Kp, Np, with_res) > budget:
        tm = max(_SUBLANE, _round_up(tm // 2, _SUBLANE))
    nt = -(-M // tm)
    tm = _round_up(-(-M // nt), _SUBLANE)
    Mp = nt * tm

    p = jnp.pad(patches, ((0, Mp - M), (0, Kp - K)))
    w = jnp.pad(wm, ((0, Kp - K), (0, 0)))

    def vec(v):
        return v.reshape(1, Np).astype(jnp.float32)

    row_spec = pl.BlockSpec((tm, Kp), lambda i: (i, 0))
    w_spec = pl.BlockSpec((Kp, Np), lambda i: (0, 0))     # same block every step: resident
    vec_spec = pl.BlockSpec((1, Np), lambda i: (0, 0))
    out_spec = pl.BlockSpec((tm, Np), lambda i: (i, 0))   # lane-dense (Np % 128 == 0)

    cparams = pltpu.CompilerParams(
        dimension_semantics=("parallel",),
        vmem_limit_bytes=_vmem_limit_bytes(),
    )

    if not with_res:
        out = pl.pallas_call(
            _gemm_bn_kernel,
            out_shape=jax.ShapeDtypeStruct((Mp, Np), out_dtype),
            grid=(nt,),
            in_specs=[row_spec, w_spec, vec_spec, vec_spec],
            out_specs=out_spec,
            compiler_params=cparams,
        )(p, w, vec(scale), vec(bias))
    else:
        r = jnp.pad(res, ((0, Mp - M), (0, 0))) if Mp > M else res
        out = pl.pallas_call(
            _gemm_bn_res_rprelu_kernel,
            out_shape=jax.ShapeDtypeStruct((Mp, Np), out_dtype),
            grid=(nt,),
            in_specs=[row_spec, w_spec, vec_spec, vec_spec,
                      pl.BlockSpec((tm, Np), lambda i: (i, 0)),
                      vec_spec, vec_spec],
            out_specs=out_spec,
            compiler_params=cparams,
        )(p, w, vec(scale), vec(bias), r, vec(slope), vec(zeta))
    return out[:M] if Mp > M else out


# --------------------------------------------------------------------------------------
# JAX glue: binarize + spatial pad producer, im2col (stride-2 only), avg pool
# --------------------------------------------------------------------------------------
def _binarize_pad(x, k, b):
    # BiSR per-channel redistribution + sign binarization; sign(tanh(z)) == sign(z).
    # {-1, 0, +1} is exact in bf16.  Zero spatial border (pad=1).
    z = x.astype(jnp.float32) * k.reshape(1, 1, 1, -1) + b.reshape(1, 1, 1, -1)
    xb = jnp.sign(z).astype(jnp.bfloat16)
    return jnp.pad(xb, ((0, 0), (1, 1), (1, 1), (0, 0)))


def _im2col_from_padded(xp, stride):
    B, Hp2, Wp2, C = xp.shape
    H, W = Hp2 - 2, Wp2 - 2
    Ho = (H - 1) // stride + 1
    Wo = (W - 1) // stride + 1
    cols = [xp[:, dy:dy + (Ho - 1) * stride + 1:stride,
               dx:dx + (Wo - 1) * stride + 1:stride, :]
            for dy in range(3) for dx in range(3)]
    patches = jnp.concatenate(cols, axis=-1).reshape(B * Ho * Wo, 9 * C)
    return patches, (Ho, Wo)


def avg_pool2(x):
    """2x2 average pool, stride 2, NHWC.  Fused by XLA into the next binarize producer."""
    B, H, W, C = x.shape
    return (x.reshape(B, H // 2, 2, W // 2, 2, C).astype(jnp.float32)
            .mean(axis=(2, 4)).astype(x.dtype))


# --------------------------------------------------------------------------------------
# Binary conv + BN (+ residual + RPReLU) wrapper
# --------------------------------------------------------------------------------------
def binary_conv_bn(x, p, stride, residual=None, rprelu=None):
    """x: (B, H, W, C_act) NHWC with C_act >= true Cin (extra channels are zero).
    Returns (B, Ho, Wo, Coutp) bf16 with Coutp = round_up(Cout, 128); channels
    [Cout:Coutp] are exactly zero, so the padded layout is carried between layers."""
    B, H, W, C_act = x.shape
    Wt = p['weight']                                     # torch layout (Cout, Cin, 3, 3)
    Cout, Cin = Wt.shape[0], Wt.shape[1]
    Coutp = _round_up(Cout, _LANE)

    # per-input-channel redistribution params (zero over the channel padding)
    k = _pad_vec(p['k'], C_act)
    b = _pad_vec(p['b'], C_act)

    # fold alpha = mean|W| into the BN scale; fold RPReLU gamma into the bias; zero-pad
    # every per-output-channel vector so the padded channels stay exactly zero.
    alpha = jnp.mean(jnp.abs(Wt), axis=(1, 2, 3))
    scale = _pad_vec(alpha * p['bn_scale'], Coutp)
    if residual is None:
        bias = _pad_vec(p['bn_bias'], Coutp)
        slope = zeta = None
    else:
        bias = _pad_vec(p['bn_bias'] - rprelu['gamma'], Coutp)
        slope = _pad_vec(rprelu['slope'], Coutp)
        zeta = _pad_vec(rprelu['zeta'], Coutp)

    # sign weights, tap-major layout (ky*3+kx, C_act, Coutp); +-1/0 exact in bf16.
    wtaps = jnp.transpose(jnp.sign(Wt), (2, 3, 1, 0)).reshape(9, Cin, Cout)
    wtaps = jnp.pad(wtaps, ((0, 0), (0, C_act - Cin), (0, Coutp - Cout))).astype(jnp.bfloat16)

    xb_pad = _binarize_pad(x, k, b)

    if stride == 1:
        return _conv3x3_s1(xb_pad, wtaps, scale, bias,
                           res=residual, slope=slope, zeta=zeta)

    # stride != 1: im2col + tiled GEMM (stage-0 stride-2 convs only; smallest Cin)
    patches, (Ho, Wo) = _im2col_from_padded(xb_pad, stride)
    wm = wtaps.reshape(9 * C_act, Coutp)
    res2d = None if residual is None else residual.reshape(B * Ho * Wo, Coutp)
    out = _bconv_gemm(patches, wm, scale, bias, res=res2d, slope=slope, zeta=zeta)
    return out.reshape(B, Ho, Wo, Coutp)


# --------------------------------------------------------------------------------------
# Blocks / backbone
# --------------------------------------------------------------------------------------
def basic_block(x, p, stride, has_downsample):
    identity = binary_conv_bn(x, p['down'], stride) if has_downsample else x
    out = binary_conv_bn(x, p['conv1'], stride, residual=identity, rprelu=p['rprelu1'])
    out = binary_conv_bn(out, p['conv2'], 1, residual=out, rprelu=p['rprelu2'])
    return out


def downsample_block(x, p):
    # i>0 stages: spatial /2 via avg-pool, binary convs at stride 1 (BiSRNet "Down").
    x_ds = avg_pool2(x)
    identity = binary_conv_bn(x_ds, p['down'], 1)
    out = binary_conv_bn(x_ds, p['conv1'], 1, residual=identity, rprelu=p['rprelu1'])
    out = binary_conv_bn(out, p['conv2'], 1, residual=out, rprelu=p['rprelu2'])
    return out


def binary_resnet_bisrnet_down(x_nchw, params, stride=(2, 2, 2)):
    """x_nchw: (B, C, H, W) -> list of NCHW feats at /2, /4, /8 with 2C, 4C, 8C chans."""
    x = jnp.transpose(x_nchw, (0, 2, 3, 1)).astype(jnp.float32)   # -> NHWC
    feats = []
    for i, layer in enumerate(params):
        for j, blk in enumerate(layer):
            if j == 0:
                if i == 0:
                    x = basic_block(x, blk, stride[i], has_downsample=True)
                else:
                    x = downsample_block(x, blk)
            else:
                x = basic_block(x, blk, 1, has_downsample=False)
        cout = layer[0]['conv2']['weight'].shape[0]
        feats.append(jnp.transpose(x[..., :cout], (0, 3, 1, 2)).astype(jnp.float32))
    return feats


# --------------------------------------------------------------------------------------
# Deterministic parameter init
# --------------------------------------------------------------------------------------
def init_conv_params(key, cin, cout):
    k1, k2, k3 = jax.random.split(key, 3)
    return dict(
        weight=0.1 * jax.random.normal(k1, (cout, cin, 3, 3), jnp.float32),
        k=1.0 + 0.01 * jax.random.normal(k2, (cin,), jnp.float32),
        b=0.01 * jax.random.normal(k3, (cin,), jnp.float32),
        bn_scale=jnp.ones((cout,), jnp.float32),
        bn_bias=jnp.zeros((cout,), jnp.float32),
    )


def init_rprelu(cout):
    return dict(gamma=jnp.zeros((cout,), jnp.float32),
                slope=jnp.full((cout,), 0.25, jnp.float32),
                zeta=jnp.zeros((cout,), jnp.float32))


def init_block(key, cin, cout, with_down):
    k1, k2, k3 = jax.random.split(key, 3)
    p = dict(conv1=init_conv_params(k1, cin, cout),
             conv2=init_conv_params(k2, cout, cout),
             rprelu1=init_rprelu(cout),
             rprelu2=init_rprelu(cout))
    if with_down:
        p['down'] = init_conv_params(k3, cin, cout)
    return p


def init_model_params(key, numC_input, num_layer=(2, 2, 2)):
    num_channels = [numC_input * 2 ** (i + 1) for i in range(len(num_layer))]
    params = []
    curr = numC_input
    for i in range(len(num_layer)):
        layer = []
        key, sub = jax.random.split(key)
        layer.append(init_block(sub, curr, num_channels[i], with_down=True))
        curr = num_channels[i]
        for _ in range(num_layer[i] - 1):
            key, sub = jax.random.split(key)
            layer.append(init_block(sub, curr, curr, with_down=False))
        params.append(layer)
    return params, num_channels


# --------------------------------------------------------------------------------------
if __name__ == "__main__":
    key = jax.random.PRNGKey(0)
    kx, kp = jax.random.split(key)
    B, C, H, W = 2, 4, 16, 16
    x = jax.random.normal(kx, (B, C, H, W), jnp.float32)
    params, _ = init_model_params(kp, C)

    fwd = jax.jit(binary_resnet_bisrnet_down)
    feats = fwd(x, params)
    feats = jax.block_until_ready(feats)

    expected = [(B, 2 * C, H // 2, W // 2),
                (B, 4 * C, H // 4, W // 4),
                (B, 8 * C, H // 8, W // 8)]
    for f, e in zip(feats, expected):
        assert tuple(f.shape) == e, (f.shape, e)
        assert f.dtype == jnp.float32
    print("KERNEL_OK")
</pallas_src>

<mosaic_0001>
module attributes {stable_mosaic.version = 11 : i64} {
  func.func @_gemm_bn_kernel(%arg0: i32, %arg1: memref<128x128xbf16, #tpu.memory_space<vmem>>, %arg2: memref<128x128xbf16, #tpu.memory_space<vmem>>, %arg3: memref<1x128xf32, #tpu.memory_space<vmem>>, %arg4: memref<1x128xf32, #tpu.memory_space<vmem>>, %arg5: memref<128x128xbf16, #tpu.memory_space<vmem>>) attributes {dimension_semantics = [#tpu.dimension_semantics<parallel>], iteration_bounds = array<i64: 1>, scalar_prefetch = 0 : i64, scratch_operands = 0 : i64, tpu.core_type = #tpu.core_type<tc>, window_params = [{transform_indices = @transform_0, window_bounds = array<i64: 128, 128>}, {pipeline_mode = #tpu.pipeline_mode<synchronous>, transform_indices = @transform_1, window_bounds = array<i64: 128, 128>}, {pipeline_mode = #tpu.pipeline_mode<synchronous>, transform_indices = @transform_2, window_bounds = array<i64: 1, 128>}, {pipeline_mode = #tpu.pipeline_mode<synchronous>, transform_indices = @transform_3, window_bounds = array<i64: 1, 128>}, {transform_indices = @transform_4, window_bounds = array<i64: 128, 128>}]} {
    %c0 = arith.constant 0 : index
    %c0_0 = arith.constant 0 : index
    %0 = vector.load %arg1[%c0, %c0_0] : memref<128x128xbf16, #tpu.memory_space<vmem>>, vector<128x128xbf16>
    %c0_1 = arith.constant 0 : index
    %c0_2 = arith.constant 0 : index
    %1 = vector.load %arg2[%c0_1, %c0_2] : memref<128x128xbf16, #tpu.memory_space<vmem>>, vector<128x128xbf16>
    %cst = arith.constant dense<0.000000e+00> : vector<128x128xf32>
    %2 = tpu.matmul %0, %1, %cst {dimension_numbers = #tpu.dot_dimension_numbers<[1], [0], [0], [1], [0, 0, 1, 1], [], []>} : vector<128x128xbf16>, vector<128x128xbf16>, vector<128x128xf32> -> vector<128x128xf32>
    %c0_3 = arith.constant 0 : index
    %c0_4 = arith.constant 0 : index
    %3 = vector.load %arg3[%c0_3, %c0_4] : memref<1x128xf32, #tpu.memory_space<vmem>>, vector<1x128xf32>
    %4 = vector.broadcast %3 : vector<1x128xf32> to vector<128x128xf32>
    %5 = arith.mulf %2, %4 : vector<128x128xf32>
    %c0_5 = arith.constant 0 : index
    %c0_6 = arith.constant 0 : index
    %6 = vector.load %arg4[%c0_5, %c0_6] : memref<1x128xf32, #tpu.memory_space<vmem>>, vector<1x128xf32>
    %7 = vector.broadcast %6 : vector<1x128xf32> to vector<128x128xf32>
    %8 = arith.addf %5, %7 : vector<128x128xf32>
    %9 = arith.truncf %8 : vector<128x128xf32> to vector<128x128xbf16>
    %c0_7 = arith.constant 0 : index
    %c0_8 = arith.constant 0 : index
    %10 = vector.load %arg5[%c0_7, %c0_8] : memref<128x128xbf16, #tpu.memory_space<vmem>>, vector<128x128xbf16>
    tpu.vector_store %arg5[%c0_7, %c0_8], %9 {strides = array<i32>} : memref<128x128xbf16, #tpu.memory_space<vmem>>, vector<128x128xbf16>,
    return
  }
  func.func @transform_0(%arg0: i32) -> (i32, i32) {
    %c0_i32 = arith.constant 0 : i32
    %c0_i32_0 = arith.constant 0 : i32
    return %arg0, %c0_i32 : i32, i32
  }
  func.func @transform_1(%arg0: i32) -> (i32, i32) {
    %c0_i32 = arith.constant 0 : i32
    %c0_i32_0 = arith.constant 0 : i32
    %c0_i32_1 = arith.constant 0 : i32
    return %c0_i32, %c0_i32_0 : i32, i32
  }
  func.func @transform_2(%arg0: i32) -> (i32, i32) {
    %c0_i32 = arith.constant 0 : i32
    %c0_i32_0 = arith.constant 0 : i32
    %c0_i32_1 = arith.constant 0 : i32
    return %c0_i32, %c0_i32_0 : i32, i32
  }
  func.func @transform_3(%arg0: i32) -> (i32, i32) {
    %c0_i32 = arith.constant 0 : i32
    %c0_i32_0 = arith.constant 0 : i32
    %c0_i32_1 = arith.constant 0 : i32
    return %c0_i32, %c0_i32_0 : i32, i32
  }
  func.func @transform_4(%arg0: i32) -> (i32, i32) {
    %c0_i32 = arith.constant 0 : i32
    %c0_i32_0 = arith.constant 0 : i32
    return %arg0, %c0_i32 : i32, i32
  }
}

module attributes {stable_mosaic.version = 11 : i64} {
  func.func @_gemm_bn_res_rprelu_kernel(%arg0: i32, %arg1: memref<128x128xbf16, #tpu.memory_space<vmem>>, %arg2: memref<128x128xbf16, #tpu.memory_space<vmem>>, %arg3: memref<1x128xf32, #tpu.memory_space<vmem>>, %arg4: memref<1x128xf32, #tpu.memory_space<vmem>>, %arg5: memref<128x128xbf16, #tpu.memory_space<vmem>>, %arg6: memref<1x128xf32, #tpu.memory_space<vmem>>, %arg7: memref<1x128xf32, #tpu.memory_space<vmem>>, %arg8: memref<128x128xbf16, #tpu.memory_space<vmem>>) attributes {dimension_semantics = [#tpu.dimension_semantics<parallel>], iteration_bounds = array<i64: 1>, scalar_prefetch = 0 : i64, scratch_operands = 0 : i64, tpu.core_type = #tpu.core_type<tc>, window_params = [{transform_indices = @transform_0, window_bounds = array<i64: 128, 128>}, {pipeline_mode = #tpu.pipeline_mode<synchronous>, transform_indices = @transform_1, window_bounds = array<i64: 128, 128>}, {pipeline_mode = #tpu.pipeline_mode<synchronous>, transform_indices = @transform_2, window_bounds = array<i64: 1, 128>}, {pipeline_mode = #tpu.pipeline_mode<synchronous>, transform_indices = @transform_3, window_bounds = array<i64: 1, 128>}, {transform_indices = @transform_4, window_bounds = array<i64: 128, 128>}, {pipeline_mode = #tpu.pipeline_mode<synchronous>, transform_indices = @transform_5, window_bounds = array<i64: 1, 128>}, {pipeline_mode = #tpu.pipeline_mode<synchronous>, transform_indices = @transform_6, window_bounds = array<i64: 1, 128>}, {transform_indices = @transform_7, window_bounds = array<i64: 128, 128>}]} {
    %c0 = arith.constant 0 : index
    %c0_0 = arith.constant 0 : index
    %0 = vector.load %arg1[%c0, %c0_0] : memref<128x128xbf16, #tpu.memory_space<vmem>>, vector<128x128xbf16>
    %c0_1 = arith.constant 0 : index
    %c0_2 = arith.constant 0 : index
    %1 = vector.load %arg2[%c0_1, %c0_2] : memref<128x128xbf16, #tpu.memory_space<vmem>>, vector<128x128xbf16>
    %cst = arith.constant dense<0.000000e+00> : vector<128x128xf32>
    %2 = tpu.matmul %0, %1, %cst {dimension_numbers = #tpu.dot_dimension_numbers<[1], [0], [0], [1], [0, 0, 1, 1], [], []>} : vector<128x128xbf16>, vector<128x128xbf16>, vector<128x128xf32> -> vector<128x128xf32>
    %c0_3 = arith.constant 0 : index
    %c0_4 = arith.constant 0 : index
    %3 = vector.load %arg3[%c0_3, %c0_4] : memref<1x128xf32, #tpu.memory_space<vmem>>, vector<1x128xf32>
    %4 = vector.broadcast %3 : vector<1x128xf32> to vector<128x128xf32>
    %5 = arith.mulf %2, %4 : vector<128x128xf32>
    %c0_5 = arith.constant 0 : index
    %c0_6 = arith.constant 0 : index
    %6 = vector.load %arg4[%c0_5, %c0_6] : memref<1x128xf32, #tpu.memory_space<vmem>>, vector<1x128xf32>
    %7 = vector.broadcast %6 : vector<1x128xf32> to vector<128x128xf32>
    %8 = arith.addf %5, %7 : vector<128x128xf32>
    %c0_7 = arith.constant 0 : index
    %c0_8 = arith.constant 0 : index
    %9 = vector.load %arg5[%c0_7, %c0_8] : memref<128x128xbf16, #tpu.memory_space<vmem>>, vector<128x128xbf16>
    %10 = arith.extf %9 : vector<128x128xbf16> to vector<128x128xf32>
    %11 = arith.addf %8, %10 : vector<128x128xf32>
    %cst_9 = arith.constant 0.000000e+00 : f32
    %12 = vector.broadcast %cst_9 : f32 to vector<128x128xf32>
    %13 = arith.cmpf ogt, %11, %12 : vector<128x128xf32>
    %c0_10 = arith.constant 0 : index
    %c0_11 = arith.constant 0 : index
    %14 = vector.load %arg6[%c0_10, %c0_11] : memref<1x128xf32, #tpu.memory_space<vmem>>, vector<1x128xf32>
    %15 = vector.broadcast %14 : vector<1x128xf32> to vector<128x128xf32>
    %16 = arith.mulf %15, %11 : vector<128x128xf32>
    %17 = arith.select %13, %11, %16 : vector<128x128xi1>, vector<128x128xf32>
    %c0_12 = arith.constant 0 : index
    %c0_13 = arith.constant 0 : index
    %18 = vector.load %arg7[%c0_12, %c0_13] : memref<1x128xf32, #tpu.memory_space<vmem>>, vector<1x128xf32>
    %19 = vector.broadcast %18 : vector<1x128xf32> to vector<128x128xf32>
    %20 = arith.addf %17, %19 : vector<128x128xf32>
    %21 = arith.truncf %20 : vector<128x128xf32> to vector<128x128xbf16>
    %c0_14 = arith.constant 0 : index
    %c0_15 = arith.constant 0 : index
    %22 = vector.load %arg8[%c0_14, %c0_15] : memref<128x128xbf16, #tpu.memory_space<vmem>>, vector<128x128xbf16>
    tpu.vector_store %arg8[%c0_14, %c0_15], %21 {strides = array<i32>} : memref<128x128xbf16, #tpu.memory_space<vmem>>, vector<128x128xbf16>,
    return
  }
  func.func @transform_0(%arg0: i32) -> (i32, i32) {
    %c0_i32 = arith.constant 0 : i32
    %c0_i32_0 = arith.constant 0 : i32
    return %arg0, %c0_i32 : i32, i32
  }
  func.func @transform_1(%arg0: i32) -> (i32, i32) {
    %c0_i32 = arith.constant 0 : i32
    %c0_i32_0 = arith.constant 0 : i32
    %c0_i32_1 = arith.constant 0 : i32
    return %c0_i32, %c0_i32_0 : i32, i32
  }
  func.func @transform_2(%arg0: i32) -> (i32, i32) {
    %c0_i32 = arith.constant 0 : i32
    %c0_i32_0 = arith.constant 0 : i32
    %c0_i32_1 = arith.constant 0 : i32
    return %c0_i32, %c0_i32_0 : i32, i32
  }
  func.func @transform_3(%arg0: i32) -> (i32, i32) {
    %c0_i32 = arith.constant 0 : i32
    %c0_i32_0 = arith.constant 0 : i32
    %c0_i32_1 = arith.constant 0 : i32
    return %c0_i32, %c0_i32_0 : i32, i32
  }
  func.func @transform_4(%arg0: i32) -> (i32, i32) {
    %c0_i32 = arith.constant 0 : i32
    %c0_i32_0 = arith.constant 0 : i32
    return %arg0, %c0_i32 : i32, i32
  }
  func.func @transform_5(%arg0: i32) -> (i32, i32) {
    %c0_i32 = arith.constant 0 : i32
    %c0_i32_0 = arith.constant 0 : i32
    %c0_i32_1 = arith.constant 0 : i32
    return %c0_i32, %c0_i32_0 : i32, i32
  }
  func.func @transform_6(%arg0: i32) -> (i32, i32) {
    %c0_i32 = arith.constant 0 : i32
    %c0_i32_0 = arith.constant 0 : i32
    %c0_i32_1 = arith.constant 0 : i32
    return %c0_i32, %c0_i32_0 : i32, i32
  }
  func.func @transform_7(%arg0: i32) -> (i32, i32) {
    %c0_i32 = arith.constant 0 : i32
    %c0_i32_0 = arith.constant 0 : i32
    return %arg0, %c0_i32 : i32, i32
  }
}

module attributes {stable_mosaic.version = 11 : i64} {
  func.func @_conv3x3_bn_res_rprelu_kernel(%arg0: i32, %arg1: i32, %arg2: memref<1x1x10x128xbf16, #tpu.memory_space<vmem>>, %arg3: memref<1x1x10x128xbf16, #tpu.memory_space<vmem>>, %arg4: memref<1x1x10x128xbf16, #tpu.memory_space<vmem>>, %arg5: memref<9x128x128xbf16, #tpu.memory_space<vmem>>, %arg6: memref<1x128xf32, #tpu.memory_space<vmem>>, %arg7: memref<1x128xf32, #tpu.memory_space<vmem>>, %arg8: memref<1x1x8x128xbf16, #tpu.memory_space<vmem>>, %arg9: memref<1x128xf32, #tpu.memory_space<vmem>>, %arg10: memref<1x128xf32, #tpu.memory_space<vmem>>, %arg11: memref<1x1x8x128xbf16, #tpu.memory_space<vmem>>) attributes {dimension_semantics = [#tpu.dimension_semantics<parallel>, #tpu.dimension_semantics<parallel>], iteration_bounds = array<i64: 2, 8>, scalar_prefetch = 0 : i64, scratch_operands = 0 : i64, tpu.core_type = #tpu.core_type<tc>, window_params = [{transform_indices = @transform_0, window_bounds = array<i64: 1, 1, 10, 128>}, {transform_indices = @transform_1, window_bounds = array<i64: 1, 1, 10, 128>}, {transform_indices = @transform_2, window_bounds = array<i64: 1, 1, 10, 128>}, {pipeline_mode = #tpu.pipeline_mode<synchronous>, transform_indices = @transform_3, window_bounds = array<i64: 9, 128, 128>}, {pipeline_mode = #tpu.pipeline_mode<synchronous>, transform_indices = @transform_4, window_bounds = array<i64: 1, 128>}, {pipeline_mode = #tpu.pipeline_mode<synchronous>, transform_indices = @transform_5, window_bounds = array<i64: 1, 128>}, {transform_indices = @transform_6, window_bounds = array<i64: 1, 1, 8, 128>}, {pipeline_mode = #tpu.pipeline_mode<synchronous>, transform_indices = @transform_7, window_bounds = array<i64: 1, 128>}, {pipeline_mode = #tpu.pipeline_mode<synchronous>, transform_indices = @transform_8, window_bounds = array<i64: 1, 128>}, {transform_indices = @transform_9, window_bounds = array<i64: 1, 1, 8, 128>}]} {
    %cst = arith.constant 0.000000e+00 : f32
    %0 = vector.broadcast %cst : f32 to vector<8x128xf32>
    %c0 = arith.constant 0 : index
    %c0_0 = arith.constant 0 : index
    %c0_1 = arith.constant 0 : index
    %c0_2 = arith.constant 0 : index
    %1 = vector.load %arg2[%c0, %c0_0, %c0_1, %c0_2] : memref<1x1x10x128xbf16, #tpu.memory_space<vmem>>, vector<1x1x10x128xbf16>
    %2 = vector.shape_cast %1 : vector<1x1x10x128xbf16> to vector<10x128xbf16>
    %3 = vector.extract_strided_slice %2 {offsets = [0, 0], sizes = [8, 128], strides = [1, 1]} : vector<10x128xbf16> to vector<8x128xbf16>
    %c0_3 = arith.constant 0 : index
    %c0_4 = arith.constant 0 : index
    %c0_5 = arith.constant 0 : index
    %4 = vector.load %arg5[%c0_3, %c0_4, %c0_5] : memref<9x128x128xbf16, #tpu.memory_space<vmem>>, vector<1x128x128xbf16>
    %5 = vector.shape_cast %4 : vector<1x128x128xbf16> to vector<128x128xbf16>
    %cst_6 = arith.constant dense<0.000000e+00> : vector<8x128xf32>
    %6 = tpu.matmul %3, %5, %cst_6 {dimension_numbers = #tpu.dot_dimension_numbers<[1], [0], [0], [1], [0, 0, 1, 1], [], []>} : vector<8x128xbf16>, vector<128x128xbf16>, vector<8x128xf32> -> vector<8x128xf32>
    %7 = arith.addf %0, %6 : vector<8x128xf32>
    %8 = vector.extract_strided_slice %2 {offsets = [1, 0], sizes = [8, 128], strides = [1, 1]} : vector<10x128xbf16> to vector<8x128xbf16>
    %c1 = arith.constant 1 : index
    %c0_7 = arith.constant 0 : index
    %c0_8 = arith.constant 0 : index
    %9 = vector.load %arg5[%c1, %c0_7, %c0_8] : memref<9x128x128xbf16, #tpu.memory_space<vmem>>, vector<1x128x128xbf16>
    %10 = vector.shape_cast %9 : vector<1x128x128xbf16> to vector<128x128xbf16>
    %cst_9 = arith.constant dense<0.000000e+00> : vector<8x128xf32>
    %11 = tpu.matmul %8, %10, %cst_9 {dimension_numbers = #tpu.dot_dimension_numbers<[1], [0], [0], [1], [0, 0, 1, 1], [], []>} : vector<8x128xbf16>, vector<128x128xbf16>, vector<8x128xf32> -> vector<8x128xf32>
    %12 = arith.addf %7, %11 : vector<8x128xf32>
    %13 = vector.extract_strided_slice %2 {offsets = [2, 0], sizes = [8, 128], strides = [1, 1]} : vector<10x128xbf16> to vector<8x128xbf16>
    %c2 = arith.constant 2 : index
    %c0_10 = arith.constant 0 : index
    %c0_11 = arith.constant 0 : index
    %14 = vector.load %arg5[%c2, %c0_10, %c0_11] : memref<9x128x128xbf16, #tpu.memory_space<vmem>>, vector<1x128x128xbf16>
    %15 = vector.shape_cast %14 : vector<1x128x128xbf16> to vector<128x128xbf16>
    %cst_12 = arith.constant dense<0.000000e+00> : vector<8x128xf32>
    %16 = tpu.matmul %13, %15, %cst_12 {dimension_numbers = #tpu.dot_dimension_numbers<[1], [0], [0], [1], [0, 0, 1, 1], [], []>} : vector<8x128xbf16>, vector<128x128xbf16>, vector<8x128xf32> -> vector<8x128xf32>
    %17 = arith.addf %12, %16 : vector<8x128xf32>
    %c0_13 = arith.constant 0 : index
    %c0_14 = arith.constant 0 : index
    %c0_15 = arith.constant 0 : index
    %c0_16 = arith.constant 0 : index
    %18 = vector.load %arg3[%c0_13, %c0_14, %c0_15, %c0_16] : memref<1x1x10x128xbf16, #tpu.memory_space<vmem>>, vector<1x1x10x128xbf16>
    %19 = vector.shape_cast %18 : vector<1x1x10x128xbf16> to vector<10x128xbf16>
    %20 = vector.extract_strided_slice %19 {offsets = [0, 0], sizes = [8, 128], strides = [1, 1]} : vector<10x128xbf16> to vector<8x128xbf16>
    %c3 = arith.constant 3 : index
    %c0_17 = arith.constant 0 : index
    %c0_18 = arith.constant 0 : index
    %21 = vector.load %arg5[%c3, %c0_17, %c0_18] : memref<9x128x128xbf16, #tpu.memory_space<vmem>>, vector<1x128x128xbf16>
    %22 = vector.shape_cast %21 : vector<1x128x128xbf16> to vector<128x128xbf16>
    %cst_19 = arith.constant dense<0.000000e+00> : vector<8x128xf32>
    %23 = tpu.matmul %20, %22, %cst_19 {dimension_numbers = #tpu.dot_dimension_numbers<[1], [0], [0], [1], [0, 0, 1, 1], [], []>} : vector<8x128xbf16>, vector<128x128xbf16>, vector<8x128xf32> -> vector<8x128xf32>
    %24 = arith.addf %17, %23 : vector<8x128xf32>
    %25 = vector.extract_strided_slice %19 {offsets = [1, 0], sizes = [8, 128], strides = [1, 1]} : vector<10x128xbf16> to vector<8x128xbf16>
    %c4 = arith.constant 4 : index
    %c0_20 = arith.constant 0 : index
    %c0_21 = arith.constant 0 : index
    %26 = vector.load %arg5[%c4, %c0_20, %c0_21] : memref<9x128x128xbf16, #tpu.memory_space<vmem>>, vector<1x128x128xbf16>
    %27 = vector.shape_cast %26 : vector<1x128x128xbf16> to vector<128x128xbf16>
    %cst_22 = arith.constant dense<0.000000e+00> : vector<8x128xf32>
    %28 = tpu.matmul %25, %27, %cst_22 {dimension_numbers = #tpu.dot_dimension_numbers<[1], [0], [0], [1], [0, 0, 1, 1], [], []>} : vector<8x128xbf16>, vector<128x128xbf16>, vector<8x128xf32> -> vector<8x128xf32>
    %29 = arith.addf %24, %28 : vector<8x128xf32>
    %30 = vector.extract_strided_slice %19 {offsets = [2, 0], sizes = [8, 128], strides = [1, 1]} : vector<10x128xbf16> to vector<8x128xbf16>
    %c5 = arith.constant 5 : index
    %c0_23 = arith.constant 0 : index
    %c0_24 = arith.constant 0 : index
    %31 = vector.load %arg5[%c5, %c0_23, %c0_24] : memref<9x128x128xbf16, #tpu.memory_space<vmem>>, vector<1x128x128xbf16>
    %32 = vector.shape_cast %31 : vector<1x128x128xbf16> to vector<128x128xbf16>
    %cst_25 = arith.constant dense<0.000000e+00> : vector<8x128xf32>
    %33 = tpu.matmul %30, %32, %cst_25 {dimension_numbers = #tpu.dot_dimension_numbers<[1], [0], [0], [1], [0, 0, 1, 1], [], []>} : vector<8x128xbf16>, vector<128x128xbf16>, vector<8x128xf32> -> vector<8x128xf32>
    %34 = arith.addf %29, %33 : vector<8x128xf32>
    %c0_26 = arith.constant 0 : index
    %c0_27 = arith.constant 0 : index
    %c0_28 = arith.constant 0 : index
    %c0_29 = arith.constant 0 : index
    %35 = vector.load %arg4[%c0_26, %c0_27, %c0_28, %c0_29] : memref<1x1x10x128xbf16, #tpu.memory_space<vmem>>, vector<1x1x10x128xbf16>
    %36 = vector.shape_cast %35 : vector<1x1x10x128xbf16> to vector<10x128xbf16>
    %37 = vector.extract_strided_slice %36 {offsets = [0, 0], sizes = [8, 128], strides = [1, 1]} : vector<10x128xbf16> to vector<8x128xbf16>
    %c6 = arith.constant 6 : index
    %c0_30 = arith.constant 0 : index
    %c0_31 = arith.constant 0 : index
    %38 = vector.load %arg5[%c6, %c0_30, %c0_31] : memref<9x128x128xbf16, #tpu.memory_space<vmem>>, vector<1x128x128xbf16>
    %39 = vector.shape_cast %38 : vector<1x128x128xbf16> to vector<128x128xbf16>
    %cst_32 = arith.constant dense<0.000000e+00> : vector<8x128xf32>
    %40 = tpu.matmul %37, %39, %cst_32 {dimension_numbers = #tpu.dot_dimension_numbers<[1], [0], [0], [1], [0, 0, 1, 1], [], []>} : vector<8x128xbf16>, vector<128x128xbf16>, vector<8x128xf32> -> vector<8x128xf32>
    %41 = arith.addf %34, %40 : vector<8x128xf32>
    %42 = vector.extract_strided_slice %36 {offsets = [1, 0], sizes = [8, 128], strides = [1, 1]} : vector<10x128xbf16> to vector<8x128xbf16>
    %c7 = arith.constant 7 : index
    %c0_33 = arith.constant 0 : index
    %c0_34 = arith.constant 0 : index
    %43 = vector.load %arg5[%c7, %c0_33, %c0_34] : memref<9x128x128xbf16, #tpu.memory_space<vmem>>, vector<1x128x128xbf16>
    %44 = vector.shape_cast %43 : vector<1x128x128xbf16> to vector<128x128xbf16>
    %cst_35 = arith.constant dense<0.000000e+00> : vector<8x128xf32>
    %45 = tpu.matmul %42, %44, %cst_35 {dimension_numbers = #tpu.dot_dimension_numbers<[1], [0], [0], [1], [0, 0, 1, 1], [], []>} : vector<8x128xbf16>, vector<128x128xbf16>, vector<8x128xf32> -> vector<8x128xf32>
    %46 = arith.addf %41, %45 : vector<8x128xf32>
    %47 = vector.extract_strided_slice %36 {offsets = [2, 0], sizes = [8, 128], strides = [1, 1]} : vector<10x128xbf16> to vector<8x128xbf16>
    %c8 = arith.constant 8 : index
    %c0_36 = arith.constant 0 : index
    %c0_37 = arith.constant 0 : index
    %48 = vector.load %arg5[%c8, %c0_36, %c0_37] : memref<9x128x128xbf16, #tpu.memory_space<vmem>>, vector<1x128x128xbf16>
    %49 = vector.shape_cast %48 : vector<1x128x128xbf16> to vector<128x128xbf16>
    %cst_38 = arith.constant dense<0.000000e+00> : vector<8x128xf32>
    %50 = tpu.matmul %47, %49, %cst_38 {dimension_numbers = #tpu.dot_dimension_numbers<[1], [0], [0], [1], [0, 0, 1, 1], [], []>} : vector<8x128xbf16>, vector<128x128xbf16>, vector<8x128xf32> -> vector<8x128xf32>
    %51 = arith.addf %46, %50 : vector<8x128xf32>
    %c0_39 = arith.constant 0 : index
    %c0_40 = arith.constant 0 : index
    %52 = vector.load %arg6[%c0_39, %c0_40] : memref<1x128xf32, #tpu.memory_space<vmem>>, vector<1x128xf32>
    %53 = vector.broadcast %52 : vector<1x128xf32> to vector<8x128xf32>
    %54 = arith.mulf %51, %53 : vector<8x128xf32>
    %c0_41 = arith.constant 0 : index
    %c0_42 = arith.constant 0 : index
    %55 = vector.load %arg7[%c0_41, %c0_42] : memref<1x128xf32, #tpu.memory_space<vmem>>, vector<1x128xf32>
    %56 = vector.broadcast %55 : vector<1x128xf32> to vector<8x128xf32>
    %57 = arith.addf %54, %56 : vector<8x128xf32>
    %c0_43 = arith.constant 0 : index
    %c0_44 = arith.constant 0 : index
    %c0_45 = arith.constant 0 : index
    %c0_46 = arith.constant 0 : index
    %58 = vector.load %arg8[%c0_43, %c0_44, %c0_45, %c0_46] : memref<1x1x8x128xbf16, #tpu.memory_space<vmem>>, vector<1x1x8x128xbf16>
    %59 = vector.shape_cast %58 : vector<1x1x8x128xbf16> to vector<8x128xbf16>
    %60 = arith.extf %59 : vector<8x128xbf16> to vector<8x128xf32>
    %61 = arith.addf %57, %60 : vector<8x128xf32>
    %cst_47 = arith.constant 0.000000e+00 : f32
    %62 = vector.broadcast %cst_47 : f32 to vector<8x128xf32>
    %63 = arith.cmpf ogt, %61, %62 : vector<8x128xf32>
    %c0_48 = arith.constant 0 : index
    %c0_49 = arith.constant 0 : index
    %64 = vector.load %arg9[%c0_48, %c0_49] : memref<1x128xf32, #tpu.memory_space<vmem>>, vector<1x128xf32>
    %65 = vector.broadcast %64 : vector<1x128xf32> to vector<8x128xf32>
    %66 = arith.mulf %65, %61 : vector<8x128xf32>
    %67 = arith.select %63, %61, %66 : vector<8x128xi1>, vector<8x128xf32>
    %c0_50 = arith.constant 0 : index
    %c0_51 = arith.constant 0 : index
    %68 = vector.load %arg10[%c0_50, %c0_51] : memref<1x128xf32, #tpu.memory_space<vmem>>, vector<1x128xf32>
    %69 = vector.broadcast %68 : vector<1x128xf32> to vector<8x128xf32>
    %70 = arith.addf %67, %69 : vector<8x128xf32>
    %71 = arith.truncf %70 : vector<8x128xf32> to vector<8x128xbf16>
    %c0_52 = arith.constant 0 : index
    %c0_53 = arith.constant 0 : index
    %c0_54 = arith.constant 0 : index
    %c0_55 = arith.constant 0 : index
    %72 = vector.load %arg11[%c0_52, %c0_53, %c0_54, %c0_55] : memref<1x1x8x128xbf16, #tpu.memory_space<vmem>>, vector<1x1x8x128xbf16>
    %73 = vector.shape_cast %72 : vector<1x1x8x128xbf16> to vector<8x128xbf16>
    %74 = vector.shape_cast %71 : vector<8x128xbf16> to vector<1x1x8x128xbf16>
    tpu.vector_store %arg11[%c0_52, %c0_53, %c0_54, %c0_55], %74 {strides = array<i32>} : memref<1x1x8x128xbf16, #tpu.memory_space<vmem>>, vector<1x1x8x128xbf16>,
    return
  }
  func.func @transform_0(%arg0: i32, %arg1: i32) -> (i32, i32, i32, i32) {
    %c0_i32 = arith.constant 0 : i32
    %0 = arith.addi %arg1, %c0_i32 : i32
    %c0_i32_0 = arith.constant 0 : i32
    %c0_i32_1 = arith.constant 0 : i32
    %c0_i32_2 = arith.constant 0 : i32
    return %arg0, %0, %c0_i32_0, %c0_i32_1 : i32, i32, i32, i32
  }
  func.func @transform_1(%arg0: i32, %arg1: i32) -> (i32, i32, i32, i32) {
    %c1_i32 = arith.constant 1 : i32
    %0 = arith.addi %arg1, %c1_i32 : i32
    %c0_i32 = arith.constant 0 : i32
    %c0_i32_0 = arith.constant 0 : i32
    %c0_i32_1 = arith.constant 0 : i32
    return %arg0, %0, %c0_i32, %c0_i32_0 : i32, i32, i32, i32
  }
  func.func @transform_2(%arg0: i32, %arg1: i32) -> (i32, i32, i32, i32) {
    %c2_i32 = arith.constant 2 : i32
    %0 = arith.addi %arg1, %c2_i32 : i32
    %c0_i32 = arith.constant 0 : i32
    %c0_i32_0 = arith.constant 0 : i32
    %c0_i32_1 = arith.constant 0 : i32
    return %arg0, %0, %c0_i32, %c0_i32_0 : i32, i32, i32, i32
  }
  func.func @transform_3(%arg0: i32, %arg1: i32) -> (i32, i32, i32) {
    %c0_i32 = arith.constant 0 : i32
    %c0_i32_0 = arith.constant 0 : i32
    %c0_i32_1 = arith.constant 0 : i32
    %c0_i32_2 = arith.constant 0 : i32
    return %c0_i32, %c0_i32_0, %c0_i32_1 : i32, i32, i32
  }
  func.func @transform_4(%arg0: i32, %arg1: i32) -> (i32, i32) {
    %c0_i32 = arith.constant 0 : i32
    %c0_i32_0 = arith.constant 0 : i32
    %c0_i32_1 = arith.constant 0 : i32
    return %c0_i32, %c0_i32_0 : i32, i32
  }
  func.func @transform_5(%arg0: i32, %arg1: i32) -> (i32, i32) {
    %c0_i32 = arith.constant 0 : i32
    %c0_i32_0 = arith.constant 0 : i32
    %c0_i32_1 = arith.constant 0 : i32
    return %c0_i32, %c0_i32_0 : i32, i32
  }
  func.func @transform_6(%arg0: i32, %arg1: i32) -> (i32, i32, i32, i32) {
    %c0_i32 = arith.constant 0 : i32
    %c0_i32_0 = arith.constant 0 : i32
    %c0_i32_1 = arith.constant 0 : i32
    return %arg0, %arg1, %c0_i32, %c0_i32_0 : i32, i32, i32, i32
  }
  func.func @transform_7(%arg0: i32, %arg1: i32) -> (i32, i32) {
    %c0_i32 = arith.constant 0 : i32
    %c0_i32_0 = arith.constant 0 : i32
    %c0_i32_1 = arith.constant 0 : i32
    return %c0_i32, %c0_i32_0 : i32, i32
  }
  func.func @transform_8(%arg0: i32, %arg1: i32) -> (i32, i32) {
    %c0_i32 = arith.constant 0 : i32
    %c0_i32_0 = arith.constant 0 : i32
    %c0_i32_1 = arith.constant 0 : i32
    return %c0_i32, %c0_i32_0 : i32, i32
  }
  func.func @transform_9(%arg0: i32, %arg1: i32) -> (i32, i32, i32, i32) {
    %c0_i32 = arith.constant 0 : i32
    %c0_i32_0 = arith.constant 0 : i32
    %c0_i32_1 = arith.constant 0 : i32
    return %arg0, %arg1, %c0_i32, %c0_i32_0 : i32, i32, i32, i32
  }
}

module attributes {stable_mosaic.version = 11 : i64} {
  func.func @_conv3x3_bn_kernel(%arg0: i32, %arg1: i32, %arg2: memref<1x1x6x128xbf16, #tpu.memory_space<vmem>>, %arg3: memref<1x1x6x128xbf16, #tpu.memory_space<vmem>>, %arg4: memref<1x1x6x128xbf16, #tpu.memory_space<vmem>>, %arg5: memref<9x128x128xbf16, #tpu.memory_space<vmem>>, %arg6: memref<1x128xf32, #tpu.memory_space<vmem>>, %arg7: memref<1x128xf32, #tpu.memory_space<vmem>>, %arg8: memref<1x1x4x128xbf16, #tpu.memory_space<vmem>>) attributes {dimension_semantics = [#tpu.dimension_semantics<parallel>, #tpu.dimension_semantics<parallel>], iteration_bounds = array<i64: 2, 4>, scalar_prefetch = 0 : i64, scratch_operands = 0 : i64, tpu.core_type = #tpu.core_type<tc>, window_params = [{transform_indices = @transform_0, window_bounds = array<i64: 1, 1, 6, 128>}, {transform_indices = @transform_1, window_bounds = array<i64: 1, 1, 6, 128>}, {transform_indices = @transform_2, window_bounds = array<i64: 1, 1, 6, 128>}, {pipeline_mode = #tpu.pipeline_mode<synchronous>, transform_indices = @transform_3, window_bounds = array<i64: 9, 128, 128>}, {pipeline_mode = #tpu.pipeline_mode<synchronous>, transform_indices = @transform_4, window_bounds = array<i64: 1, 128>}, {pipeline_mode = #tpu.pipeline_mode<synchronous>, transform_indices = @transform_5, window_bounds = array<i64: 1, 128>}, {transform_indices = @transform_6, window_bounds = array<i64: 1, 1, 4, 128>}]} {
    %cst = arith.constant 0.000000e+00 : f32
    %0 = vector.broadcast %cst : f32 to vector<4x128xf32>
    %c0 = arith.constant 0 : index
    %c0_0 = arith.constant 0 : index
    %c0_1 = arith.constant 0 : index
    %c0_2 = arith.constant 0 : index
    %1 = vector.load %arg2[%c0, %c0_0, %c0_1, %c0_2] : memref<1x1x6x128xbf16, #tpu.memory_space<vmem>>, vector<1x1x6x128xbf16>
    %2 = vector.shape_cast %1 : vector<1x1x6x128xbf16> to vector<6x128xbf16>
    %3 = vector.extract_strided_slice %2 {offsets = [0, 0], sizes = [4, 128], strides = [1, 1]} : vector<6x128xbf16> to vector<4x128xbf16>
    %c0_3 = arith.constant 0 : index
    %c0_4 = arith.constant 0 : index
    %c0_5 = arith.constant 0 : index
    %4 = vector.load %arg5[%c0_3, %c0_4, %c0_5] : memref<9x128x128xbf16, #tpu.memory_space<vmem>>, vector<1x128x128xbf16>
    %5 = vector.shape_cast %4 : vector<1x128x128xbf16> to vector<128x128xbf16>
    %cst_6 = arith.constant dense<0.000000e+00> : vector<4x128xf32>
    %6 = tpu.matmul %3, %5, %cst_6 {dimension_numbers = #tpu.dot_dimension_numbers<[1], [0], [0], [1], [0, 0, 1, 1], [], []>} : vector<4x128xbf16>, vector<128x128xbf16>, vector<4x128xf32> -> vector<4x128xf32>
    %7 = arith.addf %0, %6 : vector<4x128xf32>
    %8 = vector.extract_strided_slice %2 {offsets = [1, 0], sizes = [4, 128], strides = [1, 1]} : vector<6x128xbf16> to vector<4x128xbf16>
    %c1 = arith.constant 1 : index
    %c0_7 = arith.constant 0 : index
    %c0_8 = arith.constant 0 : index
    %9 = vector.load %arg5[%c1, %c0_7, %c0_8] : memref<9x128x128xbf16, #tpu.memory_space<vmem>>, vector<1x128x128xbf16>
    %10 = vector.shape_cast %9 : vector<1x128x128xbf16> to vector<128x128xbf16>
    %cst_9 = arith.constant dense<0.000000e+00> : vector<4x128xf32>
    %11 = tpu.matmul %8, %10, %cst_9 {dimension_numbers = #tpu.dot_dimension_numbers<[1], [0], [0], [1], [0, 0, 1, 1], [], []>} : vector<4x128xbf16>, vector<128x128xbf16>, vector<4x128xf32> -> vector<4x128xf32>
    %12 = arith.addf %7, %11 : vector<4x128xf32>
    %13 = vector.extract_strided_slice %2 {offsets = [2, 0], sizes = [4, 128], strides = [1, 1]} : vector<6x128xbf16> to vector<4x128xbf16>
    %c2 = arith.constant 2 : index
    %c0_10 = arith.constant 0 : index
    %c0_11 = arith.constant 0 : index
    %14 = vector.load %arg5[%c2, %c0_10, %c0_11] : memref<9x128x128xbf16, #tpu.memory_space<vmem>>, vector<1x128x128xbf16>
    %15 = vector.shape_cast %14 : vector<1x128x128xbf16> to vector<128x128xbf16>
    %cst_12 = arith.constant dense<0.000000e+00> : vector<4x128xf32>
    %16 = tpu.matmul %13, %15, %cst_12 {dimension_numbers = #tpu.dot_dimension_numbers<[1], [0], [0], [1], [0, 0, 1, 1], [], []>} : vector<4x128xbf16>, vector<128x128xbf16>, vector<4x128xf32> -> vector<4x128xf32>
    %17 = arith.addf %12, %16 : vector<4x128xf32>
    %c0_13 = arith.constant 0 : index
    %c0_14 = arith.constant 0 : index
    %c0_15 = arith.constant 0 : index
    %c0_16 = arith.constant 0 : index
    %18 = vector.load %arg3[%c0_13, %c0_14, %c0_15, %c0_16] : memref<1x1x6x128xbf16, #tpu.memory_space<vmem>>, vector<1x1x6x128xbf16>
    %19 = vector.shape_cast %18 : vector<1x1x6x128xbf16> to vector<6x128xbf16>
    %20 = vector.extract_strided_slice %19 {offsets = [0, 0], sizes = [4, 128], strides = [1, 1]} : vector<6x128xbf16> to vector<4x128xbf16>
    %c3 = arith.constant 3 : index
    %c0_17 = arith.constant 0 : index
    %c0_18 = arith.constant 0 : index
    %21 = vector.load %arg5[%c3, %c0_17, %c0_18] : memref<9x128x128xbf16, #tpu.memory_space<vmem>>, vector<1x128x128xbf16>
    %22 = vector.shape_cast %21 : vector<1x128x128xbf16> to vector<128x128xbf16>
    %cst_19 = arith.constant dense<0.000000e+00> : vector<4x128xf32>
    %23 = tpu.matmul %20, %22, %cst_19 {dimension_numbers = #tpu.dot_dimension_numbers<[1], [0], [0], [1], [0, 0, 1, 1], [], []>} : vector<4x128xbf16>, vector<128x128xbf16>, vector<4x128xf32> -> vector<4x128xf32>
    %24 = arith.addf %17, %23 : vector<4x128xf32>
    %25 = vector.extract_strided_slice %19 {offsets = [1, 0], sizes = [4, 128], strides = [1, 1]} : vector<6x128xbf16> to vector<4x128xbf16>
    %c4 = arith.constant 4 : index
    %c0_20 = arith.constant 0 : index
    %c0_21 = arith.constant 0 : index
    %26 = vector.load %arg5[%c4, %c0_20, %c0_21] : memref<9x128x128xbf16, #tpu.memory_space<vmem>>, vector<1x128x128xbf16>
    %27 = vector.shape_cast %26 : vector<1x128x128xbf16> to vector<128x128xbf16>
    %cst_22 = arith.constant dense<0.000000e+00> : vector<4x128xf32>
    %28 = tpu.matmul %25, %27, %cst_22 {dimension_numbers = #tpu.dot_dimension_numbers<[1], [0], [0], [1], [0, 0, 1, 1], [], []>} : vector<4x128xbf16>, vector<128x128xbf16>, vector<4x128xf32> -> vector<4x128xf32>
    %29 = arith.addf %24, %28 : vector<4x128xf32>
    %30 = vector.extract_strided_slice %19 {offsets = [2, 0], sizes = [4, 128], strides = [1, 1]} : vector<6x128xbf16> to vector<4x128xbf16>
    %c5 = arith.constant 5 : index
    %c0_23 = arith.constant 0 : index
    %c0_24 = arith.constant 0 : index
    %31 = vector.load %arg5[%c5, %c0_23, %c0_24] : memref<9x128x128xbf16, #tpu.memory_space<vmem>>, vector<1x128x128xbf16>
    %32 = vector.shape_cast %31 : vector<1x128x128xbf16> to vector<128x128xbf16>
    %cst_25 = arith.constant dense<0.000000e+00> : vector<4x128xf32>
    %33 = tpu.matmul %30, %32, %cst_25 {dimension_numbers = #tpu.dot_dimension_numbers<[1], [0], [0], [1], [0, 0, 1, 1], [], []>} : vector<4x128xbf16>, vector<128x128xbf16>, vector<4x128xf32> -> vector<4x128xf32>
    %34 = arith.addf %29, %33 : vector<4x128xf32>
    %c0_26 = arith.constant 0 : index
    %c0_27 = arith.constant 0 : index
    %c0_28 = arith.constant 0 : index
    %c0_29 = arith.constant 0 : index
    %35 = vector.load %arg4[%c0_26, %c0_27, %c0_28, %c0_29] : memref<1x1x6x128xbf16, #tpu.memory_space<vmem>>, vector<1x1x6x128xbf16>
    %36 = vector.shape_cast %35 : vector<1x1x6x128xbf16> to vector<6x128xbf16>
    %37 = vector.extract_strided_slice %36 {offsets = [0, 0], sizes = [4, 128], strides = [1, 1]} : vector<6x128xbf16> to vector<4x128xbf16>
    %c6 = arith.constant 6 : index
    %c0_30 = arith.constant 0 : index
    %c0_31 = arith.constant 0 : index
    %38 = vector.load %arg5[%c6, %c0_30, %c0_31] : memref<9x128x128xbf16, #tpu.memory_space<vmem>>, vector<1x128x128xbf16>
    %39 = vector.shape_cast %38 : vector<1x128x128xbf16> to vector<128x128xbf16>
    %cst_32 = arith.constant dense<0.000000e+00> : vector<4x128xf32>
    %40 = tpu.matmul %37, %39, %cst_32 {dimension_numbers = #tpu.dot_dimension_numbers<[1], [0], [0], [1], [0, 0, 1, 1], [], []>} : vector<4x128xbf16>, vector<128x128xbf16>, vector<4x128xf32> -> vector<4x128xf32>
    %41 = arith.addf %34, %40 : vector<4x128xf32>
    %42 = vector.extract_strided_slice %36 {offsets = [1, 0], sizes = [4, 128], strides = [1, 1]} : vector<6x128xbf16> to vector<4x128xbf16>
    %c7 = arith.constant 7 : index
    %c0_33 = arith.constant 0 : index
    %c0_34 = arith.constant 0 : index
    %43 = vector.load %arg5[%c7, %c0_33, %c0_34] : memref<9x128x128xbf16, #tpu.memory_space<vmem>>, vector<1x128x128xbf16>
    %44 = vector.shape_cast %43 : vector<1x128x128xbf16> to vector<128x128xbf16>
    %cst_35 = arith.constant dense<0.000000e+00> : vector<4x128xf32>
    %45 = tpu.matmul %42, %44, %cst_35 {dimension_numbers = #tpu.dot_dimension_numbers<[1], [0], [0], [1], [0, 0, 1, 1], [], []>} : vector<4x128xbf16>, vector<128x128xbf16>, vector<4x128xf32> -> vector<4x128xf32>
    %46 = arith.addf %41, %45 : vector<4x128xf32>
    %47 = vector.extract_strided_slice %36 {offsets = [2, 0], sizes = [4, 128], strides = [1, 1]} : vector<6x128xbf16> to vector<4x128xbf16>
    %c8 = arith.constant 8 : index
    %c0_36 = arith.constant 0 : index
    %c0_37 = arith.constant 0 : index
    %48 = vector.load %arg5[%c8, %c0_36, %c0_37] : memref<9x128x128xbf16, #tpu.memory_space<vmem>>, vector<1x128x128xbf16>
    %49 = vector.shape_cast %48 : vector<1x128x128xbf16> to vector<128x128xbf16>
    %cst_38 = arith.constant dense<0.000000e+00> : vector<4x128xf32>
    %50 = tpu.matmul %47, %49, %cst_38 {dimension_numbers = #tpu.dot_dimension_numbers<[1], [0], [0], [1], [0, 0, 1, 1], [], []>} : vector<4x128xbf16>, vector<128x128xbf16>, vector<4x128xf32> -> vector<4x128xf32>
    %51 = arith.addf %46, %50 : vector<4x128xf32>
    %c0_39 = arith.constant 0 : index
    %c0_40 = arith.constant 0 : index
    %52 = vector.load %arg6[%c0_39, %c0_40] : memref<1x128xf32, #tpu.memory_space<vmem>>, vector<1x128xf32>
    %53 = vector.broadcast %52 : vector<1x128xf32> to vector<4x128xf32>
    %54 = arith.mulf %51, %53 : vector<4x128xf32>
    %c0_41 = arith.constant 0 : index
    %c0_42 = arith.constant 0 : index
    %55 = vector.load %arg7[%c0_41, %c0_42] : memref<1x128xf32, #tpu.memory_space<vmem>>, vector<1x128xf32>
    %56 = vector.broadcast %55 : vector<1x128xf32> to vector<4x128xf32>
    %57 = arith.addf %54, %56 : vector<4x128xf32>
    %58 = arith.truncf %57 : vector<4x128xf32> to vector<4x128xbf16>
    %c0_43 = arith.constant 0 : index
    %c0_44 = arith.constant 0 : index
    %c0_45 = arith.constant 0 : index
    %c0_46 = arith.constant 0 : index
    %59 = vector.load %arg8[%c0_43, %c0_44, %c0_45, %c0_46] : memref<1x1x4x128xbf16, #tpu.memory_space<vmem>>, vector<1x1x4x128xbf16>
    %60 = vector.shape_cast %59 : vector<1x1x4x128xbf16> to vector<4x128xbf16>
    %61 = vector.shape_cast %58 : vector<4x128xbf16> to vector<1x1x4x128xbf16>
    tpu.vector_store %arg8[%c0_43, %c0_44, %c0_45, %c0_46], %61 {strides = array<i32>} : memref<1x1x4x128xbf16, #tpu.memory_space<vmem>>, vector<1x1x4x128xbf16>,
    return
  }
  func.func @transform_0(%arg0: i32, %arg1: i32) -> (i32, i32, i32, i32) {
    %c0_i32 = arith.constant 0 : i32
    %0 = arith.addi %arg1, %c0_i32 : i32
    %c0_i32_0 = arith.constant 0 : i32
    %c0_i32_1 = arith.constant 0 : i32
    %c0_i32_2 = arith.constant 0 : i32
    return %arg0, %0, %c0_i32_0, %c0_i32_1 : i32, i32, i32, i32
  }
  func.func @transform_1(%arg0: i32, %arg1: i32) -> (i32, i32, i32, i32) {
    %c1_i32 = arith.constant 1 : i32
    %0 = arith.addi %arg1, %c1_i32 : i32
    %c0_i32 = arith.constant 0 : i32
    %c0_i32_0 = arith.constant 0 : i32
    %c0_i32_1 = arith.constant 0 : i32
    return %arg0, %0, %c0_i32, %c0_i32_0 : i32, i32, i32, i32
  }
  func.func @transform_2(%arg0: i32, %arg1: i32) -> (i32, i32, i32, i32) {
    %c2_i32 = arith.constant 2 : i32
    %0 = arith.addi %arg1, %c2_i32 : i32
    %c0_i32 = arith.constant 0 : i32
    %c0_i32_0 = arith.constant 0 : i32
    %c0_i32_1 = arith.constant 0 : i32
    return %arg0, %0, %c0_i32, %c0_i32_0 : i32, i32, i32, i32
  }
  func.func @transform_3(%arg0: i32, %arg1: i32) -> (i32, i32, i32) {
    %c0_i32 = arith.constant 0 : i32
    %c0_i32_0 = arith.constant 0 : i32
    %c0_i32_1 = arith.constant 0 : i32
    %c0_i32_2 = arith.constant 0 : i32
    return %c0_i32, %c0_i32_0, %c0_i32_1 : i32, i32, i32
  }
  func.func @transform_4(%arg0: i32, %arg1: i32) -> (i32, i32) {
    %c0_i32 = arith.constant 0 : i32
    %c0_i32_0 = arith.constant 0 : i32
    %c0_i32_1 = arith.constant 0 : i32
    return %c0_i32, %c0_i32_0 : i32, i32
  }
  func.func @transform_5(%arg0: i32, %arg1: i32) -> (i32, i32) {
    %c0_i32 = arith.constant 0 : i32
    %c0_i32_0 = arith.constant 0 : i32
    %c0_i32_1 = arith.constant 0 : i32
    return %c0_i32, %c0_i32_0 : i32, i32
  }
  func.func @transform_6(%arg0: i32, %arg1: i32) -> (i32, i32, i32, i32) {
    %c0_i32 = arith.constant 0 : i32
    %c0_i32_0 = arith.constant 0 : i32
    %c0_i32_1 = arith.constant 0 : i32
    return %arg0, %arg1, %c0_i32, %c0_i32_0 : i32, i32, i32, i32
  }
}

module attributes {stable_mosaic.version = 11 : i64} {
  func.func @_conv3x3_bn_res_rprelu_kernel(%arg0: i32, %arg1: i32, %arg2: memref<1x1x6x128xbf16, #tpu.memory_space<vmem>>, %arg3: memref<1x1x6x128xbf16, #tpu.memory_space<vmem>>, %arg4: memref<1x1x6x128xbf16, #tpu.memory_space<vmem>>, %arg5: memref<9x128x128xbf16, #tpu.memory_space<vmem>>, %arg6: memref<1x128xf32, #tpu.memory_space<vmem>>, %arg7: memref<1x128xf32, #tpu.memory_space<vmem>>, %arg8: memref<1x1x4x128xbf16, #tpu.memory_space<vmem>>, %arg9: memref<1x128xf32, #tpu.memory_space<vmem>>, %arg10: memref<1x128xf32, #tpu.memory_space<vmem>>, %arg11: memref<1x1x4x128xbf16, #tpu.memory_space<vmem>>) attributes {dimension_semantics = [#tpu.dimension_semantics<parallel>, #tpu.dimension_semantics<parallel>], iteration_bounds = array<i64: 2, 4>, scalar_prefetch = 0 : i64, scratch_operands = 0 : i64, tpu.core_type = #tpu.core_type<tc>, window_params = [{transform_indices = @transform_0, window_bounds = array<i64: 1, 1, 6, 128>}, {transform_indices = @transform_1, window_bounds = array<i64: 1, 1, 6, 128>}, {transform_indices = @transform_2, window_bounds = array<i64: 1, 1, 6, 128>}, {pipeline_mode = #tpu.pipeline_mode<synchronous>, transform_indices = @transform_3, window_bounds = array<i64: 9, 128, 128>}, {pipeline_mode = #tpu.pipeline_mode<synchronous>, transform_indices = @transform_4, window_bounds = array<i64: 1, 128>}, {pipeline_mode = #tpu.pipeline_mode<synchronous>, transform_indices = @transform_5, window_bounds = array<i64: 1, 128>}, {transform_indices = @transform_6, window_bounds = array<i64: 1, 1, 4, 128>}, {pipeline_mode = #tpu.pipeline_mode<synchronous>, transform_indices = @transform_7, window_bounds = array<i64: 1, 128>}, {pipeline_mode = #tpu.pipeline_mode<synchronous>, transform_indices = @transform_8, window_bounds = array<i64: 1, 128>}, {transform_indices = @transform_9, window_bounds = array<i64: 1, 1, 4, 128>}]} {
    %cst = arith.constant 0.000000e+00 : f32
    %0 = vector.broadcast %cst : f32 to vector<4x128xf32>
    %c0 = arith.constant 0 : index
    %c0_0 = arith.constant 0 : index
    %c0_1 = arith.constant 0 : index
    %c0_2 = arith.constant 0 : index
    %1 = vector.load %arg2[%c0, %c0_0, %c0_1, %c0_2] : memref<1x1x6x128xbf16, #tpu.memory_space<vmem>>, vector<1x1x6x128xbf16>
    %2 = vector.shape_cast %1 : vector<1x1x6x128xbf16> to vector<6x128xbf16>
    %3 = vector.extract_strided_slice %2 {offsets = [0, 0], sizes = [4, 128], strides = [1, 1]} : vector<6x128xbf16> to vector<4x128xbf16>
    %c0_3 = arith.constant 0 : index
    %c0_4 = arith.constant 0 : index
    %c0_5 = arith.constant 0 : index
    %4 = vector.load %arg5[%c0_3, %c0_4, %c0_5] : memref<9x128x128xbf16, #tpu.memory_space<vmem>>, vector<1x128x128xbf16>
    %5 = vector.shape_cast %4 : vector<1x128x128xbf16> to vector<128x128xbf16>
    %cst_6 = arith.constant dense<0.000000e+00> : vector<4x128xf32>
    %6 = tpu.matmul %3, %5, %cst_6 {dimension_numbers = #tpu.dot_dimension_numbers<[1], [0], [0], [1], [0, 0, 1, 1], [], []>} : vector<4x128xbf16>, vector<128x128xbf16>, vector<4x128xf32> -> vector<4x128xf32>
    %7 = arith.addf %0, %6 : vector<4x128xf32>
    %8 = vector.extract_strided_slice %2 {offsets = [1, 0], sizes = [4, 128], strides = [1, 1]} : vector<6x128xbf16> to vector<4x128xbf16>
    %c1 = arith.constant 1 : index
    %c0_7 = arith.constant 0 : index
    %c0_8 = arith.constant 0 : index
    %9 = vector.load %arg5[%c1, %c0_7, %c0_8] : memref<9x128x128xbf16, #tpu.memory_space<vmem>>, vector<1x128x128xbf16>
    %10 = vector.shape_cast %9 : vector<1x128x128xbf16> to vector<128x128xbf16>
    %cst_9 = arith.constant dense<0.000000e+00> : vector<4x128xf32>
    %11 = tpu.matmul %8, %10, %cst_9 {dimension_numbers = #tpu.dot_dimension_numbers<[1], [0], [0], [1], [0, 0, 1, 1], [], []>} : vector<4x128xbf16>, vector<128x128xbf16>, vector<4x128xf32> -> vector<4x128xf32>
    %12 = arith.addf %7, %11 : vector<4x128xf32>
    %13 = vector.extract_strided_slice %2 {offsets = [2, 0], sizes = [4, 128], strides = [1, 1]} : vector<6x128xbf16> to vector<4x128xbf16>
    %c2 = arith.constant 2 : index
    %c0_10 = arith.constant 0 : index
    %c0_11 = arith.constant 0 : index
    %14 = vector.load %arg5[%c2, %c0_10, %c0_11] : memref<9x128x128xbf16, #tpu.memory_space<vmem>>, vector<1x128x128xbf16>
    %15 = vector.shape_cast %14 : vector<1x128x128xbf16> to vector<128x128xbf16>
    %cst_12 = arith.constant dense<0.000000e+00> : vector<4x128xf32>
    %16 = tpu.matmul %13, %15, %cst_12 {dimension_numbers = #tpu.dot_dimension_numbers<[1], [0], [0], [1], [0, 0, 1, 1], [], []>} : vector<4x128xbf16>, vector<128x128xbf16>, vector<4x128xf32> -> vector<4x128xf32>
    %17 = arith.addf %12, %16 : vector<4x128xf32>
    %c0_13 = arith.constant 0 : index
    %c0_14 = arith.constant 0 : index
    %c0_15 = arith.constant 0 : index
    %c0_16 = arith.constant 0 : index
    %18 = vector.load %arg3[%c0_13, %c0_14, %c0_15, %c0_16] : memref<1x1x6x128xbf16, #tpu.memory_space<vmem>>, vector<1x1x6x128xbf16>
    %19 = vector.shape_cast %18 : vector<1x1x6x128xbf16> to vector<6x128xbf16>
    %20 = vector.extract_strided_slice %19 {offsets = [0, 0], sizes = [4, 128], strides = [1, 1]} : vector<6x128xbf16> to vector<4x128xbf16>
    %c3 = arith.constant 3 : index
    %c0_17 = arith.constant 0 : index
    %c0_18 = arith.constant 0 : index
    %21 = vector.load %arg5[%c3, %c0_17, %c0_18] : memref<9x128x128xbf16, #tpu.memory_space<vmem>>, vector<1x128x128xbf16>
    %22 = vector.shape_cast %21 : vector<1x128x128xbf16> to vector<128x128xbf16>
    %cst_19 = arith.constant dense<0.000000e+00> : vector<4x128xf32>
    %23 = tpu.matmul %20, %22, %cst_19 {dimension_numbers = #tpu.dot_dimension_numbers<[1], [0], [0], [1], [0, 0, 1, 1], [], []>} : vector<4x128xbf16>, vector<128x128xbf16>, vector<4x128xf32> -> vector<4x128xf32>
    %24 = arith.addf %17, %23 : vector<4x128xf32>
    %25 = vector.extract_strided_slice %19 {offsets = [1, 0], sizes = [4, 128], strides = [1, 1]} : vector<6x128xbf16> to vector<4x128xbf16>
    %c4 = arith.constant 4 : index
    %c0_20 = arith.constant 0 : index
    %c0_21 = arith.constant 0 : index
    %26 = vector.load %arg5[%c4, %c0_20, %c0_21] : memref<9x128x128xbf16, #tpu.memory_space<vmem>>, vector<1x128x128xbf16>
    %27 = vector.shape_cast %26 : vector<1x128x128xbf16> to vector<128x128xbf16>
    %cst_22 = arith.constant dense<0.000000e+00> : vector<4x128xf32>
    %28 = tpu.matmul %25, %27, %cst_22 {dimension_numbers = #tpu.dot_dimension_numbers<[1], [0], [0], [1], [0, 0, 1, 1], [], []>} : vector<4x128xbf16>, vector<128x128xbf16>, vector<4x128xf32> -> vector<4x128xf32>
    %29 = arith.addf %24, %28 : vector<4x128xf32>
    %30 = vector.extract_strided_slice %19 {offsets = [2, 0], sizes = [4, 128], strides = [1, 1]} : vector<6x128xbf16> to vector<4x128xbf16>
    %c5 = arith.constant 5 : index
    %c0_23 = arith.constant 0 : index
    %c0_24 = arith.constant 0 : index
    %31 = vector.load %arg5[%c5, %c0_23, %c0_24] : memref<9x128x128xbf16, #tpu.memory_space<vmem>>, vector<1x128x128xbf16>
    %32 = vector.shape_cast %31 : vector<1x128x128xbf16> to vector<128x128xbf16>
    %cst_25 = arith.constant dense<0.000000e+00> : vector<4x128xf32>
    %33 = tpu.matmul %30, %32, %cst_25 {dimension_numbers = #tpu.dot_dimension_numbers<[1], [0], [0], [1], [0, 0, 1, 1], [], []>} : vector<4x128xbf16>, vector<128x128xbf16>, vector<4x128xf32> -> vector<4x128xf32>
    %34 = arith.addf %29, %33 : vector<4x128xf32>
    %c0_26 = arith.constant 0 : index
    %c0_27 = arith.constant 0 : index
    %c0_28 = arith.constant 0 : index
    %c0_29 = arith.constant 0 : index
    %35 = vector.load %arg4[%c0_26, %c0_27, %c0_28, %c0_29] : memref<1x1x6x128xbf16, #tpu.memory_space<vmem>>, vector<1x1x6x128xbf16>
    %36 = vector.shape_cast %35 : vector<1x1x6x128xbf16> to vector<6x128xbf16>
    %37 = vector.extract_strided_slice %36 {offsets = [0, 0], sizes = [4, 128], strides = [1, 1]} : vector<6x128xbf16> to vector<4x128xbf16>
    %c6 = arith.constant 6 : index
    %c0_30 = arith.constant 0 : index
    %c0_31 = arith.constant 0 : index
    %38 = vector.load %arg5[%c6, %c0_30, %c0_31] : memref<9x128x128xbf16, #tpu.memory_space<vmem>>, vector<1x128x128xbf16>
    %39 = vector.shape_cast %38 : vector<1x128x128xbf16> to vector<128x128xbf16>
    %cst_32 = arith.constant dense<0.000000e+00> : vector<4x128xf32>
    %40 = tpu.matmul %37, %39, %cst_32 {dimension_numbers = #tpu.dot_dimension_numbers<[1], [0], [0], [1], [0, 0, 1, 1], [], []>} : vector<4x128xbf16>, vector<128x128xbf16>, vector<4x128xf32> -> vector<4x128xf32>
    %41 = arith.addf %34, %40 : vector<4x128xf32>
    %42 = vector.extract_strided_slice %36 {offsets = [1, 0], sizes = [4, 128], strides = [1, 1]} : vector<6x128xbf16> to vector<4x128xbf16>
    %c7 = arith.constant 7 : index
    %c0_33 = arith.constant 0 : index
    %c0_34 = arith.constant 0 : index
    %43 = vector.load %arg5[%c7, %c0_33, %c0_34] : memref<9x128x128xbf16, #tpu.memory_space<vmem>>, vector<1x128x128xbf16>
    %44 = vector.shape_cast %43 : vector<1x128x128xbf16> to vector<128x128xbf16>
    %cst_35 = arith.constant dense<0.000000e+00> : vector<4x128xf32>
    %45 = tpu.matmul %42, %44, %cst_35 {dimension_numbers = #tpu.dot_dimension_numbers<[1], [0], [0], [1], [0, 0, 1, 1], [], []>} : vector<4x128xbf16>, vector<128x128xbf16>, vector<4x128xf32> -> vector<4x128xf32>
    %46 = arith.addf %41, %45 : vector<4x128xf32>
    %47 = vector.extract_strided_slice %36 {offsets = [2, 0], sizes = [4, 128], strides = [1, 1]} : vector<6x128xbf16> to vector<4x128xbf16>
    %c8 = arith.constant 8 : index
    %c0_36 = arith.constant 0 : index
    %c0_37 = arith.constant 0 : index
    %48 = vector.load %arg5[%c8, %c0_36, %c0_37] : memref<9x128x128xbf16, #tpu.memory_space<vmem>>, vector<1x128x128xbf16>
    %49 = vector.shape_cast %48 : vector<1x128x128xbf16> to vector<128x128xbf16>
    %cst_38 = arith.constant dense<0.000000e+00> : vector<4x128xf32>
    %50 = tpu.matmul %47, %49, %cst_38 {dimension_numbers = #tpu.dot_dimension_numbers<[1], [0], [0], [1], [0, 0, 1, 1], [], []>} : vector<4x128xbf16>, vector<128x128xbf16>, vector<4x128xf32> -> vector<4x128xf32>
    %51 = arith.addf %46, %50 : vector<4x128xf32>
    %c0_39 = arith.constant 0 : index
    %c0_40 = arith.constant 0 : index
    %52 = vector.load %arg6[%c0_39, %c0_40] : memref<1x128xf32, #tpu.memory_space<vmem>>, vector<1x128xf32>
    %53 = vector.broadcast %52 : vector<1x128xf32> to vector<4x128xf32>
    %54 = arith.mulf %51, %53 : vector<4x128xf32>
    %c0_41 = arith.constant 0 : index
    %c0_42 = arith.constant 0 : index
    %55 = vector.load %arg7[%c0_41, %c0_42] : memref<1x128xf32, #tpu.memory_space<vmem>>, vector<1x128xf32>
    %56 = vector.broadcast %55 : vector<1x128xf32> to vector<4x128xf32>
    %57 = arith.addf %54, %56 : vector<4x128xf32>
    %c0_43 = arith.constant 0 : index
    %c0_44 = arith.constant 0 : index
    %c0_45 = arith.constant 0 : index
    %c0_46 = arith.constant 0 : index
    %58 = vector.load %arg8[%c0_43, %c0_44, %c0_45, %c0_46] : memref<1x1x4x128xbf16, #tpu.memory_space<vmem>>, vector<1x1x4x128xbf16>
    %59 = vector.shape_cast %58 : vector<1x1x4x128xbf16> to vector<4x128xbf16>
    %60 = arith.extf %59 : vector<4x128xbf16> to vector<4x128xf32>
    %61 = arith.addf %57, %60 : vector<4x128xf32>
    %cst_47 = arith.constant 0.000000e+00 : f32
    %62 = vector.broadcast %cst_47 : f32 to vector<4x128xf32>
    %63 = arith.cmpf ogt, %61, %62 : vector<4x128xf32>
    %c0_48 = arith.constant 0 : index
    %c0_49 = arith.constant 0 : index
    %64 = vector.load %arg9[%c0_48, %c0_49] : memref<1x128xf32, #tpu.memory_space<vmem>>, vector<1x128xf32>
    %65 = vector.broadcast %64 : vector<1x128xf32> to vector<4x128xf32>
    %66 = arith.mulf %65, %61 : vector<4x128xf32>
    %67 = arith.select %63, %61, %66 : vector<4x128xi1>, vector<4x128xf32>
    %c0_50 = arith.constant 0 : index
    %c0_51 = arith.constant 0 : index
    %68 = vector.load %arg10[%c0_50, %c0_51] : memref<1x128xf32, #tpu.memory_space<vmem>>, vector<1x128xf32>
    %69 = vector.broadcast %68 : vector<1x128xf32> to vector<4x128xf32>
    %70 = arith.addf %67, %69 : vector<4x128xf32>
    %71 = arith.truncf %70 : vector<4x128xf32> to vector<4x128xbf16>
    %c0_52 = arith.constant 0 : index
    %c0_53 = arith.constant 0 : index
    %c0_54 = arith.constant 0 : index
    %c0_55 = arith.constant 0 : index
    %72 = vector.load %arg11[%c0_52, %c0_53, %c0_54, %c0_55] : memref<1x1x4x128xbf16, #tpu.memory_space<vmem>>, vector<1x1x4x128xbf16>
    %73 = vector.shape_cast %72 : vector<1x1x4x128xbf16> to vector<4x128xbf16>
    %74 = vector.shape_cast %71 : vector<4x128xbf16> to vector<1x1x4x128xbf16>
    tpu.vector_store %arg11[%c0_52, %c0_53, %c0_54, %c0_55], %74 {strides = array<i32>} : memref<1x1x4x128xbf16, #tpu.memory_space<vmem>>, vector<1x1x4x128xbf16>,
    return
  }
  func.func @transform_0(%arg0: i32, %arg1: i32) -> (i32, i32, i32, i32) {
    %c0_i32 = arith.constant 0 : i32
    %0 = arith.addi %arg1, %c0_i32 : i32
    %c0_i32_0 = arith.constant 0 : i32
    %c0_i32_1 = arith.constant 0 : i32
    %c0_i32_2 = arith.constant 0 : i32
    return %arg0, %0, %c0_i32_0, %c0_i32_1 : i32, i32, i32, i32
  }
  func.func @transform_1(%arg0: i32, %arg1: i32) -> (i32, i32, i32, i32) {
    %c1_i32 = arith.constant 1 : i32
    %0 = arith.addi %arg1, %c1_i32 : i32
    %c0_i32 = arith.constant 0 : i32
    %c0_i32_0 = arith.constant 0 : i32
    %c0_i32_1 = arith.constant 0 : i32
    return %arg0, %0, %c0_i32, %c0_i32_0 : i32, i32, i32, i32
  }
  func.func @transform_2(%arg0: i32, %arg1: i32) -> (i32, i32, i32, i32) {
    %c2_i32 = arith.constant 2 : i32
    %0 = arith.addi %arg1, %c2_i32 : i32
    %c0_i32 = arith.constant 0 : i32
    %c0_i32_0 = arith.constant 0 : i32
    %c0_i32_1 = arith.constant 0 : i32
    return %arg0, %0, %c0_i32, %c0_i32_0 : i32, i32, i32, i32
  }
  func.func @transform_3(%arg0: i32, %arg1: i32) -> (i32, i32, i32) {
    %c0_i32 = arith.constant 0 : i32
    %c0_i32_0 = arith.constant 0 : i32
    %c0_i32_1 = arith.constant 0 : i32
    %c0_i32_2 = arith.constant 0 : i32
    return %c0_i32, %c0_i32_0, %c0_i32_1 : i32, i32, i32
  }
  func.func @transform_4(%arg0: i32, %arg1: i32) -> (i32, i32) {
    %c0_i32 = arith.constant 0 : i32
    %c0_i32_0 = arith.constant 0 : i32
    %c0_i32_1 = arith.constant 0 : i32
    return %c0_i32, %c0_i32_0 : i32, i32
  }
  func.func @transform_5(%arg0: i32, %arg1: i32) -> (i32, i32) {
    %c0_i32 = arith.constant 0 : i32
    %c0_i32_0 = arith.constant 0 : i32
    %c0_i32_1 = arith.constant 0 : i32
    return %c0_i32, %c0_i32_0 : i32, i32
  }
  func.func @transform_6(%arg0: i32, %arg1: i32) -> (i32, i32, i32, i32) {
    %c0_i32 = arith.constant 0 : i32
    %c0_i32_0 = arith.constant 0 : i32
    %c0_i32_1 = arith.constant 0 : i32
    return %arg0, %arg1, %c0_i32, %c0_i32_0 : i32, i32, i32, i32
  }
  func.func @transform_7(%arg0: i32, %arg1: i32) -> (i32, i32) {
    %c0_i32 = arith.constant 0 : i32
    %c0_i32_0 = arith.constant 0 : i32
    %c0_i32_1 = arith.constant 0 : i32
    return %c0_i32, %c0_i32_0 : i32, i32
  }
  func.func @transform_8(%arg0: i32, %arg1: i32) -> (i32, i32) {
    %c0_i32 = arith.constant 0 : i32
    %c0_i32_0 = arith.constant 0 : i32
    %c0_i32_1 = arith.constant 0 : i32
    return %c0_i32, %c0_i32_0 : i32, i32
  }
  func.func @transform_9(%arg0: i32, %arg1: i32) -> (i32, i32, i32, i32) {
    %c0_i32 = arith.constant 0 : i32
    %c0_i32_0 = arith.constant 0 : i32
    %c0_i32_1 = arith.constant 0 : i32
    return %arg0, %arg1, %c0_i32, %c0_i32_0 : i32, i32, i32, i32
  }
}

module attributes {stable_mosaic.version = 11 : i64} {
  func.func @_conv3x3_bn_res_rprelu_kernel(%arg0: i32, %arg1: i32, %arg2: memref<1x1x4x128xbf16, #tpu.memory_space<vmem>>, %arg3: memref<1x1x4x128xbf16, #tpu.memory_space<vmem>>, %arg4: memref<1x1x4x128xbf16, #tpu.memory_space<vmem>>, %arg5: memref<9x128x128xbf16, #tpu.memory_space<vmem>>, %arg6: memref<1x128xf32, #tpu.memory_space<vmem>>, %arg7: memref<1x128xf32, #tpu.memory_space<vmem>>, %arg8: memref<1x1x2x128xbf16, #tpu.memory_space<vmem>>, %arg9: memref<1x128xf32, #tpu.memory_space<vmem>>, %arg10: memref<1x128xf32, #tpu.memory_space<vmem>>, %arg11: memref<1x1x2x128xbf16, #tpu.memory_space<vmem>>) attributes {dimension_semantics = [#tpu.dimension_semantics<parallel>, #tpu.dimension_semantics<parallel>], iteration_bounds = array<i64: 2, 2>, scalar_prefetch = 0 : i64, scratch_operands = 0 : i64, tpu.core_type = #tpu.core_type<tc>, window_params = [{transform_indices = @transform_0, window_bounds = array<i64: 1, 1, 4, 128>}, {transform_indices = @transform_1, window_bounds = array<i64: 1, 1, 4, 128>}, {transform_indices = @transform_2, window_bounds = array<i64: 1, 1, 4, 128>}, {pipeline_mode = #tpu.pipeline_mode<synchronous>, transform_indices = @transform_3, window_bounds = array<i64: 9, 128, 128>}, {pipeline_mode = #tpu.pipeline_mode<synchronous>, transform_indices = @transform_4, window_bounds = array<i64: 1, 128>}, {pipeline_mode = #tpu.pipeline_mode<synchronous>, transform_indices = @transform_5, window_bounds = array<i64: 1, 128>}, {transform_indices = @transform_6, window_bounds = array<i64: 1, 1, 2, 128>}, {pipeline_mode = #tpu.pipeline_mode<synchronous>, transform_indices = @transform_7, window_bounds = array<i64: 1, 128>}, {pipeline_mode = #tpu.pipeline_mode<synchronous>, transform_indices = @transform_8, window_bounds = array<i64: 1, 128>}, {transform_indices = @transform_9, window_bounds = array<i64: 1, 1, 2, 128>}]} {
    %cst = arith.constant 0.000000e+00 : f32
    %0 = vector.broadcast %cst : f32 to vector<2x128xf32>
    %c0 = arith.constant 0 : index
    %c0_0 = arith.constant 0 : index
    %c0_1 = arith.constant 0 : index
    %c0_2 = arith.constant 0 : index
    %1 = vector.load %arg2[%c0, %c0_0, %c0_1, %c0_2] : memref<1x1x4x128xbf16, #tpu.memory_space<vmem>>, vector<1x1x4x128xbf16>
    %2 = vector.shape_cast %1 : vector<1x1x4x128xbf16> to vector<4x128xbf16>
    %3 = vector.extract_strided_slice %2 {offsets = [0, 0], sizes = [2, 128], strides = [1, 1]} : vector<4x128xbf16> to vector<2x128xbf16>
    %c0_3 = arith.constant 0 : index
    %c0_4 = arith.constant 0 : index
    %c0_5 = arith.constant 0 : index
    %4 = vector.load %arg5[%c0_3, %c0_4, %c0_5] : memref<9x128x128xbf16, #tpu.memory_space<vmem>>, vector<1x128x128xbf16>
    %5 = vector.shape_cast %4 : vector<1x128x128xbf16> to vector<128x128xbf16>
    %cst_6 = arith.constant dense<0.000000e+00> : vector<2x128xf32>
    %6 = tpu.matmul %3, %5, %cst_6 {dimension_numbers = #tpu.dot_dimension_numbers<[1], [0], [0], [1], [0, 0, 1, 1], [], []>} : vector<2x128xbf16>, vector<128x128xbf16>, vector<2x128xf32> -> vector<2x128xf32>
    %7 = arith.addf %0, %6 : vector<2x128xf32>
    %8 = vector.extract_strided_slice %2 {offsets = [1, 0], sizes = [2, 128], strides = [1, 1]} : vector<4x128xbf16> to vector<2x128xbf16>
    %c1 = arith.constant 1 : index
    %c0_7 = arith.constant 0 : index
    %c0_8 = arith.constant 0 : index
    %9 = vector.load %arg5[%c1, %c0_7, %c0_8] : memref<9x128x128xbf16, #tpu.memory_space<vmem>>, vector<1x128x128xbf16>
    %10 = vector.shape_cast %9 : vector<1x128x128xbf16> to vector<128x128xbf16>
    %cst_9 = arith.constant dense<0.000000e+00> : vector<2x128xf32>
    %11 = tpu.matmul %8, %10, %cst_9 {dimension_numbers = #tpu.dot_dimension_numbers<[1], [0], [0], [1], [0, 0, 1, 1], [], []>} : vector<2x128xbf16>, vector<128x128xbf16>, vector<2x128xf32> -> vector<2x128xf32>
    %12 = arith.addf %7, %11 : vector<2x128xf32>
    %13 = vector.extract_strided_slice %2 {offsets = [2, 0], sizes = [2, 128], strides = [1, 1]} : vector<4x128xbf16> to vector<2x128xbf16>
    %c2 = arith.constant 2 : index
    %c0_10 = arith.constant 0 : index
    %c0_11 = arith.constant 0 : index
    %14 = vector.load %arg5[%c2, %c0_10, %c0_11] : memref<9x128x128xbf16, #tpu.memory_space<vmem>>, vector<1x128x128xbf16>
    %15 = vector.shape_cast %14 : vector<1x128x128xbf16> to vector<128x128xbf16>
    %cst_12 = arith.constant dense<0.000000e+00> : vector<2x128xf32>
    %16 = tpu.matmul %13, %15, %cst_12 {dimension_numbers = #tpu.dot_dimension_numbers<[1], [0], [0], [1], [0, 0, 1, 1], [], []>} : vector<2x128xbf16>, vector<128x128xbf16>, vector<2x128xf32> -> vector<2x128xf32>
    %17 = arith.addf %12, %16 : vector<2x128xf32>
    %c0_13 = arith.constant 0 : index
    %c0_14 = arith.constant 0 : index
    %c0_15 = arith.constant 0 : index
    %c0_16 = arith.constant 0 : index
    %18 = vector.load %arg3[%c0_13, %c0_14, %c0_15, %c0_16] : memref<1x1x4x128xbf16, #tpu.memory_space<vmem>>, vector<1x1x4x128xbf16>
    %19 = vector.shape_cast %18 : vector<1x1x4x128xbf16> to vector<4x128xbf16>
    %20 = vector.extract_strided_slice %19 {offsets = [0, 0], sizes = [2, 128], strides = [1, 1]} : vector<4x128xbf16> to vector<2x128xbf16>
    %c3 = arith.constant 3 : index
    %c0_17 = arith.constant 0 : index
    %c0_18 = arith.constant 0 : index
    %21 = vector.load %arg5[%c3, %c0_17, %c0_18] : memref<9x128x128xbf16, #tpu.memory_space<vmem>>, vector<1x128x128xbf16>
    %22 = vector.shape_cast %21 : vector<1x128x128xbf16> to vector<128x128xbf16>
    %cst_19 = arith.constant dense<0.000000e+00> : vector<2x128xf32>
    %23 = tpu.matmul %20, %22, %cst_19 {dimension_numbers = #tpu.dot_dimension_numbers<[1], [0], [0], [1], [0, 0, 1, 1], [], []>} : vector<2x128xbf16>, vector<128x128xbf16>, vector<2x128xf32> -> vector<2x128xf32>
    %24 = arith.addf %17, %23 : vector<2x128xf32>
    %25 = vector.extract_strided_slice %19 {offsets = [1, 0], sizes = [2, 128], strides = [1, 1]} : vector<4x128xbf16> to vector<2x128xbf16>
    %c4 = arith.constant 4 : index
    %c0_20 = arith.constant 0 : index
    %c0_21 = arith.constant 0 : index
    %26 = vector.load %arg5[%c4, %c0_20, %c0_21] : memref<9x128x128xbf16, #tpu.memory_space<vmem>>, vector<1x128x128xbf16>
    %27 = vector.shape_cast %26 : vector<1x128x128xbf16> to vector<128x128xbf16>
    %cst_22 = arith.constant dense<0.000000e+00> : vector<2x128xf32>
    %28 = tpu.matmul %25, %27, %cst_22 {dimension_numbers = #tpu.dot_dimension_numbers<[1], [0], [0], [1], [0, 0, 1, 1], [], []>} : vector<2x128xbf16>, vector<128x128xbf16>, vector<2x128xf32> -> vector<2x128xf32>
    %29 = arith.addf %24, %28 : vector<2x128xf32>
    %30 = vector.extract_strided_slice %19 {offsets = [2, 0], sizes = [2, 128], strides = [1, 1]} : vector<4x128xbf16> to vector<2x128xbf16>
    %c5 = arith.constant 5 : index
    %c0_23 = arith.constant 0 : index
    %c0_24 = arith.constant 0 : index
    %31 = vector.load %arg5[%c5, %c0_23, %c0_24] : memref<9x128x128xbf16, #tpu.memory_space<vmem>>, vector<1x128x128xbf16>
    %32 = vector.shape_cast %31 : vector<1x128x128xbf16> to vector<128x128xbf16>
    %cst_25 = arith.constant dense<0.000000e+00> : vector<2x128xf32>
    %33 = tpu.matmul %30, %32, %cst_25 {dimension_numbers = #tpu.dot_dimension_numbers<[1], [0], [0], [1], [0, 0, 1, 1], [], []>} : vector<2x128xbf16>, vector<128x128xbf16>, vector<2x128xf32> -> vector<2x128xf32>
    %34 = arith.addf %29, %33 : vector<2x128xf32>
    %c0_26 = arith.constant 0 : index
    %c0_27 = arith.constant 0 : index
    %c0_28 = arith.constant 0 : index
    %c0_29 = arith.constant 0 : index
    %35 = vector.load %arg4[%c0_26, %c0_27, %c0_28, %c0_29] : memref<1x1x4x128xbf16, #tpu.memory_space<vmem>>, vector<1x1x4x128xbf16>
    %36 = vector.shape_cast %35 : vector<1x1x4x128xbf16> to vector<4x128xbf16>
    %37 = vector.extract_strided_slice %36 {offsets = [0, 0], sizes = [2, 128], strides = [1, 1]} : vector<4x128xbf16> to vector<2x128xbf16>
    %c6 = arith.constant 6 : index
    %c0_30 = arith.constant 0 : index
    %c0_31 = arith.constant 0 : index
    %38 = vector.load %arg5[%c6, %c0_30, %c0_31] : memref<9x128x128xbf16, #tpu.memory_space<vmem>>, vector<1x128x128xbf16>
    %39 = vector.shape_cast %38 : vector<1x128x128xbf16> to vector<128x128xbf16>
    %cst_32 = arith.constant dense<0.000000e+00> : vector<2x128xf32>
    %40 = tpu.matmul %37, %39, %cst_32 {dimension_numbers = #tpu.dot_dimension_numbers<[1], [0], [0], [1], [0, 0, 1, 1], [], []>} : vector<2x128xbf16>, vector<128x128xbf16>, vector<2x128xf32> -> vector<2x128xf32>
    %41 = arith.addf %34, %40 : vector<2x128xf32>
    %42 = vector.extract_strided_slice %36 {offsets = [1, 0], sizes = [2, 128], strides = [1, 1]} : vector<4x128xbf16> to vector<2x128xbf16>
    %c7 = arith.constant 7 : index
    %c0_33 = arith.constant 0 : index
    %c0_34 = arith.constant 0 : index
    %43 = vector.load %arg5[%c7, %c0_33, %c0_34] : memref<9x128x128xbf16, #tpu.memory_space<vmem>>, vector<1x128x128xbf16>
    %44 = vector.shape_cast %43 : vector<1x128x128xbf16> to vector<128x128xbf16>
    %cst_35 = arith.constant dense<0.000000e+00> : vector<2x128xf32>
    %45 = tpu.matmul %42, %44, %cst_35 {dimension_numbers = #tpu.dot_dimension_numbers<[1], [0], [0], [1], [0, 0, 1, 1], [], []>} : vector<2x128xbf16>, vector<128x128xbf16>, vector<2x128xf32> -> vector<2x128xf32>
    %46 = arith.addf %41, %45 : vector<2x128xf32>
    %47 = vector.extract_strided_slice %36 {offsets = [2, 0], sizes = [2, 128], strides = [1, 1]} : vector<4x128xbf16> to vector<2x128xbf16>
    %c8 = arith.constant 8 : index
    %c0_36 = arith.constant 0 : index
    %c0_37 = arith.constant 0 : index
    %48 = vector.load %arg5[%c8, %c0_36, %c0_37] : memref<9x128x128xbf16, #tpu.memory_space<vmem>>, vector<1x128x128xbf16>
    %49 = vector.shape_cast %48 : vector<1x128x128xbf16> to vector<128x128xbf16>
    %cst_38 = arith.constant dense<0.000000e+00> : vector<2x128xf32>
    %50 = tpu.matmul %47, %49, %cst_38 {dimension_numbers = #tpu.dot_dimension_numbers<[1], [0], [0], [1], [0, 0, 1, 1], [], []>} : vector<2x128xbf16>, vector<128x128xbf16>, vector<2x128xf32> -> vector<2x128xf32>
    %51 = arith.addf %46, %50 : vector<2x128xf32>
    %c0_39 = arith.constant 0 : index
    %c0_40 = arith.constant 0 : index
    %52 = vector.load %arg6[%c0_39, %c0_40] : memref<1x128xf32, #tpu.memory_space<vmem>>, vector<1x128xf32>
    %53 = vector.broadcast %52 : vector<1x128xf32> to vector<2x128xf32>
    %54 = arith.mulf %51, %53 : vector<2x128xf32>
    %c0_41 = arith.constant 0 : index
    %c0_42 = arith.constant 0 : index
    %55 = vector.load %arg7[%c0_41, %c0_42] : memref<1x128xf32, #tpu.memory_space<vmem>>, vector<1x128xf32>
    %56 = vector.broadcast %55 : vector<1x128xf32> to vector<2x128xf32>
    %57 = arith.addf %54, %56 : vector<2x128xf32>
    %c0_43 = arith.constant 0 : index
    %c0_44 = arith.constant 0 : index
    %c0_45 = arith.constant 0 : index
    %c0_46 = arith.constant 0 : index
    %58 = vector.load %arg8[%c0_43, %c0_44, %c0_45, %c0_46] : memref<1x1x2x128xbf16, #tpu.memory_space<vmem>>, vector<1x1x2x128xbf16>
    %59 = vector.shape_cast %58 : vector<1x1x2x128xbf16> to vector<2x128xbf16>
    %60 = arith.extf %59 : vector<2x128xbf16> to vector<2x128xf32>
    %61 = arith.addf %57, %60 : vector<2x128xf32>
    %cst_47 = arith.constant 0.000000e+00 : f32
    %62 = vector.broadcast %cst_47 : f32 to vector<2x128xf32>
    %63 = arith.cmpf ogt, %61, %62 : vector<2x128xf32>
    %c0_48 = arith.constant 0 : index
    %c0_49 = arith.constant 0 : index
    %64 = vector.load %arg9[%c0_48, %c0_49] : memref<1x128xf32, #tpu.memory_space<vmem>>, vector<1x128xf32>
    %65 = vector.broadcast %64 : vector<1x128xf32> to vector<2x128xf32>
    %66 = arith.mulf %65, %61 : vector<2x128xf32>
    %67 = arith.select %63, %61, %66 : vector<2x128xi1>, vector<2x128xf32>
    %c0_50 = arith.constant 0 : index
    %c0_51 = arith.constant 0 : index
    %68 = vector.load %arg10[%c0_50, %c0_51] : memref<1x128xf32, #tpu.memory_space<vmem>>, vector<1x128xf32>
    %69 = vector.broadcast %68 : vector<1x128xf32> to vector<2x128xf32>
    %70 = arith.addf %67, %69 : vector<2x128xf32>
    %71 = arith.truncf %70 : vector<2x128xf32> to vector<2x128xbf16>
    %c0_52 = arith.constant 0 : index
    %c0_53 = arith.constant 0 : index
    %c0_54 = arith.constant 0 : index
    %c0_55 = arith.constant 0 : index
    %72 = vector.load %arg11[%c0_52, %c0_53, %c0_54, %c0_55] : memref<1x1x2x128xbf16, #tpu.memory_space<vmem>>, vector<1x1x2x128xbf16>
    %73 = vector.shape_cast %72 : vector<1x1x2x128xbf16> to vector<2x128xbf16>
    %74 = vector.shape_cast %71 : vector<2x128xbf16> to vector<1x1x2x128xbf16>
    tpu.vector_store %arg11[%c0_52, %c0_53, %c0_54, %c0_55], %74 {strides = array<i32>} : memref<1x1x2x128xbf16, #tpu.memory_space<vmem>>, vector<1x1x2x128xbf16>,
    return
  }
  func.func @transform_0(%arg0: i32, %arg1: i32) -> (i32, i32, i32, i32) {
    %c0_i32 = arith.constant 0 : i32
    %0 = arith.addi %arg1, %c0_i32 : i32
    %c0_i32_0 = arith.constant 0 : i32
    %c0_i32_1 = arith.constant 0 : i32
    %c0_i32_2 = arith.constant 0 : i32
    return %arg0, %0, %c0_i32_0, %c0_i32_1 : i32, i32, i32, i32
  }
  func.func @transform_1(%arg0: i32, %arg1: i32) -> (i32, i32, i32, i32) {
    %c1_i32 = arith.constant 1 : i32
    %0 = arith.addi %arg1, %c1_i32 : i32
    %c0_i32 = arith.constant 0 : i32
    %c0_i32_0 = arith.constant 0 : i32
    %c0_i32_1 = arith.constant 0 : i32
    return %arg0, %0, %c0_i32, %c0_i32_0 : i32, i32, i32, i32
  }
  func.func @transform_2(%arg0: i32, %arg1: i32) -> (i32, i32, i32, i32) {
    %c2_i32 = arith.constant 2 : i32
    %0 = arith.addi %arg1, %c2_i32 : i32
    %c0_i32 = arith.constant 0 : i32
    %c0_i32_0 = arith.constant 0 : i32
    %c0_i32_1 = arith.constant 0 : i32
    return %arg0, %0, %c0_i32, %c0_i32_0 : i32, i32, i32, i32
  }
  func.func @transform_3(%arg0: i32, %arg1: i32) -> (i32, i32, i32) {
    %c0_i32 = arith.constant 0 : i32
    %c0_i32_0 = arith.constant 0 : i32
    %c0_i32_1 = arith.constant 0 : i32
    %c0_i32_2 = arith.constant 0 : i32
    return %c0_i32, %c0_i32_0, %c0_i32_1 : i32, i32, i32
  }
  func.func @transform_4(%arg0: i32, %arg1: i32) -> (i32, i32) {
    %c0_i32 = arith.constant 0 : i32
    %c0_i32_0 = arith.constant 0 : i32
    %c0_i32_1 = arith.constant 0 : i32
    return %c0_i32, %c0_i32_0 : i32, i32
  }
  func.func @transform_5(%arg0: i32, %arg1: i32) -> (i32, i32) {
    %c0_i32 = arith.constant 0 : i32
    %c0_i32_0 = arith.constant 0 : i32
    %c0_i32_1 = arith.constant 0 : i32
    return %c0_i32, %c0_i32_0 : i32, i32
  }
  func.func @transform_6(%arg0: i32, %arg1: i32) -> (i32, i32, i32, i32) {
    %c0_i32 = arith.constant 0 : i32
    %c0_i32_0 = arith.constant 0 : i32
    %c0_i32_1 = arith.constant 0 : i32
    return %arg0, %arg1, %c0_i32, %c0_i32_0 : i32, i32, i32, i32
  }
  func.func @transform_7(%arg0: i32, %arg1: i32) -> (i32, i32) {
    %c0_i32 = arith.constant 0 : i32
    %c0_i32_0 = arith.constant 0 : i32
    %c0_i32_1 = arith.constant 0 : i32
    return %c0_i32, %c0_i32_0 : i32, i32
  }
  func.func @transform_8(%arg0: i32, %arg1: i32) -> (i32, i32) {
    %c0_i32 = arith.constant 0 : i32
    %c0_i32_0 = arith.constant 0 : i32
    %c0_i32_1 = arith.constant 0 : i32
    return %c0_i32, %c0_i32_0 : i32, i32
  }
  func.func @transform_9(%arg0: i32, %arg1: i32) -> (i32, i32, i32, i32) {
    %c0_i32 = arith.constant 0 : i32
    %c0_i32_0 = arith.constant 0 : i32
    %c0_i32_1 = arith.constant 0 : i32
    return %arg0, %arg1, %c0_i32, %c0_i32_0 : i32, i32, i32, i32
  }
}

module attributes {stable_mosaic.version = 11 : i64} {
  func.func @_conv3x3_bn_kernel(%arg0: i32, %arg1: i32, %arg2: memref<1x1x4x128xbf16, #tpu.memory_space<vmem>>, %arg3: memref<1x1x4x128xbf16, #tpu.memory_space<vmem>>, %arg4: memref<1x1x4x128xbf16, #tpu.memory_space<vmem>>, %arg5: memref<9x128x128xbf16, #tpu.memory_space<vmem>>, %arg6: memref<1x128xf32, #tpu.memory_space<vmem>>, %arg7: memref<1x128xf32, #tpu.memory_space<vmem>>, %arg8: memref<1x1x2x128xbf16, #tpu.memory_space<vmem>>) attributes {dimension_semantics = [#tpu.dimension_semantics<parallel>, #tpu.dimension_semantics<parallel>], iteration_bounds = array<i64: 2, 2>, scalar_prefetch = 0 : i64, scratch_operands = 0 : i64, tpu.core_type = #tpu.core_type<tc>, window_params = [{transform_indices = @transform_0, window_bounds = array<i64: 1, 1, 4, 128>}, {transform_indices = @transform_1, window_bounds = array<i64: 1, 1, 4, 128>}, {transform_indices = @transform_2, window_bounds = array<i64: 1, 1, 4, 128>}, {pipeline_mode = #tpu.pipeline_mode<synchronous>, transform_indices = @transform_3, window_bounds = array<i64: 9, 128, 128>}, {pipeline_mode = #tpu.pipeline_mode<synchronous>, transform_indices = @transform_4, window_bounds = array<i64: 1, 128>}, {pipeline_mode = #tpu.pipeline_mode<synchronous>, transform_indices = @transform_5, window_bounds = array<i64: 1, 128>}, {transform_indices = @transform_6, window_bounds = array<i64: 1, 1, 2, 128>}]} {
    %cst = arith.constant 0.000000e+00 : f32
    %0 = vector.broadcast %cst : f32 to vector<2x128xf32>
    %c0 = arith.constant 0 : index
    %c0_0 = arith.constant 0 : index
    %c0_1 = arith.constant 0 : index
    %c0_2 = arith.constant 0 : index
    %1 = vector.load %arg2[%c0, %c0_0, %c0_1, %c0_2] : memref<1x1x4x128xbf16, #tpu.memory_space<vmem>>, vector<1x1x4x128xbf16>
    %2 = vector.shape_cast %1 : vector<1x1x4x128xbf16> to vector<4x128xbf16>
    %3 = vector.extract_strided_slice %2 {offsets = [0, 0], sizes = [2, 128], strides = [1, 1]} : vector<4x128xbf16> to vector<2x128xbf16>
    %c0_3 = arith.constant 0 : index
    %c0_4 = arith.constant 0 : index
    %c0_5 = arith.constant 0 : index
    %4 = vector.load %arg5[%c0_3, %c0_4, %c0_5] : memref<9x128x128xbf16, #tpu.memory_space<vmem>>, vector<1x128x128xbf16>
    %5 = vector.shape_cast %4 : vector<1x128x128xbf16> to vector<128x128xbf16>
    %cst_6 = arith.constant dense<0.000000e+00> : vector<2x128xf32>
    %6 = tpu.matmul %3, %5, %cst_6 {dimension_numbers = #tpu.dot_dimension_numbers<[1], [0], [0], [1], [0, 0, 1, 1], [], []>} : vector<2x128xbf16>, vector<128x128xbf16>, vector<2x128xf32> -> vector<2x128xf32>
    %7 = arith.addf %0, %6 : vector<2x128xf32>
    %8 = vector.extract_strided_slice %2 {offsets = [1, 0], sizes = [2, 128], strides = [1, 1]} : vector<4x128xbf16> to vector<2x128xbf16>
    %c1 = arith.constant 1 : index
    %c0_7 = arith.constant 0 : index
    %c0_8 = arith.constant 0 : index
    %9 = vector.load %arg5[%c1, %c0_7, %c0_8] : memref<9x128x128xbf16, #tpu.memory_space<vmem>>, vector<1x128x128xbf16>
    %10 = vector.shape_cast %9 : vector<1x128x128xbf16> to vector<128x128xbf16>
    %cst_9 = arith.constant dense<0.000000e+00> : vector<2x128xf32>
    %11 = tpu.matmul %8, %10, %cst_9 {dimension_numbers = #tpu.dot_dimension_numbers<[1], [0], [0], [1], [0, 0, 1, 1], [], []>} : vector<2x128xbf16>, vector<128x128xbf16>, vector<2x128xf32> -> vector<2x128xf32>
    %12 = arith.addf %7, %11 : vector<2x128xf32>
    %13 = vector.extract_strided_slice %2 {offsets = [2, 0], sizes = [2, 128], strides = [1, 1]} : vector<4x128xbf16> to vector<2x128xbf16>
    %c2 = arith.constant 2 : index
    %c0_10 = arith.constant 0 : index
    %c0_11 = arith.constant 0 : index
    %14 = vector.load %arg5[%c2, %c0_10, %c0_11] : memref<9x128x128xbf16, #tpu.memory_space<vmem>>, vector<1x128x128xbf16>
    %15 = vector.shape_cast %14 : vector<1x128x128xbf16> to vector<128x128xbf16>
    %cst_12 = arith.constant dense<0.000000e+00> : vector<2x128xf32>
    %16 = tpu.matmul %13, %15, %cst_12 {dimension_numbers = #tpu.dot_dimension_numbers<[1], [0], [0], [1], [0, 0, 1, 1], [], []>} : vector<2x128xbf16>, vector<128x128xbf16>, vector<2x128xf32> -> vector<2x128xf32>
    %17 = arith.addf %12, %16 : vector<2x128xf32>
    %c0_13 = arith.constant 0 : index
    %c0_14 = arith.constant 0 : index
    %c0_15 = arith.constant 0 : index
    %c0_16 = arith.constant 0 : index
    %18 = vector.load %arg3[%c0_13, %c0_14, %c0_15, %c0_16] : memref<1x1x4x128xbf16, #tpu.memory_space<vmem>>, vector<1x1x4x128xbf16>
    %19 = vector.shape_cast %18 : vector<1x1x4x128xbf16> to vector<4x128xbf16>
    %20 = vector.extract_strided_slice %19 {offsets = [0, 0], sizes = [2, 128], strides = [1, 1]} : vector<4x128xbf16> to vector<2x128xbf16>
    %c3 = arith.constant 3 : index
    %c0_17 = arith.constant 0 : index
    %c0_18 = arith.constant 0 : index
    %21 = vector.load %arg5[%c3, %c0_17, %c0_18] : memref<9x128x128xbf16, #tpu.memory_space<vmem>>, vector<1x128x128xbf16>
    %22 = vector.shape_cast %21 : vector<1x128x128xbf16> to vector<128x128xbf16>
    %cst_19 = arith.constant dense<0.000000e+00> : vector<2x128xf32>
    %23 = tpu.matmul %20, %22, %cst_19 {dimension_numbers = #tpu.dot_dimension_numbers<[1], [0], [0], [1], [0, 0, 1, 1], [], []>} : vector<2x128xbf16>, vector<128x128xbf16>, vector<2x128xf32> -> vector<2x128xf32>
    %24 = arith.addf %17, %23 : vector<2x128xf32>
    %25 = vector.extract_strided_slice %19 {offsets = [1, 0], sizes = [2, 128], strides = [1, 1]} : vector<4x128xbf16> to vector<2x128xbf16>
    %c4 = arith.constant 4 : index
    %c0_20 = arith.constant 0 : index
    %c0_21 = arith.constant 0 : index
    %26 = vector.load %arg5[%c4, %c0_20, %c0_21] : memref<9x128x128xbf16, #tpu.memory_space<vmem>>, vector<1x128x128xbf16>
    %27 = vector.shape_cast %26 : vector<1x128x128xbf16> to vector<128x128xbf16>
    %cst_22 = arith.constant dense<0.000000e+00> : vector<2x128xf32>
    %28 = tpu.matmul %25, %27, %cst_22 {dimension_numbers = #tpu.dot_dimension_numbers<[1], [0], [0], [1], [0, 0, 1, 1], [], []>} : vector<2x128xbf16>, vector<128x128xbf16>, vector<2x128xf32> -> vector<2x128xf32>
    %29 = arith.addf %24, %28 : vector<2x128xf32>
    %30 = vector.extract_strided_slice %19 {offsets = [2, 0], sizes = [2, 128], strides = [1, 1]} : vector<4x128xbf16> to vector<2x128xbf16>
    %c5 = arith.constant 5 : index
    %c0_23 = arith.constant 0 : index
    %c0_24 = arith.constant 0 : index
    %31 = vector.load %arg5[%c5, %c0_23, %c0_24] : memref<9x128x128xbf16, #tpu.memory_space<vmem>>, vector<1x128x128xbf16>
    %32 = vector.shape_cast %31 : vector<1x128x128xbf16> to vector<128x128xbf16>
    %cst_25 = arith.constant dense<0.000000e+00> : vector<2x128xf32>
    %33 = tpu.matmul %30, %32, %cst_25 {dimension_numbers = #tpu.dot_dimension_numbers<[1], [0], [0], [1], [0, 0, 1, 1], [], []>} : vector<2x128xbf16>, vector<128x128xbf16>, vector<2x128xf32> -> vector<2x128xf32>
    %34 = arith.addf %29, %33 : vector<2x128xf32>
    %c0_26 = arith.constant 0 : index
    %c0_27 = arith.constant 0 : index
    %c0_28 = arith.constant 0 : index
    %c0_29 = arith.constant 0 : index
    %35 = vector.load %arg4[%c0_26, %c0_27, %c0_28, %c0_29] : memref<1x1x4x128xbf16, #tpu.memory_space<vmem>>, vector<1x1x4x128xbf16>
    %36 = vector.shape_cast %35 : vector<1x1x4x128xbf16> to vector<4x128xbf16>
    %37 = vector.extract_strided_slice %36 {offsets = [0, 0], sizes = [2, 128], strides = [1, 1]} : vector<4x128xbf16> to vector<2x128xbf16>
    %c6 = arith.constant 6 : index
    %c0_30 = arith.constant 0 : index
    %c0_31 = arith.constant 0 : index
    %38 = vector.load %arg5[%c6, %c0_30, %c0_31] : memref<9x128x128xbf16, #tpu.memory_space<vmem>>, vector<1x128x128xbf16>
    %39 = vector.shape_cast %38 : vector<1x128x128xbf16> to vector<128x128xbf16>
    %cst_32 = arith.constant dense<0.000000e+00> : vector<2x128xf32>
    %40 = tpu.matmul %37, %39, %cst_32 {dimension_numbers = #tpu.dot_dimension_numbers<[1], [0], [0], [1], [0, 0, 1, 1], [], []>} : vector<2x128xbf16>, vector<128x128xbf16>, vector<2x128xf32> -> vector<2x128xf32>
    %41 = arith.addf %34, %40 : vector<2x128xf32>
    %42 = vector.extract_strided_slice %36 {offsets = [1, 0], sizes = [2, 128], strides = [1, 1]} : vector<4x128xbf16> to vector<2x128xbf16>
    %c7 = arith.constant 7 : index
    %c0_33 = arith.constant 0 : index
    %c0_34 = arith.constant 0 : index
    %43 = vector.load %arg5[%c7, %c0_33, %c0_34] : memref<9x128x128xbf16, #tpu.memory_space<vmem>>, vector<1x128x128xbf16>
    %44 = vector.shape_cast %43 : vector<1x128x128xbf16> to vector<128x128xbf16>
    %cst_35 = arith.constant dense<0.000000e+00> : vector<2x128xf32>
    %45 = tpu.matmul %42, %44, %cst_35 {dimension_numbers = #tpu.dot_dimension_numbers<[1], [0], [0], [1], [0, 0, 1, 1], [], []>} : vector<2x128xbf16>, vector<128x128xbf16>, vector<2x128xf32> -> vector<2x128xf32>
    %46 = arith.addf %41, %45 : vector<2x128xf32>
    %47 = vector.extract_strided_slice %36 {offsets = [2, 0], sizes = [2, 128], strides = [1, 1]} : vector<4x128xbf16> to vector<2x128xbf16>
    %c8 = arith.constant 8 : index
    %c0_36 = arith.constant 0 : index
    %c0_37 = arith.constant 0 : index
    %48 = vector.load %arg5[%c8, %c0_36, %c0_37] : memref<9x128x128xbf16, #tpu.memory_space<vmem>>, vector<1x128x128xbf16>
    %49 = vector.shape_cast %48 : vector<1x128x128xbf16> to vector<128x128xbf16>
    %cst_38 = arith.constant dense<0.000000e+00> : vector<2x128xf32>
    %50 = tpu.matmul %47, %49, %cst_38 {dimension_numbers = #tpu.dot_dimension_numbers<[1], [0], [0], [1], [0, 0, 1, 1], [], []>} : vector<2x128xbf16>, vector<128x128xbf16>, vector<2x128xf32> -> vector<2x128xf32>
    %51 = arith.addf %46, %50 : vector<2x128xf32>
    %c0_39 = arith.constant 0 : index
    %c0_40 = arith.constant 0 : index
    %52 = vector.load %arg6[%c0_39, %c0_40] : memref<1x128xf32, #tpu.memory_space<vmem>>, vector<1x128xf32>
    %53 = vector.broadcast %52 : vector<1x128xf32> to vector<2x128xf32>
    %54 = arith.mulf %51, %53 : vector<2x128xf32>
    %c0_41 = arith.constant 0 : index
    %c0_42 = arith.constant 0 : index
    %55 = vector.load %arg7[%c0_41, %c0_42] : memref<1x128xf32, #tpu.memory_space<vmem>>, vector<1x128xf32>
    %56 = vector.broadcast %55 : vector<1x128xf32> to vector<2x128xf32>
    %57 = arith.addf %54, %56 : vector<2x128xf32>
    %58 = arith.truncf %57 : vector<2x128xf32> to vector<2x128xbf16>
    %c0_43 = arith.constant 0 : index
    %c0_44 = arith.constant 0 : index
    %c0_45 = arith.constant 0 : index
    %c0_46 = arith.constant 0 : index
    %59 = vector.load %arg8[%c0_43, %c0_44, %c0_45, %c0_46] : memref<1x1x2x128xbf16, #tpu.memory_space<vmem>>, vector<1x1x2x128xbf16>
    %60 = vector.shape_cast %59 : vector<1x1x2x128xbf16> to vector<2x128xbf16>
    %61 = vector.shape_cast %58 : vector<2x128xbf16> to vector<1x1x2x128xbf16>
    tpu.vector_store %arg8[%c0_43, %c0_44, %c0_45, %c0_46], %61 {strides = array<i32>} : memref<1x1x2x128xbf16, #tpu.memory_space<vmem>>, vector<1x1x2x128xbf16>,
    return
  }
  func.func @transform_0(%arg0: i32, %arg1: i32) -> (i32, i32, i32, i32) {
    %c0_i32 = arith.constant 0 : i32
    %0 = arith.addi %arg1, %c0_i32 : i32
    %c0_i32_0 = arith.constant 0 : i32
    %c0_i32_1 = arith.constant 0 : i32
    %c0_i32_2 = arith.constant 0 : i32
    return %arg0, %0, %c0_i32_0, %c0_i32_1 : i32, i32, i32, i32
  }
  func.func @transform_1(%arg0: i32, %arg1: i32) -> (i32, i32, i32, i32) {
    %c1_i32 = arith.constant 1 : i32
    %0 = arith.addi %arg1, %c1_i32 : i32
    %c0_i32 = arith.constant 0 : i32
    %c0_i32_0 = arith.constant 0 : i32
    %c0_i32_1 = arith.constant 0 : i32
    return %arg0, %0, %c0_i32, %c0_i32_0 : i32, i32, i32, i32
  }
  func.func @transform_2(%arg0: i32, %arg1: i32) -> (i32, i32, i32, i32) {
    %c2_i32 = arith.constant 2 : i32
    %0 = arith.addi %arg1, %c2_i32 : i32
    %c0_i32 = arith.constant 0 : i32
    %c0_i32_0 = arith.constant 0 : i32
    %c0_i32_1 = arith.constant 0 : i32
    return %arg0, %0, %c0_i32, %c0_i32_0 : i32, i32, i32, i32
  }
  func.func @transform_3(%arg0: i32, %arg1: i32) -> (i32, i32, i32) {
    %c0_i32 = arith.constant 0 : i32
    %c0_i32_0 = arith.constant 0 : i32
    %c0_i32_1 = arith.constant 0 : i32
    %c0_i32_2 = arith.constant 0 : i32
    return %c0_i32, %c0_i32_0, %c0_i32_1 : i32, i32, i32
  }
  func.func @transform_4(%arg0: i32, %arg1: i32) -> (i32, i32) {
    %c0_i32 = arith.constant 0 : i32
    %c0_i32_0 = arith.constant 0 : i32
    %c0_i32_1 = arith.constant 0 : i32
    return %c0_i32, %c0_i32_0 : i32, i32
  }
  func.func @transform_5(%arg0: i32, %arg1: i32) -> (i32, i32) {
    %c0_i32 = arith.constant 0 : i32
    %c0_i32_0 = arith.constant 0 : i32
    %c0_i32_1 = arith.constant 0 : i32
    return %c0_i32, %c0_i32_0 : i32, i32
  }
  func.func @transform_6(%arg0: i32, %arg1: i32) -> (i32, i32, i32, i32) {
    %c0_i32 = arith.constant 0 : i32
    %c0_i32_0 = arith.constant 0 : i32
    %c0_i32_1 = arith.constant 0 : i32
    return %arg0, %arg1, %c0_i32, %c0_i32_0 : i32, i32, i32, i32
  }
}

</mosaic_0001>

<llo_original>
// kernel: sub.12
$region0: #{sub.12}
  #allocation0 [shape = 's32[1]{0}', space=sflag, size = 0x4, scoped, tag = 'scoped memory for sub.12']
  %s0 = inlined_call_operand.vmem [shape: f32[8], index: 0, kind: input, shape index: {}]
  %s1 = inlined_call_operand.vmem [shape: f32[8], index: 1, kind: input, shape index: {}]
  %s2 = inlined_call_operand.vmem [shape: f32[8], index: 2, kind: output, shape index: {}]
  %v3 = vld [vmem:[%s0] sm:$0x1]
  %v4 = vld [vmem:[%s1] sm:$0x1]
  %5 = xla_tuple %v3, %v4
  %6 = xla_tuple %5
  %v7 = vsub.f32 %v3, %v4
  %8 = xla_tuple %v7
  %9 = vst [vmem:[%s2] sm:$0x1] %v7

// kernel: binary_resnet_bisrnet_down.15
$region0: #{binary_resnet_bisrnet_down.15}
  #allocation0 [shape = 'u32[]', space=smem, size = 0x4, offset = 0x4, fixed_abs, tag = 'smem constant byte address 0x4 - core index']
  #allocation1 [shape = 'u32[72,128]{1,0:T(1,128)}', space=vmem, size = 0x9000, scoped, tag = 'internal scratch']
  %s0 = inlined_call_operand.vmem [shape: bf16[128,128], index: 0, kind: input, shape index: {}]
  %s1 = inlined_call_operand.vmem [shape: bf16[128,128], index: 1, kind: input, shape index: {}]
  %s2 = inlined_call_operand.vmem [shape: f32[1,128], index: 2, kind: input, shape index: {}]
  %s3 = inlined_call_operand.vmem [shape: f32[1,128], index: 3, kind: input, shape index: {}]
  %s4 = inlined_call_operand.vmem [shape: bf16[128,128], index: 4, kind: output, shape index: {}]
  %s5 = sld [smem:[#allocation0]]
  $region26: #{binary_resnet_bisrnet_down.15} parent=0
    _
  %s7 = ssub.s32 1, %s5
  %s8 = scalar_select 0, %s7, %s5
  // Predicated region
  $region2: #{binary_resnet_bisrnet_down.15} parent=0 // pred_check
    _
  $region3: #{binary_resnet_bisrnet_down.15} parent=0 // pred_check_branch
    %10 = sbr.rel (0) target = $region5
  $region4: #{binary_resnet_bisrnet_down.15} parent=0 // pred_region
    _
  $region5: #{binary_resnet_bisrnet_down.15} parent=0 // pred_fallthru
    _
  // Predicated region
  $region6: #{binary_resnet_bisrnet_down.15} parent=0 // pred_check
    _
  $region7: #{binary_resnet_bisrnet_down.15} parent=0 // pred_check_branch
    %12 = sbr.rel (0) target = $region9
  $region8: #{binary_resnet_bisrnet_down.15} parent=0 // pred_region
    _
  $region9: #{binary_resnet_bisrnet_down.15} parent=0 // pred_fallthru
    _
  // Predicated region
  $region10: #{binary_resnet_bisrnet_down.15} parent=0 // pred_check
    _
  $region11: #{binary_resnet_bisrnet_down.15} parent=0 // pred_check_branch
    %14 = sbr.rel (0) target = $region13
  $region12: #{binary_resnet_bisrnet_down.15} parent=0 // pred_region
    _
  $region13: #{binary_resnet_bisrnet_down.15} parent=0 // pred_fallthru
    _
  // Predicated region
  $region14: #{binary_resnet_bisrnet_down.15} parent=0 // pred_check
    _
  $region15: #{binary_resnet_bisrnet_down.15} parent=0 // pred_check_branch
    %16 = sbr.rel (0) target = $region17
  $region16: #{binary_resnet_bisrnet_down.15} parent=0 // pred_region
    _
  $region17: #{binary_resnet_bisrnet_down.15} parent=0 // pred_fallthru
    _
  %v17 = vld [vmem:[%s0] sm:$0xf]
  %v18 = vld [vmem:[%s0 + $0x4] sm:$0xf]
  %v19 = vld [vmem:[%s0 + $0x8] sm:$0xf]
  %v20 = vld [vmem:[%s0 + $0xc] sm:$0xf]
  %v21 = vld [vmem:[%s0 + $0x10] sm:$0xf]
  %v22 = vld [vmem:[%s0 + $0x14] sm:$0xf]
  %v23 = vld [vmem:[%s0 + $0x18] sm:$0xf]
  %v24 = vld [vmem:[%s0 + $0x1c] sm:$0xf]
  %v25 = vld [vmem:[%s0 + $0x20] sm:$0xf]
  %v26 = vld [vmem:[%s0 + $0x24] sm:$0xf]
  %v27 = vld [vmem:[%s0 + $0x28] sm:$0xf]
  %v28 = vld [vmem:[%s0 + $0x2c] sm:$0xf]
  %v29 = vld [vmem:[%s0 + $0x30] sm:$0xf]
  %v30 = vld [vmem:[%s0 + $0x34] sm:$0xf]
  %v31 = vld [vmem:[%s0 + $0x38] sm:$0xf]
  %v32 = vld [vmem:[%s0 + $0x3c] sm:$0xf]
  %v33 = vld [vmem:[%s1] sm:$0xf]
  %v34 = vld [vmem:[%s1 + $0x4] sm:$0xf]
  %v35 = vld [vmem:[%s1 + $0x8] sm:$0xf]
  %v36 = vld [vmem:[%s1 + $0xc] sm:$0xf]
  %v37 = vld [vmem:[%s1 + $0x10] sm:$0xf]
  %v38 = vld [vmem:[%s1 + $0x14] sm:$0xf]
  %v39 = vld [vmem:[%s1 + $0x18] sm:$0xf]
  %v40 = vld [vmem:[%s1 + $0x1c] sm:$0xf]
  %v41 = vld [vmem:[%s1 + $0x20] sm:$0xf]
  %v42 = vld [vmem:[%s1 + $0x24] sm:$0xf]
  %v43 = vld [vmem:[%s1 + $0x28] sm:$0xf]
  %v44 = vld [vmem:[%s1 + $0x2c] sm:$0xf]
  %v45 = vld [vmem:[%s1 + $0x30] sm:$0xf]
  %v46 = vld [vmem:[%s1 + $0x34] sm:$0xf]
  %v47 = vld [vmem:[%s1 + $0x38] sm:$0xf]
  %v48 = vld [vmem:[%s1 + $0x3c] sm:$0xf]
  %v65 = vunpack.c.l.b16 %v17
  %v66 = vunpack.c.l.b16 %v18
  %v67 = vunpack.c.l.b16 %v19
  %v68 = vunpack.c.l.b16 %v20
  %v69 = vunpack.c.l.b16 %v21
  %v70 = vunpack.c.l.b16 %v22
  %v71 = vunpack.c.l.b16 %v23
  %v72 = vunpack.c.l.b16 %v24
  %v73 = vunpack.c.l.b16 %v25
  %v74 = vunpack.c.l.b16 %v26
  %v75 = vunpack.c.l.b16 %v27
  %v76 = vunpack.c.l.b16 %v28
  %v77 = vunpack.c.l.b16 %v29
  %v78 = vunpack.c.l.b16 %v30
  %v79 = vunpack.c.l.b16 %v31
  %v80 = vunpack.c.l.b16 %v32
  %v81 = vpack.c.b16 %v66, %v65
  %v82 = vpack.c.b16 %v68, %v67
  %v83 = vpack.c.b16 %v70, %v69
  %v84 = vpack.c.b16 %v72, %v71
  %v85 = vpack.c.b16 %v74, %v73
  %v86 = vpack.c.b16 %v76, %v75
  %v87 = vpack.c.b16 %v78, %v77
  %v88 = vpack.c.b16 %v80, %v79
  %v113 = vunpack.c.l.b16 %v33
  %v114 = vunpack.c.l.b16 %v34
  %v115 = vunpack.c.l.b16 %v35
  %v116 = vunpack.c.l.b16 %v36
  %v117 = vunpack.c.l.b16 %v37
  %v118 = vunpack.c.l.b16 %v38
  %v119 = vunpack.c.l.b16 %v39
  %v120 = vunpack.c.l.b16 %v40
  %v121 = vunpack.c.l.b16 %v41
  %v122 = vunpack.c.l.b16 %v42
  %v123 = vunpack.c.l.b16 %v43
  %v124 = vunpack.c.l.b16 %v44
  %v125 = vunpack.c.l.b16 %v45
  %v126 = vunpack.c.l.b16 %v46
  %v127 = vunpack.c.l.b16 %v47
  %v128 = vunpack.c.l.b16 %v48
  %v129 = vpack.c.b16 %v114, %v113
  %v130 = vpack.c.b16 %v116, %v115
  %v131 = vpack.c.b16 %v118, %v117
  %v132 = vpack.c.b16 %v120, %v119
  %v133 = vpack.c.b16 %v122, %v121
  %v134 = vpack.c.b16 %v124, %v123
  %v135 = vpack.c.b16 %v126, %v125
  %v136 = vpack.c.b16 %v128, %v127
  %145 = vmatpush.bf16.msra.mxu0 %v136
  %146 = vmatpush.bf16.msra.mxu0 %v135
  %147 = vmatpush.bf16.msra.mxu0 %v134
  %148 = vmatpush.bf16.msra.mxu0 %v133
  %149 = vmatpush.bf16.msra.mxu0 %v132
  %150 = vmatpush.bf16.msra.mxu0 %v131
  %151 = vmatpush.bf16.msra.mxu0 %v130
  %152 = vmatpush.bf16.msra.mxu0 %v129
  %153 = vmatmul.bf16.gmra.mxu0 %v81
  %v154 = vpop.f32.mrf.mxu0
  %v155 = vadd.f32 0.0, %v154
  %v156 = vpop.f32.mrf.mxu0
  %v157 = vadd.f32 0.0, %v156
  %158 = vmatmul.bf16.gmra.mxu0 %v82
  %v159 = vpop.f32.mrf.mxu0
  %v160 = vadd.f32 0.0, %v159
  %v161 = vpop.f32.mrf.mxu0
  %v162 = vadd.f32 0.0, %v161
  %163 = vmatmul.bf16.gmra.mxu0 %v83
  %v164 = vpop.f32.mrf.mxu0
  %v165 = vadd.f32 0.0, %v164
  %v166 = vpop.f32.mrf.mxu0
  %v167 = vadd.f32 0.0, %v166
  %168 = vmatmul.bf16.gmra.mxu0 %v84
  %v169 = vpop.f32.mrf.mxu0
  %v170 = vadd.f32 0.0, %v169
  %v171 = vpop.f32.mrf.mxu0
  %v172 = vadd.f32 0.0, %v171
  %173 = vmatmul.bf16.gmra.mxu0 %v85
  %v174 = vpop.f32.mrf.mxu0
  %v175 = vadd.f32 0.0, %v174
  %v176 = vpop.f32.mrf.mxu0
  %v177 = vadd.f32 0.0, %v176
  %178 = vmatmul.bf16.gmra.mxu0 %v86
  %v179 = vpop.f32.mrf.mxu0
  %v180 = vadd.f32 0.0, %v179
  %v181 = vpop.f32.mrf.mxu0
  %v182 = vadd.f32 0.0, %v181
  %183 = vmatmul.bf16.gmra.mxu0 %v87
  %v184 = vpop.f32.mrf.mxu0
  %v185 = vadd.f32 0.0, %v184
  %v186 = vpop.f32.mrf.mxu0
  %v187 = vadd.f32 0.0, %v186
  %188 = vmatmul.bf16.gmra.mxu0 %v88
  %v189 = vpop.f32.mrf.mxu0
  %v190 = vadd.f32 0.0, %v189
  %v191 = vpop.f32.mrf.mxu0
  %v192 = vadd.f32 0.0, %v191
  %193 = vdwg.mxu0
  %v194 = vld [vmem:[%s2] sm:$0x1]
  %v196 = vperm.slane %v194, 0
  %v198 = vmul.f32 %v155, %v196
  %v199 = vmul.f32 %v157, %v196
  %v200 = vmul.f32 %v160, %v196
  %v201 = vmul.f32 %v162, %v196
  %v202 = vmul.f32 %v165, %v196
  %v203 = vmul.f32 %v167, %v196
  %v204 = vmul.f32 %v170, %v196
  %v205 = vmul.f32 %v172, %v196
  %v206 = vmul.f32 %v175, %v196
  %v207 = vmul.f32 %v177, %v196
  %v208 = vmul.f32 %v180, %v196
  %v209 = vmul.f32 %v182, %v196
  %v210 = vmul.f32 %v185, %v196
  %v211 = vmul.f32 %v187, %v196
  %v212 = vmul.f32 %v190, %v196
  %v213 = vmul.f32 %v192, %v196
  %v214 = vld [vmem:[%s3] sm:$0x1]
  %v216 = vperm.slane %v214, 0
  %v218 = vadd.f32 %v198, %v216
  %v219 = vadd.f32 %v199, %v216
  %v220 = vadd.f32 %v200, %v216
  %v221 = vadd.f32 %v201, %v216
  %v222 = vadd.f32 %v202, %v216
  %v223 = vadd.f32 %v203, %v216
  %v224 = vadd.f32 %v204, %v216
  %v225 = vadd.f32 %v205, %v216
  %v226 = vadd.f32 %v206, %v216
  %v227 = vadd.f32 %v207, %v216
  %v228 = vadd.f32 %v208, %v216
  %v229 = vadd.f32 %v209, %v216
  %v230 = vadd.f32 %v210, %v216
  %v231 = vadd.f32 %v211, %v216
  %v232 = vadd.f32 %v212, %v216
  %v233 = vadd.f32 %v213, %v216
  %v234 = vpack.c.bf16 %v218, %v218
  %v235 = vpack.c.bf16 %v219, %v219
  %v236 = vpack.c.bf16 %v220, %v220
  %v237 = vpack.c.bf16 %v221, %v221
  %v238 = vpack.c.bf16 %v222, %v222
  %v239 = vpack.c.bf16 %v223, %v223
  %v240 = vpack.c.bf16 %v224, %v224
  %v241 = vpack.c.bf16 %v225, %v225
  %v242 = vpack.c.bf16 %v226, %v226
  %v243 = vpack.c.bf16 %v227, %v227
  %v244 = vpack.c.bf16 %v228, %v228
  %v245 = vpack.c.bf16 %v229, %v229
  %v246 = vpack.c.bf16 %v230, %v230
  %v247 = vpack.c.bf16 %v231, %v231
  %v248 = vpack.c.bf16 %v232, %v232
  %v249 = vpack.c.bf16 %v233, %v233
  %250 = vst [vmem:[%s4] sm:$0xf] %v234
  %251 = vst [vmem:[%s4 + $0x4] sm:$0xf] %v235
  %252 = vst [vmem:[%s4 + $0x8] sm:$0xf] %v236
  %253 = vst [vmem:[%s4 + $0xc] sm:$0xf] %v237
  %254 = vst [vmem:[%s4 + $0x10] sm:$0xf] %v238
  %255 = vst [vmem:[%s4 + $0x14] sm:$0xf] %v239
  %256 = vst [vmem:[%s4 + $0x18] sm:$0xf] %v240
  %257 = vst [vmem:[%s4 + $0x1c] sm:$0xf] %v241
  %258 = vst [vmem:[%s4 + $0x20] sm:$0xf] %v242
  %259 = vst [vmem:[%s4 + $0x24] sm:$0xf] %v243
  %260 = vst [vmem:[%s4 + $0x28] sm:$0xf] %v244
  %261 = vst [vmem:[%s4 + $0x2c] sm:$0xf] %v245
  %262 = vst [vmem:[%s4 + $0x30] sm:$0xf] %v246
  %263 = vst [vmem:[%s4 + $0x34] sm:$0xf] %v247
  %264 = vst [vmem:[%s4 + $0x38] sm:$0xf] %v248
  %265 = vst [vmem:[%s4 + $0x3c] sm:$0xf] %v249
  // Predicated region
  $region18: #{binary_resnet_bisrnet_down.15} parent=0 // pred_check
    _
  $region19: #{binary_resnet_bisrnet_down.15} parent=0 // pred_check_branch
    %267 = sbr.rel (0) target = $region21
  $region20: #{binary_resnet_bisrnet_down.15} parent=0 // pred_region
    _
  $region21: #{binary_resnet_bisrnet_down.15} parent=0 // pred_fallthru
    _
  // Predicated region
  $region22: #{binary_resnet_bisrnet_down.15} parent=0 // pred_check
    _
  $region23: #{binary_resnet_bisrnet_down.15} parent=0 // pred_check_branch
    %269 = sbr.rel (0) target = $region25
  $region24: #{binary_resnet_bisrnet_down.15} parent=0 // pred_region
    _
  $region25: #{binary_resnet_bisrnet_down.15} parent=0 // pred_fallthru
    _

// kernel: binary_resnet_bisrnet_down.16
$region0: #{binary_resnet_bisrnet_down.16}
  #allocation0 [shape = 'u32[]', space=smem, size = 0x4, offset = 0x4, fixed_abs, tag = 'smem constant byte address 0x4 - core index']
  #allocation1 [shape = 'u32[72,128]{1,0:T(1,128)}', space=vmem, size = 0x9000, scoped, tag = 'internal scratch']
  %s0 = inlined_call_operand.vmem [shape: bf16[128,128], index: 0, kind: input, shape index: {}]
  %s1 = inlined_call_operand.vmem [shape: bf16[128,128], index: 1, kind: input, shape index: {}]
  %s2 = inlined_call_operand.vmem [shape: f32[1,128], index: 2, kind: input, shape index: {}]
  %s3 = inlined_call_operand.vmem [shape: f32[1,128], index: 3, kind: input, shape index: {}]
  %s4 = inlined_call_operand.vmem [shape: bf16[128,128], index: 4, kind: input, shape index: {}]
  %s5 = inlined_call_operand.vmem [shape: f32[1,128], index: 5, kind: input, shape index: {}]
  %s6 = inlined_call_operand.vmem [shape: f32[1,128], index: 6, kind: input, shape index: {}]
  %s7 = inlined_call_operand.vmem [shape: bf16[128,128], index: 7, kind: output, shape index: {}]
  %s8 = sld [smem:[#allocation0]]
  $region38: #{binary_resnet_bisrnet_down.16} parent=0
    _
  %s10 = ssub.s32 1, %s8
  %s11 = scalar_select 0, %s10, %s8
  // Predicated region
  $region2: #{binary_resnet_bisrnet_down.16} parent=0 // pred_check
    _
  $region3: #{binary_resnet_bisrnet_down.16} parent=0 // pred_check_branch
    %13 = sbr.rel (0) target = $region5
  $region4: #{binary_resnet_bisrnet_down.16} parent=0 // pred_region
    _
  $region5: #{binary_resnet_bisrnet_down.16} parent=0 // pred_fallthru
    _
  // Predicated region
  $region6: #{binary_resnet_bisrnet_down.16} parent=0 // pred_check
    _
  $region7: #{binary_resnet_bisrnet_down.16} parent=0 // pred_check_branch
    %15 = sbr.rel (0) target = $region9
  $region8: #{binary_resnet_bisrnet_down.16} parent=0 // pred_region
    _
  $region9: #{binary_resnet_bisrnet_down.16} parent=0 // pred_fallthru
    _
  // Predicated region
  $region10: #{binary_resnet_bisrnet_down.16} parent=0 // pred_check
    _
  $region11: #{binary_resnet_bisrnet_down.16} parent=0 // pred_check_branch
    %17 = sbr.rel (0) target = $region13
  $region12: #{binary_resnet_bisrnet_down.16} parent=0 // pred_region
    _
  $region13: #{binary_resnet_bisrnet_down.16} parent=0 // pred_fallthru
    _
  // Predicated region
  $region14: #{binary_resnet_bisrnet_down.16} parent=0 // pred_check
    _
  $region15: #{binary_resnet_bisrnet_down.16} parent=0 // pred_check_branch
    %19 = sbr.rel (0) target = $region17
  $region16: #{binary_resnet_bisrnet_down.16} parent=0 // pred_region
    _
  $region17: #{binary_resnet_bisrnet_down.16} parent=0 // pred_fallthru
    _
  // Predicated region
  $region18: #{binary_resnet_bisrnet_down.16} parent=0 // pred_check
    _
  $region19: #{binary_resnet_bisrnet_down.16} parent=0 // pred_check_branch
    %21 = sbr.rel (0) target = $region21
  $region20: #{binary_resnet_bisrnet_down.16} parent=0 // pred_region
    _
  $region21: #{binary_resnet_bisrnet_down.16} parent=0 // pred_fallthru
    _
  // Predicated region
  $region22: #{binary_resnet_bisrnet_down.16} parent=0 // pred_check
    _
  $region23: #{binary_resnet_bisrnet_down.16} parent=0 // pred_check_branch
    %23 = sbr.rel (0) target = $region25
  $region24: #{binary_resnet_bisrnet_down.16} parent=0 // pred_region
    _
  $region25: #{binary_resnet_bisrnet_down.16} parent=0 // pred_fallthru
    _
  // Predicated region
  $region26: #{binary_resnet_bisrnet_down.16} parent=0 // pred_check
    _
  $region27: #{binary_resnet_bisrnet_down.16} parent=0 // pred_check_branch
    %25 = sbr.rel (0) target = $region29
  $region28: #{binary_resnet_bisrnet_down.16} parent=0 // pred_region
    _
  $region29: #{binary_resnet_bisrnet_down.16} parent=0 // pred_fallthru
    _
  %v26 = vld [vmem:[%s0] sm:$0xf]
  %v27 = vld [vmem:[%s0 + $0x4] sm:$0xf]
  %v28 = vld [vmem:[%s0 + $0x8] sm:$0xf]
  %v29 = vld [vmem:[%s0 + $0xc] sm:$0xf]
  %v30 = vld [vmem:[%s0 + $0x10] sm:$0xf]
  %v31 = vld [vmem:[%s0 + $0x14] sm:$0xf]
  %v32 = vld [vmem:[%s0 + $0x18] sm:$0xf]
  %v33 = vld [vmem:[%s0 + $0x1c] sm:$0xf]
  %v34 = vld [vmem:[%s0 + $0x20] sm:$0xf]
  %v35 = vld [vmem:[%s0 + $0x24] sm:$0xf]
  %v36 = vld [vmem:[%s0 + $0x28] sm:$0xf]
  %v37 = vld [vmem:[%s0 + $0x2c] sm:$0xf]
  %v38 = vld [vmem:[%s0 + $0x30] sm:$0xf]
  %v39 = vld [vmem:[%s0 + $0x34] sm:$0xf]
  %v40 = vld [vmem:[%s0 + $0x38] sm:$0xf]
  %v41 = vld [vmem:[%s0 + $0x3c] sm:$0xf]
  %v42 = vld [vmem:[%s1] sm:$0xf]
  %v43 = vld [vmem:[%s1 + $0x4] sm:$0xf]
  %v44 = vld [vmem:[%s1 + $0x8] sm:$0xf]
  %v45 = vld [vmem:[%s1 + $0xc] sm:$0xf]
  %v46 = vld [vmem:[%s1 + $0x10] sm:$0xf]
  %v47 = vld [vmem:[%s1 + $0x14] sm:$0xf]
  %v48 = vld [vmem:[%s1 + $0x18] sm:$0xf]
  %v49 = vld [vmem:[%s1 + $0x1c] sm:$0xf]
  %v50 = vld [vmem:[%s1 + $0x20] sm:$0xf]
  %v51 = vld [vmem:[%s1 + $0x24] sm:$0xf]
  %v52 = vld [vmem:[%s1 + $0x28] sm:$0xf]
  %v53 = vld [vmem:[%s1 + $0x2c] sm:$0xf]
  %v54 = vld [vmem:[%s1 + $0x30] sm:$0xf]
  %v55 = vld [vmem:[%s1 + $0x34] sm:$0xf]
  %v56 = vld [vmem:[%s1 + $0x38] sm:$0xf]
  %v57 = vld [vmem:[%s1 + $0x3c] sm:$0xf]
  %v74 = vunpack.c.l.b16 %v26
  %v75 = vunpack.c.l.b16 %v27
  %v76 = vunpack.c.l.b16 %v28
  %v77 = vunpack.c.l.b16 %v29
  %v78 = vunpack.c.l.b16 %v30
  %v79 = vunpack.c.l.b16 %v31
  %v80 = vunpack.c.l.b16 %v32
  %v81 = vunpack.c.l.b16 %v33
  %v82 = vunpack.c.l.b16 %v34
  %v83 = vunpack.c.l.b16 %v35
  %v84 = vunpack.c.l.b16 %v36
  %v85 = vunpack.c.l.b16 %v37
  %v86 = vunpack.c.l.b16 %v38
  %v87 = vunpack.c.l.b16 %v39
  %v88 = vunpack.c.l.b16 %v40
  %v89 = vunpack.c.l.b16 %v41
  %v90 = vpack.c.b16 %v75, %v74
  %v91 = vpack.c.b16 %v77, %v76
  %v92 = vpack.c.b16 %v79, %v78
  %v93 = vpack.c.b16 %v81, %v80
  %v94 = vpack.c.b16 %v83, %v82
  %v95 = vpack.c.b16 %v85, %v84
  %v96 = vpack.c.b16 %v87, %v86
  %v97 = vpack.c.b16 %v89, %v88
  %v122 = vunpack.c.l.b16 %v42
  %v123 = vunpack.c.l.b16 %v43
  %v124 = vunpack.c.l.b16 %v44
  %v125 = vunpack.c.l.b16 %v45
  %v126 = vunpack.c.l.b16 %v46
  %v127 = vunpack.c.l.b16 %v47
  %v128 = vunpack.c.l.b16 %v48
  %v129 = vunpack.c.l.b16 %v49
  %v130 = vunpack.c.l.b16 %v50
  %v131 = vunpack.c.l.b16 %v51
  %v132 = vunpack.c.l.b16 %v52
  %v133 = vunpack.c.l.b16 %v53
  %v134 = vunpack.c.l.b16 %v54
  %v135 = vunpack.c.l.b16 %v55
  %v136 = vunpack.c.l.b16 %v56
  %v137 = vunpack.c.l.b16 %v57
  %v138 = vpack.c.b16 %v123, %v122
  %v139 = vpack.c.b16 %v125, %v124
  %v140 = vpack.c.b16 %v127, %v126
  %v141 = vpack.c.b16 %v129, %v128
  %v142 = vpack.c.b16 %v131, %v130
  %v143 = vpack.c.b16 %v133, %v132
  %v144 = vpack.c.b16 %v135, %v134
  %v145 = vpack.c.b16 %v137, %v136
  %154 = vmatpush.bf16.msra.mxu0 %v145
  %155 = vmatpush.bf16.msra.mxu0 %v144
  %156 = vmatpush.bf16.msra.mxu0 %v143
  %157 = vmatpush.bf16.msra.mxu0 %v142
  %158 = vmatpush.bf16.msra.mxu0 %v141
  %159 = vmatpush.bf16.msra.mxu0 %v140
  %160 = vmatpush.bf16.msra.mxu0 %v139
  %161 = vmatpush.bf16.msra.mxu0 %v138
  %162 = vmatmul.bf16.gmra.mxu0 %v90
  %v163 = vpop.f32.mrf.mxu0
  %v164 = vadd.f32 0.0, %v163
  %v165 = vpop.f32.mrf.mxu0
  %v166 = vadd.f32 0.0, %v165
  %167 = vmatmul.bf16.gmra.mxu0 %v91
  %v168 = vpop.f32.mrf.mxu0
  %v169 = vadd.f32 0.0, %v168
  %v170 = vpop.f32.mrf.mxu0
  %v171 = vadd.f32 0.0, %v170
  %172 = vmatmul.bf16.gmra.mxu0 %v92
  %v173 = vpop.f32.mrf.mxu0
  %v174 = vadd.f32 0.0, %v173
  %v175 = vpop.f32.mrf.mxu0
  %v176 = vadd.f32 0.0, %v175
  %177 = vmatmul.bf16.gmra.mxu0 %v93
  %v178 = vpop.f32.mrf.mxu0
  %v179 = vadd.f32 0.0, %v178
  %v180 = vpop.f32.mrf.mxu0
  %v181 = vadd.f32 0.0, %v180
  %182 = vmatmul.bf16.gmra.mxu0 %v94
  %v183 = vpop.f32.mrf.mxu0
  %v184 = vadd.f32 0.0, %v183
  %v185 = vpop.f32.mrf.mxu0
  %v186 = vadd.f32 0.0, %v185
  %187 = vmatmul.bf16.gmra.mxu0 %v95
  %v188 = vpop.f32.mrf.mxu0
  %v189 = vadd.f32 0.0, %v188
  %v190 = vpop.f32.mrf.mxu0
  %v191 = vadd.f32 0.0, %v190
  %192 = vmatmul.bf16.gmra.mxu0 %v96
  %v193 = vpop.f32.mrf.mxu0
  %v194 = vadd.f32 0.0, %v193
  %v195 = vpop.f32.mrf.mxu0
  %v196 = vadd.f32 0.0, %v195
  %197 = vmatmul.bf16.gmra.mxu0 %v97
  %v198 = vpop.f32.mrf.mxu0
  %v199 = vadd.f32 0.0, %v198
  %v200 = vpop.f32.mrf.mxu0
  %v201 = vadd.f32 0.0, %v200
  %202 = vdwg.mxu0
  %v203 = vld [vmem:[%s2] sm:$0x1]
  %v205 = vperm.slane %v203, 0
  %v207 = vmul.f32 %v164, %v205
  %v208 = vmul.f32 %v166, %v205
  %v209 = vmul.f32 %v169, %v205
  %v210 = vmul.f32 %v171, %v205
  %v211 = vmul.f32 %v174, %v205
  %v212 = vmul.f32 %v176, %v205
  %v213 = vmul.f32 %v179, %v205
  %v214 = vmul.f32 %v181, %v205
  %v215 = vmul.f32 %v184, %v205
  %v216 = vmul.f32 %v186, %v205
  %v217 = vmul.f32 %v189, %v205
  %v218 = vmul.f32 %v191, %v205
  %v219 = vmul.f32 %v194, %v205
  %v220 = vmul.f32 %v196, %v205
  %v221 = vmul.f32 %v199, %v205
  %v222 = vmul.f32 %v201, %v205
  %v223 = vld [vmem:[%s3] sm:$0x1]
  %v225 = vperm.slane %v223, 0
  %v227 = vadd.f32 %v207, %v225
  %v228 = vadd.f32 %v208, %v225
  %v229 = vadd.f32 %v209, %v225
  %v230 = vadd.f32 %v210, %v225
  %v231 = vadd.f32 %v211, %v225
  %v232 = vadd.f32 %v212, %v225
  %v233 = vadd.f32 %v213, %v225
  %v234 = vadd.f32 %v214, %v225
  %v235 = vadd.f32 %v215, %v225
  %v236 = vadd.f32 %v216, %v225
  %v237 = vadd.f32 %v217, %v225
  %v238 = vadd.f32 %v218, %v225
  %v239 = vadd.f32 %v219, %v225
  %v240 = vadd.f32 %v220, %v225
  %v241 = vadd.f32 %v221, %v225
  %v242 = vadd.f32 %v222, %v225
  %v243 = vld [vmem:[%s4] sm:$0xf]
  %v244 = vld [vmem:[%s4 + $0x4] sm:$0xf]
  %v245 = vld [vmem:[%s4 + $0x8] sm:$0xf]
  %v246 = vld [vmem:[%s4 + $0xc] sm:$0xf]
  %v247 = vld [vmem:[%s4 + $0x10] sm:$0xf]
  %v248 = vld [vmem:[%s4 + $0x14] sm:$0xf]
  %v249 = vld [vmem:[%s4 + $0x18] sm:$0xf]
  %v250 = vld [vmem:[%s4 + $0x1c] sm:$0xf]
  %v251 = vld [vmem:[%s4 + $0x20] sm:$0xf]
  %v252 = vld [vmem:[%s4 + $0x24] sm:$0xf]
  %v253 = vld [vmem:[%s4 + $0x28] sm:$0xf]
  %v254 = vld [vmem:[%s4 + $0x2c] sm:$0xf]
  %v255 = vld [vmem:[%s4 + $0x30] sm:$0xf]
  %v256 = vld [vmem:[%s4 + $0x34] sm:$0xf]
  %v257 = vld [vmem:[%s4 + $0x38] sm:$0xf]
  %v258 = vld [vmem:[%s4 + $0x3c] sm:$0xf]
  %v259 = vunpack.c.l.bf16 %v243
  %v260 = vunpack.c.l.bf16 %v244
  %v261 = vunpack.c.l.bf16 %v245
  %v262 = vunpack.c.l.bf16 %v246
  %v263 = vunpack.c.l.bf16 %v247
  %v264 = vunpack.c.l.bf16 %v248
  %v265 = vunpack.c.l.bf16 %v249
  %v266 = vunpack.c.l.bf16 %v250
  %v267 = vunpack.c.l.bf16 %v251
  %v268 = vunpack.c.l.bf16 %v252
  %v269 = vunpack.c.l.bf16 %v253
  %v270 = vunpack.c.l.bf16 %v254
  %v271 = vunpack.c.l.bf16 %v255
  %v272 = vunpack.c.l.bf16 %v256
  %v273 = vunpack.c.l.bf16 %v257
  %v274 = vunpack.c.l.bf16 %v258
  %v275 = vadd.f32 %v227, %v259
  %v276 = vadd.f32 %v228, %v260
  %v277 = vadd.f32 %v229, %v261
  %v278 = vadd.f32 %v230, %v262
  %v279 = vadd.f32 %v231, %v263
  %v280 = vadd.f32 %v232, %v264
  %v281 = vadd.f32 %v233, %v265
  %v282 = vadd.f32 %v234, %v266
  %v283 = vadd.f32 %v235, %v267
  %v284 = vadd.f32 %v236, %v268
  %v285 = vadd.f32 %v237, %v269
  %v286 = vadd.f32 %v238, %v270
  %v287 = vadd.f32 %v239, %v271
  %v288 = vadd.f32 %v240, %v272
  %v289 = vadd.f32 %v241, %v273
  %v290 = vadd.f32 %v242, %v274
  %vm291 = vcmp.gt.f32.partialorder %v275, 0.0
  %vm292 = vcmp.gt.f32.partialorder %v276, 0.0
  %vm293 = vcmp.gt.f32.partialorder %v277, 0.0
  %vm294 = vcmp.gt.f32.partialorder %v278, 0.0
  %vm295 = vcmp.gt.f32.partialorder %v279, 0.0
  %vm296 = vcmp.gt.f32.partialorder %v280, 0.0
  %vm297 = vcmp.gt.f32.partialorder %v281, 0.0
  %vm298 = vcmp.gt.f32.partialorder %v282, 0.0
  %vm299 = vcmp.gt.f32.partialorder %v283, 0.0
  %vm300 = vcmp.gt.f32.partialorder %v284, 0.0
  %vm301 = vcmp.gt.f32.partialorder %v285, 0.0
  %vm302 = vcmp.gt.f32.partialorder %v286, 0.0
  %vm303 = vcmp.gt.f32.partialorder %v287, 0.0
  %vm304 = vcmp.gt.f32.partialorder %v288, 0.0
  %vm305 = vcmp.gt.f32.partialorder %v289, 0.0
  %vm306 = vcmp.gt.f32.partialorder %v290, 0.0
  %v307 = vld [vmem:[%s5] sm:$0x1]
  %v309 = vperm.slane %v307, 0
  %v311 = vmul.f32 %v309, %v275
  %v312 = vmul.f32 %v309, %v276
  %v313 = vmul.f32 %v309, %v277
  %v314 = vmul.f32 %v309, %v278
  %v315 = vmul.f32 %v309, %v279
  %v316 = vmul.f32 %v309, %v280
  %v317 = vmul.f32 %v309, %v281
  %v318 = vmul.f32 %v309, %v282
  %v319 = vmul.f32 %v309, %v283
  %v320 = vmul.f32 %v309, %v284
  %v321 = vmul.f32 %v309, %v285
  %v322 = vmul.f32 %v309, %v286
  %v323 = vmul.f32 %v309, %v287
  %v324 = vmul.f32 %v309, %v288
  %v325 = vmul.f32 %v309, %v289
  %v326 = vmul.f32 %v309, %v290
  %v327 = vsel %vm291, %v275, %v311
  %v328 = vsel %vm292, %v276, %v312
  %v329 = vsel %vm293, %v277, %v313
  %v330 = vsel %vm294, %v278, %v314
  %v331 = vsel %vm295, %v279, %v315
  %v332 = vsel %vm296, %v280, %v316
  %v333 = vsel %vm297, %v281, %v317
  %v334 = vsel %vm298, %v282, %v318
  %v335 = vsel %vm299, %v283, %v319
  %v336 = vsel %vm300, %v284, %v320
  %v337 = vsel %vm301, %v285, %v321
  %v338 = vsel %vm302, %v286, %v322
  %v339 = vsel %vm303, %v287, %v323
  %v340 = vsel %vm304, %v288, %v324
  %v341 = vsel %vm305, %v289, %v325
  %v342 = vsel %vm306, %v290, %v326
  %v343 = vld [vmem:[%s6] sm:$0x1]
  %v345 = vperm.slane %v343, 0
  %v347 = vadd.f32 %v327, %v345
  %v348 = vadd.f32 %v328, %v345
  %v349 = vadd.f32 %v329, %v345
  %v350 = vadd.f32 %v330, %v345
  %v351 = vadd.f32 %v331, %v345
  %v352 = vadd.f32 %v332, %v345
  %v353 = vadd.f32 %v333, %v345
  %v354 = vadd.f32 %v334, %v345
  %v355 = vadd.f32 %v335, %v345
  %v356 = vadd.f32 %v336, %v345
  %v357 = vadd.f32 %v337, %v345
  %v358 = vadd.f32 %v338, %v345
  %v359 = vadd.f32 %v339, %v345
  %v360 = vadd.f32 %v340, %v345
  %v361 = vadd.f32 %v341, %v345
  %v362 = vadd.f32 %v342, %v345
  %v363 = vpack.c.bf16 %v347, %v347
  %v364 = vpack.c.bf16 %v348, %v348
  %v365 = vpack.c.bf16 %v349, %v349
  %v366 = vpack.c.bf16 %v350, %v350
  %v367 = vpack.c.bf16 %v351, %v351
  %v368 = vpack.c.bf16 %v352, %v352
  %v369 = vpack.c.bf16 %v353, %v353
  %v370 = vpack.c.bf16 %v354, %v354
  %v371 = vpack.c.bf16 %v355, %v355
  %v372 = vpack.c.bf16 %v356, %v356
  %v373 = vpack.c.bf16 %v357, %v357
  %v374 = vpack.c.bf16 %v358, %v358
  %v375 = vpack.c.bf16 %v359, %v359
  %v376 = vpack.c.bf16 %v360, %v360
  %v377 = vpack.c.bf16 %v361, %v361
  %v378 = vpack.c.bf16 %v362, %v362
  %379 = vst [vmem:[%s7] sm:$0xf] %v363
  %380 = vst [vmem:[%s7 + $0x4] sm:$0xf] %v364
  %381 = vst [vmem:[%s7 + $0x8] sm:$0xf] %v365
  %382 = vst [vmem:[%s7 + $0xc] sm:$0xf] %v366
  %383 = vst [vmem:[%s7 + $0x10] sm:$0xf] %v367
  %384 = vst [vmem:[%s7 + $0x14] sm:$0xf] %v368
  %385 = vst [vmem:[%s7 + $0x18] sm:$0xf] %v369
  %386 = vst [vmem:[%s7 + $0x1c] sm:$0xf] %v370
  %387 = vst [vmem:[%s7 + $0x20] sm:$0xf] %v371
  %388 = vst [vmem:[%s7 + $0x24] sm:$0xf] %v372
  %389 = vst [vmem:[%s7 + $0x28] sm:$0xf] %v373
  %390 = vst [vmem:[%s7 + $0x2c] sm:$0xf] %v374
  %391 = vst [vmem:[%s7 + $0x30] sm:$0xf] %v375
  %392 = vst [vmem:[%s7 + $0x34] sm:$0xf] %v376
  %393 = vst [vmem:[%s7 + $0x38] sm:$0xf] %v377
  %394 = vst [vmem:[%s7 + $0x3c] sm:$0xf] %v378
  // Predicated region
  $region30: #{binary_resnet_bisrnet_down.16} parent=0 // pred_check
    _
  $region31: #{binary_resnet_bisrnet_down.16} parent=0 // pred_check_branch
    %396 = sbr.rel (0) target = $region33
  $region32: #{binary_resnet_bisrnet_down.16} parent=0 // pred_region
    _
  $region33: #{binary_resnet_bisrnet_down.16} parent=0 // pred_fallthru
    _
  // Predicated region
  $region34: #{binary_resnet_bisrnet_down.16} parent=0 // pred_check
    _
  $region35: #{binary_resnet_bisrnet_down.16} parent=0 // pred_check_branch
    %398 = sbr.rel (0) target = $region37
  $region36: #{binary_resnet_bisrnet_down.16} parent=0 // pred_region
    _
  $region37: #{binary_resnet_bisrnet_down.16} parent=0 // pred_fallthru
    _

// kernel: sub.16
$region0: #{sub.16}
  #allocation0 [shape = 's32[1]{0}', space=sflag, size = 0x4, scoped, tag = 'scoped memory for sub.16']
  %s0 = inlined_call_operand.vmem [shape: f32[16], index: 0, kind: input, shape index: {}]
  %s1 = inlined_call_operand.vmem [shape: f32[16], index: 1, kind: input, shape index: {}]
  %s2 = inlined_call_operand.vmem [shape: f32[16], index: 2, kind: output, shape index: {}]
  %v3 = vld [vmem:[%s0] sm:$0x1]
  %v4 = vld [vmem:[%s1] sm:$0x1]
  %5 = xla_tuple %v3, %v4
  %6 = xla_tuple %5
  %v7 = vsub.f32 %v3, %v4
  %8 = xla_tuple %v7
  %9 = vst [vmem:[%s2] sm:$0x1] %v7

// kernel: binary_resnet_bisrnet_down.17
$region0: #{binary_resnet_bisrnet_down.17}
  #allocation0 [shape = 'u32[]', space=smem, size = 0x4, offset = 0x4, fixed_abs, tag = 'smem constant byte address 0x4 - core index']
  #allocation1 [shape = 'u32[72,128]{1,0:T(1,128)}', space=vmem, size = 0x9000, scoped, tag = 'internal scratch']
  %s0 = inlined_call_operand.vmem [shape: bf16[2,10,10,128], index: 0, kind: input, shape index: {}, may-alias: {0,1,2}]
  %s1 = inlined_call_operand.vmem [shape: bf16[2,10,10,128], index: 1, kind: input, shape index: {}, may-alias: {0,1,2}]
  %s2 = inlined_call_operand.vmem [shape: bf16[2,10,10,128], index: 2, kind: input, shape index: {}, may-alias: {0,1,2}]
  %s3 = inlined_call_operand.vmem [shape: bf16[9,128,128], index: 3, kind: input, shape index: {}]
  %s4 = inlined_call_operand.vmem [shape: f32[1,128], index: 4, kind: input, shape index: {}]
  %s5 = inlined_call_operand.vmem [shape: f32[1,128], index: 5, kind: input, shape index: {}]
  %s6 = inlined_call_operand.vmem [shape: bf16[2,8,8,128], index: 6, kind: input, shape index: {}]
  %s7 = inlined_call_operand.vmem [shape: f32[1,128], index: 7, kind: input, shape index: {}]
  %s8 = inlined_call_operand.vmem [shape: f32[1,128], index: 8, kind: input, shape index: {}]
  %s9 = inlined_call_operand.vmem [shape: bf16[2,8,8,128], index: 9, kind: output, shape index: {}]
  %s10 = sld [smem:[#allocation0]]
  $region69: #{binary_resnet_bisrnet_down.17} parent=0
    _
  %s12 = ssub.s32 1, %s10
  %s13 = scalar_select 0, %s12, %s10
  loop: start=0, step=1, limit=18
  $region2: #{binary_resnet_bisrnet_down.17} parent=0 // loop_pre_header
    _
  $region3: #{binary_resnet_bisrnet_down.17} parent=0 // loop_header
    %s15 = sphi 0, %s19
    %p16 = scmp.ge.s32.totalorder %s15, 18
    %s22 = sphi 0, %s34
    %s23 = sphi 0, %s30
    %s24 = sphi 0, %s22
    %s25 = sphi 0, %s23
    %s26 = sphi 0, %s24
    %s27 = sphi 0, %s25
    %s39 = sphi 0, %s41
    %s42 = sphi 0, %s39
    %s43 = sphi 0, %s42
    %s59 = sphi 0, %s43
    %s69 = sphi 0, %s71
    %s72 = sphi 0, %s69
    %s73 = sphi 0, %s72
    %s89 = sphi 0, %s73
    %s99 = sphi 0, %s101
    %s102 = sphi 0, %s99
    %s103 = sphi 0, %s102
    %s119 = sphi 0, %s103
    %s123 = sphi 0, %s123
    %s125 = sphi 0, %s123
    %s126 = sphi 0, %s125
    %s140 = sphi 0, %s126
    %s144 = sphi 0, %s144
    %s146 = sphi 0, %s144
    %s147 = sphi 0, %s146
    %s161 = sphi 0, %s147
    %s165 = sphi 0, %s165
    %s167 = sphi 0, %s165
    %s168 = sphi 0, %s167
    %s182 = sphi 0, %s168
    %s190 = sphi 0, %s192
    %s193 = sphi 0, %s190
    %s194 = sphi 0, %s193
    %s210 = sphi 0, %s194
    %s214 = sphi 0, %s214
    %s216 = sphi 0, %s214
    %s217 = sphi 0, %s216
    %s231 = sphi 0, %s217
    %s235 = sphi 0, %s235
    %s237 = sphi 0, %s235
    %s238 = sphi 0, %s237
    %s252 = sphi 0, %s238
    %s260 = sphi 0, %s262
    %s263 = sphi 0, %s260
    %s264 = sphi 0, %s263
    %s280 = sphi 0, %s264
  $region4: #{binary_resnet_bisrnet_down.17} parent=0 // loop_header_branch
    %18 = sbr.rel (%p16) target = $region8
  $region5: #{binary_resnet_bisrnet_down.17} parent=0 // loop_body
    %s20 = ssub.s32 %s15, 1
    %s21 = ssub.s32 %s15, 2
    %s28 = sadd.s32 1, %s23
    %p29 = scmp.ge.s32.totalorder %s28, 8
    %s30 = scalar_select %p29, 0, %s28
    %s31 = sadd.s32 1, %s22
    %s32 = scalar_select %p29, %s31, %s22
    %p33 = scmp.ge.s32.totalorder %s32, 2
    %s34 = scalar_select %p33, 0, %s32
    %s35 = ssub.s32 %s22, %s34
    %s36 = ssub.s32 %s23, %s30
    %s37 = sor.u32 %s35, %s36
    %p38 = scmp.eq.s32.totalorder %s37, 0
    %s40 = sadd.s32 %s39, 1
    %s41 = scalar_select %p38, %s39, %s40
    %p44 = pneg %p38
    %p45 = scmp.eq.s32.totalorder %s15, 15
    %p46 = por %p44, %p45
    %p47 = scmp.ne.s32.totalorder %s39, %s42
    %p48 = scmp.eq.s32.totalorder %s15, 0
    %p49 = por %p47, %p48
    %p50 = scmp.ne.s32.totalorder %s39, %s42
    %p51 = scmp.eq.s32.totalorder %s20, 15
    %p52 = por %p50, %p51
    %p53 = scmp.ne.s32.totalorder %s42, %s43
    %p54 = scmp.eq.s32.totalorder %s20, 0
    %p55 = por %p53, %p54
    %p56 = scmp.ne.s32.totalorder %s42, %s43
    %p57 = scmp.eq.s32.totalorder %s21, 15
    %p58 = por %p56, %p57
    %p60 = scmp.ne.s32.totalorder %s43, %s59
    %p61 = scmp.eq.s32.totalorder %s21, 0
    %p62 = por %p60, %p61
    %s63 = sadd.s32 %s23, 1
    %s64 = sadd.s32 %s30, 1
    %s65 = ssub.s32 %s22, %s34
    %s66 = ssub.s32 %s63, %s64
    %s67 = sor.u32 %s65, %s66
    %p68 = scmp.eq.s32.totalorder %s67, 0
    %s70 = sadd.s32 %s69, 1
    %s71 = scalar_select %p68, %s69, %s70
    %p74 = pneg %p68
    %p75 = scmp.eq.s32.totalorder %s15, 15
    %p76 = por %p74, %p75
    %p77 = scmp.ne.s32.totalorder %s69, %s72
    %p78 = scmp.eq.s32.totalorder %s15, 0
    %p79 = por %p77, %p78
    %p80 = scmp.ne.s32.totalorder %s69, %s72
    %p81 = scmp.eq.s32.totalorder %s20, 15
    %p82 = por %p80, %p81
    %p83 = scmp.ne.s32.totalorder %s72, %s73
    %p84 = scmp.eq.s32.totalorder %s20, 0
    %p85 = por %p83, %p84
    %p86 = scmp.ne.s32.totalorder %s72, %s73
    %p87 = scmp.eq.s32.totalorder %s21, 15
    %p88 = por %p86, %p87
    %p90 = scmp.ne.s32.totalorder %s73, %s89
    %p91 = scmp.eq.s32.totalorder %s21, 0
    %p92 = por %p90, %p91
    %s93 = sadd.s32 %s23, 2
    %s94 = sadd.s32 %s30, 2
    %s95 = ssub.s32 %s22, %s34
    %s96 = ssub.s32 %s93, %s94
    %s97 = sor.u32 %s95, %s96
    %p98 = scmp.eq.s32.totalorder %s97, 0
    %s100 = sadd.s32 %s99, 1
    %s101 = scalar_select %p98, %s99, %s100
    %p104 = pneg %p98
    %p105 = scmp.eq.s32.totalorder %s15, 15
    %p106 = por %p104, %p105
    %p107 = scmp.ne.s32.totalorder %s99, %s102
    %p108 = scmp.eq.s32.totalorder %s15, 0
    %p109 = por %p107, %p108
    %p110 = scmp.ne.s32.totalorder %s99, %s102
    %p111 = scmp.eq.s32.totalorder %s20, 15
    %p112 = por %p110, %p111
    %p113 = scmp.ne.s32.totalorder %s102, %s103
    %p114 = scmp.eq.s32.totalorder %s20, 0
    %p115 = por %p113, %p114
    %p116 = scmp.ne.s32.totalorder %s102, %s103
    %p117 = scmp.eq.s32.totalorder %s21, 15
    %p118 = por %p116, %p117
    %p120 = scmp.ne.s32.totalorder %s103, %s119
    %p121 = scmp.eq.s32.totalorder %s21, 0
    %p122 = por %p120, %p121
    %s124 = sadd.s32 %s123, 1
    %p127 = scmp.eq.s32.totalorder %s15, 15
    %p128 = scmp.ne.s32.totalorder %s123, %s125
    %p129 = scmp.eq.s32.totalorder %s15, 0
    %p130 = por %p128, %p129
    %p131 = scmp.ne.s32.totalorder %s123, %s125
    %p132 = scmp.eq.s32.totalorder %s20, 15
    %p133 = por %p131, %p132
    %p134 = scmp.ne.s32.totalorder %s125, %s126
    %p135 = scmp.eq.s32.totalorder %s20, 0
    %p136 = por %p134, %p135
    %p137 = scmp.ne.s32.totalorder %s125, %s126
    %p138 = scmp.eq.s32.totalorder %s21, 15
    %p139 = por %p137, %p138
    %p141 = scmp.ne.s32.totalorder %s126, %s140
    %p142 = scmp.eq.s32.totalorder %s21, 0
    %p143 = por %p141, %p142
    %s145 = sadd.s32 %s144, 1
    %p148 = scmp.eq.s32.totalorder %s15, 15
    %p149 = scmp.ne.s32.totalorder %s144, %s146
    %p150 = scmp.eq.s32.totalorder %s15, 0
    %p151 = por %p149, %p150
    %p152 = scmp.ne.s32.totalorder %s144, %s146
    %p153 = scmp.eq.s32.totalorder %s20, 15
    %p154 = por %p152, %p153
    %p155 = scmp.ne.s32.totalorder %s146, %s147
    %p156 = scmp.eq.s32.totalorder %s20, 0
    %p157 = por %p155, %p156
    %p158 = scmp.ne.s32.totalorder %s146, %s147
    %p159 = scmp.eq.s32.totalorder %s21, 15
    %p160 = por %p158, %p159
    %p162 = scmp.ne.s32.totalorder %s147, %s161
    %p163 = scmp.eq.s32.totalorder %s21, 0
    %p164 = por %p162, %p163
    %s166 = sadd.s32 %s165, 1
    %p169 = scmp.eq.s32.totalorder %s15, 15
    %p170 = scmp.ne.s32.totalorder %s165, %s167
    %p171 = scmp.eq.s32.totalorder %s15, 0
    %p172 = por %p170, %p171
    %p173 = scmp.ne.s32.totalorder %s165, %s167
    %p174 = scmp.eq.s32.totalorder %s20, 15
    %p175 = por %p173, %p174
    %p176 = scmp.ne.s32.totalorder %s167, %s168
    %p177 = scmp.eq.s32.totalorder %s20, 0
    %p178 = por %p176, %p177
    %p179 = scmp.ne.s32.totalorder %s167, %s168
    %p180 = scmp.eq.s32.totalorder %s21, 15
    %p181 = por %p179, %p180
    %p183 = scmp.ne.s32.totalorder %s168, %s182
    %p184 = scmp.eq.s32.totalorder %s21, 0
    %p185 = por %p183, %p184
    %s186 = ssub.s32 %s22, %s34
    %s187 = ssub.s32 %s23, %s30
    %s188 = sor.u32 %s186, %s187
    %p189 = scmp.eq.s32.totalorder %s188, 0
    %s191 = sadd.s32 %s190, 1
    %s192 = scalar_select %p189, %s190, %s191
    %p195 = pneg %p189
    %p196 = scmp.eq.s32.totalorder %s15, 15
    %p197 = por %p195, %p196
    %p198 = scmp.ne.s32.totalorder %s190, %s193
    %p199 = scmp.eq.s32.totalorder %s15, 0
    %p200 = por %p198, %p199
    %p201 = scmp.ne.s32.totalorder %s190, %s193
    %p202 = scmp.eq.s32.totalorder %s20, 15
    %p203 = por %p201, %p202
    %p204 = scmp.ne.s32.totalorder %s193, %s194
    %p205 = scmp.eq.s32.totalorder %s20, 0
    %p206 = por %p204, %p205
    %p207 = scmp.ne.s32.totalorder %s193, %s194
    %p208 = scmp.eq.s32.totalorder %s21, 15
    %p209 = por %p207, %p208
    %p211 = scmp.ne.s32.totalorder %s194, %s210
    %p212 = scmp.eq.s32.totalorder %s21, 0
    %p213 = por %p211, %p212
    %s215 = sadd.s32 %s214, 1
    %p218 = scmp.eq.s32.totalorder %s15, 15
    %p219 = scmp.ne.s32.totalorder %s214, %s216
    %p220 = scmp.eq.s32.totalorder %s15, 0
    %p221 = por %p219, %p220
    %p222 = scmp.ne.s32.totalorder %s214, %s216
    %p223 = scmp.eq.s32.totalorder %s20, 15
    %p224 = por %p222, %p223
    %p225 = scmp.ne.s32.totalorder %s216, %s217
    %p226 = scmp.eq.s32.totalorder %s20, 0
    %p227 = por %p225, %p226
    %p228 = scmp.ne.s32.totalorder %s216, %s217
    %p229 = scmp.eq.s32.totalorder %s21, 15
    %p230 = por %p228, %p229
    %p232 = scmp.ne.s32.totalorder %s217, %s231
    %p233 = scmp.eq.s32.totalorder %s21, 0
    %p234 = por %p232, %p233
    %s236 = sadd.s32 %s235, 1
    %p239 = scmp.eq.s32.totalorder %s15, 15
    %p240 = scmp.ne.s32.totalorder %s235, %s237
    %p241 = scmp.eq.s32.totalorder %s15, 0
    %p242 = por %p240, %p241
    %p243 = scmp.ne.s32.totalorder %s235, %s237
    %p244 = scmp.eq.s32.totalorder %s20, 15
    %p245 = por %p243, %p244
    %p246 = scmp.ne.s32.totalorder %s237, %s238
    %p247 = scmp.eq.s32.totalorder %s20, 0
    %p248 = por %p246, %p247
    %p249 = scmp.ne.s32.totalorder %s237, %s238
    %p250 = scmp.eq.s32.totalorder %s21, 15
    %p251 = por %p249, %p250
    %p253 = scmp.ne.s32.totalorder %s238, %s252
    %p254 = scmp.eq.s32.totalorder %s21, 0
    %p255 = por %p253, %p254
    %s256 = ssub.s32 %s22, %s34
    %s257 = ssub.s32 %s23, %s30
    %s258 = sor.u32 %s256, %s257
    %p259 = scmp.eq.s32.totalorder %s258, 0
    %s261 = sadd.s32 %s260, 1
    %s262 = scalar_select %p259, %s260, %s261
    %p265 = pneg %p259
    %p266 = scmp.eq.s32.totalorder %s15, 15
    %p267 = por %p265, %p266
    %p268 = scmp.ne.s32.totalorder %s260, %s263
    %p269 = scmp.eq.s32.totalorder %s15, 0
    %p270 = por %p268, %p269
    %p271 = scmp.ne.s32.totalorder %s260, %s263
    %p272 = scmp.eq.s32.totalorder %s20, 15
    %p273 = por %p271, %p272
    %p274 = scmp.ne.s32.totalorder %s263, %s264
    %p275 = scmp.eq.s32.totalorder %s20, 0
    %p276 = por %p274, %p275
    %p277 = scmp.ne.s32.totalorder %s263, %s264
    %p278 = scmp.eq.s32.totalorder %s21, 15
    %p279 = por %p277, %p278
    %p281 = scmp.ne.s32.totalorder %s264, %s280
    %p282 = scmp.eq.s32.totalorder %s21, 0
    %p283 = por %p281, %p282
    %p284 = scmp.le.s32.totalorder 1, %s15
    %p285 = scmp.lt.s32.totalorder %s15, 17
    %p286 = pnand %p284, %p285
    %p287 = pneg %p286
    // Predicated region
    $region9: #{binary_resnet_bisrnet_down.17} parent=5 // pred_check
      _
    $region10: #{binary_resnet_bisrnet_down.17} parent=5 // pred_check_branch
      %289 = sbr.rel (%p286) target = $region12
    $region11: #{binary_resnet_bisrnet_down.17} parent=5 // pred_region
      %s290 = ssub.s32 %s15, 1
      // Predicated region
      $region13: #{binary_resnet_bisrnet_down.17} parent=11 // pred_check
        %p291 = pneg %p136
      $region14: #{binary_resnet_bisrnet_down.17} parent=11 // pred_check_branch
        %293 = sbr.rel (%p291) target = $region16
      $region15: #{binary_resnet_bisrnet_down.17} parent=11 // pred_region
        _
      $region16: #{binary_resnet_bisrnet_down.17} parent=11 // pred_fallthru
        _
      // Predicated region
      $region17: #{binary_resnet_bisrnet_down.17} parent=11 // pred_check
        %p294 = pneg %p157
      $region18: #{binary_resnet_bisrnet_down.17} parent=11 // pred_check_branch
        %296 = sbr.rel (%p294) target = $region20
      $region19: #{binary_resnet_bisrnet_down.17} parent=11 // pred_region
        _
      $region20: #{binary_resnet_bisrnet_down.17} parent=11 // pred_fallthru
        _
      // Predicated region
      $region21: #{binary_resnet_bisrnet_down.17} parent=11 // pred_check
        %p297 = pneg %p178
      $region22: #{binary_resnet_bisrnet_down.17} parent=11 // pred_check_branch
        %299 = sbr.rel (%p297) target = $region24
      $region23: #{binary_resnet_bisrnet_down.17} parent=11 // pred_region
        _
      $region24: #{binary_resnet_bisrnet_down.17} parent=11 // pred_fallthru
        _
      // Predicated region
      $region25: #{binary_resnet_bisrnet_down.17} parent=11 // pred_check
        %p300 = pneg %p227
      $region26: #{binary_resnet_bisrnet_down.17} parent=11 // pred_check_branch
        %302 = sbr.rel (%p300) target = $region28
      $region27: #{binary_resnet_bisrnet_down.17} parent=11 // pred_region
        _
      $region28: #{binary_resnet_bisrnet_down.17} parent=11 // pred_fallthru
        _
      // Predicated region
      $region29: #{binary_resnet_bisrnet_down.17} parent=11 // pred_check
        %p303 = pneg %p248
      $region30: #{binary_resnet_bisrnet_down.17} parent=11 // pred_check_branch
        %305 = sbr.rel (%p303) target = $region32
      $region31: #{binary_resnet_bisrnet_down.17} parent=11 // pred_region
        _
      $region32: #{binary_resnet_bisrnet_down.17} parent=11 // pred_fallthru
        _
    $region12: #{binary_resnet_bisrnet_down.17} parent=5 // pred_fallthru
      _
    %p306 = scmp.lt.s32.totalorder %s15, 16
    // Predicated region
    $region33: #{binary_resnet_bisrnet_down.17} parent=5 // pred_check
      %p307 = pneg %p306
    $region34: #{binary_resnet_bisrnet_down.17} parent=5 // pred_check_branch
      %309 = sbr.rel (%p307) target = $region36
    $region35: #{binary_resnet_bisrnet_down.17} parent=5 // pred_region
      // Predicated region
      $region37: #{binary_resnet_bisrnet_down.17} parent=35 // pred_check
        %p310 = pneg %p49
      $region38: #{binary_resnet_bisrnet_down.17} parent=35 // pred_check_branch
        %312 = sbr.rel (%p310) target = $region40
      $region39: #{binary_resnet_bisrnet_down.17} parent=35 // pred_region
        %p313 = scmp.lt.s32.totalorder %s22, 1
        %s314 = scalar_select %p313, %s22, 1
        %p315 = scmp.lt.s32.totalorder %s23, 9
        %s316 = scalar_select %p315, %s23, 9
        %s317 = smul.addr %s316, 2
        %s318 = smul.addr %s314, 20
        %s319 = sadd.s32 %s317, %s318
        %s320 = smul.addr %s319, 4
        %s321 = scalar_lea.vmem %s0, %s320
      $region40: #{binary_resnet_bisrnet_down.17} parent=35 // pred_fallthru
        _
      // Predicated region
      $region41: #{binary_resnet_bisrnet_down.17} parent=35 // pred_check
        %p322 = pneg %p79
      $region42: #{binary_resnet_bisrnet_down.17} parent=35 // pred_check_branch
        %324 = sbr.rel (%p322) target = $region44
      $region43: #{binary_resnet_bisrnet_down.17} parent=35 // pred_region
        %s325 = sadd.s32 %s23, 1
        %p326 = scmp.lt.s32.totalorder %s22, 1
        %s327 = scalar_select %p326, %s22, 1
        %p328 = scmp.lt.s32.totalorder %s325, 9
        %s329 = scalar_select %p328, %s325, 9
        %s330 = smul.addr %s329, 2
        %s331 = smul.addr %s327, 20
        %s332 = sadd.s32 %s330, %s331
        %s333 = smul.addr %s332, 4
        %s334 = scalar_lea.vmem %s1, %s333
        %s335 = sadd.s32 %s23, 1
      $region44: #{binary_resnet_bisrnet_down.17} parent=35 // pred_fallthru
        _
      // Predicated region
      $region45: #{binary_resnet_bisrnet_down.17} parent=35 // pred_check
        %p336 = pneg %p109
      $region46: #{binary_resnet_bisrnet_down.17} parent=35 // pred_check_branch
        %338 = sbr.rel (%p336) target = $region48
      $region47: #{binary_resnet_bisrnet_down.17} parent=35 // pred_region
        %s339 = sadd.s32 %s23, 2
        %p340 = scmp.lt.s32.totalorder %s22, 1
        %s341 = scalar_select %p340, %s22, 1
        %p342 = scmp.lt.s32.totalorder %s339, 9
        %s343 = scalar_select %p342, %s339, 9
        %s344 = smul.addr %s343, 2
        %s345 = smul.addr %s341, 20
        %s346 = sadd.s32 %s344, %s345
        %s347 = smul.addr %s346, 4
        %s348 = scalar_lea.vmem %s2, %s347
        %s349 = sadd.s32 %s23, 2
      $region48: #{binary_resnet_bisrnet_down.17} parent=35 // pred_fallthru
        _
      // Predicated region
      $region49: #{binary_resnet_bisrnet_down.17} parent=35 // pred_check
        %p350 = pneg %p200
      $region50: #{binary_resnet_bisrnet_down.17} parent=35 // pred_check_branch
        %352 = sbr.rel (%p350) target = $region52
      $region51: #{binary_resnet_bisrnet_down.17} parent=35 // pred_region
        %p353 = scmp.lt.s32.totalorder %s22, 1
        %s354 = scalar_select %p353, %s22, 1
        %p355 = scmp.lt.s32.totalorder %s23, 7
        %s356 = scalar_select %p355, %s23, 7
        %s357 = smul.addr %s354, 8
        %s358 = sadd.s32 %s356, %s357
        %s359 = smul.addr %s358, 4
        %s360 = scalar_lea.vmem %s6, %s359
      $region52: #{binary_resnet_bisrnet_down.17} parent=35 // pred_fallthru
        _
    $region36: #{binary_resnet_bisrnet_down.17} parent=5 // pred_fallthru
      _
    %p361 = scmp.le.s32.totalorder 1, %s15
    %p362 = scmp.lt.s32.totalorder %s15, 17
    %p363 = pnand %p361, %p362
    %p364 = pneg %p363
    // Predicated region
    $region53: #{binary_resnet_bisrnet_down.17} parent=5 // pred_check
      _
    $region54: #{binary_resnet_bisrnet_down.17} parent=5 // pred_check_branch
      %366 = sbr.rel (%p363) target = $region56
    $region55: #{binary_resnet_bisrnet_down.17} parent=5 // pred_region
      %s367 = ssub.s32 %s15, 1
      %p368 = scmp.lt.s32.totalorder %s24, 1
      %s369 = scalar_select %p368, %s24, 1
      %p370 = scmp.lt.s32.totalorder %s25, 9
      %s371 = scalar_select %p370, %s25, 9
      %s372 = smul.addr %s371, 2
      %s373 = smul.addr %s369, 20
      %s374 = sadd.s32 %s372, %s373
      %s375 = smul.addr %s374, 4
      %s376 = scalar_lea.vmem %s0, %s375
      %p377 = pneg %p55
      %p378 = pneg %p52
      %s379 = sadd.s32 %s25, 1
      %p380 = scmp.lt.s32.totalorder %s24, 1
      %s381 = scalar_select %p380, %s24, 1
      %p382 = scmp.lt.s32.totalorder %s379, 9
      %s383 = scalar_select %p382, %s379, 9
      %s384 = smul.addr %s383, 2
      %s385 = smul.addr %s381, 20
      %s386 = sadd.s32 %s384, %s385
      %s387 = smul.addr %s386, 4
      %s388 = scalar_lea.vmem %s1, %s387
      %p389 = pneg %p85
      %p390 = pneg %p82
      %s391 = sadd.s32 %s25, 2
      %p392 = scmp.lt.s32.totalorder %s24, 1
      %s393 = scalar_select %p392, %s24, 1
      %p394 = scmp.lt.s32.totalorder %s391, 9
      %s395 = scalar_select %p394, %s391, 9
      %s396 = smul.addr %s395, 2
      %s397 = smul.addr %s393, 20
      %s398 = sadd.s32 %s396, %s397
      %s399 = smul.addr %s398, 4
      %s400 = scalar_lea.vmem %s2, %s399
      %p401 = pneg %p115
      %p402 = pneg %p112
      %p403 = pneg %p136
      %p404 = pneg %p133
      %p405 = pneg %p157
      %p406 = pneg %p154
      %p407 = pneg %p178
      %p408 = pneg %p175
      %p409 = scmp.lt.s32.totalorder %s24, 1
      %s410 = scalar_select %p409, %s24, 1
      %p411 = scmp.lt.s32.totalorder %s25, 7
      %s412 = scalar_select %p411, %s25, 7
      %s413 = smul.addr %s410, 8
      %s414 = sadd.s32 %s412, %s413
      %s415 = smul.addr %s414, 4
      %s416 = scalar_lea.vmem %s6, %s415
      %p417 = pneg %p206
      %p418 = pneg %p203
      %p419 = pneg %p227
      %p420 = pneg %p224
      %p421 = pneg %p248
      %p422 = pneg %p245
      %p423 = pneg %p276
      %p424 = pneg %p273
      %p425 = scmp.lt.s32.totalorder %s24, 1
      %s426 = scalar_select %p425, %s24, 1
      %p427 = scmp.lt.s32.totalorder %s25, 7
      %s428 = scalar_select %p427, %s25, 7
      %s429 = smul.addr %s426, 8
      %s430 = sadd.s32 %s428, %s429
      %s431 = smul.addr %s430, 4
      %s432 = scalar_lea.vmem %s9, %s431
      %p433 = scmp.lt.s32.totalorder %s24, 1
      %s434 = scalar_select %p433, %s24, 1
      %p435 = scmp.lt.s32.totalorder %s25, 9
      %s436 = scalar_select %p435, %s25, 9
      %s437 = smul.addr %s436, 2
      %s438 = smul.addr %s434, 20
      %s439 = sadd.s32 %s437, %s438
      %s440 = smul.addr %s439, 4
      %s441 = scalar_lea.vmem %s0, %s440
      %s442 = sadd.s32 %s25, 1
      %p443 = scmp.lt.s32.totalorder %s24, 1
      %s444 = scalar_select %p443, %s24, 1
      %p445 = scmp.lt.s32.totalorder %s442, 9
      %s446 = scalar_select %p445, %s442, 9
      %s447 = smul.addr %s446, 2
      %s448 = smul.addr %s444, 20
      %s449 = sadd.s32 %s447, %s448
      %s450 = smul.addr %s449, 4
      %s451 = scalar_lea.vmem %s1, %s450
      %s452 = sadd.s32 %s25, 1
      %s453 = sadd.s32 %s25, 2
      %p454 = scmp.lt.s32.totalorder %s24, 1
      %s455 = scalar_select %p454, %s24, 1
      %p456 = scmp.lt.s32.totalorder %s453, 9
      %s457 = scalar_select %p456, %s453, 9
      %s458 = smul.addr %s457, 2
      %s459 = smul.addr %s455, 20
      %s460 = sadd.s32 %s458, %s459
      %s461 = smul.addr %s460, 4
      %s462 = scalar_lea.vmem %s2, %s461
      %s463 = sadd.s32 %s25, 2
      %p464 = scmp.lt.s32.totalorder %s24, 1
      %s465 = scalar_select %p464, %s24, 1
      %p466 = scmp.lt.s32.totalorder %s25, 7
      %s467 = scalar_select %p466, %s25, 7
      %s468 = smul.addr %s465, 8
      %s469 = sadd.s32 %s467, %s468
      %s470 = smul.addr %s469, 4
      %s471 = scalar_lea.vmem %s6, %s470
      %p472 = scmp.lt.s32.totalorder %s24, 1
      %s473 = scalar_select %p472, %s24, 1
      %p474 = scmp.lt.s32.totalorder %s25, 7
      %s475 = scalar_select %p474, %s25, 7
      %s476 = smul.addr %s473, 8
      %s477 = sadd.s32 %s475, %s476
      %s478 = smul.addr %s477, 4
      %s479 = scalar_lea.vmem %s9, %s478
      %v480 = vld [vmem:[%s441] sm:$0xf]
      %v481 = vld [vmem:[%s441 + $0x4] sm:$0x1]
      %v482 = vld [vmem:[%s3] sm:$0xf]
      %v483 = vld [vmem:[%s3 + $0x4] sm:$0xf]
      %v484 = vld [vmem:[%s3 + $0x8] sm:$0xf]
      %v485 = vld [vmem:[%s3 + $0xc] sm:$0xf]
      %v486 = vld [vmem:[%s3 + $0x10] sm:$0xf]
      %v487 = vld [vmem:[%s3 + $0x14] sm:$0xf]
      %v488 = vld [vmem:[%s3 + $0x18] sm:$0xf]
      %v489 = vld [vmem:[%s3 + $0x1c] sm:$0xf]
      %v490 = vld [vmem:[%s3 + $0x20] sm:$0xf]
      %v491 = vld [vmem:[%s3 + $0x24] sm:$0xf]
      %v492 = vld [vmem:[%s3 + $0x28] sm:$0xf]
      %v493 = vld [vmem:[%s3 + $0x2c] sm:$0xf]
      %v494 = vld [vmem:[%s3 + $0x30] sm:$0xf]
      %v495 = vld [vmem:[%s3 + $0x34] sm:$0xf]
      %v496 = vld [vmem:[%s3 + $0x38] sm:$0xf]
      %v497 = vld [vmem:[%s3 + $0x3c] sm:$0xf]
      %s498 = scalar_lea.vmem %s3, 64
      %v499 = vld [vmem:[%s498] sm:$0xf]
      %v500 = vld [vmem:[%s498 + $0x4] sm:$0xf]
      %v501 = vld [vmem:[%s498 + $0x8] sm:$0xf]
      %v502 = vld [vmem:[%s498 + $0xc] sm:$0xf]
      %v503 = vld [vmem:[%s498 + $0x10] sm:$0xf]
      %v504 = vld [vmem:[%s498 + $0x14] sm:$0xf]
      %v505 = vld [vmem:[%s498 + $0x18] sm:$0xf]
      %v506 = vld [vmem:[%s498 + $0x1c] sm:$0xf]
      %v507 = vld [vmem:[%s498 + $0x20] sm:$0xf]
      %v508 = vld [vmem:[%s498 + $0x24] sm:$0xf]
      %v509 = vld [vmem:[%s498 + $0x28] sm:$0xf]
      %v510 = vld [vmem:[%s498 + $0x2c] sm:$0xf]
      %v511 = vld [vmem:[%s498 + $0x30] sm:$0xf]
      %v512 = vld [vmem:[%s498 + $0x34] sm:$0xf]
      %v513 = vld [vmem:[%s498 + $0x38] sm:$0xf]
      %v514 = vld [vmem:[%s498 + $0x3c] sm:$0xf]
      %v517 = vunpack.c.l.b16 %v480
      %v518 = vunpack.c.l.b16 %v481
      %v519 = vpack.c.b16 %v518, %v517
      %v521 = vshrl.u32 %v519, 16
      %v523 = vshll.u32 %v519, 16
      %v525 = vrot.slane %v523, 1
      %v526 = vor.u32 %v521, %v525
      %v544 = vunpack.c.l.b16 %v499
      %v545 = vunpack.c.l.b16 %v500
      %v546 = vunpack.c.l.b16 %v501
      %v547 = vunpack.c.l.b16 %v502
      %v548 = vunpack.c.l.b16 %v503
      %v549 = vunpack.c.l.b16 %v504
      %v550 = vunpack.c.l.b16 %v505
      %v551 = vunpack.c.l.b16 %v506
      %v552 = vunpack.c.l.b16 %v507
      %v553 = vunpack.c.l.b16 %v508
      %v554 = vunpack.c.l.b16 %v509
      %v555 = vunpack.c.l.b16 %v510
      %v556 = vunpack.c.l.b16 %v511
      %v557 = vunpack.c.l.b16 %v512
      %v558 = vunpack.c.l.b16 %v513
      %v559 = vunpack.c.l.b16 %v514
      %v560 = vpack.c.b16 %v545, %v544
      %v561 = vpack.c.b16 %v547, %v546
      %v562 = vpack.c.b16 %v549, %v548
      %v563 = vpack.c.b16 %v551, %v550
      %v564 = vpack.c.b16 %v553, %v552
      %v565 = vpack.c.b16 %v555, %v554
      %v566 = vpack.c.b16 %v557, %v556
      %v567 = vpack.c.b16 %v559, %v558
      %576 = vmatpush.bf16.msra.mxu0 %v567
      %577 = vmatpush.bf16.msra.mxu0 %v566
      %578 = vmatpush.bf16.msra.mxu0 %v565
      %579 = vmatpush.bf16.msra.mxu0 %v564
      %580 = vmatpush.bf16.msra.mxu0 %v563
      %581 = vmatpush.bf16.msra.mxu0 %v562
      %582 = vmatpush.bf16.msra.mxu0 %v561
      %583 = vmatpush.bf16.msra.mxu0 %v560
      %584 = vmatmul.bf16.gmra.mxu0 %v526
      %v585 = vpop.f32.mrf.mxu0
      %v586 = vadd.f32 0.0, %v585
      %v587 = vpop.f32.mrf.mxu0
      %588 = vdwg.mxu0
      %v605 = vunpack.c.l.b16 %v482
      %v606 = vunpack.c.l.b16 %v483
      %v607 = vunpack.c.l.b16 %v484
      %v608 = vunpack.c.l.b16 %v485
      %v609 = vunpack.c.l.b16 %v486
      %v610 = vunpack.c.l.b16 %v487
      %v611 = vunpack.c.l.b16 %v488
      %v612 = vunpack.c.l.b16 %v489
      %v613 = vunpack.c.l.b16 %v490
      %v614 = vunpack.c.l.b16 %v491
      %v615 = vunpack.c.l.b16 %v492
      %v616 = vunpack.c.l.b16 %v493
      %v617 = vunpack.c.l.b16 %v494
      %v618 = vunpack.c.l.b16 %v495
      %v619 = vunpack.c.l.b16 %v496
      %v620 = vunpack.c.l.b16 %v497
      %v621 = vpack.c.b16 %v606, %v605
      %v622 = vpack.c.b16 %v608, %v607
      %v623 = vpack.c.b16 %v610, %v609
      %v624 = vpack.c.b16 %v612, %v611
      %v625 = vpack.c.b16 %v614, %v613
      %v626 = vpack.c.b16 %v616, %v615
      %v627 = vpack.c.b16 %v618, %v617
      %v628 = vpack.c.b16 %v620, %v619
      %637 = vmatpush.bf16.msra.mxu0 %v628
      %638 = vmatpush.bf16.msra.mxu0 %v627
      %639 = vmatpush.bf16.msra.mxu0 %v626
      %640 = vmatpush.bf16.msra.mxu0 %v625
      %641 = vmatpush.bf16.msra.mxu0 %v624
      %642 = vmatpush.bf16.msra.mxu0 %v623
      %643 = vmatpush.bf16.msra.mxu0 %v622
      %644 = vmatpush.bf16.msra.mxu0 %v621
      %645 = vmatmul.bf16.gmra.mxu0 %v480
      %v646 = vpop.f32.mrf.mxu0
      %v647 = vadd.f32 %v586, %v646
      %v648 = vpop.f32.mrf.mxu0
      %649 = vdwg.mxu0
      %s650 = scalar_lea.vmem %s3, 128
      %v651 = vld [vmem:[%s650] sm:$0xf]
      %v652 = vld [vmem:[%s650 + $0x4] sm:$0xf]
      %v653 = vld [vmem:[%s650 + $0x8] sm:$0xf]
      %v654 = vld [vmem:[%s650 + $0xc] sm:$0xf]
      %v655 = vld [vmem:[%s650 + $0x10] sm:$0xf]
      %v656 = vld [vmem:[%s650 + $0x14] sm:$0xf]
      %v657 = vld [vmem:[%s650 + $0x18] sm:$0xf]
      %v658 = vld [vmem:[%s650 + $0x1c] sm:$0xf]
      %v659 = vld [vmem:[%s650 + $0x20] sm:$0xf]
      %v660 = vld [vmem:[%s650 + $0x24] sm:$0xf]
      %v661 = vld [vmem:[%s650 + $0x28] sm:$0xf]
      %v662 = vld [vmem:[%s650 + $0x2c] sm:$0xf]
      %v663 = vld [vmem:[%s650 + $0x30] sm:$0xf]
      %v664 = vld [vmem:[%s650 + $0x34] sm:$0xf]
      %v665 = vld [vmem:[%s650 + $0x38] sm:$0xf]
      %v666 = vld [vmem:[%s650 + $0x3c] sm:$0xf]
      %v667 = vrot.slane %v519, 1
      %v685 = vunpack.c.l.b16 %v651
      %v686 = vunpack.c.l.b16 %v652
      %v687 = vunpack.c.l.b16 %v653
      %v688 = vunpack.c.l.b16 %v654
      %v689 = vunpack.c.l.b16 %v655
      %v690 = vunpack.c.l.b16 %v656
      %v691 = vunpack.c.l.b16 %v657
      %v692 = vunpack.c.l.b16 %v658
      %v693 = vunpack.c.l.b16 %v659
      %v694 = vunpack.c.l.b16 %v660
      %v695 = vunpack.c.l.b16 %v661
      %v696 = vunpack.c.l.b16 %v662
      %v697 = vunpack.c.l.b16 %v663
      %v698 = vunpack.c.l.b16 %v664
      %v699 = vunpack.c.l.b16 %v665
      %v700 = vunpack.c.l.b16 %v666
      %v701 = vpack.c.b16 %v686, %v685
      %v702 = vpack.c.b16 %v688, %v687
      %v703 = vpack.c.b16 %v690, %v689
      %v704 = vpack.c.b16 %v692, %v691
      %v705 = vpack.c.b16 %v694, %v693
      %v706 = vpack.c.b16 %v696, %v695
      %v707 = vpack.c.b16 %v698, %v697
      %v708 = vpack.c.b16 %v700, %v699
      %717 = vmatpush.bf16.msra.mxu0 %v708
      %718 = vmatpush.bf16.msra.mxu0 %v707
      %719 = vmatpush.bf16.msra.mxu0 %v706
      %720 = vmatpush.bf16.msra.mxu0 %v705
      %721 = vmatpush.bf16.msra.mxu0 %v704
      %722 = vmatpush.bf16.msra.mxu0 %v703
      %723 = vmatpush.bf16.msra.mxu0 %v702
      %724 = vmatpush.bf16.msra.mxu0 %v701
      %725 = vmatmul.bf16.gmra.mxu0 %v667
      %v726 = vpop.f32.mrf.mxu0
      %v727 = vadd.f32 0.0, %v726
      %v728 = vpop.f32.mrf.mxu0
      %729 = vdwg.mxu0
      %v730 = vadd.f32 %v647, %v727
      %v731 = vld [vmem:[%s451] sm:$0xf]
      %v732 = vld [vmem:[%s451 + $0x4] sm:$0x1]
      %s733 = scalar_lea.vmem %s3, 192
      %v734 = vld [vmem:[%s733] sm:$0xf]
      %v735 = vld [vmem:[%s733 + $0x4] sm:$0xf]
      %v736 = vld [vmem:[%s733 + $0x8] sm:$0xf]
      %v737 = vld [vmem:[%s733 + $0xc] sm:$0xf]
      %v738 = vld [vmem:[%s733 + $0x10] sm:$0xf]
      %v739 = vld [vmem:[%s733 + $0x14] sm:$0xf]
      %v740 = vld [vmem:[%s733 + $0x18] sm:$0xf]
      %v741 = vld [vmem:[%s733 + $0x1c] sm:$0xf]
      %v742 = vld [vmem:[%s733 + $0x20] sm:$0xf]
      %v743 = vld [vmem:[%s733 + $0x24] sm:$0xf]
      %v744 = vld [vmem:[%s733 + $0x28] sm:$0xf]
      %v745 = vld [vmem:[%s733 + $0x2c] sm:$0xf]
      %v746 = vld [vmem:[%s733 + $0x30] sm:$0xf]
      %v747 = vld [vmem:[%s733 + $0x34] sm:$0xf]
      %v748 = vld [vmem:[%s733 + $0x38] sm:$0xf]
      %v749 = vld [vmem:[%s733 + $0x3c] sm:$0xf]
      %v766 = vunpack.c.l.b16 %v734
      %v767 = vunpack.c.l.b16 %v735
      %v768 = vunpack.c.l.b16 %v736
      %v769 = vunpack.c.l.b16 %v737
      %v770 = vunpack.c.l.b16 %v738
      %v771 = vunpack.c.l.b16 %v739
      %v772 = vunpack.c.l.b16 %v740
      %v773 = vunpack.c.l.b16 %v741
      %v774 = vunpack.c.l.b16 %v742
      %v775 = vunpack.c.l.b16 %v743
      %v776 = vunpack.c.l.b16 %v744
      %v777 = vunpack.c.l.b16 %v745
      %v778 = vunpack.c.l.b16 %v746
      %v779 = vunpack.c.l.b16 %v747
      %v780 = vunpack.c.l.b16 %v748
      %v781 = vunpack.c.l.b16 %v749
      %v782 = vpack.c.b16 %v767, %v766
      %v783 = vpack.c.b16 %v769, %v768
      %v784 = vpack.c.b16 %v771, %v770
      %v785 = vpack.c.b16 %v773, %v772
      %v786 = vpack.c.b16 %v775, %v774
      %v787 = vpack.c.b16 %v777, %v776
      %v788 = vpack.c.b16 %v779, %v778
      %v789 = vpack.c.b16 %v781, %v780
      %798 = vmatpush.bf16.msra.mxu0 %v789
      %799 = vmatpush.bf16.msra.mxu0 %v788
      %800 = vmatpush.bf16.msra.mxu0 %v787
      %801 = vmatpush.bf16.msra.mxu0 %v786
      %802 = vmatpush.bf16.msra.mxu0 %v785
      %803 = vmatpush.bf16.msra.mxu0 %v784
      %804 = vmatpush.bf16.msra.mxu0 %v783
      %805 = vmatpush.bf16.msra.mxu0 %v782
      %806 = vmatmul.bf16.gmra.mxu0 %v731
      %v807 = vpop.f32.mrf.mxu0
      %v808 = vadd.f32 0.0, %v807
      %v809 = vpop.f32.mrf.mxu0
      %810 = vdwg.mxu0
      %v811 = vadd.f32 %v730, %v808
      %s812 = scalar_lea.vmem %s3, 256
      %v813 = vld [vmem:[%s812] sm:$0xf]
      %v814 = vld [vmem:[%s812 + $0x4] sm:$0xf]
      %v815 = vld [vmem:[%s812 + $0x8] sm:$0xf]
      %v816 = vld [vmem:[%s812 + $0xc] sm:$0xf]
      %v817 = vld [vmem:[%s812 + $0x10] sm:$0xf]
      %v818 = vld [vmem:[%s812 + $0x14] sm:$0xf]
      %v819 = vld [vmem:[%s812 + $0x18] sm:$0xf]
      %v820 = vld [vmem:[%s812 + $0x1c] sm:$0xf]
      %v821 = vld [vmem:[%s812 + $0x20] sm:$0xf]
      %v822 = vld [vmem:[%s812 + $0x24] sm:$0xf]
      %v823 = vld [vmem:[%s812 + $0x28] sm:$0xf]
      %v824 = vld [vmem:[%s812 + $0x2c] sm:$0xf]
      %v825 = vld [vmem:[%s812 + $0x30] sm:$0xf]
      %v826 = vld [vmem:[%s812 + $0x34] sm:$0xf]
      %v827 = vld [vmem:[%s812 + $0x38] sm:$0xf]
      %v828 = vld [vmem:[%s812 + $0x3c] sm:$0xf]
      %v831 = vunpack.c.l.b16 %v731
      %v832 = vunpack.c.l.b16 %v732
      %v833 = vpack.c.b16 %v832, %v831
      %v835 = vshrl.u32 %v833, 16
      %v837 = vshll.u32 %v833, 16
      %v839 = vrot.slane %v837, 1
      %v840 = vor.u32 %v835, %v839
      %v858 = vunpack.c.l.b16 %v813
      %v859 = vunpack.c.l.b16 %v814
      %v860 = vunpack.c.l.b16 %v815
      %v861 = vunpack.c.l.b16 %v816
      %v862 = vunpack.c.l.b16 %v817
      %v863 = vunpack.c.l.b16 %v818
      %v864 = vunpack.c.l.b16 %v819
      %v865 = vunpack.c.l.b16 %v820
      %v866 = vunpack.c.l.b16 %v821
      %v867 = vunpack.c.l.b16 %v822
      %v868 = vunpack.c.l.b16 %v823
      %v869 = vunpack.c.l.b16 %v824
      %v870 = vunpack.c.l.b16 %v825
      %v871 = vunpack.c.l.b16 %v826
      %v872 = vunpack.c.l.b16 %v827
      %v873 = vunpack.c.l.b16 %v828
      %v874 = vpack.c.b16 %v859, %v858
      %v875 = vpack.c.b16 %v861, %v860
      %v876 = vpack.c.b16 %v863, %v862
      %v877 = vpack.c.b16 %v865, %v864
      %v878 = vpack.c.b16 %v867, %v866
      %v879 = vpack.c.b16 %v869, %v868
      %v880 = vpack.c.b16 %v871, %v870
      %v881 = vpack.c.b16 %v873, %v872
      %890 = vmatpush.bf16.msra.mxu0 %v881
      %891 = vmatpush.bf16.msra.mxu0 %v880
      %892 = vmatpush.bf16.msra.mxu0 %v879
      %893 = vmatpush.bf16.msra.mxu0 %v878
      %894 = vmatpush.bf16.msra.mxu0 %v877
      %895 = vmatpush.bf16.msra.mxu0 %v876
      %896 = vmatpush.bf16.msra.mxu0 %v875
      %897 = vmatpush.bf16.msra.mxu0 %v874
      %898 = vmatmul.bf16.gmra.mxu0 %v840
      %v899 = vpop.f32.mrf.mxu0
      %v900 = vadd.f32 0.0, %v899
      %v901 = vpop.f32.mrf.mxu0
      %902 = vdwg.mxu0
      %v903 = vadd.f32 %v811, %v900
      %s904 = scalar_lea.vmem %s3, 320
      %v905 = vld [vmem:[%s904] sm:$0xf]
      %v906 = vld [vmem:[%s904 + $0x4] sm:$0xf]
      %v907 = vld [vmem:[%s904 + $0x8] sm:$0xf]
      %v908 = vld [vmem:[%s904 + $0xc] sm:$0xf]
      %v909 = vld [vmem:[%s904 + $0x10] sm:$0xf]
      %v910 = vld [vmem:[%s904 + $0x14] sm:$0xf]
      %v911 = vld [vmem:[%s904 + $0x18] sm:$0xf]
      %v912 = vld [vmem:[%s904 + $0x1c] sm:$0xf]
      %v913 = vld [vmem:[%s904 + $0x20] sm:$0xf]
      %v914 = vld [vmem:[%s904 + $0x24] sm:$0xf]
      %v915 = vld [vmem:[%s904 + $0x28] sm:$0xf]
      %v916 = vld [vmem:[%s904 + $0x2c] sm:$0xf]
      %v917 = vld [vmem:[%s904 + $0x30] sm:$0xf]
      %v918 = vld [vmem:[%s904 + $0x34] sm:$0xf]
      %v919 = vld [vmem:[%s904 + $0x38] sm:$0xf]
      %v920 = vld [vmem:[%s904 + $0x3c] sm:$0xf]
      %v921 = vrot.slane %v833, 1
      %v939 = vunpack.c.l.b16 %v905
      %v940 = vunpack.c.l.b16 %v906
      %v941 = vunpack.c.l.b16 %v907
      %v942 = vunpack.c.l.b16 %v908
      %v943 = vunpack.c.l.b16 %v909
      %v944 = vunpack.c.l.b16 %v910
      %v945 = vunpack.c.l.b16 %v911
      %v946 = vunpack.c.l.b16 %v912
      %v947 = vunpack.c.l.b16 %v913
      %v948 = vunpack.c.l.b16 %v914
      %v949 = vunpack.c.l.b16 %v915
      %v950 = vunpack.c.l.b16 %v916
      %v951 = vunpack.c.l.b16 %v917
      %v952 = vunpack.c.l.b16 %v918
      %v953 = vunpack.c.l.b16 %v919
      %v954 = vunpack.c.l.b16 %v920
      %v955 = vpack.c.b16 %v940, %v939
      %v956 = vpack.c.b16 %v942, %v941
      %v957 = vpack.c.b16 %v944, %v943
      %v958 = vpack.c.b16 %v946, %v945
      %v959 = vpack.c.b16 %v948, %v947
      %v960 = vpack.c.b16 %v950, %v949
      %v961 = vpack.c.b16 %v952, %v951
      %v962 = vpack.c.b16 %v954, %v953
      %971 = vmatpush.bf16.msra.mxu0 %v962
      %972 = vmatpush.bf16.msra.mxu0 %v961
      %973 = vmatpush.bf16.msra.mxu0 %v960
      %974 = vmatpush.bf16.msra.mxu0 %v959
      %975 = vmatpush.bf16.msra.mxu0 %v958
      %976 = vmatpush.bf16.msra.mxu0 %v957
      %977 = vmatpush.bf16.msra.mxu0 %v956
      %978 = vmatpush.bf16.msra.mxu0 %v955
      %979 = vmatmul.bf16.gmra.mxu0 %v921
      %v980 = vpop.f32.mrf.mxu0
      %v981 = vadd.f32 0.0, %v980
      %v982 = vpop.f32.mrf.mxu0
      %983 = vdwg.mxu0
      %v984 = vadd.f32 %v903, %v981
      %v985 = vld [vmem:[%s462] sm:$0xf]
      %v986 = vld [vmem:[%s462 + $0x4] sm:$0x1]
      %s987 = scalar_lea.vmem %s3, 384
      %v988 = vld [vmem:[%s987] sm:$0xf]
      %v989 = vld [vmem:[%s987 + $0x4] sm:$0xf]
      %v990 = vld [vmem:[%s987 + $0x8] sm:$0xf]
      %v991 = vld [vmem:[%s987 + $0xc] sm:$0xf]
      %v992 = vld [vmem:[%s987 + $0x10] sm:$0xf]
      %v993 = vld [vmem:[%s987 + $0x14] sm:$0xf]
      %v994 = vld [vmem:[%s987 + $0x18] sm:$0xf]
      %v995 = vld [vmem:[%s987 + $0x1c] sm:$0xf]
      %v996 = vld [vmem:[%s987 + $0x20] sm:$0xf]
      %v997 = vld [vmem:[%s987 + $0x24] sm:$0xf]
      %v998 = vld [vmem:[%s987 + $0x28] sm:$0xf]
      %v999 = vld [vmem:[%s987 + $0x2c] sm:$0xf]
      %v1000 = vld [vmem:[%s987 + $0x30] sm:$0xf]
      %v1001 = vld [vmem:[%s987 + $0x34] sm:$0xf]
      %v1002 = vld [vmem:[%s987 + $0x38] sm:$0xf]
      %v1003 = vld [vmem:[%s987 + $0x3c] sm:$0xf]
      %v1020 = vunpack.c.l.b16 %v988
      %v1021 = vunpack.c.l.b16 %v989
      %v1022 = vunpack.c.l.b16 %v990
      %v1023 = vunpack.c.l.b16 %v991
      %v1024 = vunpack.c.l.b16 %v992
      %v1025 = vunpack.c.l.b16 %v993
      %v1026 = vunpack.c.l.b16 %v994
      %v1027 = vunpack.c.l.b16 %v995
      %v1028 = vunpack.c.l.b16 %v996
      %v1029 = vunpack.c.l.b16 %v997
      %v1030 = vunpack.c.l.b16 %v998
      %v1031 = vunpack.c.l.b16 %v999
      %v1032 = vunpack.c.l.b16 %v1000
      %v1033 = vunpack.c.l.b16 %v1001
      %v1034 = vunpack.c.l.b16 %v1002
      %v1035 = vunpack.c.l.b16 %v1003
      %v1036 = vpack.c.b16 %v1021, %v1020
      %v1037 = vpack.c.b16 %v1023, %v1022
      %v1038 = vpack.c.b16 %v1025, %v1024
      %v1039 = vpack.c.b16 %v1027, %v1026
      %v1040 = vpack.c.b16 %v1029, %v1028
      %v1041 = vpack.c.b16 %v1031, %v1030
      %v1042 = vpack.c.b16 %v1033, %v1032
      %v1043 = vpack.c.b16 %v1035, %v1034
      %1052 = vmatpush.bf16.msra.mxu0 %v1043
      %1053 = vmatpush.bf16.msra.mxu0 %v1042
      %1054 = vmatpush.bf16.msra.mxu0 %v1041
      %1055 = vmatpush.bf16.msra.mxu0 %v1040
      %1056 = vmatpush.bf16.msra.mxu0 %v1039
      %1057 = vmatpush.bf16.msra.mxu0 %v1038
      %1058 = vmatpush.bf16.msra.mxu0 %v1037
      %1059 = vmatpush.bf16.msra.mxu0 %v1036
      %1060 = vmatmul.bf16.gmra.mxu0 %v985
      %v1061 = vpop.f32.mrf.mxu0
      %v1062 = vadd.f32 0.0, %v1061
      %v1063 = vpop.f32.mrf.mxu0
      %1064 = vdwg.mxu0
      %v1065 = vadd.f32 %v984, %v1062
      %s1066 = scalar_lea.vmem %s3, 448
      %v1067 = vld [vmem:[%s1066] sm:$0xf]
      %v1068 = vld [vmem:[%s1066 + $0x4] sm:$0xf]
      %v1069 = vld [vmem:[%s1066 + $0x8] sm:$0xf]
      %v1070 = vld [vmem:[%s1066 + $0xc] sm:$0xf]
      %v1071 = vld [vmem:[%s1066 + $0x10] sm:$0xf]
      %v1072 = vld [vmem:[%s1066 + $0x14] sm:$0xf]
      %v1073 = vld [vmem:[%s1066 + $0x18] sm:$0xf]
      %v1074 = vld [vmem:[%s1066 + $0x1c] sm:$0xf]
      %v1075 = vld [vmem:[%s1066 + $0x20] sm:$0xf]
      %v1076 = vld [vmem:[%s1066 + $0x24] sm:$0xf]
      %v1077 = vld [vmem:[%s1066 + $0x28] sm:$0xf]
      %v1078 = vld [vmem:[%s1066 + $0x2c] sm:$0xf]
      %v1079 = vld [vmem:[%s1066 + $0x30] sm:$0xf]
      %v1080 = vld [vmem:[%s1066 + $0x34] sm:$0xf]
      %v1081 = vld [vmem:[%s1066 + $0x38] sm:$0xf]
      %v1082 = vld [vmem:[%s1066 + $0x3c] sm:$0xf]
      %v1085 = vunpack.c.l.b16 %v985
      %v1086 = vunpack.c.l.b16 %v986
      %v1087 = vpack.c.b16 %v1086, %v1085
      %v1089 = vshrl.u32 %v1087, 16
      %v1091 = vshll.u32 %v1087, 16
      %v1093 = vrot.slane %v1091, 1
      %v1094 = vor.u32 %v1089, %v1093
      %v1112 = vunpack.c.l.b16 %v1067
      %v1113 = vunpack.c.l.b16 %v1068
      %v1114 = vunpack.c.l.b16 %v1069
      %v1115 = vunpack.c.l.b16 %v1070
      %v1116 = vunpack.c.l.b16 %v1071
      %v1117 = vunpack.c.l.b16 %v1072
      %v1118 = vunpack.c.l.b16 %v1073
      %v1119 = vunpack.c.l.b16 %v1074
      %v1120 = vunpack.c.l.b16 %v1075
      %v1121 = vunpack.c.l.b16 %v1076
      %v1122 = vunpack.c.l.b16 %v1077
      %v1123 = vunpack.c.l.b16 %v1078
      %v1124 = vunpack.c.l.b16 %v1079
      %v1125 = vunpack.c.l.b16 %v1080
      %v1126 = vunpack.c.l.b16 %v1081
      %v1127 = vunpack.c.l.b16 %v1082
      %v1128 = vpack.c.b16 %v1113, %v1112
      %v1129 = vpack.c.b16 %v1115, %v1114
      %v1130 = vpack.c.b16 %v1117, %v1116
      %v1131 = vpack.c.b16 %v1119, %v1118
      %v1132 = vpack.c.b16 %v1121, %v1120
      %v1133 = vpack.c.b16 %v1123, %v1122
      %v1134 = vpack.c.b16 %v1125, %v1124
      %v1135 = vpack.c.b16 %v1127, %v1126
      %1144 = vmatpush.bf16.msra.mxu0 %v1135
      %1145 = vmatpush.bf16.msra.mxu0 %v1134
      %1146 = vmatpush.bf16.msra.mxu0 %v1133
      %1147 = vmatpush.bf16.msra.mxu0 %v1132
      %1148 = vmatpush.bf16.msra.mxu0 %v1131
      %1149 = vmatpush.bf16.msra.mxu0 %v1130
      %1150 = vmatpush.bf16.msra.mxu0 %v1129
      %1151 = vmatpush.bf16.msra.mxu0 %v1128
      %1152 = vmatmul.bf16.gmra.mxu0 %v1094
      %v1153 = vpop.f32.mrf.mxu0
      %v1154 = vadd.f32 0.0, %v1153
      %v1155 = vpop.f32.mrf.mxu0
      %1156 = vdwg.mxu0
      %v1157 = vadd.f32 %v1065, %v1154
      %s1158 = scalar_lea.vmem %s3, 512
      %v1159 = vld [vmem:[%s1158] sm:$0xf]
      %v1160 = vld [vmem:[%s1158 + $0x4] sm:$0xf]
      %v1161 = vld [vmem:[%s1158 + $0x8] sm:$0xf]
      %v1162 = vld [vmem:[%s1158 + $0xc] sm:$0xf]
      %v1163 = vld [vmem:[%s1158 + $0x10] sm:$0xf]
      %v1164 = vld [vmem:[%s1158 + $0x14] sm:$0xf]
      %v1165 = vld [vmem:[%s1158 + $0x18] sm:$0xf]
      %v1166 = vld [vmem:[%s1158 + $0x1c] sm:$0xf]
      %v1167 = vld [vmem:[%s1158 + $0x20] sm:$0xf]
      %v1168 = vld [vmem:[%s1158 + $0x24] sm:$0xf]
      %v1169 = vld [vmem:[%s1158 + $0x28] sm:$0xf]
      %v1170 = vld [vmem:[%s1158 + $0x2c] sm:$0xf]
      %v1171 = vld [vmem:[%s1158 + $0x30] sm:$0xf]
      %v1172 = vld [vmem:[%s1158 + $0x34] sm:$0xf]
      %v1173 = vld [vmem:[%s1158 + $0x38] sm:$0xf]
      %v1174 = vld [vmem:[%s1158 + $0x3c] sm:$0xf]
      %v1175 = vrot.slane %v1087, 1
      %v1193 = vunpack.c.l.b16 %v1159
      %v1194 = vunpack.c.l.b16 %v1160
      %v1195 = vunpack.c.l.b16 %v1161
      %v1196 = vunpack.c.l.b16 %v1162
      %v1197 = vunpack.c.l.b16 %v1163
      %v1198 = vunpack.c.l.b16 %v1164
      %v1199 = vunpack.c.l.b16 %v1165
      %v1200 = vunpack.c.l.b16 %v1166
      %v1201 = vunpack.c.l.b16 %v1167
      %v1202 = vunpack.c.l.b16 %v1168
      %v1203 = vunpack.c.l.b16 %v1169
      %v1204 = vunpack.c.l.b16 %v1170
      %v1205 = vunpack.c.l.b16 %v1171
      %v1206 = vunpack.c.l.b16 %v1172
      %v1207 = vunpack.c.l.b16 %v1173
      %v1208 = vunpack.c.l.b16 %v1174
      %v1209 = vpack.c.b16 %v1194, %v1193
      %v1210 = vpack.c.b16 %v1196, %v1195
      %v1211 = vpack.c.b16 %v1198, %v1197
      %v1212 = vpack.c.b16 %v1200, %v1199
      %v1213 = vpack.c.b16 %v1202, %v1201
      %v1214 = vpack.c.b16 %v1204, %v1203
      %v1215 = vpack.c.b16 %v1206, %v1205
      %v1216 = vpack.c.b16 %v1208, %v1207
      %1225 = vmatpush.bf16.msra.mxu0 %v1216
      %1226 = vmatpush.bf16.msra.mxu0 %v1215
      %1227 = vmatpush.bf16.msra.mxu0 %v1214
      %1228 = vmatpush.bf16.msra.mxu0 %v1213
      %1229 = vmatpush.bf16.msra.mxu0 %v1212
      %1230 = vmatpush.bf16.msra.mxu0 %v1211
      %1231 = vmatpush.bf16.msra.mxu0 %v1210
      %1232 = vmatpush.bf16.msra.mxu0 %v1209
      %1233 = vmatmul.bf16.gmra.mxu0 %v1175
      %v1234 = vpop.f32.mrf.mxu0
      %v1235 = vadd.f32 0.0, %v1234
      %v1236 = vpop.f32.mrf.mxu0
      %1237 = vdwg.mxu0
      %v1238 = vadd.f32 %v1157, %v1235
      %v1239 = vld [vmem:[%s4] sm:$0x1]
      %v1241 = vperm.slane %v1239, 0
      %v1243 = vmul.f32 %v1238, %v1241
      %v1244 = vld [vmem:[%s5] sm:$0x1]
      %v1246 = vperm.slane %v1244, 0
      %v1248 = vadd.f32 %v1243, %v1246
      %v1249 = vld [vmem:[%s471] sm:$0xf]
      %v1250 = vunpack.c.l.bf16 %v1249
      %v1251 = vadd.f32 %v1248, %v1250
      %vm1252 = vcmp.gt.f32.partialorder %v1251, 0.0
      %v1253 = vld [vmem:[%s7] sm:$0x1]
      %v1255 = vperm.slane %v1253, 0
      %v1257 = vmul.f32 %v1255, %v1251
      %v1258 = vsel %vm1252, %v1251, %v1257
      %v1259 = vld [vmem:[%s8] sm:$0x1]
      %v1261 = vperm.slane %v1259, 0
      %v1263 = vadd.f32 %v1258, %v1261
      %v1264 = vpack.c.bf16 %v1263, %v1263
      %1265 = vst [vmem:[%s479] sm:$0xf] %v1264
      %p1266 = scmp.lt.s32.totalorder %s24, 1
      %s1267 = scalar_select %p1266, %s24, 1
      %p1268 = scmp.lt.s32.totalorder %s25, 7
      %s1269 = scalar_select %p1268, %s25, 7
      %s1270 = smul.addr %s1267, 8
      %s1271 = sadd.s32 %s1269, %s1270
      %s1272 = smul.addr %s1271, 4
      %s1273 = scalar_lea.vmem %s9, %s1272
      // Predicated region
      $region57: #{binary_resnet_bisrnet_down.17} parent=55 // pred_check
        %p1274 = pneg %p273
      $region58: #{binary_resnet_bisrnet_down.17} parent=55 // pred_check_branch
        %1276 = sbr.rel (%p1274) target = $region60
      $region59: #{binary_resnet_bisrnet_down.17} parent=55 // pred_region
        _
      $region60: #{binary_resnet_bisrnet_down.17} parent=55 // pred_fallthru
        _
    $region56: #{binary_resnet_bisrnet_down.17} parent=5 // pred_fallthru
      _
    %p1277 = scmp.le.s32.totalorder 2, %s15
    // Predicated region
    $region61: #{binary_resnet_bisrnet_down.17} parent=5 // pred_check
      %p1278 = pneg %p1277
    $region62: #{binary_resnet_bisrnet_down.17} parent=5 // pred_check_branch
      %1280 = sbr.rel (%p1278) target = $region64
    $region63: #{binary_resnet_bisrnet_down.17} parent=5 // pred_region
      %s1281 = ssub.s32 %s15, 2
      // Predicated region
      $region65: #{binary_resnet_bisrnet_down.17} parent=63 // pred_check
        %p1282 = pneg %p279
      $region66: #{binary_resnet_bisrnet_down.17} parent=63 // pred_check_branch
        %1284 = sbr.rel (%p1282) target = $region68
      $region67: #{binary_resnet_bisrnet_down.17} parent=63 // pred_region
        %p1285 = scmp.lt.s32.totalorder %s26, 1
        %s1286 = scalar_select %p1285, %s26, 1
        %p1287 = scmp.lt.s32.totalorder %s27, 7
        %s1288 = scalar_select %p1287, %s27, 7
        %s1289 = smul.addr %s1286, 8
        %s1290 = sadd.s32 %s1288, %s1289
        %s1291 = smul.addr %s1290, 4
        %s1292 = scalar_lea.vmem %s9, %s1291
      $region68: #{binary_resnet_bisrnet_down.17} parent=63 // pred_fallthru
        _
    $region64: #{binary_resnet_bisrnet_down.17} parent=5 // pred_fallthru
      _
  $region6: #{binary_resnet_bisrnet_down.17} parent=0 // loop_footer
    %s19 = sadd.s32 1, %s15
  $region7: #{binary_resnet_bisrnet_down.17} parent=0 // loop_footer_branch
    %14 = sbr.rel target = $region3
  $region8: #{binary_resnet_bisrnet_down.17} parent=0 // loop_exit
    _

// kernel: sub.20
$region0: #{sub.20}
  #allocation0 [shape = 's32[1]{0}', space=sflag, size = 0x4, scoped, tag = 'scoped memory for sub.20']
  %s0 = inlined_call_operand.vmem [shape: f32[32], index: 0, kind: input, shape index: {}]
  %s1 = inlined_call_operand.vmem [shape: f32[32], index: 1, kind: input, shape index: {}]
  %s2 = inlined_call_operand.vmem [shape: f32[32], index: 2, kind: output, shape index: {}]
  %v3 = vld [vmem:[%s0] sm:$0x1]
  %v4 = vld [vmem:[%s1] sm:$0x1]
  %5 = xla_tuple %v3, %v4
  %6 = xla_tuple %5
  %v7 = vsub.f32 %v3, %v4
  %8 = xla_tuple %v7
  %9 = vst [vmem:[%s2] sm:$0x1] %v7

// kernel: binary_resnet_bisrnet_down.20
$region0: #{binary_resnet_bisrnet_down.20}
  #allocation0 [shape = 'u32[]', space=smem, size = 0x4, offset = 0x4, fixed_abs, tag = 'smem constant byte address 0x4 - core index']
  #allocation1 [shape = 'u32[72,128]{1,0:T(1,128)}', space=vmem, size = 0x9000, scoped, tag = 'internal scratch']
  %s0 = inlined_call_operand.vmem [shape: bf16[2,6,6,128], index: 0, kind: input, shape index: {}, may-alias: {0,1,2}]
  %s1 = inlined_call_operand.vmem [shape: bf16[2,6,6,128], index: 1, kind: input, shape index: {}, may-alias: {0,1,2}]
  %s2 = inlined_call_operand.vmem [shape: bf16[2,6,6,128], index: 2, kind: input, shape index: {}, may-alias: {0,1,2}]
  %s3 = inlined_call_operand.vmem [shape: bf16[9,128,128], index: 3, kind: input, shape index: {}]
  %s4 = inlined_call_operand.vmem [shape: f32[1,128], index: 4, kind: input, shape index: {}]
  %s5 = inlined_call_operand.vmem [shape: f32[1,128], index: 5, kind: input, shape index: {}]
  %s6 = inlined_call_operand.vmem [shape: bf16[2,4,4,128], index: 6, kind: output, shape index: {}]
  %s7 = sld [smem:[#allocation0]]
  $region57: #{binary_resnet_bisrnet_down.20} parent=0
    _
  %s9 = ssub.s32 1, %s7
  %s10 = scalar_select 0, %s9, %s7
  loop: start=0, step=1, limit=10
  $region2: #{binary_resnet_bisrnet_down.20} parent=0 // loop_pre_header
    _
  $region3: #{binary_resnet_bisrnet_down.20} parent=0 // loop_header
    %s12 = sphi 0, %s16
    %p13 = scmp.ge.s32.totalorder %s12, 10
    %s19 = sphi 0, %s31
    %s20 = sphi 0, %s27
    %s21 = sphi 0, %s19
    %s22 = sphi 0, %s20
    %s23 = sphi 0, %s21
    %s24 = sphi 0, %s22
    %s36 = sphi 0, %s38
    %s39 = sphi 0, %s36
    %s40 = sphi 0, %s39
    %s56 = sphi 0, %s40
    %s66 = sphi 0, %s68
    %s69 = sphi 0, %s66
    %s70 = sphi 0, %s69
    %s86 = sphi 0, %s70
    %s96 = sphi 0, %s98
    %s99 = sphi 0, %s96
    %s100 = sphi 0, %s99
    %s116 = sphi 0, %s100
    %s120 = sphi 0, %s120
    %s122 = sphi 0, %s120
    %s123 = sphi 0, %s122
    %s137 = sphi 0, %s123
    %s141 = sphi 0, %s141
    %s143 = sphi 0, %s141
    %s144 = sphi 0, %s143
    %s158 = sphi 0, %s144
    %s162 = sphi 0, %s162
    %s164 = sphi 0, %s162
    %s165 = sphi 0, %s164
    %s179 = sphi 0, %s165
    %s187 = sphi 0, %s189
    %s190 = sphi 0, %s187
    %s191 = sphi 0, %s190
    %s207 = sphi 0, %s191
  $region4: #{binary_resnet_bisrnet_down.20} parent=0 // loop_header_branch
    %15 = sbr.rel (%p13) target = $region8
  $region5: #{binary_resnet_bisrnet_down.20} parent=0 // loop_body
    %s17 = ssub.s32 %s12, 1
    %s18 = ssub.s32 %s12, 2
    %s25 = sadd.s32 1, %s20
    %p26 = scmp.ge.s32.totalorder %s25, 4
    %s27 = scalar_select %p26, 0, %s25
    %s28 = sadd.s32 1, %s19
    %s29 = scalar_select %p26, %s28, %s19
    %p30 = scmp.ge.s32.totalorder %s29, 2
    %s31 = scalar_select %p30, 0, %s29
    %s32 = ssub.s32 %s19, %s31
    %s33 = ssub.s32 %s20, %s27
    %s34 = sor.u32 %s32, %s33
    %p35 = scmp.eq.s32.totalorder %s34, 0
    %s37 = sadd.s32 %s36, 1
    %s38 = scalar_select %p35, %s36, %s37
    %p41 = pneg %p35
    %p42 = scmp.eq.s32.totalorder %s12, 7
    %p43 = por %p41, %p42
    %p44 = scmp.ne.s32.totalorder %s36, %s39
    %p45 = scmp.eq.s32.totalorder %s12, 0
    %p46 = por %p44, %p45
    %p47 = scmp.ne.s32.totalorder %s36, %s39
    %p48 = scmp.eq.s32.totalorder %s17, 7
    %p49 = por %p47, %p48
    %p50 = scmp.ne.s32.totalorder %s39, %s40
    %p51 = scmp.eq.s32.totalorder %s17, 0
    %p52 = por %p50, %p51
    %p53 = scmp.ne.s32.totalorder %s39, %s40
    %p54 = scmp.eq.s32.totalorder %s18, 7
    %p55 = por %p53, %p54
    %p57 = scmp.ne.s32.totalorder %s40, %s56
    %p58 = scmp.eq.s32.totalorder %s18, 0
    %p59 = por %p57, %p58
    %s60 = sadd.s32 %s20, 1
    %s61 = sadd.s32 %s27, 1
    %s62 = ssub.s32 %s19, %s31
    %s63 = ssub.s32 %s60, %s61
    %s64 = sor.u32 %s62, %s63
    %p65 = scmp.eq.s32.totalorder %s64, 0
    %s67 = sadd.s32 %s66, 1
    %s68 = scalar_select %p65, %s66, %s67
    %p71 = pneg %p65
    %p72 = scmp.eq.s32.totalorder %s12, 7
    %p73 = por %p71, %p72
    %p74 = scmp.ne.s32.totalorder %s66, %s69
    %p75 = scmp.eq.s32.totalorder %s12, 0
    %p76 = por %p74, %p75
    %p77 = scmp.ne.s32.totalorder %s66, %s69
    %p78 = scmp.eq.s32.totalorder %s17, 7
    %p79 = por %p77, %p78
    %p80 = scmp.ne.s32.totalorder %s69, %s70
    %p81 = scmp.eq.s32.totalorder %s17, 0
    %p82 = por %p80, %p81
    %p83 = scmp.ne.s32.totalorder %s69, %s70
    %p84 = scmp.eq.s32.totalorder %s18, 7
    %p85 = por %p83, %p84
    %p87 = scmp.ne.s32.totalorder %s70, %s86
    %p88 = scmp.eq.s32.totalorder %s18, 0
    %p89 = por %p87, %p88
    %s90 = sadd.s32 %s20, 2
    %s91 = sadd.s32 %s27, 2
    %s92 = ssub.s32 %s19, %s31
    %s93 = ssub.s32 %s90, %s91
    %s94 = sor.u32 %s92, %s93
    %p95 = scmp.eq.s32.totalorder %s94, 0
    %s97 = sadd.s32 %s96, 1
    %s98 = scalar_select %p95, %s96, %s97
    %p101 = pneg %p95
    %p102 = scmp.eq.s32.totalorder %s12, 7
    %p103 = por %p101, %p102
    %p104 = scmp.ne.s32.totalorder %s96, %s99
    %p105 = scmp.eq.s32.totalorder %s12, 0
    %p106 = por %p104, %p105
    %p107 = scmp.ne.s32.totalorder %s96, %s99
    %p108 = scmp.eq.s32.totalorder %s17, 7
    %p109 = por %p107, %p108
    %p110 = scmp.ne.s32.totalorder %s99, %s100
    %p111 = scmp.eq.s32.totalorder %s17, 0
    %p112 = por %p110, %p111
    %p113 = scmp.ne.s32.totalorder %s99, %s100
    %p114 = scmp.eq.s32.totalorder %s18, 7
    %p115 = por %p113, %p114
    %p117 = scmp.ne.s32.totalorder %s100, %s116
    %p118 = scmp.eq.s32.totalorder %s18, 0
    %p119 = por %p117, %p118
    %s121 = sadd.s32 %s120, 1
    %p124 = scmp.eq.s32.totalorder %s12, 7
    %p125 = scmp.ne.s32.totalorder %s120, %s122
    %p126 = scmp.eq.s32.totalorder %s12, 0
    %p127 = por %p125, %p126
    %p128 = scmp.ne.s32.totalorder %s120, %s122
    %p129 = scmp.eq.s32.totalorder %s17, 7
    %p130 = por %p128, %p129
    %p131 = scmp.ne.s32.totalorder %s122, %s123
    %p132 = scmp.eq.s32.totalorder %s17, 0
    %p133 = por %p131, %p132
    %p134 = scmp.ne.s32.totalorder %s122, %s123
    %p135 = scmp.eq.s32.totalorder %s18, 7
    %p136 = por %p134, %p135
    %p138 = scmp.ne.s32.totalorder %s123, %s137
    %p139 = scmp.eq.s32.totalorder %s18, 0
    %p140 = por %p138, %p139
    %s142 = sadd.s32 %s141, 1
    %p145 = scmp.eq.s32.totalorder %s12, 7
    %p146 = scmp.ne.s32.totalorder %s141, %s143
    %p147 = scmp.eq.s32.totalorder %s12, 0
    %p148 = por %p146, %p147
    %p149 = scmp.ne.s32.totalorder %s141, %s143
    %p150 = scmp.eq.s32.totalorder %s17, 7
    %p151 = por %p149, %p150
    %p152 = scmp.ne.s32.totalorder %s143, %s144
    %p153 = scmp.eq.s32.totalorder %s17, 0
    %p154 = por %p152, %p153
    %p155 = scmp.ne.s32.totalorder %s143, %s144
    %p156 = scmp.eq.s32.totalorder %s18, 7
    %p157 = por %p155, %p156
    %p159 = scmp.ne.s32.totalorder %s144, %s158
    %p160 = scmp.eq.s32.totalorder %s18, 0
    %p161 = por %p159, %p160
    %s163 = sadd.s32 %s162, 1
    %p166 = scmp.eq.s32.totalorder %s12, 7
    %p167 = scmp.ne.s32.totalorder %s162, %s164
    %p168 = scmp.eq.s32.totalorder %s12, 0
    %p169 = por %p167, %p168
    %p170 = scmp.ne.s32.totalorder %s162, %s164
    %p171 = scmp.eq.s32.totalorder %s17, 7
    %p172 = por %p170, %p171
    %p173 = scmp.ne.s32.totalorder %s164, %s165
    %p174 = scmp.eq.s32.totalorder %s17, 0
    %p175 = por %p173, %p174
    %p176 = scmp.ne.s32.totalorder %s164, %s165
    %p177 = scmp.eq.s32.totalorder %s18, 7
    %p178 = por %p176, %p177
    %p180 = scmp.ne.s32.totalorder %s165, %s179
    %p181 = scmp.eq.s32.totalorder %s18, 0
    %p182 = por %p180, %p181
    %s183 = ssub.s32 %s19, %s31
    %s184 = ssub.s32 %s20, %s27
    %s185 = sor.u32 %s183, %s184
    %p186 = scmp.eq.s32.totalorder %s185, 0
    %s188 = sadd.s32 %s187, 1
    %s189 = scalar_select %p186, %s187, %s188
    %p192 = pneg %p186
    %p193 = scmp.eq.s32.totalorder %s12, 7
    %p194 = por %p192, %p193
    %p195 = scmp.ne.s32.totalorder %s187, %s190
    %p196 = scmp.eq.s32.totalorder %s12, 0
    %p197 = por %p195, %p196
    %p198 = scmp.ne.s32.totalorder %s187, %s190
    %p199 = scmp.eq.s32.totalorder %s17, 7
    %p200 = por %p198, %p199
    %p201 = scmp.ne.s32.totalorder %s190, %s191
    %p202 = scmp.eq.s32.totalorder %s17, 0
    %p203 = por %p201, %p202
    %p204 = scmp.ne.s32.totalorder %s190, %s191
    %p205 = scmp.eq.s32.totalorder %s18, 7
    %p206 = por %p204, %p205
    %p208 = scmp.ne.s32.totalorder %s191, %s207
    %p209 = scmp.eq.s32.totalorder %s18, 0
    %p210 = por %p208, %p209
    %p211 = scmp.le.s32.totalorder 1, %s12
    %p212 = scmp.lt.s32.totalorder %s12, 9
    %p213 = pnand %p211, %p212
    %p214 = pneg %p213
    // Predicated region
    $region9: #{binary_resnet_bisrnet_down.20} parent=5 // pred_check
      _
    $region10: #{binary_resnet_bisrnet_down.20} parent=5 // pred_check_branch
      %216 = sbr.rel (%p213) target = $region12
    $region11: #{binary_resnet_bisrnet_down.20} parent=5 // pred_region
      %s217 = ssub.s32 %s12, 1
      // Predicated region
      $region13: #{binary_resnet_bisrnet_down.20} parent=11 // pred_check
        %p218 = pneg %p133
      $region14: #{binary_resnet_bisrnet_down.20} parent=11 // pred_check_branch
        %220 = sbr.rel (%p218) target = $region16
      $region15: #{binary_resnet_bisrnet_down.20} parent=11 // pred_region
        _
      $region16: #{binary_resnet_bisrnet_down.20} parent=11 // pred_fallthru
        _
      // Predicated region
      $region17: #{binary_resnet_bisrnet_down.20} parent=11 // pred_check
        %p221 = pneg %p154
      $region18: #{binary_resnet_bisrnet_down.20} parent=11 // pred_check_branch
        %223 = sbr.rel (%p221) target = $region20
      $region19: #{binary_resnet_bisrnet_down.20} parent=11 // pred_region
        _
      $region20: #{binary_resnet_bisrnet_down.20} parent=11 // pred_fallthru
        _
      // Predicated region
      $region21: #{binary_resnet_bisrnet_down.20} parent=11 // pred_check
        %p224 = pneg %p175
      $region22: #{binary_resnet_bisrnet_down.20} parent=11 // pred_check_branch
        %226 = sbr.rel (%p224) target = $region24
      $region23: #{binary_resnet_bisrnet_down.20} parent=11 // pred_region
        _
      $region24: #{binary_resnet_bisrnet_down.20} parent=11 // pred_fallthru
        _
    $region12: #{binary_resnet_bisrnet_down.20} parent=5 // pred_fallthru
      _
    %p227 = scmp.lt.s32.totalorder %s12, 8
    // Predicated region
    $region25: #{binary_resnet_bisrnet_down.20} parent=5 // pred_check
      %p228 = pneg %p227
    $region26: #{binary_resnet_bisrnet_down.20} parent=5 // pred_check_branch
      %230 = sbr.rel (%p228) target = $region28
    $region27: #{binary_resnet_bisrnet_down.20} parent=5 // pred_region
      // Predicated region
      $region29: #{binary_resnet_bisrnet_down.20} parent=27 // pred_check
        %p231 = pneg %p46
      $region30: #{binary_resnet_bisrnet_down.20} parent=27 // pred_check_branch
        %233 = sbr.rel (%p231) target = $region32
      $region31: #{binary_resnet_bisrnet_down.20} parent=27 // pred_region
        %p234 = scmp.lt.s32.totalorder %s19, 1
        %s235 = scalar_select %p234, %s19, 1
        %p236 = scmp.lt.s32.totalorder %s20, 5
        %s237 = scalar_select %p236, %s20, 5
        %s238 = smul.addr %s235, 6
        %s239 = sadd.s32 %s237, %s238
        %s240 = smul.addr %s239, 4
        %s241 = scalar_lea.vmem %s0, %s240
      $region32: #{binary_resnet_bisrnet_down.20} parent=27 // pred_fallthru
        _
      // Predicated region
      $region33: #{binary_resnet_bisrnet_down.20} parent=27 // pred_check
        %p242 = pneg %p76
      $region34: #{binary_resnet_bisrnet_down.20} parent=27 // pred_check_branch
        %244 = sbr.rel (%p242) target = $region36
      $region35: #{binary_resnet_bisrnet_down.20} parent=27 // pred_region
        %s245 = sadd.s32 %s20, 1
        %p246 = scmp.lt.s32.totalorder %s19, 1
        %s247 = scalar_select %p246, %s19, 1
        %p248 = scmp.lt.s32.totalorder %s245, 5
        %s249 = scalar_select %p248, %s245, 5
        %s250 = smul.addr %s247, 6
        %s251 = sadd.s32 %s249, %s250
        %s252 = smul.addr %s251, 4
        %s253 = scalar_lea.vmem %s1, %s252
        %s254 = sadd.s32 %s20, 1
      $region36: #{binary_resnet_bisrnet_down.20} parent=27 // pred_fallthru
        _
      // Predicated region
      $region37: #{binary_resnet_bisrnet_down.20} parent=27 // pred_check
        %p255 = pneg %p106
      $region38: #{binary_resnet_bisrnet_down.20} parent=27 // pred_check_branch
        %257 = sbr.rel (%p255) target = $region40
      $region39: #{binary_resnet_bisrnet_down.20} parent=27 // pred_region
        %s258 = sadd.s32 %s20, 2
        %p259 = scmp.lt.s32.totalorder %s19, 1
        %s260 = scalar_select %p259, %s19, 1
        %p261 = scmp.lt.s32.totalorder %s258, 5
        %s262 = scalar_select %p261, %s258, 5
        %s263 = smul.addr %s260, 6
        %s264 = sadd.s32 %s262, %s263
        %s265 = smul.addr %s264, 4
        %s266 = scalar_lea.vmem %s2, %s265
        %s267 = sadd.s32 %s20, 2
      $region40: #{binary_resnet_bisrnet_down.20} parent=27 // pred_fallthru
        _
    $region28: #{binary_resnet_bisrnet_down.20} parent=5 // pred_fallthru
      _
    %p268 = scmp.le.s32.totalorder 1, %s12
    %p269 = scmp.lt.s32.totalorder %s12, 9
    %p270 = pnand %p268, %p269
    %p271 = pneg %p270
    // Predicated region
    $region41: #{binary_resnet_bisrnet_down.20} parent=5 // pred_check
      _
    $region42: #{binary_resnet_bisrnet_down.20} parent=5 // pred_check_branch
      %273 = sbr.rel (%p270) target = $region44
    $region43: #{binary_resnet_bisrnet_down.20} parent=5 // pred_region
      %s274 = ssub.s32 %s12, 1
      %p275 = scmp.lt.s32.totalorder %s21, 1
      %s276 = scalar_select %p275, %s21, 1
      %p277 = scmp.lt.s32.totalorder %s22, 5
      %s278 = scalar_select %p277, %s22, 5
      %s279 = smul.addr %s276, 6
      %s280 = sadd.s32 %s278, %s279
      %s281 = smul.addr %s280, 4
      %s282 = scalar_lea.vmem %s0, %s281
      %p283 = pneg %p52
      %p284 = pneg %p49
      %s285 = sadd.s32 %s22, 1
      %p286 = scmp.lt.s32.totalorder %s21, 1
      %s287 = scalar_select %p286, %s21, 1
      %p288 = scmp.lt.s32.totalorder %s285, 5
      %s289 = scalar_select %p288, %s285, 5
      %s290 = smul.addr %s287, 6
      %s291 = sadd.s32 %s289, %s290
      %s292 = smul.addr %s291, 4
      %s293 = scalar_lea.vmem %s1, %s292
      %p294 = pneg %p82
      %p295 = pneg %p79
      %s296 = sadd.s32 %s22, 2
      %p297 = scmp.lt.s32.totalorder %s21, 1
      %s298 = scalar_select %p297, %s21, 1
      %p299 = scmp.lt.s32.totalorder %s296, 5
      %s300 = scalar_select %p299, %s296, 5
      %s301 = smul.addr %s298, 6
      %s302 = sadd.s32 %s300, %s301
      %s303 = smul.addr %s302, 4
      %s304 = scalar_lea.vmem %s2, %s303
      %p305 = pneg %p112
      %p306 = pneg %p109
      %p307 = pneg %p133
      %p308 = pneg %p130
      %p309 = pneg %p154
      %p310 = pneg %p151
      %p311 = pneg %p175
      %p312 = pneg %p172
      %p313 = pneg %p203
      %p314 = pneg %p200
      %p315 = scmp.lt.s32.totalorder %s21, 1
      %s316 = scalar_select %p315, %s21, 1
      %p317 = scmp.lt.s32.totalorder %s22, 3
      %s318 = scalar_select %p317, %s22, 3
      %s319 = smul.addr %s316, 4
      %s320 = sadd.s32 %s318, %s319
      %s321 = smul.addr %s320, 2
      %s322 = scalar_lea.vmem %s6, %s321
      %p323 = scmp.lt.s32.totalorder %s21, 1
      %s324 = scalar_select %p323, %s21, 1
      %p325 = scmp.lt.s32.totalorder %s22, 5
      %s326 = scalar_select %p325, %s22, 5
      %s327 = smul.addr %s324, 6
      %s328 = sadd.s32 %s326, %s327
      %s329 = smul.addr %s328, 4
      %s330 = scalar_lea.vmem %s0, %s329
      %s331 = sadd.s32 %s22, 1
      %p332 = scmp.lt.s32.totalorder %s21, 1
      %s333 = scalar_select %p332, %s21, 1
      %p334 = scmp.lt.s32.totalorder %s331, 5
      %s335 = scalar_select %p334, %s331, 5
      %s336 = smul.addr %s333, 6
      %s337 = sadd.s32 %s335, %s336
      %s338 = smul.addr %s337, 4
      %s339 = scalar_lea.vmem %s1, %s338
      %s340 = sadd.s32 %s22, 1
      %s341 = sadd.s32 %s22, 2
      %p342 = scmp.lt.s32.totalorder %s21, 1
      %s343 = scalar_select %p342, %s21, 1
      %p344 = scmp.lt.s32.totalorder %s341, 5
      %s345 = scalar_select %p344, %s341, 5
      %s346 = smul.addr %s343, 6
      %s347 = sadd.s32 %s345, %s346
      %s348 = smul.addr %s347, 4
      %s349 = scalar_lea.vmem %s2, %s348
      %s350 = sadd.s32 %s22, 2
      %p351 = scmp.lt.s32.totalorder %s21, 1
      %s352 = scalar_select %p351, %s21, 1
      %p353 = scmp.lt.s32.totalorder %s22, 3
      %s354 = scalar_select %p353, %s22, 3
      %s355 = smul.addr %s352, 4
      %s356 = sadd.s32 %s354, %s355
      %s357 = smul.addr %s356, 2
      %s358 = scalar_lea.vmem %s6, %s357
      %v359 = vld [vmem:[%s330] sm:$0x7]
      %v360 = vld [vmem:[%s3] sm:$0xf]
      %v361 = vld [vmem:[%s3 + $0x4] sm:$0xf]
      %v362 = vld [vmem:[%s3 + $0x8] sm:$0xf]
      %v363 = vld [vmem:[%s3 + $0xc] sm:$0xf]
      %v364 = vld [vmem:[%s3 + $0x10] sm:$0xf]
      %v365 = vld [vmem:[%s3 + $0x14] sm:$0xf]
      %v366 = vld [vmem:[%s3 + $0x18] sm:$0xf]
      %v367 = vld [vmem:[%s3 + $0x1c] sm:$0xf]
      %v368 = vld [vmem:[%s3 + $0x20] sm:$0xf]
      %v369 = vld [vmem:[%s3 + $0x24] sm:$0xf]
      %v370 = vld [vmem:[%s3 + $0x28] sm:$0xf]
      %v371 = vld [vmem:[%s3 + $0x2c] sm:$0xf]
      %v372 = vld [vmem:[%s3 + $0x30] sm:$0xf]
      %v373 = vld [vmem:[%s3 + $0x34] sm:$0xf]
      %v374 = vld [vmem:[%s3 + $0x38] sm:$0xf]
      %v375 = vld [vmem:[%s3 + $0x3c] sm:$0xf]
      %s376 = scalar_lea.vmem %s3, 64
      %v377 = vld [vmem:[%s376] sm:$0xf]
      %v378 = vld [vmem:[%s376 + $0x4] sm:$0xf]
      %v379 = vld [vmem:[%s376 + $0x8] sm:$0xf]
      %v380 = vld [vmem:[%s376 + $0xc] sm:$0xf]
      %v381 = vld [vmem:[%s376 + $0x10] sm:$0xf]
      %v382 = vld [vmem:[%s376 + $0x14] sm:$0xf]
      %v383 = vld [vmem:[%s376 + $0x18] sm:$0xf]
      %v384 = vld [vmem:[%s376 + $0x1c] sm:$0xf]
      %v385 = vld [vmem:[%s376 + $0x20] sm:$0xf]
      %v386 = vld [vmem:[%s376 + $0x24] sm:$0xf]
      %v387 = vld [vmem:[%s376 + $0x28] sm:$0xf]
      %v388 = vld [vmem:[%s376 + $0x2c] sm:$0xf]
      %v389 = vld [vmem:[%s376 + $0x30] sm:$0xf]
      %v390 = vld [vmem:[%s376 + $0x34] sm:$0xf]
      %v391 = vld [vmem:[%s376 + $0x38] sm:$0xf]
      %v392 = vld [vmem:[%s376 + $0x3c] sm:$0xf]
      %v394 = vunpack.c.l.b16 %v359
      %v395 = vpack.c.b16 %v394, %v394
      %v397 = vshrl.u32 %v395, 16
      %v399 = vshll.u32 %v395, 16
      %v401 = vrot.slane %v399, 1
      %v402 = vor.u32 %v397, %v401
      %v420 = vunpack.c.l.b16 %v377
      %v421 = vunpack.c.l.b16 %v378
      %v422 = vunpack.c.l.b16 %v379
      %v423 = vunpack.c.l.b16 %v380
      %v424 = vunpack.c.l.b16 %v381
      %v425 = vunpack.c.l.b16 %v382
      %v426 = vunpack.c.l.b16 %v383
      %v427 = vunpack.c.l.b16 %v384
      %v428 = vunpack.c.l.b16 %v385
      %v429 = vunpack.c.l.b16 %v386
      %v430 = vunpack.c.l.b16 %v387
      %v431 = vunpack.c.l.b16 %v388
      %v432 = vunpack.c.l.b16 %v389
      %v433 = vunpack.c.l.b16 %v390
      %v434 = vunpack.c.l.b16 %v391
      %v435 = vunpack.c.l.b16 %v392
      %v436 = vpack.c.b16 %v421, %v420
      %v437 = vpack.c.b16 %v423, %v422
      %v438 = vpack.c.b16 %v425, %v424
      %v439 = vpack.c.b16 %v427, %v426
      %v440 = vpack.c.b16 %v429, %v428
      %v441 = vpack.c.b16 %v431, %v430
      %v442 = vpack.c.b16 %v433, %v432
      %v443 = vpack.c.b16 %v435, %v434
      %452 = vmatpush.bf16.msra.mxu0 %v443
      %453 = vmatpush.bf16.msra.mxu0 %v442
      %454 = vmatpush.bf16.msra.mxu0 %v441
      %455 = vmatpush.bf16.msra.mxu0 %v440
      %456 = vmatpush.bf16.msra.mxu0 %v439
      %457 = vmatpush.bf16.msra.mxu0 %v438
      %458 = vmatpush.bf16.msra.mxu0 %v437
      %459 = vmatpush.bf16.msra.mxu0 %v436
      %460 = vmatmul.bf16.gmra.mxu0 %v402
      %v461 = vpop.f32.mrf.mxu0
      %v462 = vadd.f32 0.0, %v461
      %v463 = vpop.f32.mrf.mxu0
      %464 = vdwg.mxu0
      %v481 = vunpack.c.l.b16 %v360
      %v482 = vunpack.c.l.b16 %v361
      %v483 = vunpack.c.l.b16 %v362
      %v484 = vunpack.c.l.b16 %v363
      %v485 = vunpack.c.l.b16 %v364
      %v486 = vunpack.c.l.b16 %v365
      %v487 = vunpack.c.l.b16 %v366
      %v488 = vunpack.c.l.b16 %v367
      %v489 = vunpack.c.l.b16 %v368
      %v490 = vunpack.c.l.b16 %v369
      %v491 = vunpack.c.l.b16 %v370
      %v492 = vunpack.c.l.b16 %v371
      %v493 = vunpack.c.l.b16 %v372
      %v494 = vunpack.c.l.b16 %v373
      %v495 = vunpack.c.l.b16 %v374
      %v496 = vunpack.c.l.b16 %v375
      %v497 = vpack.c.b16 %v482, %v481
      %v498 = vpack.c.b16 %v484, %v483
      %v499 = vpack.c.b16 %v486, %v485
      %v500 = vpack.c.b16 %v488, %v487
      %v501 = vpack.c.b16 %v490, %v489
      %v502 = vpack.c.b16 %v492, %v491
      %v503 = vpack.c.b16 %v494, %v493
      %v504 = vpack.c.b16 %v496, %v495
      %513 = vmatpush.bf16.msra.mxu0 %v504
      %514 = vmatpush.bf16.msra.mxu0 %v503
      %515 = vmatpush.bf16.msra.mxu0 %v502
      %516 = vmatpush.bf16.msra.mxu0 %v501
      %517 = vmatpush.bf16.msra.mxu0 %v500
      %518 = vmatpush.bf16.msra.mxu0 %v499
      %519 = vmatpush.bf16.msra.mxu0 %v498
      %520 = vmatpush.bf16.msra.mxu0 %v497
      %521 = vmatmul.bf16.gmra.mxu0 %v359
      %v522 = vpop.f32.mrf.mxu0
      %v523 = vadd.f32 %v462, %v522
      %v524 = vpop.f32.mrf.mxu0
      %525 = vdwg.mxu0
      %s526 = scalar_lea.vmem %s3, 128
      %v527 = vld [vmem:[%s526] sm:$0xf]
      %v528 = vld [vmem:[%s526 + $0x4] sm:$0xf]
      %v529 = vld [vmem:[%s526 + $0x8] sm:$0xf]
      %v530 = vld [vmem:[%s526 + $0xc] sm:$0xf]
      %v531 = vld [vmem:[%s526 + $0x10] sm:$0xf]
      %v532 = vld [vmem:[%s526 + $0x14] sm:$0xf]
      %v533 = vld [vmem:[%s526 + $0x18] sm:$0xf]
      %v534 = vld [vmem:[%s526 + $0x1c] sm:$0xf]
      %v535 = vld [vmem:[%s526 + $0x20] sm:$0xf]
      %v536 = vld [vmem:[%s526 + $0x24] sm:$0xf]
      %v537 = vld [vmem:[%s526 + $0x28] sm:$0xf]
      %v538 = vld [vmem:[%s526 + $0x2c] sm:$0xf]
      %v539 = vld [vmem:[%s526 + $0x30] sm:$0xf]
      %v540 = vld [vmem:[%s526 + $0x34] sm:$0xf]
      %v541 = vld [vmem:[%s526 + $0x38] sm:$0xf]
      %v542 = vld [vmem:[%s526 + $0x3c] sm:$0xf]
      %v543 = vrot.slane %v395, 1
      %v561 = vunpack.c.l.b16 %v527
      %v562 = vunpack.c.l.b16 %v528
      %v563 = vunpack.c.l.b16 %v529
      %v564 = vunpack.c.l.b16 %v530
      %v565 = vunpack.c.l.b16 %v531
      %v566 = vunpack.c.l.b16 %v532
      %v567 = vunpack.c.l.b16 %v533
      %v568 = vunpack.c.l.b16 %v534
      %v569 = vunpack.c.l.b16 %v535
      %v570 = vunpack.c.l.b16 %v536
      %v571 = vunpack.c.l.b16 %v537
      %v572 = vunpack.c.l.b16 %v538
      %v573 = vunpack.c.l.b16 %v539
      %v574 = vunpack.c.l.b16 %v540
      %v575 = vunpack.c.l.b16 %v541
      %v576 = vunpack.c.l.b16 %v542
      %v577 = vpack.c.b16 %v562, %v561
      %v578 = vpack.c.b16 %v564, %v563
      %v579 = vpack.c.b16 %v566, %v565
      %v580 = vpack.c.b16 %v568, %v567
      %v581 = vpack.c.b16 %v570, %v569
      %v582 = vpack.c.b16 %v572, %v571
      %v583 = vpack.c.b16 %v574, %v573
      %v584 = vpack.c.b16 %v576, %v575
      %593 = vmatpush.bf16.msra.mxu0 %v584
      %594 = vmatpush.bf16.msra.mxu0 %v583
      %595 = vmatpush.bf16.msra.mxu0 %v582
      %596 = vmatpush.bf16.msra.mxu0 %v581
      %597 = vmatpush.bf16.msra.mxu0 %v580
      %598 = vmatpush.bf16.msra.mxu0 %v579
      %599 = vmatpush.bf16.msra.mxu0 %v578
      %600 = vmatpush.bf16.msra.mxu0 %v577
      %601 = vmatmul.bf16.gmra.mxu0 %v543
      %v602 = vpop.f32.mrf.mxu0
      %v603 = vadd.f32 0.0, %v602
      %v604 = vpop.f32.mrf.mxu0
      %605 = vdwg.mxu0
      %v606 = vadd.f32 %v523, %v603
      %v607 = vld [vmem:[%s339] sm:$0x7]
      %s608 = scalar_lea.vmem %s3, 192
      %v609 = vld [vmem:[%s608] sm:$0xf]
      %v610 = vld [vmem:[%s608 + $0x4] sm:$0xf]
      %v611 = vld [vmem:[%s608 + $0x8] sm:$0xf]
      %v612 = vld [vmem:[%s608 + $0xc] sm:$0xf]
      %v613 = vld [vmem:[%s608 + $0x10] sm:$0xf]
      %v614 = vld [vmem:[%s608 + $0x14] sm:$0xf]
      %v615 = vld [vmem:[%s608 + $0x18] sm:$0xf]
      %v616 = vld [vmem:[%s608 + $0x1c] sm:$0xf]
      %v617 = vld [vmem:[%s608 + $0x20] sm:$0xf]
      %v618 = vld [vmem:[%s608 + $0x24] sm:$0xf]
      %v619 = vld [vmem:[%s608 + $0x28] sm:$0xf]
      %v620 = vld [vmem:[%s608 + $0x2c] sm:$0xf]
      %v621 = vld [vmem:[%s608 + $0x30] sm:$0xf]
      %v622 = vld [vmem:[%s608 + $0x34] sm:$0xf]
      %v623 = vld [vmem:[%s608 + $0x38] sm:$0xf]
      %v624 = vld [vmem:[%s608 + $0x3c] sm:$0xf]
      %v641 = vunpack.c.l.b16 %v609
      %v642 = vunpack.c.l.b16 %v610
      %v643 = vunpack.c.l.b16 %v611
      %v644 = vunpack.c.l.b16 %v612
      %v645 = vunpack.c.l.b16 %v613
      %v646 = vunpack.c.l.b16 %v614
      %v647 = vunpack.c.l.b16 %v615
      %v648 = vunpack.c.l.b16 %v616
      %v649 = vunpack.c.l.b16 %v617
      %v650 = vunpack.c.l.b16 %v618
      %v651 = vunpack.c.l.b16 %v619
      %v652 = vunpack.c.l.b16 %v620
      %v653 = vunpack.c.l.b16 %v621
      %v654 = vunpack.c.l.b16 %v622
      %v655 = vunpack.c.l.b16 %v623
      %v656 = vunpack.c.l.b16 %v624
      %v657 = vpack.c.b16 %v642, %v641
      %v658 = vpack.c.b16 %v644, %v643
      %v659 = vpack.c.b16 %v646, %v645
      %v660 = vpack.c.b16 %v648, %v647
      %v661 = vpack.c.b16 %v650, %v649
      %v662 = vpack.c.b16 %v652, %v651
      %v663 = vpack.c.b16 %v654, %v653
      %v664 = vpack.c.b16 %v656, %v655
      %673 = vmatpush.bf16.msra.mxu0 %v664
      %674 = vmatpush.bf16.msra.mxu0 %v663
      %675 = vmatpush.bf16.msra.mxu0 %v662
      %676 = vmatpush.bf16.msra.mxu0 %v661
      %677 = vmatpush.bf16.msra.mxu0 %v660
      %678 = vmatpush.bf16.msra.mxu0 %v659
      %679 = vmatpush.bf16.msra.mxu0 %v658
      %680 = vmatpush.bf16.msra.mxu0 %v657
      %681 = vmatmul.bf16.gmra.mxu0 %v607
      %v682 = vpop.f32.mrf.mxu0
      %v683 = vadd.f32 0.0, %v682
      %v684 = vpop.f32.mrf.mxu0
      %685 = vdwg.mxu0
      %v686 = vadd.f32 %v606, %v683
      %s687 = scalar_lea.vmem %s3, 256
      %v688 = vld [vmem:[%s687] sm:$0xf]
      %v689 = vld [vmem:[%s687 + $0x4] sm:$0xf]
      %v690 = vld [vmem:[%s687 + $0x8] sm:$0xf]
      %v691 = vld [vmem:[%s687 + $0xc] sm:$0xf]
      %v692 = vld [vmem:[%s687 + $0x10] sm:$0xf]
      %v693 = vld [vmem:[%s687 + $0x14] sm:$0xf]
      %v694 = vld [vmem:[%s687 + $0x18] sm:$0xf]
      %v695 = vld [vmem:[%s687 + $0x1c] sm:$0xf]
      %v696 = vld [vmem:[%s687 + $0x20] sm:$0xf]
      %v697 = vld [vmem:[%s687 + $0x24] sm:$0xf]
      %v698 = vld [vmem:[%s687 + $0x28] sm:$0xf]
      %v699 = vld [vmem:[%s687 + $0x2c] sm:$0xf]
      %v700 = vld [vmem:[%s687 + $0x30] sm:$0xf]
      %v701 = vld [vmem:[%s687 + $0x34] sm:$0xf]
      %v702 = vld [vmem:[%s687 + $0x38] sm:$0xf]
      %v703 = vld [vmem:[%s687 + $0x3c] sm:$0xf]
      %v705 = vunpack.c.l.b16 %v607
      %v706 = vpack.c.b16 %v705, %v705
      %v708 = vshrl.u32 %v706, 16
      %v710 = vshll.u32 %v706, 16
      %v712 = vrot.slane %v710, 1
      %v713 = vor.u32 %v708, %v712
      %v731 = vunpack.c.l.b16 %v688
      %v732 = vunpack.c.l.b16 %v689
      %v733 = vunpack.c.l.b16 %v690
      %v734 = vunpack.c.l.b16 %v691
      %v735 = vunpack.c.l.b16 %v692
      %v736 = vunpack.c.l.b16 %v693
      %v737 = vunpack.c.l.b16 %v694
      %v738 = vunpack.c.l.b16 %v695
      %v739 = vunpack.c.l.b16 %v696
      %v740 = vunpack.c.l.b16 %v697
      %v741 = vunpack.c.l.b16 %v698
      %v742 = vunpack.c.l.b16 %v699
      %v743 = vunpack.c.l.b16 %v700
      %v744 = vunpack.c.l.b16 %v701
      %v745 = vunpack.c.l.b16 %v702
      %v746 = vunpack.c.l.b16 %v703
      %v747 = vpack.c.b16 %v732, %v731
      %v748 = vpack.c.b16 %v734, %v733
      %v749 = vpack.c.b16 %v736, %v735
      %v750 = vpack.c.b16 %v738, %v737
      %v751 = vpack.c.b16 %v740, %v739
      %v752 = vpack.c.b16 %v742, %v741
      %v753 = vpack.c.b16 %v744, %v743
      %v754 = vpack.c.b16 %v746, %v745
      %763 = vmatpush.bf16.msra.mxu0 %v754
      %764 = vmatpush.bf16.msra.mxu0 %v753
      %765 = vmatpush.bf16.msra.mxu0 %v752
      %766 = vmatpush.bf16.msra.mxu0 %v751
      %767 = vmatpush.bf16.msra.mxu0 %v750
      %768 = vmatpush.bf16.msra.mxu0 %v749
      %769 = vmatpush.bf16.msra.mxu0 %v748
      %770 = vmatpush.bf16.msra.mxu0 %v747
      %771 = vmatmul.bf16.gmra.mxu0 %v713
      %v772 = vpop.f32.mrf.mxu0
      %v773 = vadd.f32 0.0, %v772
      %v774 = vpop.f32.mrf.mxu0
      %775 = vdwg.mxu0
      %v776 = vadd.f32 %v686, %v773
      %s777 = scalar_lea.vmem %s3, 320
      %v778 = vld [vmem:[%s777] sm:$0xf]
      %v779 = vld [vmem:[%s777 + $0x4] sm:$0xf]
      %v780 = vld [vmem:[%s777 + $0x8] sm:$0xf]
      %v781 = vld [vmem:[%s777 + $0xc] sm:$0xf]
      %v782 = vld [vmem:[%s777 + $0x10] sm:$0xf]
      %v783 = vld [vmem:[%s777 + $0x14] sm:$0xf]
      %v784 = vld [vmem:[%s777 + $0x18] sm:$0xf]
      %v785 = vld [vmem:[%s777 + $0x1c] sm:$0xf]
      %v786 = vld [vmem:[%s777 + $0x20] sm:$0xf]
      %v787 = vld [vmem:[%s777 + $0x24] sm:$0xf]
      %v788 = vld [vmem:[%s777 + $0x28] sm:$0xf]
      %v789 = vld [vmem:[%s777 + $0x2c] sm:$0xf]
      %v790 = vld [vmem:[%s777 + $0x30] sm:$0xf]
      %v791 = vld [vmem:[%s777 + $0x34] sm:$0xf]
      %v792 = vld [vmem:[%s777 + $0x38] sm:$0xf]
      %v793 = vld [vmem:[%s777 + $0x3c] sm:$0xf]
      %v794 = vrot.slane %v706, 1
      %v812 = vunpack.c.l.b16 %v778
      %v813 = vunpack.c.l.b16 %v779
      %v814 = vunpack.c.l.b16 %v780
      %v815 = vunpack.c.l.b16 %v781
      %v816 = vunpack.c.l.b16 %v782
      %v817 = vunpack.c.l.b16 %v783
      %v818 = vunpack.c.l.b16 %v784
      %v819 = vunpack.c.l.b16 %v785
      %v820 = vunpack.c.l.b16 %v786
      %v821 = vunpack.c.l.b16 %v787
      %v822 = vunpack.c.l.b16 %v788
      %v823 = vunpack.c.l.b16 %v789
      %v824 = vunpack.c.l.b16 %v790
      %v825 = vunpack.c.l.b16 %v791
      %v826 = vunpack.c.l.b16 %v792
      %v827 = vunpack.c.l.b16 %v793
      %v828 = vpack.c.b16 %v813, %v812
      %v829 = vpack.c.b16 %v815, %v814
      %v830 = vpack.c.b16 %v817, %v816
      %v831 = vpack.c.b16 %v819, %v818
      %v832 = vpack.c.b16 %v821, %v820
      %v833 = vpack.c.b16 %v823, %v822
      %v834 = vpack.c.b16 %v825, %v824
      %v835 = vpack.c.b16 %v827, %v826
      %844 = vmatpush.bf16.msra.mxu0 %v835
      %845 = vmatpush.bf16.msra.mxu0 %v834
      %846 = vmatpush.bf16.msra.mxu0 %v833
      %847 = vmatpush.bf16.msra.mxu0 %v832
      %848 = vmatpush.bf16.msra.mxu0 %v831
      %849 = vmatpush.bf16.msra.mxu0 %v830
      %850 = vmatpush.bf16.msra.mxu0 %v829
      %851 = vmatpush.bf16.msra.mxu0 %v828
      %852 = vmatmul.bf16.gmra.mxu0 %v794
      %v853 = vpop.f32.mrf.mxu0
      %v854 = vadd.f32 0.0, %v853
      %v855 = vpop.f32.mrf.mxu0
      %856 = vdwg.mxu0
      %v857 = vadd.f32 %v776, %v854
      %v858 = vld [vmem:[%s349] sm:$0x7]
      %s859 = scalar_lea.vmem %s3, 384
      %v860 = vld [vmem:[%s859] sm:$0xf]
      %v861 = vld [vmem:[%s859 + $0x4] sm:$0xf]
      %v862 = vld [vmem:[%s859 + $0x8] sm:$0xf]
      %v863 = vld [vmem:[%s859 + $0xc] sm:$0xf]
      %v864 = vld [vmem:[%s859 + $0x10] sm:$0xf]
      %v865 = vld [vmem:[%s859 + $0x14] sm:$0xf]
      %v866 = vld [vmem:[%s859 + $0x18] sm:$0xf]
      %v867 = vld [vmem:[%s859 + $0x1c] sm:$0xf]
      %v868 = vld [vmem:[%s859 + $0x20] sm:$0xf]
      %v869 = vld [vmem:[%s859 + $0x24] sm:$0xf]
      %v870 = vld [vmem:[%s859 + $0x28] sm:$0xf]
      %v871 = vld [vmem:[%s859 + $0x2c] sm:$0xf]
      %v872 = vld [vmem:[%s859 + $0x30] sm:$0xf]
      %v873 = vld [vmem:[%s859 + $0x34] sm:$0xf]
      %v874 = vld [vmem:[%s859 + $0x38] sm:$0xf]
      %v875 = vld [vmem:[%s859 + $0x3c] sm:$0xf]
      %v892 = vunpack.c.l.b16 %v860
      %v893 = vunpack.c.l.b16 %v861
      %v894 = vunpack.c.l.b16 %v862
      %v895 = vunpack.c.l.b16 %v863
      %v896 = vunpack.c.l.b16 %v864
      %v897 = vunpack.c.l.b16 %v865
      %v898 = vunpack.c.l.b16 %v866
      %v899 = vunpack.c.l.b16 %v867
      %v900 = vunpack.c.l.b16 %v868
      %v901 = vunpack.c.l.b16 %v869
      %v902 = vunpack.c.l.b16 %v870
      %v903 = vunpack.c.l.b16 %v871
      %v904 = vunpack.c.l.b16 %v872
      %v905 = vunpack.c.l.b16 %v873
      %v906 = vunpack.c.l.b16 %v874
      %v907 = vunpack.c.l.b16 %v875
      %v908 = vpack.c.b16 %v893, %v892
      %v909 = vpack.c.b16 %v895, %v894
      %v910 = vpack.c.b16 %v897, %v896
      %v911 = vpack.c.b16 %v899, %v898
      %v912 = vpack.c.b16 %v901, %v900
      %v913 = vpack.c.b16 %v903, %v902
      %v914 = vpack.c.b16 %v905, %v904
      %v915 = vpack.c.b16 %v907, %v906
      %924 = vmatpush.bf16.msra.mxu0 %v915
      %925 = vmatpush.bf16.msra.mxu0 %v914
      %926 = vmatpush.bf16.msra.mxu0 %v913
      %927 = vmatpush.bf16.msra.mxu0 %v912
      %928 = vmatpush.bf16.msra.mxu0 %v911
      %929 = vmatpush.bf16.msra.mxu0 %v910
      %930 = vmatpush.bf16.msra.mxu0 %v909
      %931 = vmatpush.bf16.msra.mxu0 %v908
      %932 = vmatmul.bf16.gmra.mxu0 %v858
      %v933 = vpop.f32.mrf.mxu0
      %v934 = vadd.f32 0.0, %v933
      %v935 = vpop.f32.mrf.mxu0
      %936 = vdwg.mxu0
      %v937 = vadd.f32 %v857, %v934
      %s938 = scalar_lea.vmem %s3, 448
      %v939 = vld [vmem:[%s938] sm:$0xf]
      %v940 = vld [vmem:[%s938 + $0x4] sm:$0xf]
      %v941 = vld [vmem:[%s938 + $0x8] sm:$0xf]
      %v942 = vld [vmem:[%s938 + $0xc] sm:$0xf]
      %v943 = vld [vmem:[%s938 + $0x10] sm:$0xf]
      %v944 = vld [vmem:[%s938 + $0x14] sm:$0xf]
      %v945 = vld [vmem:[%s938 + $0x18] sm:$0xf]
      %v946 = vld [vmem:[%s938 + $0x1c] sm:$0xf]
      %v947 = vld [vmem:[%s938 + $0x20] sm:$0xf]
      %v948 = vld [vmem:[%s938 + $0x24] sm:$0xf]
      %v949 = vld [vmem:[%s938 + $0x28] sm:$0xf]
      %v950 = vld [vmem:[%s938 + $0x2c] sm:$0xf]
      %v951 = vld [vmem:[%s938 + $0x30] sm:$0xf]
      %v952 = vld [vmem:[%s938 + $0x34] sm:$0xf]
      %v953 = vld [vmem:[%s938 + $0x38] sm:$0xf]
      %v954 = vld [vmem:[%s938 + $0x3c] sm:$0xf]
      %v956 = vunpack.c.l.b16 %v858
      %v957 = vpack.c.b16 %v956, %v956
      %v959 = vshrl.u32 %v957, 16
      %v961 = vshll.u32 %v957, 16
      %v963 = vrot.slane %v961, 1
      %v964 = vor.u32 %v959, %v963
      %v982 = vunpack.c.l.b16 %v939
      %v983 = vunpack.c.l.b16 %v940
      %v984 = vunpack.c.l.b16 %v941
      %v985 = vunpack.c.l.b16 %v942
      %v986 = vunpack.c.l.b16 %v943
      %v987 = vunpack.c.l.b16 %v944
      %v988 = vunpack.c.l.b16 %v945
      %v989 = vunpack.c.l.b16 %v946
      %v990 = vunpack.c.l.b16 %v947
      %v991 = vunpack.c.l.b16 %v948
      %v992 = vunpack.c.l.b16 %v949
      %v993 = vunpack.c.l.b16 %v950
      %v994 = vunpack.c.l.b16 %v951
      %v995 = vunpack.c.l.b16 %v952
      %v996 = vunpack.c.l.b16 %v953
      %v997 = vunpack.c.l.b16 %v954
      %v998 = vpack.c.b16 %v983, %v982
      %v999 = vpack.c.b16 %v985, %v984
      %v1000 = vpack.c.b16 %v987, %v986
      %v1001 = vpack.c.b16 %v989, %v988
      %v1002 = vpack.c.b16 %v991, %v990
      %v1003 = vpack.c.b16 %v993, %v992
      %v1004 = vpack.c.b16 %v995, %v994
      %v1005 = vpack.c.b16 %v997, %v996
      %1014 = vmatpush.bf16.msra.mxu0 %v1005
      %1015 = vmatpush.bf16.msra.mxu0 %v1004
      %1016 = vmatpush.bf16.msra.mxu0 %v1003
      %1017 = vmatpush.bf16.msra.mxu0 %v1002
      %1018 = vmatpush.bf16.msra.mxu0 %v1001
      %1019 = vmatpush.bf16.msra.mxu0 %v1000
      %1020 = vmatpush.bf16.msra.mxu0 %v999
      %1021 = vmatpush.bf16.msra.mxu0 %v998
      %1022 = vmatmul.bf16.gmra.mxu0 %v964
      %v1023 = vpop.f32.mrf.mxu0
      %v1024 = vadd.f32 0.0, %v1023
      %v1025 = vpop.f32.mrf.mxu0
      %1026 = vdwg.mxu0
      %v1027 = vadd.f32 %v937, %v1024
      %s1028 = scalar_lea.vmem %s3, 512
      %v1029 = vld [vmem:[%s1028] sm:$0xf]
      %v1030 = vld [vmem:[%s1028 + $0x4] sm:$0xf]
      %v1031 = vld [vmem:[%s1028 + $0x8] sm:$0xf]
      %v1032 = vld [vmem:[%s1028 + $0xc] sm:$0xf]
      %v1033 = vld [vmem:[%s1028 + $0x10] sm:$0xf]
      %v1034 = vld [vmem:[%s1028 + $0x14] sm:$0xf]
      %v1035 = vld [vmem:[%s1028 + $0x18] sm:$0xf]
      %v1036 = vld [vmem:[%s1028 + $0x1c] sm:$0xf]
      %v1037 = vld [vmem:[%s1028 + $0x20] sm:$0xf]
      %v1038 = vld [vmem:[%s1028 + $0x24] sm:$0xf]
      %v1039 = vld [vmem:[%s1028 + $0x28] sm:$0xf]
      %v1040 = vld [vmem:[%s1028 + $0x2c] sm:$0xf]
      %v1041 = vld [vmem:[%s1028 + $0x30] sm:$0xf]
      %v1042 = vld [vmem:[%s1028 + $0x34] sm:$0xf]
      %v1043 = vld [vmem:[%s1028 + $0x38] sm:$0xf]
      %v1044 = vld [vmem:[%s1028 + $0x3c] sm:$0xf]
      %v1045 = vrot.slane %v957, 1
      %v1063 = vunpack.c.l.b16 %v1029
      %v1064 = vunpack.c.l.b16 %v1030
      %v1065 = vunpack.c.l.b16 %v1031
      %v1066 = vunpack.c.l.b16 %v1032
      %v1067 = vunpack.c.l.b16 %v1033
      %v1068 = vunpack.c.l.b16 %v1034
      %v1069 = vunpack.c.l.b16 %v1035
      %v1070 = vunpack.c.l.b16 %v1036
      %v1071 = vunpack.c.l.b16 %v1037
      %v1072 = vunpack.c.l.b16 %v1038
      %v1073 = vunpack.c.l.b16 %v1039
      %v1074 = vunpack.c.l.b16 %v1040
      %v1075 = vunpack.c.l.b16 %v1041
      %v1076 = vunpack.c.l.b16 %v1042
      %v1077 = vunpack.c.l.b16 %v1043
      %v1078 = vunpack.c.l.b16 %v1044
      %v1079 = vpack.c.b16 %v1064, %v1063
      %v1080 = vpack.c.b16 %v1066, %v1065
      %v1081 = vpack.c.b16 %v1068, %v1067
      %v1082 = vpack.c.b16 %v1070, %v1069
      %v1083 = vpack.c.b16 %v1072, %v1071
      %v1084 = vpack.c.b16 %v1074, %v1073
      %v1085 = vpack.c.b16 %v1076, %v1075
      %v1086 = vpack.c.b16 %v1078, %v1077
      %1095 = vmatpush.bf16.msra.mxu0 %v1086
      %1096 = vmatpush.bf16.msra.mxu0 %v1085
      %1097 = vmatpush.bf16.msra.mxu0 %v1084
      %1098 = vmatpush.bf16.msra.mxu0 %v1083
      %1099 = vmatpush.bf16.msra.mxu0 %v1082
      %1100 = vmatpush.bf16.msra.mxu0 %v1081
      %1101 = vmatpush.bf16.msra.mxu0 %v1080
      %1102 = vmatpush.bf16.msra.mxu0 %v1079
      %1103 = vmatmul.bf16.gmra.mxu0 %v1045
      %v1104 = vpop.f32.mrf.mxu0
      %v1105 = vadd.f32 0.0, %v1104
      %v1106 = vpop.f32.mrf.mxu0
      %1107 = vdwg.mxu0
      %v1108 = vadd.f32 %v1027, %v1105
      %v1109 = vld [vmem:[%s4] sm:$0x1]
      %v1111 = vperm.slane %v1109, 0
      %v1113 = vmul.f32 %v1108, %v1111
      %v1114 = vld [vmem:[%s5] sm:$0x1]
      %v1116 = vperm.slane %v1114, 0
      %v1118 = vadd.f32 %v1113, %v1116
      %v1119 = vpack.c.bf16 %v1118, %v1118
      %1120 = vst [vmem:[%s358] sm:$0x3] %v1119
      %p1121 = scmp.lt.s32.totalorder %s21, 1
      %s1122 = scalar_select %p1121, %s21, 1
      %p1123 = scmp.lt.s32.totalorder %s22, 3
      %s1124 = scalar_select %p1123, %s22, 3
      %s1125 = smul.addr %s1122, 4
      %s1126 = sadd.s32 %s1124, %s1125
      %s1127 = smul.addr %s1126, 2
      %s1128 = scalar_lea.vmem %s6, %s1127
      // Predicated region
      $region45: #{binary_resnet_bisrnet_down.20} parent=43 // pred_check
        %p1129 = pneg %p200
      $region46: #{binary_resnet_bisrnet_down.20} parent=43 // pred_check_branch
        %1131 = sbr.rel (%p1129) target = $region48
      $region47: #{binary_resnet_bisrnet_down.20} parent=43 // pred_region
        _
      $region48: #{binary_resnet_bisrnet_down.20} parent=43 // pred_fallthru
        _
    $region44: #{binary_resnet_bisrnet_down.20} parent=5 // pred_fallthru
      _
    %p1132 = scmp.le.s32.totalorder 2, %s12
    // Predicated region
    $region49: #{binary_resnet_bisrnet_down.20} parent=5 // pred_check
      %p1133 = pneg %p1132
    $region50: #{binary_resnet_bisrnet_down.20} parent=5 // pred_check_branch
      %1135 = sbr.rel (%p1133) target = $region52
    $region51: #{binary_resnet_bisrnet_down.20} parent=5 // pred_region
      %s1136 = ssub.s32 %s12, 2
      // Predicated region
      $region53: #{binary_resnet_bisrnet_down.20} parent=51 // pred_check
        %p1137 = pneg %p206
      $region54: #{binary_resnet_bisrnet_down.20} parent=51 // pred_check_branch
        %1139 = sbr.rel (%p1137) target = $region56
      $region55: #{binary_resnet_bisrnet_down.20} parent=51 // pred_region
        %p1140 = scmp.lt.s32.totalorder %s23, 1
        %s1141 = scalar_select %p1140, %s23, 1
        %p1142 = scmp.lt.s32.totalorder %s24, 3
        %s1143 = scalar_select %p1142, %s24, 3
        %s1144 = smul.addr %s1141, 4
        %s1145 = sadd.s32 %s1143, %s1144
        %s1146 = smul.addr %s1145, 2
        %s1147 = scalar_lea.vmem %s6, %s1146
      $region56: #{binary_resnet_bisrnet_down.20} parent=51 // pred_fallthru
        _
    $region52: #{binary_resnet_bisrnet_down.20} parent=5 // pred_fallthru
      _
  $region6: #{binary_resnet_bisrnet_down.20} parent=0 // loop_footer
    %s16 = sadd.s32 1, %s12
  $region7: #{binary_resnet_bisrnet_down.20} parent=0 // loop_footer_branch
    %11 = sbr.rel target = $region3
  $region8: #{binary_resnet_bisrnet_down.20} parent=0 // loop_exit
    _

// kernel: binary_resnet_bisrnet_down.21
$region0: #{binary_resnet_bisrnet_down.21}
  #allocation0 [shape = 'u32[]', space=smem, size = 0x4, offset = 0x4, fixed_abs, tag = 'smem constant byte address 0x4 - core index']
  #allocation1 [shape = 'u32[72,128]{1,0:T(1,128)}', space=vmem, size = 0x9000, scoped, tag = 'internal scratch']
  %s0 = inlined_call_operand.vmem [shape: bf16[2,6,6,128], index: 0, kind: input, shape index: {}, may-alias: {0,1,2}]
  %s1 = inlined_call_operand.vmem [shape: bf16[2,6,6,128], index: 1, kind: input, shape index: {}, may-alias: {0,1,2}]
  %s2 = inlined_call_operand.vmem [shape: bf16[2,6,6,128], index: 2, kind: input, shape index: {}, may-alias: {0,1,2}]
  %s3 = inlined_call_operand.vmem [shape: bf16[9,128,128], index: 3, kind: input, shape index: {}]
  %s4 = inlined_call_operand.vmem [shape: f32[1,128], index: 4, kind: input, shape index: {}]
  %s5 = inlined_call_operand.vmem [shape: f32[1,128], index: 5, kind: input, shape index: {}]
  %s6 = inlined_call_operand.vmem [shape: bf16[2,4,4,128], index: 6, kind: input, shape index: {}]
  %s7 = inlined_call_operand.vmem [shape: f32[1,128], index: 7, kind: input, shape index: {}]
  %s8 = inlined_call_operand.vmem [shape: f32[1,128], index: 8, kind: input, shape index: {}]
  %s9 = inlined_call_operand.vmem [shape: bf16[2,4,4,128], index: 9, kind: output, shape index: {}]
  %s10 = sld [smem:[#allocation0]]
  $region69: #{binary_resnet_bisrnet_down.21} parent=0
    _
  %s12 = ssub.s32 1, %s10
  %s13 = scalar_select 0, %s12, %s10
  loop: start=0, step=1, limit=10
  $region2: #{binary_resnet_bisrnet_down.21} parent=0 // loop_pre_header
    _
  $region3: #{binary_resnet_bisrnet_down.21} parent=0 // loop_header
    %s15 = sphi 0, %s19
    %p16 = scmp.ge.s32.totalorder %s15, 10
    %s22 = sphi 0, %s34
    %s23 = sphi 0, %s30
    %s24 = sphi 0, %s22
    %s25 = sphi 0, %s23
    %s26 = sphi 0, %s24
    %s27 = sphi 0, %s25
    %s39 = sphi 0, %s41
    %s42 = sphi 0, %s39
    %s43 = sphi 0, %s42
    %s59 = sphi 0, %s43
    %s69 = sphi 0, %s71
    %s72 = sphi 0, %s69
    %s73 = sphi 0, %s72
    %s89 = sphi 0, %s73
    %s99 = sphi 0, %s101
    %s102 = sphi 0, %s99
    %s103 = sphi 0, %s102
    %s119 = sphi 0, %s103
    %s123 = sphi 0, %s123
    %s125 = sphi 0, %s123
    %s126 = sphi 0, %s125
    %s140 = sphi 0, %s126
    %s144 = sphi 0, %s144
    %s146 = sphi 0, %s144
    %s147 = sphi 0, %s146
    %s161 = sphi 0, %s147
    %s165 = sphi 0, %s165
    %s167 = sphi 0, %s165
    %s168 = sphi 0, %s167
    %s182 = sphi 0, %s168
    %s190 = sphi 0, %s192
    %s193 = sphi 0, %s190
    %s194 = sphi 0, %s193
    %s210 = sphi 0, %s194
    %s214 = sphi 0, %s214
    %s216 = sphi 0, %s214
    %s217 = sphi 0, %s216
    %s231 = sphi 0, %s217
    %s235 = sphi 0, %s235
    %s237 = sphi 0, %s235
    %s238 = sphi 0, %s237
    %s252 = sphi 0, %s238
    %s260 = sphi 0, %s262
    %s263 = sphi 0, %s260
    %s264 = sphi 0, %s263
    %s280 = sphi 0, %s264
  $region4: #{binary_resnet_bisrnet_down.21} parent=0 // loop_header_branch
    %18 = sbr.rel (%p16) target = $region8
  $region5: #{binary_resnet_bisrnet_down.21} parent=0 // loop_body
    %s20 = ssub.s32 %s15, 1
    %s21 = ssub.s32 %s15, 2
    %s28 = sadd.s32 1, %s23
    %p29 = scmp.ge.s32.totalorder %s28, 4
    %s30 = scalar_select %p29, 0, %s28
    %s31 = sadd.s32 1, %s22
    %s32 = scalar_select %p29, %s31, %s22
    %p33 = scmp.ge.s32.totalorder %s32, 2
    %s34 = scalar_select %p33, 0, %s32
    %s35 = ssub.s32 %s22, %s34
    %s36 = ssub.s32 %s23, %s30
    %s37 = sor.u32 %s35, %s36
    %p38 = scmp.eq.s32.totalorder %s37, 0
    %s40 = sadd.s32 %s39, 1
    %s41 = scalar_select %p38, %s39, %s40
    %p44 = pneg %p38
    %p45 = scmp.eq.s32.totalorder %s15, 7
    %p46 = por %p44, %p45
    %p47 = scmp.ne.s32.totalorder %s39, %s42
    %p48 = scmp.eq.s32.totalorder %s15, 0
    %p49 = por %p47, %p48
    %p50 = scmp.ne.s32.totalorder %s39, %s42
    %p51 = scmp.eq.s32.totalorder %s20, 7
    %p52 = por %p50, %p51
    %p53 = scmp.ne.s32.totalorder %s42, %s43
    %p54 = scmp.eq.s32.totalorder %s20, 0
    %p55 = por %p53, %p54
    %p56 = scmp.ne.s32.totalorder %s42, %s43
    %p57 = scmp.eq.s32.totalorder %s21, 7
    %p58 = por %p56, %p57
    %p60 = scmp.ne.s32.totalorder %s43, %s59
    %p61 = scmp.eq.s32.totalorder %s21, 0
    %p62 = por %p60, %p61
    %s63 = sadd.s32 %s23, 1
    %s64 = sadd.s32 %s30, 1
    %s65 = ssub.s32 %s22, %s34
    %s66 = ssub.s32 %s63, %s64
    %s67 = sor.u32 %s65, %s66
    %p68 = scmp.eq.s32.totalorder %s67, 0
    %s70 = sadd.s32 %s69, 1
    %s71 = scalar_select %p68, %s69, %s70
    %p74 = pneg %p68
    %p75 = scmp.eq.s32.totalorder %s15, 7
    %p76 = por %p74, %p75
    %p77 = scmp.ne.s32.totalorder %s69, %s72
    %p78 = scmp.eq.s32.totalorder %s15, 0
    %p79 = por %p77, %p78
    %p80 = scmp.ne.s32.totalorder %s69, %s72
    %p81 = scmp.eq.s32.totalorder %s20, 7
    %p82 = por %p80, %p81
    %p83 = scmp.ne.s32.totalorder %s72, %s73
    %p84 = scmp.eq.s32.totalorder %s20, 0
    %p85 = por %p83, %p84
    %p86 = scmp.ne.s32.totalorder %s72, %s73
    %p87 = scmp.eq.s32.totalorder %s21, 7
    %p88 = por %p86, %p87
    %p90 = scmp.ne.s32.totalorder %s73, %s89
    %p91 = scmp.eq.s32.totalorder %s21, 0
    %p92 = por %p90, %p91
    %s93 = sadd.s32 %s23, 2
    %s94 = sadd.s32 %s30, 2
    %s95 = ssub.s32 %s22, %s34
    %s96 = ssub.s32 %s93, %s94
    %s97 = sor.u32 %s95, %s96
    %p98 = scmp.eq.s32.totalorder %s97, 0
    %s100 = sadd.s32 %s99, 1
    %s101 = scalar_select %p98, %s99, %s100
    %p104 = pneg %p98
    %p105 = scmp.eq.s32.totalorder %s15, 7
    %p106 = por %p104, %p105
    %p107 = scmp.ne.s32.totalorder %s99, %s102
    %p108 = scmp.eq.s32.totalorder %s15, 0
    %p109 = por %p107, %p108
    %p110 = scmp.ne.s32.totalorder %s99, %s102
    %p111 = scmp.eq.s32.totalorder %s20, 7
    %p112 = por %p110, %p111
    %p113 = scmp.ne.s32.totalorder %s102, %s103
    %p114 = scmp.eq.s32.totalorder %s20, 0
    %p115 = por %p113, %p114
    %p116 = scmp.ne.s32.totalorder %s102, %s103
    %p117 = scmp.eq.s32.totalorder %s21, 7
    %p118 = por %p116, %p117
    %p120 = scmp.ne.s32.totalorder %s103, %s119
    %p121 = scmp.eq.s32.totalorder %s21, 0
    %p122 = por %p120, %p121
    %s124 = sadd.s32 %s123, 1
    %p127 = scmp.eq.s32.totalorder %s15, 7
    %p128 = scmp.ne.s32.totalorder %s123, %s125
    %p129 = scmp.eq.s32.totalorder %s15, 0
    %p130 = por %p128, %p129
    %p131 = scmp.ne.s32.totalorder %s123, %s125
    %p132 = scmp.eq.s32.totalorder %s20, 7
    %p133 = por %p131, %p132
    %p134 = scmp.ne.s32.totalorder %s125, %s126
    %p135 = scmp.eq.s32.totalorder %s20, 0
    %p136 = por %p134, %p135
    %p137 = scmp.ne.s32.totalorder %s125, %s126
    %p138 = scmp.eq.s32.totalorder %s21, 7
    %p139 = por %p137, %p138
    %p141 = scmp.ne.s32.totalorder %s126, %s140
    %p142 = scmp.eq.s32.totalorder %s21, 0
    %p143 = por %p141, %p142
    %s145 = sadd.s32 %s144, 1
    %p148 = scmp.eq.s32.totalorder %s15, 7
    %p149 = scmp.ne.s32.totalorder %s144, %s146
    %p150 = scmp.eq.s32.totalorder %s15, 0
    %p151 = por %p149, %p150
    %p152 = scmp.ne.s32.totalorder %s144, %s146
    %p153 = scmp.eq.s32.totalorder %s20, 7
    %p154 = por %p152, %p153
    %p155 = scmp.ne.s32.totalorder %s146, %s147
    %p156 = scmp.eq.s32.totalorder %s20, 0
    %p157 = por %p155, %p156
    %p158 = scmp.ne.s32.totalorder %s146, %s147
    %p159 = scmp.eq.s32.totalorder %s21, 7
    %p160 = por %p158, %p159
    %p162 = scmp.ne.s32.totalorder %s147, %s161
    %p163 = scmp.eq.s32.totalorder %s21, 0
    %p164 = por %p162, %p163
    %s166 = sadd.s32 %s165, 1
    %p169 = scmp.eq.s32.totalorder %s15, 7
    %p170 = scmp.ne.s32.totalorder %s165, %s167
    %p171 = scmp.eq.s32.totalorder %s15, 0
    %p172 = por %p170, %p171
    %p173 = scmp.ne.s32.totalorder %s165, %s167
    %p174 = scmp.eq.s32.totalorder %s20, 7
    %p175 = por %p173, %p174
    %p176 = scmp.ne.s32.totalorder %s167, %s168
    %p177 = scmp.eq.s32.totalorder %s20, 0
    %p178 = por %p176, %p177
    %p179 = scmp.ne.s32.totalorder %s167, %s168
    %p180 = scmp.eq.s32.totalorder %s21, 7
    %p181 = por %p179, %p180
    %p183 = scmp.ne.s32.totalorder %s168, %s182
    %p184 = scmp.eq.s32.totalorder %s21, 0
    %p185 = por %p183, %p184
    %s186 = ssub.s32 %s22, %s34
    %s187 = ssub.s32 %s23, %s30
    %s188 = sor.u32 %s186, %s187
    %p189 = scmp.eq.s32.totalorder %s188, 0
    %s191 = sadd.s32 %s190, 1
    %s192 = scalar_select %p189, %s190, %s191
    %p195 = pneg %p189
    %p196 = scmp.eq.s32.totalorder %s15, 7
    %p197 = por %p195, %p196
    %p198 = scmp.ne.s32.totalorder %s190, %s193
    %p199 = scmp.eq.s32.totalorder %s15, 0
    %p200 = por %p198, %p199
    %p201 = scmp.ne.s32.totalorder %s190, %s193
    %p202 = scmp.eq.s32.totalorder %s20, 7
    %p203 = por %p201, %p202
    %p204 = scmp.ne.s32.totalorder %s193, %s194
    %p205 = scmp.eq.s32.totalorder %s20, 0
    %p206 = por %p204, %p205
    %p207 = scmp.ne.s32.totalorder %s193, %s194
    %p208 = scmp.eq.s32.totalorder %s21, 7
    %p209 = por %p207, %p208
    %p211 = scmp.ne.s32.totalorder %s194, %s210
    %p212 = scmp.eq.s32.totalorder %s21, 0
    %p213 = por %p211, %p212
    %s215 = sadd.s32 %s214, 1
    %p218 = scmp.eq.s32.totalorder %s15, 7
    %p219 = scmp.ne.s32.totalorder %s214, %s216
    %p220 = scmp.eq.s32.totalorder %s15, 0
    %p221 = por %p219, %p220
    %p222 = scmp.ne.s32.totalorder %s214, %s216
    %p223 = scmp.eq.s32.totalorder %s20, 7
    %p224 = por %p222, %p223
    %p225 = scmp.ne.s32.totalorder %s216, %s217
    %p226 = scmp.eq.s32.totalorder %s20, 0
    %p227 = por %p225, %p226
    %p228 = scmp.ne.s32.totalorder %s216, %s217
    %p229 = scmp.eq.s32.totalorder %s21, 7
    %p230 = por %p228, %p229
    %p232 = scmp.ne.s32.totalorder %s217, %s231
    %p233 = scmp.eq.s32.totalorder %s21, 0
    %p234 = por %p232, %p233
    %s236 = sadd.s32 %s235, 1
    %p239 = scmp.eq.s32.totalorder %s15, 7
    %p240 = scmp.ne.s32.totalorder %s235, %s237
    %p241 = scmp.eq.s32.totalorder %s15, 0
    %p242 = por %p240, %p241
    %p243 = scmp.ne.s32.totalorder %s235, %s237
    %p244 = scmp.eq.s32.totalorder %s20, 7
    %p245 = por %p243, %p244
    %p246 = scmp.ne.s32.totalorder %s237, %s238
    %p247 = scmp.eq.s32.totalorder %s20, 0
    %p248 = por %p246, %p247
    %p249 = scmp.ne.s32.totalorder %s237, %s238
    %p250 = scmp.eq.s32.totalorder %s21, 7
    %p251 = por %p249, %p250
    %p253 = scmp.ne.s32.totalorder %s238, %s252
    %p254 = scmp.eq.s32.totalorder %s21, 0
    %p255 = por %p253, %p254
    %s256 = ssub.s32 %s22, %s34
    %s257 = ssub.s32 %s23, %s30
    %s258 = sor.u32 %s256, %s257
    %p259 = scmp.eq.s32.totalorder %s258, 0
    %s261 = sadd.s32 %s260, 1
    %s262 = scalar_select %p259, %s260, %s261
    %p265 = pneg %p259
    %p266 = scmp.eq.s32.totalorder %s15, 7
    %p267 = por %p265, %p266
    %p268 = scmp.ne.s32.totalorder %s260, %s263
    %p269 = scmp.eq.s32.totalorder %s15, 0
    %p270 = por %p268, %p269
    %p271 = scmp.ne.s32.totalorder %s260, %s263
    %p272 = scmp.eq.s32.totalorder %s20, 7
    %p273 = por %p271, %p272
    %p274 = scmp.ne.s32.totalorder %s263, %s264
    %p275 = scmp.eq.s32.totalorder %s20, 0
    %p276 = por %p274, %p275
    %p277 = scmp.ne.s32.totalorder %s263, %s264
    %p278 = scmp.eq.s32.totalorder %s21, 7
    %p279 = por %p277, %p278
    %p281 = scmp.ne.s32.totalorder %s264, %s280
    %p282 = scmp.eq.s32.totalorder %s21, 0
    %p283 = por %p281, %p282
    %p284 = scmp.le.s32.totalorder 1, %s15
    %p285 = scmp.lt.s32.totalorder %s15, 9
    %p286 = pnand %p284, %p285
    %p287 = pneg %p286
    // Predicated region
    $region9: #{binary_resnet_bisrnet_down.21} parent=5 // pred_check
      _
    $region10: #{binary_resnet_bisrnet_down.21} parent=5 // pred_check_branch
      %289 = sbr.rel (%p286) target = $region12
    $region11: #{binary_resnet_bisrnet_down.21} parent=5 // pred_region
      %s290 = ssub.s32 %s15, 1
      // Predicated region
      $region13: #{binary_resnet_bisrnet_down.21} parent=11 // pred_check
        %p291 = pneg %p136
      $region14: #{binary_resnet_bisrnet_down.21} parent=11 // pred_check_branch
        %293 = sbr.rel (%p291) target = $region16
      $region15: #{binary_resnet_bisrnet_down.21} parent=11 // pred_region
        _
      $region16: #{binary_resnet_bisrnet_down.21} parent=11 // pred_fallthru
        _
      // Predicated region
      $region17: #{binary_resnet_bisrnet_down.21} parent=11 // pred_check
        %p294 = pneg %p157
      $region18: #{binary_resnet_bisrnet_down.21} parent=11 // pred_check_branch
        %296 = sbr.rel (%p294) target = $region20
      $region19: #{binary_resnet_bisrnet_down.21} parent=11 // pred_region
        _
      $region20: #{binary_resnet_bisrnet_down.21} parent=11 // pred_fallthru
        _
      // Predicated region
      $region21: #{binary_resnet_bisrnet_down.21} parent=11 // pred_check
        %p297 = pneg %p178
      $region22: #{binary_resnet_bisrnet_down.21} parent=11 // pred_check_branch
        %299 = sbr.rel (%p297) target = $region24
      $region23: #{binary_resnet_bisrnet_down.21} parent=11 // pred_region
        _
      $region24: #{binary_resnet_bisrnet_down.21} parent=11 // pred_fallthru
        _
      // Predicated region
      $region25: #{binary_resnet_bisrnet_down.21} parent=11 // pred_check
        %p300 = pneg %p227
      $region26: #{binary_resnet_bisrnet_down.21} parent=11 // pred_check_branch
        %302 = sbr.rel (%p300) target = $region28
      $region27: #{binary_resnet_bisrnet_down.21} parent=11 // pred_region
        _
      $region28: #{binary_resnet_bisrnet_down.21} parent=11 // pred_fallthru
        _
      // Predicated region
      $region29: #{binary_resnet_bisrnet_down.21} parent=11 // pred_check
        %p303 = pneg %p248
      $region30: #{binary_resnet_bisrnet_down.21} parent=11 // pred_check_branch
        %305 = sbr.rel (%p303) target = $region32
      $region31: #{binary_resnet_bisrnet_down.21} parent=11 // pred_region
        _
      $region32: #{binary_resnet_bisrnet_down.21} parent=11 // pred_fallthru
        _
    $region12: #{binary_resnet_bisrnet_down.21} parent=5 // pred_fallthru
      _
    %p306 = scmp.lt.s32.totalorder %s15, 8
    // Predicated region
    $region33: #{binary_resnet_bisrnet_down.21} parent=5 // pred_check
      %p307 = pneg %p306
    $region34: #{binary_resnet_bisrnet_down.21} parent=5 // pred_check_branch
      %309 = sbr.rel (%p307) target = $region36
    $region35: #{binary_resnet_bisrnet_down.21} parent=5 // pred_region
      // Predicated region
      $region37: #{binary_resnet_bisrnet_down.21} parent=35 // pred_check
        %p310 = pneg %p49
      $region38: #{binary_resnet_bisrnet_down.21} parent=35 // pred_check_branch
        %312 = sbr.rel (%p310) target = $region40
      $region39: #{binary_resnet_bisrnet_down.21} parent=35 // pred_region
        %p313 = scmp.lt.s32.totalorder %s22, 1
        %s314 = scalar_select %p313, %s22, 1
        %p315 = scmp.lt.s32.totalorder %s23, 5
        %s316 = scalar_select %p315, %s23, 5
        %s317 = smul.addr %s314, 6
        %s318 = sadd.s32 %s316, %s317
        %s319 = smul.addr %s318, 4
        %s320 = scalar_lea.vmem %s0, %s319
      $region40: #{binary_resnet_bisrnet_down.21} parent=35 // pred_fallthru
        _
      // Predicated region
      $region41: #{binary_resnet_bisrnet_down.21} parent=35 // pred_check
        %p321 = pneg %p79
      $region42: #{binary_resnet_bisrnet_down.21} parent=35 // pred_check_branch
        %323 = sbr.rel (%p321) target = $region44
      $region43: #{binary_resnet_bisrnet_down.21} parent=35 // pred_region
        %s324 = sadd.s32 %s23, 1
        %p325 = scmp.lt.s32.totalorder %s22, 1
        %s326 = scalar_select %p325, %s22, 1
        %p327 = scmp.lt.s32.totalorder %s324, 5
        %s328 = scalar_select %p327, %s324, 5
        %s329 = smul.addr %s326, 6
        %s330 = sadd.s32 %s328, %s329
        %s331 = smul.addr %s330, 4
        %s332 = scalar_lea.vmem %s1, %s331
        %s333 = sadd.s32 %s23, 1
      $region44: #{binary_resnet_bisrnet_down.21} parent=35 // pred_fallthru
        _
      // Predicated region
      $region45: #{binary_resnet_bisrnet_down.21} parent=35 // pred_check
        %p334 = pneg %p109
      $region46: #{binary_resnet_bisrnet_down.21} parent=35 // pred_check_branch
        %336 = sbr.rel (%p334) target = $region48
      $region47: #{binary_resnet_bisrnet_down.21} parent=35 // pred_region
        %s337 = sadd.s32 %s23, 2
        %p338 = scmp.lt.s32.totalorder %s22, 1
        %s339 = scalar_select %p338, %s22, 1
        %p340 = scmp.lt.s32.totalorder %s337, 5
        %s341 = scalar_select %p340, %s337, 5
        %s342 = smul.addr %s339, 6
        %s343 = sadd.s32 %s341, %s342
        %s344 = smul.addr %s343, 4
        %s345 = scalar_lea.vmem %s2, %s344
        %s346 = sadd.s32 %s23, 2
      $region48: #{binary_resnet_bisrnet_down.21} parent=35 // pred_fallthru
        _
      // Predicated region
      $region49: #{binary_resnet_bisrnet_down.21} parent=35 // pred_check
        %p347 = pneg %p200
      $region50: #{binary_resnet_bisrnet_down.21} parent=35 // pred_check_branch
        %349 = sbr.rel (%p347) target = $region52
      $region51: #{binary_resnet_bisrnet_down.21} parent=35 // pred_region
        %p350 = scmp.lt.s32.totalorder %s22, 1
        %s351 = scalar_select %p350, %s22, 1
        %p352 = scmp.lt.s32.totalorder %s23, 3
        %s353 = scalar_select %p352, %s23, 3
        %s354 = smul.addr %s351, 4
        %s355 = sadd.s32 %s353, %s354
        %s356 = smul.addr %s355, 2
        %s357 = scalar_lea.vmem %s6, %s356
      $region52: #{binary_resnet_bisrnet_down.21} parent=35 // pred_fallthru
        _
    $region36: #{binary_resnet_bisrnet_down.21} parent=5 // pred_fallthru
      _
    %p358 = scmp.le.s32.totalorder 1, %s15
    %p359 = scmp.lt.s32.totalorder %s15, 9
    %p360 = pnand %p358, %p359
    %p361 = pneg %p360
    // Predicated region
    $region53: #{binary_resnet_bisrnet_down.21} parent=5 // pred_check
      _
    $region54: #{binary_resnet_bisrnet_down.21} parent=5 // pred_check_branch
      %363 = sbr.rel (%p360) target = $region56
    $region55: #{binary_resnet_bisrnet_down.21} parent=5 // pred_region
      %s364 = ssub.s32 %s15, 1
      %p365 = scmp.lt.s32.totalorder %s24, 1
      %s366 = scalar_select %p365, %s24, 1
      %p367 = scmp.lt.s32.totalorder %s25, 5
      %s368 = scalar_select %p367, %s25, 5
      %s369 = smul.addr %s366, 6
      %s370 = sadd.s32 %s368, %s369
      %s371 = smul.addr %s370, 4
      %s372 = scalar_lea.vmem %s0, %s371
      %p373 = pneg %p55
      %p374 = pneg %p52
      %s375 = sadd.s32 %s25, 1
      %p376 = scmp.lt.s32.totalorder %s24, 1
      %s377 = scalar_select %p376, %s24, 1
      %p378 = scmp.lt.s32.totalorder %s375, 5
      %s379 = scalar_select %p378, %s375, 5
      %s380 = smul.addr %s377, 6
      %s381 = sadd.s32 %s379, %s380
      %s382 = smul.addr %s381, 4
      %s383 = scalar_lea.vmem %s1, %s382
      %p384 = pneg %p85
      %p385 = pneg %p82
      %s386 = sadd.s32 %s25, 2
      %p387 = scmp.lt.s32.totalorder %s24, 1
      %s388 = scalar_select %p387, %s24, 1
      %p389 = scmp.lt.s32.totalorder %s386, 5
      %s390 = scalar_select %p389, %s386, 5
      %s391 = smul.addr %s388, 6
      %s392 = sadd.s32 %s390, %s391
      %s393 = smul.addr %s392, 4
      %s394 = scalar_lea.vmem %s2, %s393
      %p395 = pneg %p115
      %p396 = pneg %p112
      %p397 = pneg %p136
      %p398 = pneg %p133
      %p399 = pneg %p157
      %p400 = pneg %p154
      %p401 = pneg %p178
      %p402 = pneg %p175
      %p403 = scmp.lt.s32.totalorder %s24, 1
      %s404 = scalar_select %p403, %s24, 1
      %p405 = scmp.lt.s32.totalorder %s25, 3
      %s406 = scalar_select %p405, %s25, 3
      %s407 = smul.addr %s404, 4
      %s408 = sadd.s32 %s406, %s407
      %s409 = smul.addr %s408, 2
      %s410 = scalar_lea.vmem %s6, %s409
      %p411 = pneg %p206
      %p412 = pneg %p203
      %p413 = pneg %p227
      %p414 = pneg %p224
      %p415 = pneg %p248
      %p416 = pneg %p245
      %p417 = pneg %p276
      %p418 = pneg %p273
      %p419 = scmp.lt.s32.totalorder %s24, 1
      %s420 = scalar_select %p419, %s24, 1
      %p421 = scmp.lt.s32.totalorder %s25, 3
      %s422 = scalar_select %p421, %s25, 3
      %s423 = smul.addr %s420, 4
      %s424 = sadd.s32 %s422, %s423
      %s425 = smul.addr %s424, 2
      %s426 = scalar_lea.vmem %s9, %s425
      %p427 = scmp.lt.s32.totalorder %s24, 1
      %s428 = scalar_select %p427, %s24, 1
      %p429 = scmp.lt.s32.totalorder %s25, 5
      %s430 = scalar_select %p429, %s25, 5
      %s431 = smul.addr %s428, 6
      %s432 = sadd.s32 %s430, %s431
      %s433 = smul.addr %s432, 4
      %s434 = scalar_lea.vmem %s0, %s433
      %s435 = sadd.s32 %s25, 1
      %p436 = scmp.lt.s32.totalorder %s24, 1
      %s437 = scalar_select %p436, %s24, 1
      %p438 = scmp.lt.s32.totalorder %s435, 5
      %s439 = scalar_select %p438, %s435, 5
      %s440 = smul.addr %s437, 6
      %s441 = sadd.s32 %s439, %s440
      %s442 = smul.addr %s441, 4
      %s443 = scalar_lea.vmem %s1, %s442
      %s444 = sadd.s32 %s25, 1
      %s445 = sadd.s32 %s25, 2
      %p446 = scmp.lt.s32.totalorder %s24, 1
      %s447 = scalar_select %p446, %s24, 1
      %p448 = scmp.lt.s32.totalorder %s445, 5
      %s449 = scalar_select %p448, %s445, 5
      %s450 = smul.addr %s447, 6
      %s451 = sadd.s32 %s449, %s450
      %s452 = smul.addr %s451, 4
      %s453 = scalar_lea.vmem %s2, %s452
      %s454 = sadd.s32 %s25, 2
      %p455 = scmp.lt.s32.totalorder %s24, 1
      %s456 = scalar_select %p455, %s24, 1
      %p457 = scmp.lt.s32.totalorder %s25, 3
      %s458 = scalar_select %p457, %s25, 3
      %s459 = smul.addr %s456, 4
      %s460 = sadd.s32 %s458, %s459
      %s461 = smul.addr %s460, 2
      %s462 = scalar_lea.vmem %s6, %s461
      %p463 = scmp.lt.s32.totalorder %s24, 1
      %s464 = scalar_select %p463, %s24, 1
      %p465 = scmp.lt.s32.totalorder %s25, 3
      %s466 = scalar_select %p465, %s25, 3
      %s467 = smul.addr %s464, 4
      %s468 = sadd.s32 %s466, %s467
      %s469 = smul.addr %s468, 2
      %s470 = scalar_lea.vmem %s9, %s469
      %v471 = vld [vmem:[%s434] sm:$0x7]
      %v472 = vld [vmem:[%s3] sm:$0xf]
      %v473 = vld [vmem:[%s3 + $0x4] sm:$0xf]
      %v474 = vld [vmem:[%s3 + $0x8] sm:$0xf]
      %v475 = vld [vmem:[%s3 + $0xc] sm:$0xf]
      %v476 = vld [vmem:[%s3 + $0x10] sm:$0xf]
      %v477 = vld [vmem:[%s3 + $0x14] sm:$0xf]
      %v478 = vld [vmem:[%s3 + $0x18] sm:$0xf]
      %v479 = vld [vmem:[%s3 + $0x1c] sm:$0xf]
      %v480 = vld [vmem:[%s3 + $0x20] sm:$0xf]
      %v481 = vld [vmem:[%s3 + $0x24] sm:$0xf]
      %v482 = vld [vmem:[%s3 + $0x28] sm:$0xf]
      %v483 = vld [vmem:[%s3 + $0x2c] sm:$0xf]
      %v484 = vld [vmem:[%s3 + $0x30] sm:$0xf]
      %v485 = vld [vmem:[%s3 + $0x34] sm:$0xf]
      %v486 = vld [vmem:[%s3 + $0x38] sm:$0xf]
      %v487 = vld [vmem:[%s3 + $0x3c] sm:$0xf]
      %s488 = scalar_lea.vmem %s3, 64
      %v489 = vld [vmem:[%s488] sm:$0xf]
      %v490 = vld [vmem:[%s488 + $0x4] sm:$0xf]
      %v491 = vld [vmem:[%s488 + $0x8] sm:$0xf]
      %v492 = vld [vmem:[%s488 + $0xc] sm:$0xf]
      %v493 = vld [vmem:[%s488 + $0x10] sm:$0xf]
      %v494 = vld [vmem:[%s488 + $0x14] sm:$0xf]
      %v495 = vld [vmem:[%s488 + $0x18] sm:$0xf]
      %v496 = vld [vmem:[%s488 + $0x1c] sm:$0xf]
      %v497 = vld [vmem:[%s488 + $0x20] sm:$0xf]
      %v498 = vld [vmem:[%s488 + $0x24] sm:$0xf]
      %v499 = vld [vmem:[%s488 + $0x28] sm:$0xf]
      %v500 = vld [vmem:[%s488 + $0x2c] sm:$0xf]
      %v501 = vld [vmem:[%s488 + $0x30] sm:$0xf]
      %v502 = vld [vmem:[%s488 + $0x34] sm:$0xf]
      %v503 = vld [vmem:[%s488 + $0x38] sm:$0xf]
      %v504 = vld [vmem:[%s488 + $0x3c] sm:$0xf]
      %v506 = vunpack.c.l.b16 %v471
      %v507 = vpack.c.b16 %v506, %v506
      %v509 = vshrl.u32 %v507, 16
      %v511 = vshll.u32 %v507, 16
      %v513 = vrot.slane %v511, 1
      %v514 = vor.u32 %v509, %v513
      %v532 = vunpack.c.l.b16 %v489
      %v533 = vunpack.c.l.b16 %v490
      %v534 = vunpack.c.l.b16 %v491
      %v535 = vunpack.c.l.b16 %v492
      %v536 = vunpack.c.l.b16 %v493
      %v537 = vunpack.c.l.b16 %v494
      %v538 = vunpack.c.l.b16 %v495
      %v539 = vunpack.c.l.b16 %v496
      %v540 = vunpack.c.l.b16 %v497
      %v541 = vunpack.c.l.b16 %v498
      %v542 = vunpack.c.l.b16 %v499
      %v543 = vunpack.c.l.b16 %v500
      %v544 = vunpack.c.l.b16 %v501
      %v545 = vunpack.c.l.b16 %v502
      %v546 = vunpack.c.l.b16 %v503
      %v547 = vunpack.c.l.b16 %v504
      %v548 = vpack.c.b16 %v533, %v532
      %v549 = vpack.c.b16 %v535, %v534
      %v550 = vpack.c.b16 %v537, %v536
      %v551 = vpack.c.b16 %v539, %v538
      %v552 = vpack.c.b16 %v541, %v540
      %v553 = vpack.c.b16 %v543, %v542
      %v554 = vpack.c.b16 %v545, %v544
      %v555 = vpack.c.b16 %v547, %v546
      %564 = vmatpush.bf16.msra.mxu0 %v555
      %565 = vmatpush.bf16.msra.mxu0 %v554
      %566 = vmatpush.bf16.msra.mxu0 %v553
      %567 = vmatpush.bf16.msra.mxu0 %v552
      %568 = vmatpush.bf16.msra.mxu0 %v551
      %569 = vmatpush.bf16.msra.mxu0 %v550
      %570 = vmatpush.bf16.msra.mxu0 %v549
      %571 = vmatpush.bf16.msra.mxu0 %v548
      %572 = vmatmul.bf16.gmra.mxu0 %v514
      %v573 = vpop.f32.mrf.mxu0
      %v574 = vadd.f32 0.0, %v573
      %v575 = vpop.f32.mrf.mxu0
      %576 = vdwg.mxu0
      %v593 = vunpack.c.l.b16 %v472
      %v594 = vunpack.c.l.b16 %v473
      %v595 = vunpack.c.l.b16 %v474
      %v596 = vunpack.c.l.b16 %v475
      %v597 = vunpack.c.l.b16 %v476
      %v598 = vunpack.c.l.b16 %v477
      %v599 = vunpack.c.l.b16 %v478
      %v600 = vunpack.c.l.b16 %v479
      %v601 = vunpack.c.l.b16 %v480
      %v602 = vunpack.c.l.b16 %v481
      %v603 = vunpack.c.l.b16 %v482
      %v604 = vunpack.c.l.b16 %v483
      %v605 = vunpack.c.l.b16 %v484
      %v606 = vunpack.c.l.b16 %v485
      %v607 = vunpack.c.l.b16 %v486
      %v608 = vunpack.c.l.b16 %v487
      %v609 = vpack.c.b16 %v594, %v593
      %v610 = vpack.c.b16 %v596, %v595
      %v611 = vpack.c.b16 %v598, %v597
      %v612 = vpack.c.b16 %v600, %v599
      %v613 = vpack.c.b16 %v602, %v601
      %v614 = vpack.c.b16 %v604, %v603
      %v615 = vpack.c.b16 %v606, %v605
      %v616 = vpack.c.b16 %v608, %v607
      %625 = vmatpush.bf16.msra.mxu0 %v616
      %626 = vmatpush.bf16.msra.mxu0 %v615
      %627 = vmatpush.bf16.msra.mxu0 %v614
      %628 = vmatpush.bf16.msra.mxu0 %v613
      %629 = vmatpush.bf16.msra.mxu0 %v612
      %630 = vmatpush.bf16.msra.mxu0 %v611
      %631 = vmatpush.bf16.msra.mxu0 %v610
      %632 = vmatpush.bf16.msra.mxu0 %v609
      %633 = vmatmul.bf16.gmra.mxu0 %v471
      %v634 = vpop.f32.mrf.mxu0
      %v635 = vadd.f32 %v574, %v634
      %v636 = vpop.f32.mrf.mxu0
      %637 = vdwg.mxu0
      %s638 = scalar_lea.vmem %s3, 128
      %v639 = vld [vmem:[%s638] sm:$0xf]
      %v640 = vld [vmem:[%s638 + $0x4] sm:$0xf]
      %v641 = vld [vmem:[%s638 + $0x8] sm:$0xf]
      %v642 = vld [vmem:[%s638 + $0xc] sm:$0xf]
      %v643 = vld [vmem:[%s638 + $0x10] sm:$0xf]
      %v644 = vld [vmem:[%s638 + $0x14] sm:$0xf]
      %v645 = vld [vmem:[%s638 + $0x18] sm:$0xf]
      %v646 = vld [vmem:[%s638 + $0x1c] sm:$0xf]
      %v647 = vld [vmem:[%s638 + $0x20] sm:$0xf]
      %v648 = vld [vmem:[%s638 + $0x24] sm:$0xf]
      %v649 = vld [vmem:[%s638 + $0x28] sm:$0xf]
      %v650 = vld [vmem:[%s638 + $0x2c] sm:$0xf]
      %v651 = vld [vmem:[%s638 + $0x30] sm:$0xf]
      %v652 = vld [vmem:[%s638 + $0x34] sm:$0xf]
      %v653 = vld [vmem:[%s638 + $0x38] sm:$0xf]
      %v654 = vld [vmem:[%s638 + $0x3c] sm:$0xf]
      %v655 = vrot.slane %v507, 1
      %v673 = vunpack.c.l.b16 %v639
      %v674 = vunpack.c.l.b16 %v640
      %v675 = vunpack.c.l.b16 %v641
      %v676 = vunpack.c.l.b16 %v642
      %v677 = vunpack.c.l.b16 %v643
      %v678 = vunpack.c.l.b16 %v644
      %v679 = vunpack.c.l.b16 %v645
      %v680 = vunpack.c.l.b16 %v646
      %v681 = vunpack.c.l.b16 %v647
      %v682 = vunpack.c.l.b16 %v648
      %v683 = vunpack.c.l.b16 %v649
      %v684 = vunpack.c.l.b16 %v650
      %v685 = vunpack.c.l.b16 %v651
      %v686 = vunpack.c.l.b16 %v652
      %v687 = vunpack.c.l.b16 %v653
      %v688 = vunpack.c.l.b16 %v654
      %v689 = vpack.c.b16 %v674, %v673
      %v690 = vpack.c.b16 %v676, %v675
      %v691 = vpack.c.b16 %v678, %v677
      %v692 = vpack.c.b16 %v680, %v679
      %v693 = vpack.c.b16 %v682, %v681
      %v694 = vpack.c.b16 %v684, %v683
      %v695 = vpack.c.b16 %v686, %v685
      %v696 = vpack.c.b16 %v688, %v687
      %705 = vmatpush.bf16.msra.mxu0 %v696
      %706 = vmatpush.bf16.msra.mxu0 %v695
      %707 = vmatpush.bf16.msra.mxu0 %v694
      %708 = vmatpush.bf16.msra.mxu0 %v693
      %709 = vmatpush.bf16.msra.mxu0 %v692
      %710 = vmatpush.bf16.msra.mxu0 %v691
      %711 = vmatpush.bf16.msra.mxu0 %v690
      %712 = vmatpush.bf16.msra.mxu0 %v689
      %713 = vmatmul.bf16.gmra.mxu0 %v655
      %v714 = vpop.f32.mrf.mxu0
      %v715 = vadd.f32 0.0, %v714
      %v716 = vpop.f32.mrf.mxu0
      %717 = vdwg.mxu0
      %v718 = vadd.f32 %v635, %v715
      %v719 = vld [vmem:[%s443] sm:$0x7]
      %s720 = scalar_lea.vmem %s3, 192
      %v721 = vld [vmem:[%s720] sm:$0xf]
      %v722 = vld [vmem:[%s720 + $0x4] sm:$0xf]
      %v723 = vld [vmem:[%s720 + $0x8] sm:$0xf]
      %v724 = vld [vmem:[%s720 + $0xc] sm:$0xf]
      %v725 = vld [vmem:[%s720 + $0x10] sm:$0xf]
      %v726 = vld [vmem:[%s720 + $0x14] sm:$0xf]
      %v727 = vld [vmem:[%s720 + $0x18] sm:$0xf]
      %v728 = vld [vmem:[%s720 + $0x1c] sm:$0xf]
      %v729 = vld [vmem:[%s720 + $0x20] sm:$0xf]
      %v730 = vld [vmem:[%s720 + $0x24] sm:$0xf]
      %v731 = vld [vmem:[%s720 + $0x28] sm:$0xf]
      %v732 = vld [vmem:[%s720 + $0x2c] sm:$0xf]
      %v733 = vld [vmem:[%s720 + $0x30] sm:$0xf]
      %v734 = vld [vmem:[%s720 + $0x34] sm:$0xf]
      %v735 = vld [vmem:[%s720 + $0x38] sm:$0xf]
      %v736 = vld [vmem:[%s720 + $0x3c] sm:$0xf]
      %v753 = vunpack.c.l.b16 %v721
      %v754 = vunpack.c.l.b16 %v722
      %v755 = vunpack.c.l.b16 %v723
      %v756 = vunpack.c.l.b16 %v724
      %v757 = vunpack.c.l.b16 %v725
      %v758 = vunpack.c.l.b16 %v726
      %v759 = vunpack.c.l.b16 %v727
      %v760 = vunpack.c.l.b16 %v728
      %v761 = vunpack.c.l.b16 %v729
      %v762 = vunpack.c.l.b16 %v730
      %v763 = vunpack.c.l.b16 %v731
      %v764 = vunpack.c.l.b16 %v732
      %v765 = vunpack.c.l.b16 %v733
      %v766 = vunpack.c.l.b16 %v734
      %v767 = vunpack.c.l.b16 %v735
      %v768 = vunpack.c.l.b16 %v736
      %v769 = vpack.c.b16 %v754, %v753
      %v770 = vpack.c.b16 %v756, %v755
      %v771 = vpack.c.b16 %v758, %v757
      %v772 = vpack.c.b16 %v760, %v759
      %v773 = vpack.c.b16 %v762, %v761
      %v774 = vpack.c.b16 %v764, %v763
      %v775 = vpack.c.b16 %v766, %v765
      %v776 = vpack.c.b16 %v768, %v767
      %785 = vmatpush.bf16.msra.mxu0 %v776
      %786 = vmatpush.bf16.msra.mxu0 %v775
      %787 = vmatpush.bf16.msra.mxu0 %v774
      %788 = vmatpush.bf16.msra.mxu0 %v773
      %789 = vmatpush.bf16.msra.mxu0 %v772
      %790 = vmatpush.bf16.msra.mxu0 %v771
      %791 = vmatpush.bf16.msra.mxu0 %v770
      %792 = vmatpush.bf16.msra.mxu0 %v769
      %793 = vmatmul.bf16.gmra.mxu0 %v719
      %v794 = vpop.f32.mrf.mxu0
      %v795 = vadd.f32 0.0, %v794
      %v796 = vpop.f32.mrf.mxu0
      %797 = vdwg.mxu0
      %v798 = vadd.f32 %v718, %v795
      %s799 = scalar_lea.vmem %s3, 256
      %v800 = vld [vmem:[%s799] sm:$0xf]
      %v801 = vld [vmem:[%s799 + $0x4] sm:$0xf]
      %v802 = vld [vmem:[%s799 + $0x8] sm:$0xf]
      %v803 = vld [vmem:[%s799 + $0xc] sm:$0xf]
      %v804 = vld [vmem:[%s799 + $0x10] sm:$0xf]
      %v805 = vld [vmem:[%s799 + $0x14] sm:$0xf]
      %v806 = vld [vmem:[%s799 + $0x18] sm:$0xf]
      %v807 = vld [vmem:[%s799 + $0x1c] sm:$0xf]
      %v808 = vld [vmem:[%s799 + $0x20] sm:$0xf]
      %v809 = vld [vmem:[%s799 + $0x24] sm:$0xf]
      %v810 = vld [vmem:[%s799 + $0x28] sm:$0xf]
      %v811 = vld [vmem:[%s799 + $0x2c] sm:$0xf]
      %v812 = vld [vmem:[%s799 + $0x30] sm:$0xf]
      %v813 = vld [vmem:[%s799 + $0x34] sm:$0xf]
      %v814 = vld [vmem:[%s799 + $0x38] sm:$0xf]
      %v815 = vld [vmem:[%s799 + $0x3c] sm:$0xf]
      %v817 = vunpack.c.l.b16 %v719
      %v818 = vpack.c.b16 %v817, %v817
      %v820 = vshrl.u32 %v818, 16
      %v822 = vshll.u32 %v818, 16
      %v824 = vrot.slane %v822, 1
      %v825 = vor.u32 %v820, %v824
      %v843 = vunpack.c.l.b16 %v800
      %v844 = vunpack.c.l.b16 %v801
      %v845 = vunpack.c.l.b16 %v802
      %v846 = vunpack.c.l.b16 %v803
      %v847 = vunpack.c.l.b16 %v804
      %v848 = vunpack.c.l.b16 %v805
      %v849 = vunpack.c.l.b16 %v806
      %v850 = vunpack.c.l.b16 %v807
      %v851 = vunpack.c.l.b16 %v808
      %v852 = vunpack.c.l.b16 %v809
      %v853 = vunpack.c.l.b16 %v810
      %v854 = vunpack.c.l.b16 %v811
      %v855 = vunpack.c.l.b16 %v812
      %v856 = vunpack.c.l.b16 %v813
      %v857 = vunpack.c.l.b16 %v814
      %v858 = vunpack.c.l.b16 %v815
      %v859 = vpack.c.b16 %v844, %v843
      %v860 = vpack.c.b16 %v846, %v845
      %v861 = vpack.c.b16 %v848, %v847
      %v862 = vpack.c.b16 %v850, %v849
      %v863 = vpack.c.b16 %v852, %v851
      %v864 = vpack.c.b16 %v854, %v853
      %v865 = vpack.c.b16 %v856, %v855
      %v866 = vpack.c.b16 %v858, %v857
      %875 = vmatpush.bf16.msra.mxu0 %v866
      %876 = vmatpush.bf16.msra.mxu0 %v865
      %877 = vmatpush.bf16.msra.mxu0 %v864
      %878 = vmatpush.bf16.msra.mxu0 %v863
      %879 = vmatpush.bf16.msra.mxu0 %v862
      %880 = vmatpush.bf16.msra.mxu0 %v861
      %881 = vmatpush.bf16.msra.mxu0 %v860
      %882 = vmatpush.bf16.msra.mxu0 %v859
      %883 = vmatmul.bf16.gmra.mxu0 %v825
      %v884 = vpop.f32.mrf.mxu0
      %v885 = vadd.f32 0.0, %v884
      %v886 = vpop.f32.mrf.mxu0
      %887 = vdwg.mxu0
      %v888 = vadd.f32 %v798, %v885
      %s889 = scalar_lea.vmem %s3, 320
      %v890 = vld [vmem:[%s889] sm:$0xf]
      %v891 = vld [vmem:[%s889 + $0x4] sm:$0xf]
      %v892 = vld [vmem:[%s889 + $0x8] sm:$0xf]
      %v893 = vld [vmem:[%s889 + $0xc] sm:$0xf]
      %v894 = vld [vmem:[%s889 + $0x10] sm:$0xf]
      %v895 = vld [vmem:[%s889 + $0x14] sm:$0xf]
      %v896 = vld [vmem:[%s889 + $0x18] sm:$0xf]
      %v897 = vld [vmem:[%s889 + $0x1c] sm:$0xf]
      %v898 = vld [vmem:[%s889 + $0x20] sm:$0xf]
      %v899 = vld [vmem:[%s889 + $0x24] sm:$0xf]
      %v900 = vld [vmem:[%s889 + $0x28] sm:$0xf]
      %v901 = vld [vmem:[%s889 + $0x2c] sm:$0xf]
      %v902 = vld [vmem:[%s889 + $0x30] sm:$0xf]
      %v903 = vld [vmem:[%s889 + $0x34] sm:$0xf]
      %v904 = vld [vmem:[%s889 + $0x38] sm:$0xf]
      %v905 = vld [vmem:[%s889 + $0x3c] sm:$0xf]
      %v906 = vrot.slane %v818, 1
      %v924 = vunpack.c.l.b16 %v890
      %v925 = vunpack.c.l.b16 %v891
      %v926 = vunpack.c.l.b16 %v892
      %v927 = vunpack.c.l.b16 %v893
      %v928 = vunpack.c.l.b16 %v894
      %v929 = vunpack.c.l.b16 %v895
      %v930 = vunpack.c.l.b16 %v896
      %v931 = vunpack.c.l.b16 %v897
      %v932 = vunpack.c.l.b16 %v898
      %v933 = vunpack.c.l.b16 %v899
      %v934 = vunpack.c.l.b16 %v900
      %v935 = vunpack.c.l.b16 %v901
      %v936 = vunpack.c.l.b16 %v902
      %v937 = vunpack.c.l.b16 %v903
      %v938 = vunpack.c.l.b16 %v904
      %v939 = vunpack.c.l.b16 %v905
      %v940 = vpack.c.b16 %v925, %v924
      %v941 = vpack.c.b16 %v927, %v926
      %v942 = vpack.c.b16 %v929, %v928
      %v943 = vpack.c.b16 %v931, %v930
      %v944 = vpack.c.b16 %v933, %v932
      %v945 = vpack.c.b16 %v935, %v934
      %v946 = vpack.c.b16 %v937, %v936
      %v947 = vpack.c.b16 %v939, %v938
      %956 = vmatpush.bf16.msra.mxu0 %v947
      %957 = vmatpush.bf16.msra.mxu0 %v946
      %958 = vmatpush.bf16.msra.mxu0 %v945
      %959 = vmatpush.bf16.msra.mxu0 %v944
      %960 = vmatpush.bf16.msra.mxu0 %v943
      %961 = vmatpush.bf16.msra.mxu0 %v942
      %962 = vmatpush.bf16.msra.mxu0 %v941
      %963 = vmatpush.bf16.msra.mxu0 %v940
      %964 = vmatmul.bf16.gmra.mxu0 %v906
      %v965 = vpop.f32.mrf.mxu0
      %v966 = vadd.f32 0.0, %v965
      %v967 = vpop.f32.mrf.mxu0
      %968 = vdwg.mxu0
      %v969 = vadd.f32 %v888, %v966
      %v970 = vld [vmem:[%s453] sm:$0x7]
      %s971 = scalar_lea.vmem %s3, 384
      %v972 = vld [vmem:[%s971] sm:$0xf]
      %v973 = vld [vmem:[%s971 + $0x4] sm:$0xf]
      %v974 = vld [vmem:[%s971 + $0x8] sm:$0xf]
      %v975 = vld [vmem:[%s971 + $0xc] sm:$0xf]
      %v976 = vld [vmem:[%s971 + $0x10] sm:$0xf]
      %v977 = vld [vmem:[%s971 + $0x14] sm:$0xf]
      %v978 = vld [vmem:[%s971 + $0x18] sm:$0xf]
      %v979 = vld [vmem:[%s971 + $0x1c] sm:$0xf]
      %v980 = vld [vmem:[%s971 + $0x20] sm:$0xf]
      %v981 = vld [vmem:[%s971 + $0x24] sm:$0xf]
      %v982 = vld [vmem:[%s971 + $0x28] sm:$0xf]
      %v983 = vld [vmem:[%s971 + $0x2c] sm:$0xf]
      %v984 = vld [vmem:[%s971 + $0x30] sm:$0xf]
      %v985 = vld [vmem:[%s971 + $0x34] sm:$0xf]
      %v986 = vld [vmem:[%s971 + $0x38] sm:$0xf]
      %v987 = vld [vmem:[%s971 + $0x3c] sm:$0xf]
      %v1004 = vunpack.c.l.b16 %v972
      %v1005 = vunpack.c.l.b16 %v973
      %v1006 = vunpack.c.l.b16 %v974
      %v1007 = vunpack.c.l.b16 %v975
      %v1008 = vunpack.c.l.b16 %v976
      %v1009 = vunpack.c.l.b16 %v977
      %v1010 = vunpack.c.l.b16 %v978
      %v1011 = vunpack.c.l.b16 %v979
      %v1012 = vunpack.c.l.b16 %v980
      %v1013 = vunpack.c.l.b16 %v981
      %v1014 = vunpack.c.l.b16 %v982
      %v1015 = vunpack.c.l.b16 %v983
      %v1016 = vunpack.c.l.b16 %v984
      %v1017 = vunpack.c.l.b16 %v985
      %v1018 = vunpack.c.l.b16 %v986
      %v1019 = vunpack.c.l.b16 %v987
      %v1020 = vpack.c.b16 %v1005, %v1004
      %v1021 = vpack.c.b16 %v1007, %v1006
      %v1022 = vpack.c.b16 %v1009, %v1008
      %v1023 = vpack.c.b16 %v1011, %v1010
      %v1024 = vpack.c.b16 %v1013, %v1012
      %v1025 = vpack.c.b16 %v1015, %v1014
      %v1026 = vpack.c.b16 %v1017, %v1016
      %v1027 = vpack.c.b16 %v1019, %v1018
      %1036 = vmatpush.bf16.msra.mxu0 %v1027
      %1037 = vmatpush.bf16.msra.mxu0 %v1026
      %1038 = vmatpush.bf16.msra.mxu0 %v1025
      %1039 = vmatpush.bf16.msra.mxu0 %v1024
      %1040 = vmatpush.bf16.msra.mxu0 %v1023
      %1041 = vmatpush.bf16.msra.mxu0 %v1022
      %1042 = vmatpush.bf16.msra.mxu0 %v1021
      %1043 = vmatpush.bf16.msra.mxu0 %v1020
      %1044 = vmatmul.bf16.gmra.mxu0 %v970
      %v1045 = vpop.f32.mrf.mxu0
      %v1046 = vadd.f32 0.0, %v1045
      %v1047 = vpop.f32.mrf.mxu0
      %1048 = vdwg.mxu0
      %v1049 = vadd.f32 %v969, %v1046
      %s1050 = scalar_lea.vmem %s3, 448
      %v1051 = vld [vmem:[%s1050] sm:$0xf]
      %v1052 = vld [vmem:[%s1050 + $0x4] sm:$0xf]
      %v1053 = vld [vmem:[%s1050 + $0x8] sm:$0xf]
      %v1054 = vld [vmem:[%s1050 + $0xc] sm:$0xf]
      %v1055 = vld [vmem:[%s1050 + $0x10] sm:$0xf]
      %v1056 = vld [vmem:[%s1050 + $0x14] sm:$0xf]
      %v1057 = vld [vmem:[%s1050 + $0x18] sm:$0xf]
      %v1058 = vld [vmem:[%s1050 + $0x1c] sm:$0xf]
      %v1059 = vld [vmem:[%s1050 + $0x20] sm:$0xf]
      %v1060 = vld [vmem:[%s1050 + $0x24] sm:$0xf]
      %v1061 = vld [vmem:[%s1050 + $0x28] sm:$0xf]
      %v1062 = vld [vmem:[%s1050 + $0x2c] sm:$0xf]
      %v1063 = vld [vmem:[%s1050 + $0x30] sm:$0xf]
      %v1064 = vld [vmem:[%s1050 + $0x34] sm:$0xf]
      %v1065 = vld [vmem:[%s1050 + $0x38] sm:$0xf]
      %v1066 = vld [vmem:[%s1050 + $0x3c] sm:$0xf]
      %v1068 = vunpack.c.l.b16 %v970
      %v1069 = vpack.c.b16 %v1068, %v1068
      %v1071 = vshrl.u32 %v1069, 16
      %v1073 = vshll.u32 %v1069, 16
      %v1075 = vrot.slane %v1073, 1
      %v1076 = vor.u32 %v1071, %v1075
      %v1094 = vunpack.c.l.b16 %v1051
      %v1095 = vunpack.c.l.b16 %v1052
      %v1096 = vunpack.c.l.b16 %v1053
      %v1097 = vunpack.c.l.b16 %v1054
      %v1098 = vunpack.c.l.b16 %v1055
      %v1099 = vunpack.c.l.b16 %v1056
      %v1100 = vunpack.c.l.b16 %v1057
      %v1101 = vunpack.c.l.b16 %v1058
      %v1102 = vunpack.c.l.b16 %v1059
      %v1103 = vunpack.c.l.b16 %v1060
      %v1104 = vunpack.c.l.b16 %v1061
      %v1105 = vunpack.c.l.b16 %v1062
      %v1106 = vunpack.c.l.b16 %v1063
      %v1107 = vunpack.c.l.b16 %v1064
      %v1108 = vunpack.c.l.b16 %v1065
      %v1109 = vunpack.c.l.b16 %v1066
      %v1110 = vpack.c.b16 %v1095, %v1094
      %v1111 = vpack.c.b16 %v1097, %v1096
      %v1112 = vpack.c.b16 %v1099, %v1098
      %v1113 = vpack.c.b16 %v1101, %v1100
      %v1114 = vpack.c.b16 %v1103, %v1102
      %v1115 = vpack.c.b16 %v1105, %v1104
      %v1116 = vpack.c.b16 %v1107, %v1106
      %v1117 = vpack.c.b16 %v1109, %v1108
      %1126 = vmatpush.bf16.msra.mxu0 %v1117
      %1127 = vmatpush.bf16.msra.mxu0 %v1116
      %1128 = vmatpush.bf16.msra.mxu0 %v1115
      %1129 = vmatpush.bf16.msra.mxu0 %v1114
      %1130 = vmatpush.bf16.msra.mxu0 %v1113
      %1131 = vmatpush.bf16.msra.mxu0 %v1112
      %1132 = vmatpush.bf16.msra.mxu0 %v1111
      %1133 = vmatpush.bf16.msra.mxu0 %v1110
      %1134 = vmatmul.bf16.gmra.mxu0 %v1076
      %v1135 = vpop.f32.mrf.mxu0
      %v1136 = vadd.f32 0.0, %v1135
      %v1137 = vpop.f32.mrf.mxu0
      %1138 = vdwg.mxu0
      %v1139 = vadd.f32 %v1049, %v1136
      %s1140 = scalar_lea.vmem %s3, 512
      %v1141 = vld [vmem:[%s1140] sm:$0xf]
      %v1142 = vld [vmem:[%s1140 + $0x4] sm:$0xf]
      %v1143 = vld [vmem:[%s1140 + $0x8] sm:$0xf]
      %v1144 = vld [vmem:[%s1140 + $0xc] sm:$0xf]
      %v1145 = vld [vmem:[%s1140 + $0x10] sm:$0xf]
      %v1146 = vld [vmem:[%s1140 + $0x14] sm:$0xf]
      %v1147 = vld [vmem:[%s1140 + $0x18] sm:$0xf]
      %v1148 = vld [vmem:[%s1140 + $0x1c] sm:$0xf]
      %v1149 = vld [vmem:[%s1140 + $0x20] sm:$0xf]
      %v1150 = vld [vmem:[%s1140 + $0x24] sm:$0xf]
      %v1151 = vld [vmem:[%s1140 + $0x28] sm:$0xf]
      %v1152 = vld [vmem:[%s1140 + $0x2c] sm:$0xf]
      %v1153 = vld [vmem:[%s1140 + $0x30] sm:$0xf]
      %v1154 = vld [vmem:[%s1140 + $0x34] sm:$0xf]
      %v1155 = vld [vmem:[%s1140 + $0x38] sm:$0xf]
      %v1156 = vld [vmem:[%s1140 + $0x3c] sm:$0xf]
      %v1157 = vrot.slane %v1069, 1
      %v1175 = vunpack.c.l.b16 %v1141
      %v1176 = vunpack.c.l.b16 %v1142
      %v1177 = vunpack.c.l.b16 %v1143
      %v1178 = vunpack.c.l.b16 %v1144
      %v1179 = vunpack.c.l.b16 %v1145
      %v1180 = vunpack.c.l.b16 %v1146
      %v1181 = vunpack.c.l.b16 %v1147
      %v1182 = vunpack.c.l.b16 %v1148
      %v1183 = vunpack.c.l.b16 %v1149
      %v1184 = vunpack.c.l.b16 %v1150
      %v1185 = vunpack.c.l.b16 %v1151
      %v1186 = vunpack.c.l.b16 %v1152
      %v1187 = vunpack.c.l.b16 %v1153
      %v1188 = vunpack.c.l.b16 %v1154
      %v1189 = vunpack.c.l.b16 %v1155
      %v1190 = vunpack.c.l.b16 %v1156
      %v1191 = vpack.c.b16 %v1176, %v1175
      %v1192 = vpack.c.b16 %v1178, %v1177
      %v1193 = vpack.c.b16 %v1180, %v1179
      %v1194 = vpack.c.b16 %v1182, %v1181
      %v1195 = vpack.c.b16 %v1184, %v1183
      %v1196 = vpack.c.b16 %v1186, %v1185
      %v1197 = vpack.c.b16 %v1188, %v1187
      %v1198 = vpack.c.b16 %v1190, %v1189
      %1207 = vmatpush.bf16.msra.mxu0 %v1198
      %1208 = vmatpush.bf16.msra.mxu0 %v1197
      %1209 = vmatpush.bf16.msra.mxu0 %v1196
      %1210 = vmatpush.bf16.msra.mxu0 %v1195
      %1211 = vmatpush.bf16.msra.mxu0 %v1194
      %1212 = vmatpush.bf16.msra.mxu0 %v1193
      %1213 = vmatpush.bf16.msra.mxu0 %v1192
      %1214 = vmatpush.bf16.msra.mxu0 %v1191
      %1215 = vmatmul.bf16.gmra.mxu0 %v1157
      %v1216 = vpop.f32.mrf.mxu0
      %v1217 = vadd.f32 0.0, %v1216
      %v1218 = vpop.f32.mrf.mxu0
      %1219 = vdwg.mxu0
      %v1220 = vadd.f32 %v1139, %v1217
      %v1221 = vld [vmem:[%s4] sm:$0x1]
      %v1223 = vperm.slane %v1221, 0
      %v1225 = vmul.f32 %v1220, %v1223
      %v1226 = vld [vmem:[%s5] sm:$0x1]
      %v1228 = vperm.slane %v1226, 0
      %v1230 = vadd.f32 %v1225, %v1228
      %v1231 = vld [vmem:[%s462] sm:$0x3]
      %v1232 = vunpack.c.l.bf16 %v1231
      %v1233 = vadd.f32 %v1230, %v1232
      %vm1234 = vcmp.gt.f32.partialorder %v1233, 0.0
      %v1235 = vld [vmem:[%s7] sm:$0x1]
      %v1237 = vperm.slane %v1235, 0
      %v1239 = vmul.f32 %v1237, %v1233
      %v1240 = vsel %vm1234, %v1233, %v1239
      %v1241 = vld [vmem:[%s8] sm:$0x1]
      %v1243 = vperm.slane %v1241, 0
      %v1245 = vadd.f32 %v1240, %v1243
      %v1246 = vpack.c.bf16 %v1245, %v1245
      %1247 = vst [vmem:[%s470] sm:$0x3] %v1246
      %p1248 = scmp.lt.s32.totalorder %s24, 1
      %s1249 = scalar_select %p1248, %s24, 1
      %p1250 = scmp.lt.s32.totalorder %s25, 3
      %s1251 = scalar_select %p1250, %s25, 3
      %s1252 = smul.addr %s1249, 4
      %s1253 = sadd.s32 %s1251, %s1252
      %s1254 = smul.addr %s1253, 2
      %s1255 = scalar_lea.vmem %s9, %s1254
      // Predicated region
      $region57: #{binary_resnet_bisrnet_down.21} parent=55 // pred_check
        %p1256 = pneg %p273
      $region58: #{binary_resnet_bisrnet_down.21} parent=55 // pred_check_branch
        %1258 = sbr.rel (%p1256) target = $region60
      $region59: #{binary_resnet_bisrnet_down.21} parent=55 // pred_region
        _
      $region60: #{binary_resnet_bisrnet_down.21} parent=55 // pred_fallthru
        _
    $region56: #{binary_resnet_bisrnet_down.21} parent=5 // pred_fallthru
      _
    %p1259 = scmp.le.s32.totalorder 2, %s15
    // Predicated region
    $region61: #{binary_resnet_bisrnet_down.21} parent=5 // pred_check
      %p1260 = pneg %p1259
    $region62: #{binary_resnet_bisrnet_down.21} parent=5 // pred_check_branch
      %1262 = sbr.rel (%p1260) target = $region64
    $region63: #{binary_resnet_bisrnet_down.21} parent=5 // pred_region
      %s1263 = ssub.s32 %s15, 2
      // Predicated region
      $region65: #{binary_resnet_bisrnet_down.21} parent=63 // pred_check
        %p1264 = pneg %p279
      $region66: #{binary_resnet_bisrnet_down.21} parent=63 // pred_check_branch
        %1266 = sbr.rel (%p1264) target = $region68
      $region67: #{binary_resnet_bisrnet_down.21} parent=63 // pred_region
        %p1267 = scmp.lt.s32.totalorder %s26, 1
        %s1268 = scalar_select %p1267, %s26, 1
        %p1269 = scmp.lt.s32.totalorder %s27, 3
        %s1270 = scalar_select %p1269, %s27, 3
        %s1271 = smul.addr %s1268, 4
        %s1272 = sadd.s32 %s1270, %s1271
        %s1273 = smul.addr %s1272, 2
        %s1274 = scalar_lea.vmem %s9, %s1273
      $region68: #{binary_resnet_bisrnet_down.21} parent=63 // pred_fallthru
        _
    $region64: #{binary_resnet_bisrnet_down.21} parent=5 // pred_fallthru
      _
  $region6: #{binary_resnet_bisrnet_down.21} parent=0 // loop_footer
    %s19 = sadd.s32 1, %s15
  $region7: #{binary_resnet_bisrnet_down.21} parent=0 // loop_footer_branch
    %14 = sbr.rel target = $region3
  $region8: #{binary_resnet_bisrnet_down.21} parent=0 // loop_exit
    _

// kernel: binary_resnet_bisrnet_down.26
$region0: #{binary_resnet_bisrnet_down.26}
  #allocation0 [shape = 'u32[]', space=smem, size = 0x4, offset = 0x4, fixed_abs, tag = 'smem constant byte address 0x4 - core index']
  #allocation1 [shape = 'u32[72,128]{1,0:T(1,128)}', space=vmem, size = 0x9000, scoped, tag = 'internal scratch']
  %s0 = inlined_call_operand.vmem [shape: bf16[2,4,4,128], index: 0, kind: input, shape index: {}, may-alias: {0,1,2}]
  %s1 = inlined_call_operand.vmem [shape: bf16[2,4,4,128], index: 1, kind: input, shape index: {}, may-alias: {0,1,2}]
  %s2 = inlined_call_operand.vmem [shape: bf16[2,4,4,128], index: 2, kind: input, shape index: {}, may-alias: {0,1,2}]
  %s3 = inlined_call_operand.vmem [shape: bf16[9,128,128], index: 3, kind: input, shape index: {}]
  %s4 = inlined_call_operand.vmem [shape: f32[1,128], index: 4, kind: input, shape index: {}]
  %s5 = inlined_call_operand.vmem [shape: f32[1,128], index: 5, kind: input, shape index: {}]
  %s6 = inlined_call_operand.vmem [shape: bf16[2,2,2,128], index: 6, kind: input, shape index: {}]
  %s7 = inlined_call_operand.vmem [shape: f32[1,128], index: 7, kind: input, shape index: {}]
  %s8 = inlined_call_operand.vmem [shape: f32[1,128], index: 8, kind: input, shape index: {}]
  %s9 = inlined_call_operand.vmem [shape: bf16[2,2,2,128], index: 9, kind: output, shape index: {}]
  %s10 = sld [smem:[#allocation0]]
  $region69: #{binary_resnet_bisrnet_down.26} parent=0
    _
  %s12 = ssub.s32 1, %s10
  %s13 = scalar_select 0, %s12, %s10
  loop: start=0, step=1, limit=6
  $region2: #{binary_resnet_bisrnet_down.26} parent=0 // loop_pre_header
    _
  $region3: #{binary_resnet_bisrnet_down.26} parent=0 // loop_header
    %s15 = sphi 0, %s19
    %p16 = scmp.ge.s32.totalorder %s15, 6
    %s22 = sphi 0, %s34
    %s23 = sphi 0, %s30
    %s24 = sphi 0, %s22
    %s25 = sphi 0, %s23
    %s26 = sphi 0, %s24
    %s27 = sphi 0, %s25
    %s39 = sphi 0, %s41
    %s42 = sphi 0, %s39
    %s43 = sphi 0, %s42
    %s59 = sphi 0, %s43
    %s69 = sphi 0, %s71
    %s72 = sphi 0, %s69
    %s73 = sphi 0, %s72
    %s89 = sphi 0, %s73
    %s99 = sphi 0, %s101
    %s102 = sphi 0, %s99
    %s103 = sphi 0, %s102
    %s119 = sphi 0, %s103
    %s123 = sphi 0, %s123
    %s125 = sphi 0, %s123
    %s126 = sphi 0, %s125
    %s140 = sphi 0, %s126
    %s144 = sphi 0, %s144
    %s146 = sphi 0, %s144
    %s147 = sphi 0, %s146
    %s161 = sphi 0, %s147
    %s165 = sphi 0, %s165
    %s167 = sphi 0, %s165
    %s168 = sphi 0, %s167
    %s182 = sphi 0, %s168
    %s190 = sphi 0, %s192
    %s193 = sphi 0, %s190
    %s194 = sphi 0, %s193
    %s210 = sphi 0, %s194
    %s214 = sphi 0, %s214
    %s216 = sphi 0, %s214
    %s217 = sphi 0, %s216
    %s231 = sphi 0, %s217
    %s235 = sphi 0, %s235
    %s237 = sphi 0, %s235
    %s238 = sphi 0, %s237
    %s252 = sphi 0, %s238
    %s260 = sphi 0, %s262
    %s263 = sphi 0, %s260
    %s264 = sphi 0, %s263
    %s280 = sphi 0, %s264
  $region4: #{binary_resnet_bisrnet_down.26} parent=0 // loop_header_branch
    %18 = sbr.rel (%p16) target = $region8
  $region5: #{binary_resnet_bisrnet_down.26} parent=0 // loop_body
    %s20 = ssub.s32 %s15, 1
    %s21 = ssub.s32 %s15, 2
    %s28 = sadd.s32 1, %s23
    %p29 = scmp.ge.s32.totalorder %s28, 2
    %s30 = scalar_select %p29, 0, %s28
    %s31 = sadd.s32 1, %s22
    %s32 = scalar_select %p29, %s31, %s22
    %p33 = scmp.ge.s32.totalorder %s32, 2
    %s34 = scalar_select %p33, 0, %s32
    %s35 = ssub.s32 %s22, %s34
    %s36 = ssub.s32 %s23, %s30
    %s37 = sor.u32 %s35, %s36
    %p38 = scmp.eq.s32.totalorder %s37, 0
    %s40 = sadd.s32 %s39, 1
    %s41 = scalar_select %p38, %s39, %s40
    %p44 = pneg %p38
    %p45 = scmp.eq.s32.totalorder %s15, 3
    %p46 = por %p44, %p45
    %p47 = scmp.ne.s32.totalorder %s39, %s42
    %p48 = scmp.eq.s32.totalorder %s15, 0
    %p49 = por %p47, %p48
    %p50 = scmp.ne.s32.totalorder %s39, %s42
    %p51 = scmp.eq.s32.totalorder %s20, 3
    %p52 = por %p50, %p51
    %p53 = scmp.ne.s32.totalorder %s42, %s43
    %p54 = scmp.eq.s32.totalorder %s20, 0
    %p55 = por %p53, %p54
    %p56 = scmp.ne.s32.totalorder %s42, %s43
    %p57 = scmp.eq.s32.totalorder %s21, 3
    %p58 = por %p56, %p57
    %p60 = scmp.ne.s32.totalorder %s43, %s59
    %p61 = scmp.eq.s32.totalorder %s21, 0
    %p62 = por %p60, %p61
    %s63 = sadd.s32 %s23, 1
    %s64 = sadd.s32 %s30, 1
    %s65 = ssub.s32 %s22, %s34
    %s66 = ssub.s32 %s63, %s64
    %s67 = sor.u32 %s65, %s66
    %p68 = scmp.eq.s32.totalorder %s67, 0
    %s70 = sadd.s32 %s69, 1
    %s71 = scalar_select %p68, %s69, %s70
    %p74 = pneg %p68
    %p75 = scmp.eq.s32.totalorder %s15, 3
    %p76 = por %p74, %p75
    %p77 = scmp.ne.s32.totalorder %s69, %s72
    %p78 = scmp.eq.s32.totalorder %s15, 0
    %p79 = por %p77, %p78
    %p80 = scmp.ne.s32.totalorder %s69, %s72
    %p81 = scmp.eq.s32.totalorder %s20, 3
    %p82 = por %p80, %p81
    %p83 = scmp.ne.s32.totalorder %s72, %s73
    %p84 = scmp.eq.s32.totalorder %s20, 0
    %p85 = por %p83, %p84
    %p86 = scmp.ne.s32.totalorder %s72, %s73
    %p87 = scmp.eq.s32.totalorder %s21, 3
    %p88 = por %p86, %p87
    %p90 = scmp.ne.s32.totalorder %s73, %s89
    %p91 = scmp.eq.s32.totalorder %s21, 0
    %p92 = por %p90, %p91
    %s93 = sadd.s32 %s23, 2
    %s94 = sadd.s32 %s30, 2
    %s95 = ssub.s32 %s22, %s34
    %s96 = ssub.s32 %s93, %s94
    %s97 = sor.u32 %s95, %s96
    %p98 = scmp.eq.s32.totalorder %s97, 0
    %s100 = sadd.s32 %s99, 1
    %s101 = scalar_select %p98, %s99, %s100
    %p104 = pneg %p98
    %p105 = scmp.eq.s32.totalorder %s15, 3
    %p106 = por %p104, %p105
    %p107 = scmp.ne.s32.totalorder %s99, %s102
    %p108 = scmp.eq.s32.totalorder %s15, 0
    %p109 = por %p107, %p108
    %p110 = scmp.ne.s32.totalorder %s99, %s102
    %p111 = scmp.eq.s32.totalorder %s20, 3
    %p112 = por %p110, %p111
    %p113 = scmp.ne.s32.totalorder %s102, %s103
    %p114 = scmp.eq.s32.totalorder %s20, 0
    %p115 = por %p113, %p114
    %p116 = scmp.ne.s32.totalorder %s102, %s103
    %p117 = scmp.eq.s32.totalorder %s21, 3
    %p118 = por %p116, %p117
    %p120 = scmp.ne.s32.totalorder %s103, %s119
    %p121 = scmp.eq.s32.totalorder %s21, 0
    %p122 = por %p120, %p121
    %s124 = sadd.s32 %s123, 1
    %p127 = scmp.eq.s32.totalorder %s15, 3
    %p128 = scmp.ne.s32.totalorder %s123, %s125
    %p129 = scmp.eq.s32.totalorder %s15, 0
    %p130 = por %p128, %p129
    %p131 = scmp.ne.s32.totalorder %s123, %s125
    %p132 = scmp.eq.s32.totalorder %s20, 3
    %p133 = por %p131, %p132
    %p134 = scmp.ne.s32.totalorder %s125, %s126
    %p135 = scmp.eq.s32.totalorder %s20, 0
    %p136 = por %p134, %p135
    %p137 = scmp.ne.s32.totalorder %s125, %s126
    %p138 = scmp.eq.s32.totalorder %s21, 3
    %p139 = por %p137, %p138
    %p141 = scmp.ne.s32.totalorder %s126, %s140
    %p142 = scmp.eq.s32.totalorder %s21, 0
    %p143 = por %p141, %p142
    %s145 = sadd.s32 %s144, 1
    %p148 = scmp.eq.s32.totalorder %s15, 3
    %p149 = scmp.ne.s32.totalorder %s144, %s146
    %p150 = scmp.eq.s32.totalorder %s15, 0
    %p151 = por %p149, %p150
    %p152 = scmp.ne.s32.totalorder %s144, %s146
    %p153 = scmp.eq.s32.totalorder %s20, 3
    %p154 = por %p152, %p153
    %p155 = scmp.ne.s32.totalorder %s146, %s147
    %p156 = scmp.eq.s32.totalorder %s20, 0
    %p157 = por %p155, %p156
    %p158 = scmp.ne.s32.totalorder %s146, %s147
    %p159 = scmp.eq.s32.totalorder %s21, 3
    %p160 = por %p158, %p159
    %p162 = scmp.ne.s32.totalorder %s147, %s161
    %p163 = scmp.eq.s32.totalorder %s21, 0
    %p164 = por %p162, %p163
    %s166 = sadd.s32 %s165, 1
    %p169 = scmp.eq.s32.totalorder %s15, 3
    %p170 = scmp.ne.s32.totalorder %s165, %s167
    %p171 = scmp.eq.s32.totalorder %s15, 0
    %p172 = por %p170, %p171
    %p173 = scmp.ne.s32.totalorder %s165, %s167
    %p174 = scmp.eq.s32.totalorder %s20, 3
    %p175 = por %p173, %p174
    %p176 = scmp.ne.s32.totalorder %s167, %s168
    %p177 = scmp.eq.s32.totalorder %s20, 0
    %p178 = por %p176, %p177
    %p179 = scmp.ne.s32.totalorder %s167, %s168
    %p180 = scmp.eq.s32.totalorder %s21, 3
    %p181 = por %p179, %p180
    %p183 = scmp.ne.s32.totalorder %s168, %s182
    %p184 = scmp.eq.s32.totalorder %s21, 0
    %p185 = por %p183, %p184
    %s186 = ssub.s32 %s22, %s34
    %s187 = ssub.s32 %s23, %s30
    %s188 = sor.u32 %s186, %s187
    %p189 = scmp.eq.s32.totalorder %s188, 0
    %s191 = sadd.s32 %s190, 1
    %s192 = scalar_select %p189, %s190, %s191
    %p195 = pneg %p189
    %p196 = scmp.eq.s32.totalorder %s15, 3
    %p197 = por %p195, %p196
    %p198 = scmp.ne.s32.totalorder %s190, %s193
    %p199 = scmp.eq.s32.totalorder %s15, 0
    %p200 = por %p198, %p199
    %p201 = scmp.ne.s32.totalorder %s190, %s193
    %p202 = scmp.eq.s32.totalorder %s20, 3
    %p203 = por %p201, %p202
    %p204 = scmp.ne.s32.totalorder %s193, %s194
    %p205 = scmp.eq.s32.totalorder %s20, 0
    %p206 = por %p204, %p205
    %p207 = scmp.ne.s32.totalorder %s193, %s194
    %p208 = scmp.eq.s32.totalorder %s21, 3
    %p209 = por %p207, %p208
    %p211 = scmp.ne.s32.totalorder %s194, %s210
    %p212 = scmp.eq.s32.totalorder %s21, 0
    %p213 = por %p211, %p212
    %s215 = sadd.s32 %s214, 1
    %p218 = scmp.eq.s32.totalorder %s15, 3
    %p219 = scmp.ne.s32.totalorder %s214, %s216
    %p220 = scmp.eq.s32.totalorder %s15, 0
    %p221 = por %p219, %p220
    %p222 = scmp.ne.s32.totalorder %s214, %s216
    %p223 = scmp.eq.s32.totalorder %s20, 3
    %p224 = por %p222, %p223
    %p225 = scmp.ne.s32.totalorder %s216, %s217
    %p226 = scmp.eq.s32.totalorder %s20, 0
    %p227 = por %p225, %p226
    %p228 = scmp.ne.s32.totalorder %s216, %s217
    %p229 = scmp.eq.s32.totalorder %s21, 3
    %p230 = por %p228, %p229
    %p232 = scmp.ne.s32.totalorder %s217, %s231
    %p233 = scmp.eq.s32.totalorder %s21, 0
    %p234 = por %p232, %p233
    %s236 = sadd.s32 %s235, 1
    %p239 = scmp.eq.s32.totalorder %s15, 3
    %p240 = scmp.ne.s32.totalorder %s235, %s237
    %p241 = scmp.eq.s32.totalorder %s15, 0
    %p242 = por %p240, %p241
    %p243 = scmp.ne.s32.totalorder %s235, %s237
    %p244 = scmp.eq.s32.totalorder %s20, 3
    %p245 = por %p243, %p244
    %p246 = scmp.ne.s32.totalorder %s237, %s238
    %p247 = scmp.eq.s32.totalorder %s20, 0
    %p248 = por %p246, %p247
    %p249 = scmp.ne.s32.totalorder %s237, %s238
    %p250 = scmp.eq.s32.totalorder %s21, 3
    %p251 = por %p249, %p250
    %p253 = scmp.ne.s32.totalorder %s238, %s252
    %p254 = scmp.eq.s32.totalorder %s21, 0
    %p255 = por %p253, %p254
    %s256 = ssub.s32 %s22, %s34
    %s257 = ssub.s32 %s23, %s30
    %s258 = sor.u32 %s256, %s257
    %p259 = scmp.eq.s32.totalorder %s258, 0
    %s261 = sadd.s32 %s260, 1
    %s262 = scalar_select %p259, %s260, %s261
    %p265 = pneg %p259
    %p266 = scmp.eq.s32.totalorder %s15, 3
    %p267 = por %p265, %p266
    %p268 = scmp.ne.s32.totalorder %s260, %s263
    %p269 = scmp.eq.s32.totalorder %s15, 0
    %p270 = por %p268, %p269
    %p271 = scmp.ne.s32.totalorder %s260, %s263
    %p272 = scmp.eq.s32.totalorder %s20, 3
    %p273 = por %p271, %p272
    %p274 = scmp.ne.s32.totalorder %s263, %s264
    %p275 = scmp.eq.s32.totalorder %s20, 0
    %p276 = por %p274, %p275
    %p277 = scmp.ne.s32.totalorder %s263, %s264
    %p278 = scmp.eq.s32.totalorder %s21, 3
    %p279 = por %p277, %p278
    %p281 = scmp.ne.s32.totalorder %s264, %s280
    %p282 = scmp.eq.s32.totalorder %s21, 0
    %p283 = por %p281, %p282
    %p284 = scmp.le.s32.totalorder 1, %s15
    %p285 = scmp.lt.s32.totalorder %s15, 5
    %p286 = pnand %p284, %p285
    %p287 = pneg %p286
    // Predicated region
    $region9: #{binary_resnet_bisrnet_down.26} parent=5 // pred_check
      _
    $region10: #{binary_resnet_bisrnet_down.26} parent=5 // pred_check_branch
      %289 = sbr.rel (%p286) target = $region12
    $region11: #{binary_resnet_bisrnet_down.26} parent=5 // pred_region
      %s290 = ssub.s32 %s15, 1
      // Predicated region
      $region13: #{binary_resnet_bisrnet_down.26} parent=11 // pred_check
        %p291 = pneg %p136
      $region14: #{binary_resnet_bisrnet_down.26} parent=11 // pred_check_branch
        %293 = sbr.rel (%p291) target = $region16
      $region15: #{binary_resnet_bisrnet_down.26} parent=11 // pred_region
        _
      $region16: #{binary_resnet_bisrnet_down.26} parent=11 // pred_fallthru
        _
      // Predicated region
      $region17: #{binary_resnet_bisrnet_down.26} parent=11 // pred_check
        %p294 = pneg %p157
      $region18: #{binary_resnet_bisrnet_down.26} parent=11 // pred_check_branch
        %296 = sbr.rel (%p294) target = $region20
      $region19: #{binary_resnet_bisrnet_down.26} parent=11 // pred_region
        _
      $region20: #{binary_resnet_bisrnet_down.26} parent=11 // pred_fallthru
        _
      // Predicated region
      $region21: #{binary_resnet_bisrnet_down.26} parent=11 // pred_check
        %p297 = pneg %p178
      $region22: #{binary_resnet_bisrnet_down.26} parent=11 // pred_check_branch
        %299 = sbr.rel (%p297) target = $region24
      $region23: #{binary_resnet_bisrnet_down.26} parent=11 // pred_region
        _
      $region24: #{binary_resnet_bisrnet_down.26} parent=11 // pred_fallthru
        _
      // Predicated region
      $region25: #{binary_resnet_bisrnet_down.26} parent=11 // pred_check
        %p300 = pneg %p227
      $region26: #{binary_resnet_bisrnet_down.26} parent=11 // pred_check_branch
        %302 = sbr.rel (%p300) target = $region28
      $region27: #{binary_resnet_bisrnet_down.26} parent=11 // pred_region
        _
      $region28: #{binary_resnet_bisrnet_down.26} parent=11 // pred_fallthru
        _
      // Predicated region
      $region29: #{binary_resnet_bisrnet_down.26} parent=11 // pred_check
        %p303 = pneg %p248
      $region30: #{binary_resnet_bisrnet_down.26} parent=11 // pred_check_branch
        %305 = sbr.rel (%p303) target = $region32
      $region31: #{binary_resnet_bisrnet_down.26} parent=11 // pred_region
        _
      $region32: #{binary_resnet_bisrnet_down.26} parent=11 // pred_fallthru
        _
    $region12: #{binary_resnet_bisrnet_down.26} parent=5 // pred_fallthru
      _
    %p306 = scmp.lt.s32.totalorder %s15, 4
    // Predicated region
    $region33: #{binary_resnet_bisrnet_down.26} parent=5 // pred_check
      %p307 = pneg %p306
    $region34: #{binary_resnet_bisrnet_down.26} parent=5 // pred_check_branch
      %309 = sbr.rel (%p307) target = $region36
    $region35: #{binary_resnet_bisrnet_down.26} parent=5 // pred_region
      // Predicated region
      $region37: #{binary_resnet_bisrnet_down.26} parent=35 // pred_check
        %p310 = pneg %p49
      $region38: #{binary_resnet_bisrnet_down.26} parent=35 // pred_check_branch
        %312 = sbr.rel (%p310) target = $region40
      $region39: #{binary_resnet_bisrnet_down.26} parent=35 // pred_region
        %p313 = scmp.lt.s32.totalorder %s22, 1
        %s314 = scalar_select %p313, %s22, 1
        %p315 = scmp.lt.s32.totalorder %s23, 3
        %s316 = scalar_select %p315, %s23, 3
        %s317 = smul.addr %s314, 4
        %s318 = sadd.s32 %s316, %s317
        %s319 = smul.addr %s318, 2
        %s320 = scalar_lea.vmem %s0, %s319
      $region40: #{binary_resnet_bisrnet_down.26} parent=35 // pred_fallthru
        _
      // Predicated region
      $region41: #{binary_resnet_bisrnet_down.26} parent=35 // pred_check
        %p321 = pneg %p79
      $region42: #{binary_resnet_bisrnet_down.26} parent=35 // pred_check_branch
        %323 = sbr.rel (%p321) target = $region44
      $region43: #{binary_resnet_bisrnet_down.26} parent=35 // pred_region
        %s324 = sadd.s32 %s23, 1
        %p325 = scmp.lt.s32.totalorder %s22, 1
        %s326 = scalar_select %p325, %s22, 1
        %p327 = scmp.lt.s32.totalorder %s324, 3
        %s328 = scalar_select %p327, %s324, 3
        %s329 = smul.addr %s326, 4
        %s330 = sadd.s32 %s328, %s329
        %s331 = smul.addr %s330, 2
        %s332 = scalar_lea.vmem %s1, %s331
        %s333 = sadd.s32 %s23, 1
      $region44: #{binary_resnet_bisrnet_down.26} parent=35 // pred_fallthru
        _
      // Predicated region
      $region45: #{binary_resnet_bisrnet_down.26} parent=35 // pred_check
        %p334 = pneg %p109
      $region46: #{binary_resnet_bisrnet_down.26} parent=35 // pred_check_branch
        %336 = sbr.rel (%p334) target = $region48
      $region47: #{binary_resnet_bisrnet_down.26} parent=35 // pred_region
        %s337 = sadd.s32 %s23, 2
        %p338 = scmp.lt.s32.totalorder %s22, 1
        %s339 = scalar_select %p338, %s22, 1
        %p340 = scmp.lt.s32.totalorder %s337, 3
        %s341 = scalar_select %p340, %s337, 3
        %s342 = smul.addr %s339, 4
        %s343 = sadd.s32 %s341, %s342
        %s344 = smul.addr %s343, 2
        %s345 = scalar_lea.vmem %s2, %s344
        %s346 = sadd.s32 %s23, 2
      $region48: #{binary_resnet_bisrnet_down.26} parent=35 // pred_fallthru
        _
      // Predicated region
      $region49: #{binary_resnet_bisrnet_down.26} parent=35 // pred_check
        %p347 = pneg %p200
      $region50: #{binary_resnet_bisrnet_down.26} parent=35 // pred_check_branch
        %349 = sbr.rel (%p347) target = $region52
      $region51: #{binary_resnet_bisrnet_down.26} parent=35 // pred_region
        %p350 = scmp.lt.s32.totalorder %s22, 1
        %s351 = scalar_select %p350, %s22, 1
        %p352 = scmp.lt.s32.totalorder %s23, 1
        %s353 = scalar_select %p352, %s23, 1
        %s354 = smul.addr %s351, 2
        %s355 = sadd.s32 %s353, %s354
        %s356 = scalar_lea.vmem %s6, %s355
      $region52: #{binary_resnet_bisrnet_down.26} parent=35 // pred_fallthru
        _
    $region36: #{binary_resnet_bisrnet_down.26} parent=5 // pred_fallthru
      _
    %p357 = scmp.le.s32.totalorder 1, %s15
    %p358 = scmp.lt.s32.totalorder %s15, 5
    %p359 = pnand %p357, %p358
    %p360 = pneg %p359
    // Predicated region
    $region53: #{binary_resnet_bisrnet_down.26} parent=5 // pred_check
      _
    $region54: #{binary_resnet_bisrnet_down.26} parent=5 // pred_check_branch
      %362 = sbr.rel (%p359) target = $region56
    $region55: #{binary_resnet_bisrnet_down.26} parent=5 // pred_region
      %s363 = ssub.s32 %s15, 1
      %p364 = scmp.lt.s32.totalorder %s24, 1
      %s365 = scalar_select %p364, %s24, 1
      %p366 = scmp.lt.s32.totalorder %s25, 3
      %s367 = scalar_select %p366, %s25, 3
      %s368 = smul.addr %s365, 4
      %s369 = sadd.s32 %s367, %s368
      %s370 = smul.addr %s369, 2
      %s371 = scalar_lea.vmem %s0, %s370
      %p372 = pneg %p55
      %p373 = pneg %p52
      %s374 = sadd.s32 %s25, 1
      %p375 = scmp.lt.s32.totalorder %s24, 1
      %s376 = scalar_select %p375, %s24, 1
      %p377 = scmp.lt.s32.totalorder %s374, 3
      %s378 = scalar_select %p377, %s374, 3
      %s379 = smul.addr %s376, 4
      %s380 = sadd.s32 %s378, %s379
      %s381 = smul.addr %s380, 2
      %s382 = scalar_lea.vmem %s1, %s381
      %p383 = pneg %p85
      %p384 = pneg %p82
      %s385 = sadd.s32 %s25, 2
      %p386 = scmp.lt.s32.totalorder %s24, 1
      %s387 = scalar_select %p386, %s24, 1
      %p388 = scmp.lt.s32.totalorder %s385, 3
      %s389 = scalar_select %p388, %s385, 3
      %s390 = smul.addr %s387, 4
      %s391 = sadd.s32 %s389, %s390
      %s392 = smul.addr %s391, 2
      %s393 = scalar_lea.vmem %s2, %s392
      %p394 = pneg %p115
      %p395 = pneg %p112
      %p396 = pneg %p136
      %p397 = pneg %p133
      %p398 = pneg %p157
      %p399 = pneg %p154
      %p400 = pneg %p178
      %p401 = pneg %p175
      %p402 = scmp.lt.s32.totalorder %s24, 1
      %s403 = scalar_select %p402, %s24, 1
      %p404 = scmp.lt.s32.totalorder %s25, 1
      %s405 = scalar_select %p404, %s25, 1
      %s406 = smul.addr %s403, 2
      %s407 = sadd.s32 %s405, %s406
      %s408 = scalar_lea.vmem %s6, %s407
      %p409 = pneg %p206
      %p410 = pneg %p203
      %p411 = pneg %p227
      %p412 = pneg %p224
      %p413 = pneg %p248
      %p414 = pneg %p245
      %p415 = pneg %p276
      %p416 = pneg %p273
      %p417 = scmp.lt.s32.totalorder %s24, 1
      %s418 = scalar_select %p417, %s24, 1
      %p419 = scmp.lt.s32.totalorder %s25, 1
      %s420 = scalar_select %p419, %s25, 1
      %s421 = smul.addr %s418, 2
      %s422 = sadd.s32 %s420, %s421
      %s423 = scalar_lea.vmem %s9, %s422
      %p424 = scmp.lt.s32.totalorder %s24, 1
      %s425 = scalar_select %p424, %s24, 1
      %p426 = scmp.lt.s32.totalorder %s25, 3
      %s427 = scalar_select %p426, %s25, 3
      %s428 = smul.addr %s425, 4
      %s429 = sadd.s32 %s427, %s428
      %s430 = smul.addr %s429, 2
      %s431 = scalar_lea.vmem %s0, %s430
      %s432 = sadd.s32 %s25, 1
      %p433 = scmp.lt.s32.totalorder %s24, 1
      %s434 = scalar_select %p433, %s24, 1
      %p435 = scmp.lt.s32.totalorder %s432, 3
      %s436 = scalar_select %p435, %s432, 3
      %s437 = smul.addr %s434, 4
      %s438 = sadd.s32 %s436, %s437
      %s439 = smul.addr %s438, 2
      %s440 = scalar_lea.vmem %s1, %s439
      %s441 = sadd.s32 %s25, 1
      %s442 = sadd.s32 %s25, 2
      %p443 = scmp.lt.s32.totalorder %s24, 1
      %s444 = scalar_select %p443, %s24, 1
      %p445 = scmp.lt.s32.totalorder %s442, 3
      %s446 = scalar_select %p445, %s442, 3
      %s447 = smul.addr %s444, 4
      %s448 = sadd.s32 %s446, %s447
      %s449 = smul.addr %s448, 2
      %s450 = scalar_lea.vmem %s2, %s449
      %s451 = sadd.s32 %s25, 2
      %p452 = scmp.lt.s32.totalorder %s24, 1
      %s453 = scalar_select %p452, %s24, 1
      %p454 = scmp.lt.s32.totalorder %s25, 1
      %s455 = scalar_select %p454, %s25, 1
      %s456 = smul.addr %s453, 2
      %s457 = sadd.s32 %s455, %s456
      %s458 = scalar_lea.vmem %s6, %s457
      %p459 = scmp.lt.s32.totalorder %s24, 1
      %s460 = scalar_select %p459, %s24, 1
      %p461 = scmp.lt.s32.totalorder %s25, 1
      %s462 = scalar_select %p461, %s25, 1
      %s463 = smul.addr %s460, 2
      %s464 = sadd.s32 %s462, %s463
      %s465 = scalar_lea.vmem %s9, %s464
      %v466 = vld [vmem:[%s431] sm:$0x3]
      %v467 = vld [vmem:[%s3] sm:$0xf]
      %v468 = vld [vmem:[%s3 + $0x4] sm:$0xf]
      %v469 = vld [vmem:[%s3 + $0x8] sm:$0xf]
      %v470 = vld [vmem:[%s3 + $0xc] sm:$0xf]
      %v471 = vld [vmem:[%s3 + $0x10] sm:$0xf]
      %v472 = vld [vmem:[%s3 + $0x14] sm:$0xf]
      %v473 = vld [vmem:[%s3 + $0x18] sm:$0xf]
      %v474 = vld [vmem:[%s3 + $0x1c] sm:$0xf]
      %v475 = vld [vmem:[%s3 + $0x20] sm:$0xf]
      %v476 = vld [vmem:[%s3 + $0x24] sm:$0xf]
      %v477 = vld [vmem:[%s3 + $0x28] sm:$0xf]
      %v478 = vld [vmem:[%s3 + $0x2c] sm:$0xf]
      %v479 = vld [vmem:[%s3 + $0x30] sm:$0xf]
      %v480 = vld [vmem:[%s3 + $0x34] sm:$0xf]
      %v481 = vld [vmem:[%s3 + $0x38] sm:$0xf]
      %v482 = vld [vmem:[%s3 + $0x3c] sm:$0xf]
      %s483 = scalar_lea.vmem %s3, 64
      %v484 = vld [vmem:[%s483] sm:$0xf]
      %v485 = vld [vmem:[%s483 + $0x4] sm:$0xf]
      %v486 = vld [vmem:[%s483 + $0x8] sm:$0xf]
      %v487 = vld [vmem:[%s483 + $0xc] sm:$0xf]
      %v488 = vld [vmem:[%s483 + $0x10] sm:$0xf]
      %v489 = vld [vmem:[%s483 + $0x14] sm:$0xf]
      %v490 = vld [vmem:[%s483 + $0x18] sm:$0xf]
      %v491 = vld [vmem:[%s483 + $0x1c] sm:$0xf]
      %v492 = vld [vmem:[%s483 + $0x20] sm:$0xf]
      %v493 = vld [vmem:[%s483 + $0x24] sm:$0xf]
      %v494 = vld [vmem:[%s483 + $0x28] sm:$0xf]
      %v495 = vld [vmem:[%s483 + $0x2c] sm:$0xf]
      %v496 = vld [vmem:[%s483 + $0x30] sm:$0xf]
      %v497 = vld [vmem:[%s483 + $0x34] sm:$0xf]
      %v498 = vld [vmem:[%s483 + $0x38] sm:$0xf]
      %v499 = vld [vmem:[%s483 + $0x3c] sm:$0xf]
      %501 = vst [vmem:[#allocation1] ss:$4 sm:$0xff] %v466
      %v502 = vld.sshfl [vmem:[#allocation1] sm:$0xff pattern:$0x73625140]
      %v503 = vshrl.u32 %v502, 16
      %v505 = vshll.u32 %v502, 16
      %v507 = vrot.slane %v505, 1
      %v508 = vor.u32 %v503, %v507
      %v526 = vunpack.c.l.b16 %v484
      %v527 = vunpack.c.l.b16 %v485
      %v528 = vunpack.c.l.b16 %v486
      %v529 = vunpack.c.l.b16 %v487
      %v530 = vunpack.c.l.b16 %v488
      %v531 = vunpack.c.l.b16 %v489
      %v532 = vunpack.c.l.b16 %v490
      %v533 = vunpack.c.l.b16 %v491
      %v534 = vunpack.c.l.b16 %v492
      %v535 = vunpack.c.l.b16 %v493
      %v536 = vunpack.c.l.b16 %v494
      %v537 = vunpack.c.l.b16 %v495
      %v538 = vunpack.c.l.b16 %v496
      %v539 = vunpack.c.l.b16 %v497
      %v540 = vunpack.c.l.b16 %v498
      %v541 = vunpack.c.l.b16 %v499
      %v542 = vpack.c.b16 %v527, %v526
      %v543 = vpack.c.b16 %v529, %v528
      %v544 = vpack.c.b16 %v531, %v530
      %v545 = vpack.c.b16 %v533, %v532
      %v546 = vpack.c.b16 %v535, %v534
      %v547 = vpack.c.b16 %v537, %v536
      %v548 = vpack.c.b16 %v539, %v538
      %v549 = vpack.c.b16 %v541, %v540
      %558 = vmatpush.bf16.msra.mxu0 %v549
      %559 = vmatpush.bf16.msra.mxu0 %v548
      %560 = vmatpush.bf16.msra.mxu0 %v547
      %561 = vmatpush.bf16.msra.mxu0 %v546
      %562 = vmatpush.bf16.msra.mxu0 %v545
      %563 = vmatpush.bf16.msra.mxu0 %v544
      %564 = vmatpush.bf16.msra.mxu0 %v543
      %565 = vmatpush.bf16.msra.mxu0 %v542
      %566 = vmatmul.bf16.gmra.mxu0 %v508
      %v567 = vpop.f32.mrf.mxu0
      %v568 = vadd.f32 0.0, %v567
      %v569 = vpop.f32.mrf.mxu0
      %570 = vdwg.mxu0
      %v587 = vunpack.c.l.b16 %v467
      %v588 = vunpack.c.l.b16 %v468
      %v589 = vunpack.c.l.b16 %v469
      %v590 = vunpack.c.l.b16 %v470
      %v591 = vunpack.c.l.b16 %v471
      %v592 = vunpack.c.l.b16 %v472
      %v593 = vunpack.c.l.b16 %v473
      %v594 = vunpack.c.l.b16 %v474
      %v595 = vunpack.c.l.b16 %v475
      %v596 = vunpack.c.l.b16 %v476
      %v597 = vunpack.c.l.b16 %v477
      %v598 = vunpack.c.l.b16 %v478
      %v599 = vunpack.c.l.b16 %v479
      %v600 = vunpack.c.l.b16 %v480
      %v601 = vunpack.c.l.b16 %v481
      %v602 = vunpack.c.l.b16 %v482
      %v603 = vpack.c.b16 %v588, %v587
      %v604 = vpack.c.b16 %v590, %v589
      %v605 = vpack.c.b16 %v592, %v591
      %v606 = vpack.c.b16 %v594, %v593
      %v607 = vpack.c.b16 %v596, %v595
      %v608 = vpack.c.b16 %v598, %v597
      %v609 = vpack.c.b16 %v600, %v599
      %v610 = vpack.c.b16 %v602, %v601
      %619 = vmatpush.bf16.msra.mxu0 %v610
      %620 = vmatpush.bf16.msra.mxu0 %v609
      %621 = vmatpush.bf16.msra.mxu0 %v608
      %622 = vmatpush.bf16.msra.mxu0 %v607
      %623 = vmatpush.bf16.msra.mxu0 %v606
      %624 = vmatpush.bf16.msra.mxu0 %v605
      %625 = vmatpush.bf16.msra.mxu0 %v604
      %626 = vmatpush.bf16.msra.mxu0 %v603
      %627 = vmatmul.bf16.gmra.mxu0 %v466
      %v628 = vpop.f32.mrf.mxu0
      %v629 = vadd.f32 %v568, %v628
      %v630 = vpop.f32.mrf.mxu0
      %631 = vdwg.mxu0
      %s632 = scalar_lea.vmem %s3, 128
      %v633 = vld [vmem:[%s632] sm:$0xf]
      %v634 = vld [vmem:[%s632 + $0x4] sm:$0xf]
      %v635 = vld [vmem:[%s632 + $0x8] sm:$0xf]
      %v636 = vld [vmem:[%s632 + $0xc] sm:$0xf]
      %v637 = vld [vmem:[%s632 + $0x10] sm:$0xf]
      %v638 = vld [vmem:[%s632 + $0x14] sm:$0xf]
      %v639 = vld [vmem:[%s632 + $0x18] sm:$0xf]
      %v640 = vld [vmem:[%s632 + $0x1c] sm:$0xf]
      %v641 = vld [vmem:[%s632 + $0x20] sm:$0xf]
      %v642 = vld [vmem:[%s632 + $0x24] sm:$0xf]
      %v643 = vld [vmem:[%s632 + $0x28] sm:$0xf]
      %v644 = vld [vmem:[%s632 + $0x2c] sm:$0xf]
      %v645 = vld [vmem:[%s632 + $0x30] sm:$0xf]
      %v646 = vld [vmem:[%s632 + $0x34] sm:$0xf]
      %v647 = vld [vmem:[%s632 + $0x38] sm:$0xf]
      %v648 = vld [vmem:[%s632 + $0x3c] sm:$0xf]
      %649 = vst [vmem:[#allocation1] ss:$4 sm:$0xff] %v466
      %v650 = vld.sshfl [vmem:[#allocation1] sm:$0xff pattern:$0x73625140]
      %v652 = vrot.slane %v650, 1
      %v670 = vunpack.c.l.b16 %v633
      %v671 = vunpack.c.l.b16 %v634
      %v672 = vunpack.c.l.b16 %v635
      %v673 = vunpack.c.l.b16 %v636
      %v674 = vunpack.c.l.b16 %v637
      %v675 = vunpack.c.l.b16 %v638
      %v676 = vunpack.c.l.b16 %v639
      %v677 = vunpack.c.l.b16 %v640
      %v678 = vunpack.c.l.b16 %v641
      %v679 = vunpack.c.l.b16 %v642
      %v680 = vunpack.c.l.b16 %v643
      %v681 = vunpack.c.l.b16 %v644
      %v682 = vunpack.c.l.b16 %v645
      %v683 = vunpack.c.l.b16 %v646
      %v684 = vunpack.c.l.b16 %v647
      %v685 = vunpack.c.l.b16 %v648
      %v686 = vpack.c.b16 %v671, %v670
      %v687 = vpack.c.b16 %v673, %v672
      %v688 = vpack.c.b16 %v675, %v674
      %v689 = vpack.c.b16 %v677, %v676
      %v690 = vpack.c.b16 %v679, %v678
      %v691 = vpack.c.b16 %v681, %v680
      %v692 = vpack.c.b16 %v683, %v682
      %v693 = vpack.c.b16 %v685, %v684
      %702 = vmatpush.bf16.msra.mxu0 %v693
      %703 = vmatpush.bf16.msra.mxu0 %v692
      %704 = vmatpush.bf16.msra.mxu0 %v691
      %705 = vmatpush.bf16.msra.mxu0 %v690
      %706 = vmatpush.bf16.msra.mxu0 %v689
      %707 = vmatpush.bf16.msra.mxu0 %v688
      %708 = vmatpush.bf16.msra.mxu0 %v687
      %709 = vmatpush.bf16.msra.mxu0 %v686
      %710 = vmatmul.bf16.gmra.mxu0 %v652
      %v711 = vpop.f32.mrf.mxu0
      %v712 = vadd.f32 0.0, %v711
      %v713 = vpop.f32.mrf.mxu0
      %714 = vdwg.mxu0
      %v715 = vadd.f32 %v629, %v712
      %v716 = vld [vmem:[%s440] sm:$0x3]
      %s717 = scalar_lea.vmem %s3, 192
      %v718 = vld [vmem:[%s717] sm:$0xf]
      %v719 = vld [vmem:[%s717 + $0x4] sm:$0xf]
      %v720 = vld [vmem:[%s717 + $0x8] sm:$0xf]
      %v721 = vld [vmem:[%s717 + $0xc] sm:$0xf]
      %v722 = vld [vmem:[%s717 + $0x10] sm:$0xf]
      %v723 = vld [vmem:[%s717 + $0x14] sm:$0xf]
      %v724 = vld [vmem:[%s717 + $0x18] sm:$0xf]
      %v725 = vld [vmem:[%s717 + $0x1c] sm:$0xf]
      %v726 = vld [vmem:[%s717 + $0x20] sm:$0xf]
      %v727 = vld [vmem:[%s717 + $0x24] sm:$0xf]
      %v728 = vld [vmem:[%s717 + $0x28] sm:$0xf]
      %v729 = vld [vmem:[%s717 + $0x2c] sm:$0xf]
      %v730 = vld [vmem:[%s717 + $0x30] sm:$0xf]
      %v731 = vld [vmem:[%s717 + $0x34] sm:$0xf]
      %v732 = vld [vmem:[%s717 + $0x38] sm:$0xf]
      %v733 = vld [vmem:[%s717 + $0x3c] sm:$0xf]
      %v750 = vunpack.c.l.b16 %v718
      %v751 = vunpack.c.l.b16 %v719
      %v752 = vunpack.c.l.b16 %v720
      %v753 = vunpack.c.l.b16 %v721
      %v754 = vunpack.c.l.b16 %v722
      %v755 = vunpack.c.l.b16 %v723
      %v756 = vunpack.c.l.b16 %v724
      %v757 = vunpack.c.l.b16 %v725
      %v758 = vunpack.c.l.b16 %v726
      %v759 = vunpack.c.l.b16 %v727
      %v760 = vunpack.c.l.b16 %v728
      %v761 = vunpack.c.l.b16 %v729
      %v762 = vunpack.c.l.b16 %v730
      %v763 = vunpack.c.l.b16 %v731
      %v764 = vunpack.c.l.b16 %v732
      %v765 = vunpack.c.l.b16 %v733
      %v766 = vpack.c.b16 %v751, %v750
      %v767 = vpack.c.b16 %v753, %v752
      %v768 = vpack.c.b16 %v755, %v754
      %v769 = vpack.c.b16 %v757, %v756
      %v770 = vpack.c.b16 %v759, %v758
      %v771 = vpack.c.b16 %v761, %v760
      %v772 = vpack.c.b16 %v763, %v762
      %v773 = vpack.c.b16 %v765, %v764
      %782 = vmatpush.bf16.msra.mxu0 %v773
      %783 = vmatpush.bf16.msra.mxu0 %v772
      %784 = vmatpush.bf16.msra.mxu0 %v771
      %785 = vmatpush.bf16.msra.mxu0 %v770
      %786 = vmatpush.bf16.msra.mxu0 %v769
      %787 = vmatpush.bf16.msra.mxu0 %v768
      %788 = vmatpush.bf16.msra.mxu0 %v767
      %789 = vmatpush.bf16.msra.mxu0 %v766
      %790 = vmatmul.bf16.gmra.mxu0 %v716
      %v791 = vpop.f32.mrf.mxu0
      %v792 = vadd.f32 0.0, %v791
      %v793 = vpop.f32.mrf.mxu0
      %794 = vdwg.mxu0
      %v795 = vadd.f32 %v715, %v792
      %s796 = scalar_lea.vmem %s3, 256
      %v797 = vld [vmem:[%s796] sm:$0xf]
      %v798 = vld [vmem:[%s796 + $0x4] sm:$0xf]
      %v799 = vld [vmem:[%s796 + $0x8] sm:$0xf]
      %v800 = vld [vmem:[%s796 + $0xc] sm:$0xf]
      %v801 = vld [vmem:[%s796 + $0x10] sm:$0xf]
      %v802 = vld [vmem:[%s796 + $0x14] sm:$0xf]
      %v803 = vld [vmem:[%s796 + $0x18] sm:$0xf]
      %v804 = vld [vmem:[%s796 + $0x1c] sm:$0xf]
      %v805 = vld [vmem:[%s796 + $0x20] sm:$0xf]
      %v806 = vld [vmem:[%s796 + $0x24] sm:$0xf]
      %v807 = vld [vmem:[%s796 + $0x28] sm:$0xf]
      %v808 = vld [vmem:[%s796 + $0x2c] sm:$0xf]
      %v809 = vld [vmem:[%s796 + $0x30] sm:$0xf]
      %v810 = vld [vmem:[%s796 + $0x34] sm:$0xf]
      %v811 = vld [vmem:[%s796 + $0x38] sm:$0xf]
      %v812 = vld [vmem:[%s796 + $0x3c] sm:$0xf]
      %814 = vst [vmem:[#allocation1] ss:$4 sm:$0xff] %v716
      %v815 = vld.sshfl [vmem:[#allocation1] sm:$0xff pattern:$0x73625140]
      %v816 = vshrl.u32 %v815, 16
      %v818 = vshll.u32 %v815, 16
      %v820 = vrot.slane %v818, 1
      %v821 = vor.u32 %v816, %v820
      %v839 = vunpack.c.l.b16 %v797
      %v840 = vunpack.c.l.b16 %v798
      %v841 = vunpack.c.l.b16 %v799
      %v842 = vunpack.c.l.b16 %v800
      %v843 = vunpack.c.l.b16 %v801
      %v844 = vunpack.c.l.b16 %v802
      %v845 = vunpack.c.l.b16 %v803
      %v846 = vunpack.c.l.b16 %v804
      %v847 = vunpack.c.l.b16 %v805
      %v848 = vunpack.c.l.b16 %v806
      %v849 = vunpack.c.l.b16 %v807
      %v850 = vunpack.c.l.b16 %v808
      %v851 = vunpack.c.l.b16 %v809
      %v852 = vunpack.c.l.b16 %v810
      %v853 = vunpack.c.l.b16 %v811
      %v854 = vunpack.c.l.b16 %v812
      %v855 = vpack.c.b16 %v840, %v839
      %v856 = vpack.c.b16 %v842, %v841
      %v857 = vpack.c.b16 %v844, %v843
      %v858 = vpack.c.b16 %v846, %v845
      %v859 = vpack.c.b16 %v848, %v847
      %v860 = vpack.c.b16 %v850, %v849
      %v861 = vpack.c.b16 %v852, %v851
      %v862 = vpack.c.b16 %v854, %v853
      %871 = vmatpush.bf16.msra.mxu0 %v862
      %872 = vmatpush.bf16.msra.mxu0 %v861
      %873 = vmatpush.bf16.msra.mxu0 %v860
      %874 = vmatpush.bf16.msra.mxu0 %v859
      %875 = vmatpush.bf16.msra.mxu0 %v858
      %876 = vmatpush.bf16.msra.mxu0 %v857
      %877 = vmatpush.bf16.msra.mxu0 %v856
      %878 = vmatpush.bf16.msra.mxu0 %v855
      %879 = vmatmul.bf16.gmra.mxu0 %v821
      %v880 = vpop.f32.mrf.mxu0
      %v881 = vadd.f32 0.0, %v880
      %v882 = vpop.f32.mrf.mxu0
      %883 = vdwg.mxu0
      %v884 = vadd.f32 %v795, %v881
      %s885 = scalar_lea.vmem %s3, 320
      %v886 = vld [vmem:[%s885] sm:$0xf]
      %v887 = vld [vmem:[%s885 + $0x4] sm:$0xf]
      %v888 = vld [vmem:[%s885 + $0x8] sm:$0xf]
      %v889 = vld [vmem:[%s885 + $0xc] sm:$0xf]
      %v890 = vld [vmem:[%s885 + $0x10] sm:$0xf]
      %v891 = vld [vmem:[%s885 + $0x14] sm:$0xf]
      %v892 = vld [vmem:[%s885 + $0x18] sm:$0xf]
      %v893 = vld [vmem:[%s885 + $0x1c] sm:$0xf]
      %v894 = vld [vmem:[%s885 + $0x20] sm:$0xf]
      %v895 = vld [vmem:[%s885 + $0x24] sm:$0xf]
      %v896 = vld [vmem:[%s885 + $0x28] sm:$0xf]
      %v897 = vld [vmem:[%s885 + $0x2c] sm:$0xf]
      %v898 = vld [vmem:[%s885 + $0x30] sm:$0xf]
      %v899 = vld [vmem:[%s885 + $0x34] sm:$0xf]
      %v900 = vld [vmem:[%s885 + $0x38] sm:$0xf]
      %v901 = vld [vmem:[%s885 + $0x3c] sm:$0xf]
      %902 = vst [vmem:[#allocation1] ss:$4 sm:$0xff] %v716
      %v903 = vld.sshfl [vmem:[#allocation1] sm:$0xff pattern:$0x73625140]
      %v905 = vrot.slane %v903, 1
      %v923 = vunpack.c.l.b16 %v886
      %v924 = vunpack.c.l.b16 %v887
      %v925 = vunpack.c.l.b16 %v888
      %v926 = vunpack.c.l.b16 %v889
      %v927 = vunpack.c.l.b16 %v890
      %v928 = vunpack.c.l.b16 %v891
      %v929 = vunpack.c.l.b16 %v892
      %v930 = vunpack.c.l.b16 %v893
      %v931 = vunpack.c.l.b16 %v894
      %v932 = vunpack.c.l.b16 %v895
      %v933 = vunpack.c.l.b16 %v896
      %v934 = vunpack.c.l.b16 %v897
      %v935 = vunpack.c.l.b16 %v898
      %v936 = vunpack.c.l.b16 %v899
      %v937 = vunpack.c.l.b16 %v900
      %v938 = vunpack.c.l.b16 %v901
      %v939 = vpack.c.b16 %v924, %v923
      %v940 = vpack.c.b16 %v926, %v925
      %v941 = vpack.c.b16 %v928, %v927
      %v942 = vpack.c.b16 %v930, %v929
      %v943 = vpack.c.b16 %v932, %v931
      %v944 = vpack.c.b16 %v934, %v933
      %v945 = vpack.c.b16 %v936, %v935
      %v946 = vpack.c.b16 %v938, %v937
      %955 = vmatpush.bf16.msra.mxu0 %v946
      %956 = vmatpush.bf16.msra.mxu0 %v945
      %957 = vmatpush.bf16.msra.mxu0 %v944
      %958 = vmatpush.bf16.msra.mxu0 %v943
      %959 = vmatpush.bf16.msra.mxu0 %v942
      %960 = vmatpush.bf16.msra.mxu0 %v941
      %961 = vmatpush.bf16.msra.mxu0 %v940
      %962 = vmatpush.bf16.msra.mxu0 %v939
      %963 = vmatmul.bf16.gmra.mxu0 %v905
      %v964 = vpop.f32.mrf.mxu0
      %v965 = vadd.f32 0.0, %v964
      %v966 = vpop.f32.mrf.mxu0
      %967 = vdwg.mxu0
      %v968 = vadd.f32 %v884, %v965
      %v969 = vld [vmem:[%s450] sm:$0x3]
      %s970 = scalar_lea.vmem %s3, 384
      %v971 = vld [vmem:[%s970] sm:$0xf]
      %v972 = vld [vmem:[%s970 + $0x4] sm:$0xf]
      %v973 = vld [vmem:[%s970 + $0x8] sm:$0xf]
      %v974 = vld [vmem:[%s970 + $0xc] sm:$0xf]
      %v975 = vld [vmem:[%s970 + $0x10] sm:$0xf]
      %v976 = vld [vmem:[%s970 + $0x14] sm:$0xf]
      %v977 = vld [vmem:[%s970 + $0x18] sm:$0xf]
      %v978 = vld [vmem:[%s970 + $0x1c] sm:$0xf]
      %v979 = vld [vmem:[%s970 + $0x20] sm:$0xf]
      %v980 = vld [vmem:[%s970 + $0x24] sm:$0xf]
      %v981 = vld [vmem:[%s970 + $0x28] sm:$0xf]
      %v982 = vld [vmem:[%s970 + $0x2c] sm:$0xf]
      %v983 = vld [vmem:[%s970 + $0x30] sm:$0xf]
      %v984 = vld [vmem:[%s970 + $0x34] sm:$0xf]
      %v985 = vld [vmem:[%s970 + $0x38] sm:$0xf]
      %v986 = vld [vmem:[%s970 + $0x3c] sm:$0xf]
      %v1003 = vunpack.c.l.b16 %v971
      %v1004 = vunpack.c.l.b16 %v972
      %v1005 = vunpack.c.l.b16 %v973
      %v1006 = vunpack.c.l.b16 %v974
      %v1007 = vunpack.c.l.b16 %v975
      %v1008 = vunpack.c.l.b16 %v976
      %v1009 = vunpack.c.l.b16 %v977
      %v1010 = vunpack.c.l.b16 %v978
      %v1011 = vunpack.c.l.b16 %v979
      %v1012 = vunpack.c.l.b16 %v980
      %v1013 = vunpack.c.l.b16 %v981
      %v1014 = vunpack.c.l.b16 %v982
      %v1015 = vunpack.c.l.b16 %v983
      %v1016 = vunpack.c.l.b16 %v984
      %v1017 = vunpack.c.l.b16 %v985
      %v1018 = vunpack.c.l.b16 %v986
      %v1019 = vpack.c.b16 %v1004, %v1003
      %v1020 = vpack.c.b16 %v1006, %v1005
      %v1021 = vpack.c.b16 %v1008, %v1007
      %v1022 = vpack.c.b16 %v1010, %v1009
      %v1023 = vpack.c.b16 %v1012, %v1011
      %v1024 = vpack.c.b16 %v1014, %v1013
      %v1025 = vpack.c.b16 %v1016, %v1015
      %v1026 = vpack.c.b16 %v1018, %v1017
      %1035 = vmatpush.bf16.msra.mxu0 %v1026
      %1036 = vmatpush.bf16.msra.mxu0 %v1025
      %1037 = vmatpush.bf16.msra.mxu0 %v1024
      %1038 = vmatpush.bf16.msra.mxu0 %v1023
      %1039 = vmatpush.bf16.msra.mxu0 %v1022
      %1040 = vmatpush.bf16.msra.mxu0 %v1021
      %1041 = vmatpush.bf16.msra.mxu0 %v1020
      %1042 = vmatpush.bf16.msra.mxu0 %v1019
      %1043 = vmatmul.bf16.gmra.mxu0 %v969
      %v1044 = vpop.f32.mrf.mxu0
      %v1045 = vadd.f32 0.0, %v1044
      %v1046 = vpop.f32.mrf.mxu0
      %1047 = vdwg.mxu0
      %v1048 = vadd.f32 %v968, %v1045
      %s1049 = scalar_lea.vmem %s3, 448
      %v1050 = vld [vmem:[%s1049] sm:$0xf]
      %v1051 = vld [vmem:[%s1049 + $0x4] sm:$0xf]
      %v1052 = vld [vmem:[%s1049 + $0x8] sm:$0xf]
      %v1053 = vld [vmem:[%s1049 + $0xc] sm:$0xf]
      %v1054 = vld [vmem:[%s1049 + $0x10] sm:$0xf]
      %v1055 = vld [vmem:[%s1049 + $0x14] sm:$0xf]
      %v1056 = vld [vmem:[%s1049 + $0x18] sm:$0xf]
      %v1057 = vld [vmem:[%s1049 + $0x1c] sm:$0xf]
      %v1058 = vld [vmem:[%s1049 + $0x20] sm:$0xf]
      %v1059 = vld [vmem:[%s1049 + $0x24] sm:$0xf]
      %v1060 = vld [vmem:[%s1049 + $0x28] sm:$0xf]
      %v1061 = vld [vmem:[%s1049 + $0x2c] sm:$0xf]
      %v1062 = vld [vmem:[%s1049 + $0x30] sm:$0xf]
      %v1063 = vld [vmem:[%s1049 + $0x34] sm:$0xf]
      %v1064 = vld [vmem:[%s1049 + $0x38] sm:$0xf]
      %v1065 = vld [vmem:[%s1049 + $0x3c] sm:$0xf]
      %1067 = vst [vmem:[#allocation1] ss:$4 sm:$0xff] %v969
      %v1068 = vld.sshfl [vmem:[#allocation1] sm:$0xff pattern:$0x73625140]
      %v1069 = vshrl.u32 %v1068, 16
      %v1071 = vshll.u32 %v1068, 16
      %v1073 = vrot.slane %v1071, 1
      %v1074 = vor.u32 %v1069, %v1073
      %v1092 = vunpack.c.l.b16 %v1050
      %v1093 = vunpack.c.l.b16 %v1051
      %v1094 = vunpack.c.l.b16 %v1052
      %v1095 = vunpack.c.l.b16 %v1053
      %v1096 = vunpack.c.l.b16 %v1054
      %v1097 = vunpack.c.l.b16 %v1055
      %v1098 = vunpack.c.l.b16 %v1056
      %v1099 = vunpack.c.l.b16 %v1057
      %v1100 = vunpack.c.l.b16 %v1058
      %v1101 = vunpack.c.l.b16 %v1059
      %v1102 = vunpack.c.l.b16 %v1060
      %v1103 = vunpack.c.l.b16 %v1061
      %v1104 = vunpack.c.l.b16 %v1062
      %v1105 = vunpack.c.l.b16 %v1063
      %v1106 = vunpack.c.l.b16 %v1064
      %v1107 = vunpack.c.l.b16 %v1065
      %v1108 = vpack.c.b16 %v1093, %v1092
      %v1109 = vpack.c.b16 %v1095, %v1094
      %v1110 = vpack.c.b16 %v1097, %v1096
      %v1111 = vpack.c.b16 %v1099, %v1098
      %v1112 = vpack.c.b16 %v1101, %v1100
      %v1113 = vpack.c.b16 %v1103, %v1102
      %v1114 = vpack.c.b16 %v1105, %v1104
      %v1115 = vpack.c.b16 %v1107, %v1106
      %1124 = vmatpush.bf16.msra.mxu0 %v1115
      %1125 = vmatpush.bf16.msra.mxu0 %v1114
      %1126 = vmatpush.bf16.msra.mxu0 %v1113
      %1127 = vmatpush.bf16.msra.mxu0 %v1112
      %1128 = vmatpush.bf16.msra.mxu0 %v1111
      %1129 = vmatpush.bf16.msra.mxu0 %v1110
      %1130 = vmatpush.bf16.msra.mxu0 %v1109
      %1131 = vmatpush.bf16.msra.mxu0 %v1108
      %1132 = vmatmul.bf16.gmra.mxu0 %v1074
      %v1133 = vpop.f32.mrf.mxu0
      %v1134 = vadd.f32 0.0, %v1133
      %v1135 = vpop.f32.mrf.mxu0
      %1136 = vdwg.mxu0
      %v1137 = vadd.f32 %v1048, %v1134
      %s1138 = scalar_lea.vmem %s3, 512
      %v1139 = vld [vmem:[%s1138] sm:$0xf]
      %v1140 = vld [vmem:[%s1138 + $0x4] sm:$0xf]
      %v1141 = vld [vmem:[%s1138 + $0x8] sm:$0xf]
      %v1142 = vld [vmem:[%s1138 + $0xc] sm:$0xf]
      %v1143 = vld [vmem:[%s1138 + $0x10] sm:$0xf]
      %v1144 = vld [vmem:[%s1138 + $0x14] sm:$0xf]
      %v1145 = vld [vmem:[%s1138 + $0x18] sm:$0xf]
      %v1146 = vld [vmem:[%s1138 + $0x1c] sm:$0xf]
      %v1147 = vld [vmem:[%s1138 + $0x20] sm:$0xf]
      %v1148 = vld [vmem:[%s1138 + $0x24] sm:$0xf]
      %v1149 = vld [vmem:[%s1138 + $0x28] sm:$0xf]
      %v1150 = vld [vmem:[%s1138 + $0x2c] sm:$0xf]
      %v1151 = vld [vmem:[%s1138 + $0x30] sm:$0xf]
      %v1152 = vld [vmem:[%s1138 + $0x34] sm:$0xf]
      %v1153 = vld [vmem:[%s1138 + $0x38] sm:$0xf]
      %v1154 = vld [vmem:[%s1138 + $0x3c] sm:$0xf]
      %1155 = vst [vmem:[#allocation1] ss:$4 sm:$0xff] %v969
      %v1156 = vld.sshfl [vmem:[#allocation1] sm:$0xff pattern:$0x73625140]
      %v1158 = vrot.slane %v1156, 1
      %v1176 = vunpack.c.l.b16 %v1139
      %v1177 = vunpack.c.l.b16 %v1140
      %v1178 = vunpack.c.l.b16 %v1141
      %v1179 = vunpack.c.l.b16 %v1142
      %v1180 = vunpack.c.l.b16 %v1143
      %v1181 = vunpack.c.l.b16 %v1144
      %v1182 = vunpack.c.l.b16 %v1145
      %v1183 = vunpack.c.l.b16 %v1146
      %v1184 = vunpack.c.l.b16 %v1147
      %v1185 = vunpack.c.l.b16 %v1148
      %v1186 = vunpack.c.l.b16 %v1149
      %v1187 = vunpack.c.l.b16 %v1150
      %v1188 = vunpack.c.l.b16 %v1151
      %v1189 = vunpack.c.l.b16 %v1152
      %v1190 = vunpack.c.l.b16 %v1153
      %v1191 = vunpack.c.l.b16 %v1154
      %v1192 = vpack.c.b16 %v1177, %v1176
      %v1193 = vpack.c.b16 %v1179, %v1178
      %v1194 = vpack.c.b16 %v1181, %v1180
      %v1195 = vpack.c.b16 %v1183, %v1182
      %v1196 = vpack.c.b16 %v1185, %v1184
      %v1197 = vpack.c.b16 %v1187, %v1186
      %v1198 = vpack.c.b16 %v1189, %v1188
      %v1199 = vpack.c.b16 %v1191, %v1190
      %1208 = vmatpush.bf16.msra.mxu0 %v1199
      %1209 = vmatpush.bf16.msra.mxu0 %v1198
      %1210 = vmatpush.bf16.msra.mxu0 %v1197
      %1211 = vmatpush.bf16.msra.mxu0 %v1196
      %1212 = vmatpush.bf16.msra.mxu0 %v1195
      %1213 = vmatpush.bf16.msra.mxu0 %v1194
      %1214 = vmatpush.bf16.msra.mxu0 %v1193
      %1215 = vmatpush.bf16.msra.mxu0 %v1192
      %1216 = vmatmul.bf16.gmra.mxu0 %v1158
      %v1217 = vpop.f32.mrf.mxu0
      %v1218 = vadd.f32 0.0, %v1217
      %v1219 = vpop.f32.mrf.mxu0
      %1220 = vdwg.mxu0
      %v1221 = vadd.f32 %v1137, %v1218
      %v1222 = vld [vmem:[%s4] sm:$0x1]
      %v1224 = vperm.slane %v1222, 0
      %v1226 = vmul.f32 %v1221, %v1224
      %v1227 = vld [vmem:[%s5] sm:$0x1]
      %v1229 = vperm.slane %v1227, 0
      %v1231 = vadd.f32 %v1226, %v1229
      %v1232 = vld [vmem:[%s458] sm:$0x1]
      %v1233 = vunpack.c.l.bf16 %v1232
      %v1234 = vadd.f32 %v1231, %v1233
      %vm1235 = vcmp.gt.f32.partialorder %v1234, 0.0
      %v1236 = vld [vmem:[%s7] sm:$0x1]
      %v1238 = vperm.slane %v1236, 0
      %v1240 = vmul.f32 %v1238, %v1234
      %v1241 = vsel %vm1235, %v1234, %v1240
      %v1242 = vld [vmem:[%s8] sm:$0x1]
      %v1244 = vperm.slane %v1242, 0
      %v1246 = vadd.f32 %v1241, %v1244
      %v1247 = vpack.c.bf16 %v1246, %v1246
      %1248 = vst [vmem:[%s465] sm:$0x1] %v1247
      %p1249 = scmp.lt.s32.totalorder %s24, 1
      %s1250 = scalar_select %p1249, %s24, 1
      %p1251 = scmp.lt.s32.totalorder %s25, 1
      %s1252 = scalar_select %p1251, %s25, 1
      %s1253 = smul.addr %s1250, 2
      %s1254 = sadd.s32 %s1252, %s1253
      %s1255 = scalar_lea.vmem %s9, %s1254
      // Predicated region
      $region57: #{binary_resnet_bisrnet_down.26} parent=55 // pred_check
        %p1256 = pneg %p273
      $region58: #{binary_resnet_bisrnet_down.26} parent=55 // pred_check_branch
        %1258 = sbr.rel (%p1256) target = $region60
      $region59: #{binary_resnet_bisrnet_down.26} parent=55 // pred_region
        _
      $region60: #{binary_resnet_bisrnet_down.26} parent=55 // pred_fallthru
        _
    $region56: #{binary_resnet_bisrnet_down.26} parent=5 // pred_fallthru
      _
    %p1259 = scmp.le.s32.totalorder 2, %s15
    // Predicated region
    $region61: #{binary_resnet_bisrnet_down.26} parent=5 // pred_check
      %p1260 = pneg %p1259
    $region62: #{binary_resnet_bisrnet_down.26} parent=5 // pred_check_branch
      %1262 = sbr.rel (%p1260) target = $region64
    $region63: #{binary_resnet_bisrnet_down.26} parent=5 // pred_region
      %s1263 = ssub.s32 %s15, 2
      // Predicated region
      $region65: #{binary_resnet_bisrnet_down.26} parent=63 // pred_check
        %p1264 = pneg %p279
      $region66: #{binary_resnet_bisrnet_down.26} parent=63 // pred_check_branch
        %1266 = sbr.rel (%p1264) target = $region68
      $region67: #{binary_resnet_bisrnet_down.26} parent=63 // pred_region
        %p1267 = scmp.lt.s32.totalorder %s26, 1
        %s1268 = scalar_select %p1267, %s26, 1
        %p1269 = scmp.lt.s32.totalorder %s27, 1
        %s1270 = scalar_select %p1269, %s27, 1
        %s1271 = smul.addr %s1268, 2
        %s1272 = sadd.s32 %s1270, %s1271
        %s1273 = scalar_lea.vmem %s9, %s1272
      $region68: #{binary_resnet_bisrnet_down.26} parent=63 // pred_fallthru
        _
    $region64: #{binary_resnet_bisrnet_down.26} parent=5 // pred_fallthru
      _
  $region6: #{binary_resnet_bisrnet_down.26} parent=0 // loop_footer
    %s19 = sadd.s32 1, %s15
  $region7: #{binary_resnet_bisrnet_down.26} parent=0 // loop_footer_branch
    %14 = sbr.rel target = $region3
  $region8: #{binary_resnet_bisrnet_down.26} parent=0 // loop_exit
    _

// kernel: binary_resnet_bisrnet_down.25
$region0: #{binary_resnet_bisrnet_down.25}
  #allocation0 [shape = 'u32[]', space=smem, size = 0x4, offset = 0x4, fixed_abs, tag = 'smem constant byte address 0x4 - core index']
  #allocation1 [shape = 'u32[72,128]{1,0:T(1,128)}', space=vmem, size = 0x9000, scoped, tag = 'internal scratch']
  %s0 = inlined_call_operand.vmem [shape: bf16[2,4,4,128], index: 0, kind: input, shape index: {}, may-alias: {0,1,2}]
  %s1 = inlined_call_operand.vmem [shape: bf16[2,4,4,128], index: 1, kind: input, shape index: {}, may-alias: {0,1,2}]
  %s2 = inlined_call_operand.vmem [shape: bf16[2,4,4,128], index: 2, kind: input, shape index: {}, may-alias: {0,1,2}]
  %s3 = inlined_call_operand.vmem [shape: bf16[9,128,128], index: 3, kind: input, shape index: {}]
  %s4 = inlined_call_operand.vmem [shape: f32[1,128], index: 4, kind: input, shape index: {}]
  %s5 = inlined_call_operand.vmem [shape: f32[1,128], index: 5, kind: input, shape index: {}]
  %s6 = inlined_call_operand.vmem [shape: bf16[2,2,2,128], index: 6, kind: output, shape index: {}]
  %s7 = sld [smem:[#allocation0]]
  $region57: #{binary_resnet_bisrnet_down.25} parent=0
    _
  %s9 = ssub.s32 1, %s7
  %s10 = scalar_select 0, %s9, %s7
  loop: start=0, step=1, limit=6
  $region2: #{binary_resnet_bisrnet_down.25} parent=0 // loop_pre_header
    _
  $region3: #{binary_resnet_bisrnet_down.25} parent=0 // loop_header
    %s12 = sphi 0, %s16
    %p13 = scmp.ge.s32.totalorder %s12, 6
    %s19 = sphi 0, %s31
    %s20 = sphi 0, %s27
    %s21 = sphi 0, %s19
    %s22 = sphi 0, %s20
    %s23 = sphi 0, %s21
    %s24 = sphi 0, %s22
    %s36 = sphi 0, %s38
    %s39 = sphi 0, %s36
    %s40 = sphi 0, %s39
    %s56 = sphi 0, %s40
    %s66 = sphi 0, %s68
    %s69 = sphi 0, %s66
    %s70 = sphi 0, %s69
    %s86 = sphi 0, %s70
    %s96 = sphi 0, %s98
    %s99 = sphi 0, %s96
    %s100 = sphi 0, %s99
    %s116 = sphi 0, %s100
    %s120 = sphi 0, %s120
    %s122 = sphi 0, %s120
    %s123 = sphi 0, %s122
    %s137 = sphi 0, %s123
    %s141 = sphi 0, %s141
    %s143 = sphi 0, %s141
    %s144 = sphi 0, %s143
    %s158 = sphi 0, %s144
    %s162 = sphi 0, %s162
    %s164 = sphi 0, %s162
    %s165 = sphi 0, %s164
    %s179 = sphi 0, %s165
    %s187 = sphi 0, %s189
    %s190 = sphi 0, %s187
    %s191 = sphi 0, %s190
    %s207 = sphi 0, %s191
  $region4: #{binary_resnet_bisrnet_down.25} parent=0 // loop_header_branch
    %15 = sbr.rel (%p13) target = $region8
  $region5: #{binary_resnet_bisrnet_down.25} parent=0 // loop_body
    %s17 = ssub.s32 %s12, 1
    %s18 = ssub.s32 %s12, 2
    %s25 = sadd.s32 1, %s20
    %p26 = scmp.ge.s32.totalorder %s25, 2
    %s27 = scalar_select %p26, 0, %s25
    %s28 = sadd.s32 1, %s19
    %s29 = scalar_select %p26, %s28, %s19
    %p30 = scmp.ge.s32.totalorder %s29, 2
    %s31 = scalar_select %p30, 0, %s29
    %s32 = ssub.s32 %s19, %s31
    %s33 = ssub.s32 %s20, %s27
    %s34 = sor.u32 %s32, %s33
    %p35 = scmp.eq.s32.totalorder %s34, 0
    %s37 = sadd.s32 %s36, 1
    %s38 = scalar_select %p35, %s36, %s37
    %p41 = pneg %p35
    %p42 = scmp.eq.s32.totalorder %s12, 3
    %p43 = por %p41, %p42
    %p44 = scmp.ne.s32.totalorder %s36, %s39
    %p45 = scmp.eq.s32.totalorder %s12, 0
    %p46 = por %p44, %p45
    %p47 = scmp.ne.s32.totalorder %s36, %s39
    %p48 = scmp.eq.s32.totalorder %s17, 3
    %p49 = por %p47, %p48
    %p50 = scmp.ne.s32.totalorder %s39, %s40
    %p51 = scmp.eq.s32.totalorder %s17, 0
    %p52 = por %p50, %p51
    %p53 = scmp.ne.s32.totalorder %s39, %s40
    %p54 = scmp.eq.s32.totalorder %s18, 3
    %p55 = por %p53, %p54
    %p57 = scmp.ne.s32.totalorder %s40, %s56
    %p58 = scmp.eq.s32.totalorder %s18, 0
    %p59 = por %p57, %p58
    %s60 = sadd.s32 %s20, 1
    %s61 = sadd.s32 %s27, 1
    %s62 = ssub.s32 %s19, %s31
    %s63 = ssub.s32 %s60, %s61
    %s64 = sor.u32 %s62, %s63
    %p65 = scmp.eq.s32.totalorder %s64, 0
    %s67 = sadd.s32 %s66, 1
    %s68 = scalar_select %p65, %s66, %s67
    %p71 = pneg %p65
    %p72 = scmp.eq.s32.totalorder %s12, 3
    %p73 = por %p71, %p72
    %p74 = scmp.ne.s32.totalorder %s66, %s69
    %p75 = scmp.eq.s32.totalorder %s12, 0
    %p76 = por %p74, %p75
    %p77 = scmp.ne.s32.totalorder %s66, %s69
    %p78 = scmp.eq.s32.totalorder %s17, 3
    %p79 = por %p77, %p78
    %p80 = scmp.ne.s32.totalorder %s69, %s70
    %p81 = scmp.eq.s32.totalorder %s17, 0
    %p82 = por %p80, %p81
    %p83 = scmp.ne.s32.totalorder %s69, %s70
    %p84 = scmp.eq.s32.totalorder %s18, 3
    %p85 = por %p83, %p84
    %p87 = scmp.ne.s32.totalorder %s70, %s86
    %p88 = scmp.eq.s32.totalorder %s18, 0
    %p89 = por %p87, %p88
    %s90 = sadd.s32 %s20, 2
    %s91 = sadd.s32 %s27, 2
    %s92 = ssub.s32 %s19, %s31
    %s93 = ssub.s32 %s90, %s91
    %s94 = sor.u32 %s92, %s93
    %p95 = scmp.eq.s32.totalorder %s94, 0
    %s97 = sadd.s32 %s96, 1
    %s98 = scalar_select %p95, %s96, %s97
    %p101 = pneg %p95
    %p102 = scmp.eq.s32.totalorder %s12, 3
    %p103 = por %p101, %p102
    %p104 = scmp.ne.s32.totalorder %s96, %s99
    %p105 = scmp.eq.s32.totalorder %s12, 0
    %p106 = por %p104, %p105
    %p107 = scmp.ne.s32.totalorder %s96, %s99
    %p108 = scmp.eq.s32.totalorder %s17, 3
    %p109 = por %p107, %p108
    %p110 = scmp.ne.s32.totalorder %s99, %s100
    %p111 = scmp.eq.s32.totalorder %s17, 0
    %p112 = por %p110, %p111
    %p113 = scmp.ne.s32.totalorder %s99, %s100
    %p114 = scmp.eq.s32.totalorder %s18, 3
    %p115 = por %p113, %p114
    %p117 = scmp.ne.s32.totalorder %s100, %s116
    %p118 = scmp.eq.s32.totalorder %s18, 0
    %p119 = por %p117, %p118
    %s121 = sadd.s32 %s120, 1
    %p124 = scmp.eq.s32.totalorder %s12, 3
    %p125 = scmp.ne.s32.totalorder %s120, %s122
    %p126 = scmp.eq.s32.totalorder %s12, 0
    %p127 = por %p125, %p126
    %p128 = scmp.ne.s32.totalorder %s120, %s122
    %p129 = scmp.eq.s32.totalorder %s17, 3
    %p130 = por %p128, %p129
    %p131 = scmp.ne.s32.totalorder %s122, %s123
    %p132 = scmp.eq.s32.totalorder %s17, 0
    %p133 = por %p131, %p132
    %p134 = scmp.ne.s32.totalorder %s122, %s123
    %p135 = scmp.eq.s32.totalorder %s18, 3
    %p136 = por %p134, %p135
    %p138 = scmp.ne.s32.totalorder %s123, %s137
    %p139 = scmp.eq.s32.totalorder %s18, 0
    %p140 = por %p138, %p139
    %s142 = sadd.s32 %s141, 1
    %p145 = scmp.eq.s32.totalorder %s12, 3
    %p146 = scmp.ne.s32.totalorder %s141, %s143
    %p147 = scmp.eq.s32.totalorder %s12, 0
    %p148 = por %p146, %p147
    %p149 = scmp.ne.s32.totalorder %s141, %s143
    %p150 = scmp.eq.s32.totalorder %s17, 3
    %p151 = por %p149, %p150
    %p152 = scmp.ne.s32.totalorder %s143, %s144
    %p153 = scmp.eq.s32.totalorder %s17, 0
    %p154 = por %p152, %p153
    %p155 = scmp.ne.s32.totalorder %s143, %s144
    %p156 = scmp.eq.s32.totalorder %s18, 3
    %p157 = por %p155, %p156
    %p159 = scmp.ne.s32.totalorder %s144, %s158
    %p160 = scmp.eq.s32.totalorder %s18, 0
    %p161 = por %p159, %p160
    %s163 = sadd.s32 %s162, 1
    %p166 = scmp.eq.s32.totalorder %s12, 3
    %p167 = scmp.ne.s32.totalorder %s162, %s164
    %p168 = scmp.eq.s32.totalorder %s12, 0
    %p169 = por %p167, %p168
    %p170 = scmp.ne.s32.totalorder %s162, %s164
    %p171 = scmp.eq.s32.totalorder %s17, 3
    %p172 = por %p170, %p171
    %p173 = scmp.ne.s32.totalorder %s164, %s165
    %p174 = scmp.eq.s32.totalorder %s17, 0
    %p175 = por %p173, %p174
    %p176 = scmp.ne.s32.totalorder %s164, %s165
    %p177 = scmp.eq.s32.totalorder %s18, 3
    %p178 = por %p176, %p177
    %p180 = scmp.ne.s32.totalorder %s165, %s179
    %p181 = scmp.eq.s32.totalorder %s18, 0
    %p182 = por %p180, %p181
    %s183 = ssub.s32 %s19, %s31
    %s184 = ssub.s32 %s20, %s27
    %s185 = sor.u32 %s183, %s184
    %p186 = scmp.eq.s32.totalorder %s185, 0
    %s188 = sadd.s32 %s187, 1
    %s189 = scalar_select %p186, %s187, %s188
    %p192 = pneg %p186
    %p193 = scmp.eq.s32.totalorder %s12, 3
    %p194 = por %p192, %p193
    %p195 = scmp.ne.s32.totalorder %s187, %s190
    %p196 = scmp.eq.s32.totalorder %s12, 0
    %p197 = por %p195, %p196
    %p198 = scmp.ne.s32.totalorder %s187, %s190
    %p199 = scmp.eq.s32.totalorder %s17, 3
    %p200 = por %p198, %p199
    %p201 = scmp.ne.s32.totalorder %s190, %s191
    %p202 = scmp.eq.s32.totalorder %s17, 0
    %p203 = por %p201, %p202
    %p204 = scmp.ne.s32.totalorder %s190, %s191
    %p205 = scmp.eq.s32.totalorder %s18, 3
    %p206 = por %p204, %p205
    %p208 = scmp.ne.s32.totalorder %s191, %s207
    %p209 = scmp.eq.s32.totalorder %s18, 0
    %p210 = por %p208, %p209
    %p211 = scmp.le.s32.totalorder 1, %s12
    %p212 = scmp.lt.s32.totalorder %s12, 5
    %p213 = pnand %p211, %p212
    %p214 = pneg %p213
    // Predicated region
    $region9: #{binary_resnet_bisrnet_down.25} parent=5 // pred_check
      _
    $region10: #{binary_resnet_bisrnet_down.25} parent=5 // pred_check_branch
      %216 = sbr.rel (%p213) target = $region12
    $region11: #{binary_resnet_bisrnet_down.25} parent=5 // pred_region
      %s217 = ssub.s32 %s12, 1
      // Predicated region
      $region13: #{binary_resnet_bisrnet_down.25} parent=11 // pred_check
        %p218 = pneg %p133
      $region14: #{binary_resnet_bisrnet_down.25} parent=11 // pred_check_branch
        %220 = sbr.rel (%p218) target = $region16
      $region15: #{binary_resnet_bisrnet_down.25} parent=11 // pred_region
        _
      $region16: #{binary_resnet_bisrnet_down.25} parent=11 // pred_fallthru
        _
      // Predicated region
      $region17: #{binary_resnet_bisrnet_down.25} parent=11 // pred_check
        %p221 = pneg %p154
      $region18: #{binary_resnet_bisrnet_down.25} parent=11 // pred_check_branch
        %223 = sbr.rel (%p221) target = $region20
      $region19: #{binary_resnet_bisrnet_down.25} parent=11 // pred_region
        _
      $region20: #{binary_resnet_bisrnet_down.25} parent=11 // pred_fallthru
        _
      // Predicated region
      $region21: #{binary_resnet_bisrnet_down.25} parent=11 // pred_check
        %p224 = pneg %p175
      $region22: #{binary_resnet_bisrnet_down.25} parent=11 // pred_check_branch
        %226 = sbr.rel (%p224) target = $region24
      $region23: #{binary_resnet_bisrnet_down.25} parent=11 // pred_region
        _
      $region24: #{binary_resnet_bisrnet_down.25} parent=11 // pred_fallthru
        _
    $region12: #{binary_resnet_bisrnet_down.25} parent=5 // pred_fallthru
      _
    %p227 = scmp.lt.s32.totalorder %s12, 4
    // Predicated region
    $region25: #{binary_resnet_bisrnet_down.25} parent=5 // pred_check
      %p228 = pneg %p227
    $region26: #{binary_resnet_bisrnet_down.25} parent=5 // pred_check_branch
      %230 = sbr.rel (%p228) target = $region28
    $region27: #{binary_resnet_bisrnet_down.25} parent=5 // pred_region
      // Predicated region
      $region29: #{binary_resnet_bisrnet_down.25} parent=27 // pred_check
        %p231 = pneg %p46
      $region30: #{binary_resnet_bisrnet_down.25} parent=27 // pred_check_branch
        %233 = sbr.rel (%p231) target = $region32
      $region31: #{binary_resnet_bisrnet_down.25} parent=27 // pred_region
        %p234 = scmp.lt.s32.totalorder %s19, 1
        %s235 = scalar_select %p234, %s19, 1
        %p236 = scmp.lt.s32.totalorder %s20, 3
        %s237 = scalar_select %p236, %s20, 3
        %s238 = smul.addr %s235, 4
        %s239 = sadd.s32 %s237, %s238
        %s240 = smul.addr %s239, 2
        %s241 = scalar_lea.vmem %s0, %s240
      $region32: #{binary_resnet_bisrnet_down.25} parent=27 // pred_fallthru
        _
      // Predicated region
      $region33: #{binary_resnet_bisrnet_down.25} parent=27 // pred_check
        %p242 = pneg %p76
      $region34: #{binary_resnet_bisrnet_down.25} parent=27 // pred_check_branch
        %244 = sbr.rel (%p242) target = $region36
      $region35: #{binary_resnet_bisrnet_down.25} parent=27 // pred_region
        %s245 = sadd.s32 %s20, 1
        %p246 = scmp.lt.s32.totalorder %s19, 1
        %s247 = scalar_select %p246, %s19, 1
        %p248 = scmp.lt.s32.totalorder %s245, 3
        %s249 = scalar_select %p248, %s245, 3
        %s250 = smul.addr %s247, 4
        %s251 = sadd.s32 %s249, %s250
        %s252 = smul.addr %s251, 2
        %s253 = scalar_lea.vmem %s1, %s252
        %s254 = sadd.s32 %s20, 1
      $region36: #{binary_resnet_bisrnet_down.25} parent=27 // pred_fallthru
        _
      // Predicated region
      $region37: #{binary_resnet_bisrnet_down.25} parent=27 // pred_check
        %p255 = pneg %p106
      $region38: #{binary_resnet_bisrnet_down.25} parent=27 // pred_check_branch
        %257 = sbr.rel (%p255) target = $region40
      $region39: #{binary_resnet_bisrnet_down.25} parent=27 // pred_region
        %s258 = sadd.s32 %s20, 2
        %p259 = scmp.lt.s32.totalorder %s19, 1
        %s260 = scalar_select %p259, %s19, 1
        %p261 = scmp.lt.s32.totalorder %s258, 3
        %s262 = scalar_select %p261, %s258, 3
        %s263 = smul.addr %s260, 4
        %s264 = sadd.s32 %s262, %s263
        %s265 = smul.addr %s264, 2
        %s266 = scalar_lea.vmem %s2, %s265
        %s267 = sadd.s32 %s20, 2
      $region40: #{binary_resnet_bisrnet_down.25} parent=27 // pred_fallthru
        _
    $region28: #{binary_resnet_bisrnet_down.25} parent=5 // pred_fallthru
      _
    %p268 = scmp.le.s32.totalorder 1, %s12
    %p269 = scmp.lt.s32.totalorder %s12, 5
    %p270 = pnand %p268, %p269
    %p271 = pneg %p270
    // Predicated region
    $region41: #{binary_resnet_bisrnet_down.25} parent=5 // pred_check
      _
    $region42: #{binary_resnet_bisrnet_down.25} parent=5 // pred_check_branch
      %273 = sbr.rel (%p270) target = $region44
    $region43: #{binary_resnet_bisrnet_down.25} parent=5 // pred_region
      %s274 = ssub.s32 %s12, 1
      %p275 = scmp.lt.s32.totalorder %s21, 1
      %s276 = scalar_select %p275, %s21, 1
      %p277 = scmp.lt.s32.totalorder %s22, 3
      %s278 = scalar_select %p277, %s22, 3
      %s279 = smul.addr %s276, 4
      %s280 = sadd.s32 %s278, %s279
      %s281 = smul.addr %s280, 2
      %s282 = scalar_lea.vmem %s0, %s281
      %p283 = pneg %p52
      %p284 = pneg %p49
      %s285 = sadd.s32 %s22, 1
      %p286 = scmp.lt.s32.totalorder %s21, 1
      %s287 = scalar_select %p286, %s21, 1
      %p288 = scmp.lt.s32.totalorder %s285, 3
      %s289 = scalar_select %p288, %s285, 3
      %s290 = smul.addr %s287, 4
      %s291 = sadd.s32 %s289, %s290
      %s292 = smul.addr %s291, 2
      %s293 = scalar_lea.vmem %s1, %s292
      %p294 = pneg %p82
      %p295 = pneg %p79
      %s296 = sadd.s32 %s22, 2
      %p297 = scmp.lt.s32.totalorder %s21, 1
      %s298 = scalar_select %p297, %s21, 1
      %p299 = scmp.lt.s32.totalorder %s296, 3
      %s300 = scalar_select %p299, %s296, 3
      %s301 = smul.addr %s298, 4
      %s302 = sadd.s32 %s300, %s301
      %s303 = smul.addr %s302, 2
      %s304 = scalar_lea.vmem %s2, %s303
      %p305 = pneg %p112
      %p306 = pneg %p109
      %p307 = pneg %p133
      %p308 = pneg %p130
      %p309 = pneg %p154
      %p310 = pneg %p151
      %p311 = pneg %p175
      %p312 = pneg %p172
      %p313 = pneg %p203
      %p314 = pneg %p200
      %p315 = scmp.lt.s32.totalorder %s21, 1
      %s316 = scalar_select %p315, %s21, 1
      %p317 = scmp.lt.s32.totalorder %s22, 1
      %s318 = scalar_select %p317, %s22, 1
      %s319 = smul.addr %s316, 2
      %s320 = sadd.s32 %s318, %s319
      %s321 = scalar_lea.vmem %s6, %s320
      %p322 = scmp.lt.s32.totalorder %s21, 1
      %s323 = scalar_select %p322, %s21, 1
      %p324 = scmp.lt.s32.totalorder %s22, 3
      %s325 = scalar_select %p324, %s22, 3
      %s326 = smul.addr %s323, 4
      %s327 = sadd.s32 %s325, %s326
      %s328 = smul.addr %s327, 2
      %s329 = scalar_lea.vmem %s0, %s328
      %s330 = sadd.s32 %s22, 1
      %p331 = scmp.lt.s32.totalorder %s21, 1
      %s332 = scalar_select %p331, %s21, 1
      %p333 = scmp.lt.s32.totalorder %s330, 3
      %s334 = scalar_select %p333, %s330, 3
      %s335 = smul.addr %s332, 4
      %s336 = sadd.s32 %s334, %s335
      %s337 = smul.addr %s336, 2
      %s338 = scalar_lea.vmem %s1, %s337
      %s339 = sadd.s32 %s22, 1
      %s340 = sadd.s32 %s22, 2
      %p341 = scmp.lt.s32.totalorder %s21, 1
      %s342 = scalar_select %p341, %s21, 1
      %p343 = scmp.lt.s32.totalorder %s340, 3
      %s344 = scalar_select %p343, %s340, 3
      %s345 = smul.addr %s342, 4
      %s346 = sadd.s32 %s344, %s345
      %s347 = smul.addr %s346, 2
      %s348 = scalar_lea.vmem %s2, %s347
      %s349 = sadd.s32 %s22, 2
      %p350 = scmp.lt.s32.totalorder %s21, 1
      %s351 = scalar_select %p350, %s21, 1
      %p352 = scmp.lt.s32.totalorder %s22, 1
      %s353 = scalar_select %p352, %s22, 1
      %s354 = smul.addr %s351, 2
      %s355 = sadd.s32 %s353, %s354
      %s356 = scalar_lea.vmem %s6, %s355
      %v357 = vld [vmem:[%s329] sm:$0x3]
      %v358 = vld [vmem:[%s3] sm:$0xf]
      %v359 = vld [vmem:[%s3 + $0x4] sm:$0xf]
      %v360 = vld [vmem:[%s3 + $0x8] sm:$0xf]
      %v361 = vld [vmem:[%s3 + $0xc] sm:$0xf]
      %v362 = vld [vmem:[%s3 + $0x10] sm:$0xf]
      %v363 = vld [vmem:[%s3 + $0x14] sm:$0xf]
      %v364 = vld [vmem:[%s3 + $0x18] sm:$0xf]
      %v365 = vld [vmem:[%s3 + $0x1c] sm:$0xf]
      %v366 = vld [vmem:[%s3 + $0x20] sm:$0xf]
      %v367 = vld [vmem:[%s3 + $0x24] sm:$0xf]
      %v368 = vld [vmem:[%s3 + $0x28] sm:$0xf]
      %v369 = vld [vmem:[%s3 + $0x2c] sm:$0xf]
      %v370 = vld [vmem:[%s3 + $0x30] sm:$0xf]
      %v371 = vld [vmem:[%s3 + $0x34] sm:$0xf]
      %v372 = vld [vmem:[%s3 + $0x38] sm:$0xf]
      %v373 = vld [vmem:[%s3 + $0x3c] sm:$0xf]
      %s374 = scalar_lea.vmem %s3, 64
      %v375 = vld [vmem:[%s374] sm:$0xf]
      %v376 = vld [vmem:[%s374 + $0x4] sm:$0xf]
      %v377 = vld [vmem:[%s374 + $0x8] sm:$0xf]
      %v378 = vld [vmem:[%s374 + $0xc] sm:$0xf]
      %v379 = vld [vmem:[%s374 + $0x10] sm:$0xf]
      %v380 = vld [vmem:[%s374 + $0x14] sm:$0xf]
      %v381 = vld [vmem:[%s374 + $0x18] sm:$0xf]
      %v382 = vld [vmem:[%s374 + $0x1c] sm:$0xf]
      %v383 = vld [vmem:[%s374 + $0x20] sm:$0xf]
      %v384 = vld [vmem:[%s374 + $0x24] sm:$0xf]
      %v385 = vld [vmem:[%s374 + $0x28] sm:$0xf]
      %v386 = vld [vmem:[%s374 + $0x2c] sm:$0xf]
      %v387 = vld [vmem:[%s374 + $0x30] sm:$0xf]
      %v388 = vld [vmem:[%s374 + $0x34] sm:$0xf]
      %v389 = vld [vmem:[%s374 + $0x38] sm:$0xf]
      %v390 = vld [vmem:[%s374 + $0x3c] sm:$0xf]
      %392 = vst [vmem:[#allocation1] ss:$4 sm:$0xff] %v357
      %v393 = vld.sshfl [vmem:[#allocation1] sm:$0xff pattern:$0x73625140]
      %v394 = vshrl.u32 %v393, 16
      %v396 = vshll.u32 %v393, 16
      %v398 = vrot.slane %v396, 1
      %v399 = vor.u32 %v394, %v398
      %v417 = vunpack.c.l.b16 %v375
      %v418 = vunpack.c.l.b16 %v376
      %v419 = vunpack.c.l.b16 %v377
      %v420 = vunpack.c.l.b16 %v378
      %v421 = vunpack.c.l.b16 %v379
      %v422 = vunpack.c.l.b16 %v380
      %v423 = vunpack.c.l.b16 %v381
      %v424 = vunpack.c.l.b16 %v382
      %v425 = vunpack.c.l.b16 %v383
      %v426 = vunpack.c.l.b16 %v384
      %v427 = vunpack.c.l.b16 %v385
      %v428 = vunpack.c.l.b16 %v386
      %v429 = vunpack.c.l.b16 %v387
      %v430 = vunpack.c.l.b16 %v388
      %v431 = vunpack.c.l.b16 %v389
      %v432 = vunpack.c.l.b16 %v390
      %v433 = vpack.c.b16 %v418, %v417
      %v434 = vpack.c.b16 %v420, %v419
      %v435 = vpack.c.b16 %v422, %v421
      %v436 = vpack.c.b16 %v424, %v423
      %v437 = vpack.c.b16 %v426, %v425
      %v438 = vpack.c.b16 %v428, %v427
      %v439 = vpack.c.b16 %v430, %v429
      %v440 = vpack.c.b16 %v432, %v431
      %449 = vmatpush.bf16.msra.mxu0 %v440
      %450 = vmatpush.bf16.msra.mxu0 %v439
      %451 = vmatpush.bf16.msra.mxu0 %v438
      %452 = vmatpush.bf16.msra.mxu0 %v437
      %453 = vmatpush.bf16.msra.mxu0 %v436
      %454 = vmatpush.bf16.msra.mxu0 %v435
      %455 = vmatpush.bf16.msra.mxu0 %v434
      %456 = vmatpush.bf16.msra.mxu0 %v433
      %457 = vmatmul.bf16.gmra.mxu0 %v399
      %v458 = vpop.f32.mrf.mxu0
      %v459 = vadd.f32 0.0, %v458
      %v460 = vpop.f32.mrf.mxu0
      %461 = vdwg.mxu0
      %v478 = vunpack.c.l.b16 %v358
      %v479 = vunpack.c.l.b16 %v359
      %v480 = vunpack.c.l.b16 %v360
      %v481 = vunpack.c.l.b16 %v361
      %v482 = vunpack.c.l.b16 %v362
      %v483 = vunpack.c.l.b16 %v363
      %v484 = vunpack.c.l.b16 %v364
      %v485 = vunpack.c.l.b16 %v365
      %v486 = vunpack.c.l.b16 %v366
      %v487 = vunpack.c.l.b16 %v367
      %v488 = vunpack.c.l.b16 %v368
      %v489 = vunpack.c.l.b16 %v369
      %v490 = vunpack.c.l.b16 %v370
      %v491 = vunpack.c.l.b16 %v371
      %v492 = vunpack.c.l.b16 %v372
      %v493 = vunpack.c.l.b16 %v373
      %v494 = vpack.c.b16 %v479, %v478
      %v495 = vpack.c.b16 %v481, %v480
      %v496 = vpack.c.b16 %v483, %v482
      %v497 = vpack.c.b16 %v485, %v484
      %v498 = vpack.c.b16 %v487, %v486
      %v499 = vpack.c.b16 %v489, %v488
      %v500 = vpack.c.b16 %v491, %v490
      %v501 = vpack.c.b16 %v493, %v492
      %510 = vmatpush.bf16.msra.mxu0 %v501
      %511 = vmatpush.bf16.msra.mxu0 %v500
      %512 = vmatpush.bf16.msra.mxu0 %v499
      %513 = vmatpush.bf16.msra.mxu0 %v498
      %514 = vmatpush.bf16.msra.mxu0 %v497
      %515 = vmatpush.bf16.msra.mxu0 %v496
      %516 = vmatpush.bf16.msra.mxu0 %v495
      %517 = vmatpush.bf16.msra.mxu0 %v494
      %518 = vmatmul.bf16.gmra.mxu0 %v357
      %v519 = vpop.f32.mrf.mxu0
      %v520 = vadd.f32 %v459, %v519
      %v521 = vpop.f32.mrf.mxu0
      %522 = vdwg.mxu0
      %s523 = scalar_lea.vmem %s3, 128
      %v524 = vld [vmem:[%s523] sm:$0xf]
      %v525 = vld [vmem:[%s523 + $0x4] sm:$0xf]
      %v526 = vld [vmem:[%s523 + $0x8] sm:$0xf]
      %v527 = vld [vmem:[%s523 + $0xc] sm:$0xf]
      %v528 = vld [vmem:[%s523 + $0x10] sm:$0xf]
      %v529 = vld [vmem:[%s523 + $0x14] sm:$0xf]
      %v530 = vld [vmem:[%s523 + $0x18] sm:$0xf]
      %v531 = vld [vmem:[%s523 + $0x1c] sm:$0xf]
      %v532 = vld [vmem:[%s523 + $0x20] sm:$0xf]
      %v533 = vld [vmem:[%s523 + $0x24] sm:$0xf]
      %v534 = vld [vmem:[%s523 + $0x28] sm:$0xf]
      %v535 = vld [vmem:[%s523 + $0x2c] sm:$0xf]
      %v536 = vld [vmem:[%s523 + $0x30] sm:$0xf]
      %v537 = vld [vmem:[%s523 + $0x34] sm:$0xf]
      %v538 = vld [vmem:[%s523 + $0x38] sm:$0xf]
      %v539 = vld [vmem:[%s523 + $0x3c] sm:$0xf]
      %540 = vst [vmem:[#allocation1] ss:$4 sm:$0xff] %v357
      %v541 = vld.sshfl [vmem:[#allocation1] sm:$0xff pattern:$0x73625140]
      %v543 = vrot.slane %v541, 1
      %v561 = vunpack.c.l.b16 %v524
      %v562 = vunpack.c.l.b16 %v525
      %v563 = vunpack.c.l.b16 %v526
      %v564 = vunpack.c.l.b16 %v527
      %v565 = vunpack.c.l.b16 %v528
      %v566 = vunpack.c.l.b16 %v529
      %v567 = vunpack.c.l.b16 %v530
      %v568 = vunpack.c.l.b16 %v531
      %v569 = vunpack.c.l.b16 %v532
      %v570 = vunpack.c.l.b16 %v533
      %v571 = vunpack.c.l.b16 %v534
      %v572 = vunpack.c.l.b16 %v535
      %v573 = vunpack.c.l.b16 %v536
      %v574 = vunpack.c.l.b16 %v537
      %v575 = vunpack.c.l.b16 %v538
      %v576 = vunpack.c.l.b16 %v539
      %v577 = vpack.c.b16 %v562, %v561
      %v578 = vpack.c.b16 %v564, %v563
      %v579 = vpack.c.b16 %v566, %v565
      %v580 = vpack.c.b16 %v568, %v567
      %v581 = vpack.c.b16 %v570, %v569
      %v582 = vpack.c.b16 %v572, %v571
      %v583 = vpack.c.b16 %v574, %v573
      %v584 = vpack.c.b16 %v576, %v575
      %593 = vmatpush.bf16.msra.mxu0 %v584
      %594 = vmatpush.bf16.msra.mxu0 %v583
      %595 = vmatpush.bf16.msra.mxu0 %v582
      %596 = vmatpush.bf16.msra.mxu0 %v581
      %597 = vmatpush.bf16.msra.mxu0 %v580
      %598 = vmatpush.bf16.msra.mxu0 %v579
      %599 = vmatpush.bf16.msra.mxu0 %v578
      %600 = vmatpush.bf16.msra.mxu0 %v577
      %601 = vmatmul.bf16.gmra.mxu0 %v543
      %v602 = vpop.f32.mrf.mxu0
      %v603 = vadd.f32 0.0, %v602
      %v604 = vpop.f32.mrf.mxu0
      %605 = vdwg.mxu0
      %v606 = vadd.f32 %v520, %v603
      %v607 = vld [vmem:[%s338] sm:$0x3]
      %s608 = scalar_lea.vmem %s3, 192
      %v609 = vld [vmem:[%s608] sm:$0xf]
      %v610 = vld [vmem:[%s608 + $0x4] sm:$0xf]
      %v611 = vld [vmem:[%s608 + $0x8] sm:$0xf]
      %v612 = vld [vmem:[%s608 + $0xc] sm:$0xf]
      %v613 = vld [vmem:[%s608 + $0x10] sm:$0xf]
      %v614 = vld [vmem:[%s608 + $0x14] sm:$0xf]
      %v615 = vld [vmem:[%s608 + $0x18] sm:$0xf]
      %v616 = vld [vmem:[%s608 + $0x1c] sm:$0xf]
      %v617 = vld [vmem:[%s608 + $0x20] sm:$0xf]
      %v618 = vld [vmem:[%s608 + $0x24] sm:$0xf]
      %v619 = vld [vmem:[%s608 + $0x28] sm:$0xf]
      %v620 = vld [vmem:[%s608 + $0x2c] sm:$0xf]
      %v621 = vld [vmem:[%s608 + $0x30] sm:$0xf]
      %v622 = vld [vmem:[%s608 + $0x34] sm:$0xf]
      %v623 = vld [vmem:[%s608 + $0x38] sm:$0xf]
      %v624 = vld [vmem:[%s608 + $0x3c] sm:$0xf]
      %v641 = vunpack.c.l.b16 %v609
      %v642 = vunpack.c.l.b16 %v610
      %v643 = vunpack.c.l.b16 %v611
      %v644 = vunpack.c.l.b16 %v612
      %v645 = vunpack.c.l.b16 %v613
      %v646 = vunpack.c.l.b16 %v614
      %v647 = vunpack.c.l.b16 %v615
      %v648 = vunpack.c.l.b16 %v616
      %v649 = vunpack.c.l.b16 %v617
      %v650 = vunpack.c.l.b16 %v618
      %v651 = vunpack.c.l.b16 %v619
      %v652 = vunpack.c.l.b16 %v620
      %v653 = vunpack.c.l.b16 %v621
      %v654 = vunpack.c.l.b16 %v622
      %v655 = vunpack.c.l.b16 %v623
      %v656 = vunpack.c.l.b16 %v624
      %v657 = vpack.c.b16 %v642, %v641
      %v658 = vpack.c.b16 %v644, %v643
      %v659 = vpack.c.b16 %v646, %v645
      %v660 = vpack.c.b16 %v648, %v647
      %v661 = vpack.c.b16 %v650, %v649
      %v662 = vpack.c.b16 %v652, %v651
      %v663 = vpack.c.b16 %v654, %v653
      %v664 = vpack.c.b16 %v656, %v655
      %673 = vmatpush.bf16.msra.mxu0 %v664
      %674 = vmatpush.bf16.msra.mxu0 %v663
      %675 = vmatpush.bf16.msra.mxu0 %v662
      %676 = vmatpush.bf16.msra.mxu0 %v661
      %677 = vmatpush.bf16.msra.mxu0 %v660
      %678 = vmatpush.bf16.msra.mxu0 %v659
      %679 = vmatpush.bf16.msra.mxu0 %v658
      %680 = vmatpush.bf16.msra.mxu0 %v657
      %681 = vmatmul.bf16.gmra.mxu0 %v607
      %v682 = vpop.f32.mrf.mxu0
      %v683 = vadd.f32 0.0, %v682
      %v684 = vpop.f32.mrf.mxu0
      %685 = vdwg.mxu0
      %v686 = vadd.f32 %v606, %v683
      %s687 = scalar_lea.vmem %s3, 256
      %v688 = vld [vmem:[%s687] sm:$0xf]
      %v689 = vld [vmem:[%s687 + $0x4] sm:$0xf]
      %v690 = vld [vmem:[%s687 + $0x8] sm:$0xf]
      %v691 = vld [vmem:[%s687 + $0xc] sm:$0xf]
      %v692 = vld [vmem:[%s687 + $0x10] sm:$0xf]
      %v693 = vld [vmem:[%s687 + $0x14] sm:$0xf]
      %v694 = vld [vmem:[%s687 + $0x18] sm:$0xf]
      %v695 = vld [vmem:[%s687 + $0x1c] sm:$0xf]
      %v696 = vld [vmem:[%s687 + $0x20] sm:$0xf]
      %v697 = vld [vmem:[%s687 + $0x24] sm:$0xf]
      %v698 = vld [vmem:[%s687 + $0x28] sm:$0xf]
      %v699 = vld [vmem:[%s687 + $0x2c] sm:$0xf]
      %v700 = vld [vmem:[%s687 + $0x30] sm:$0xf]
      %v701 = vld [vmem:[%s687 + $0x34] sm:$0xf]
      %v702 = vld [vmem:[%s687 + $0x38] sm:$0xf]
      %v703 = vld [vmem:[%s687 + $0x3c] sm:$0xf]
      %705 = vst [vmem:[#allocation1] ss:$4 sm:$0xff] %v607
      %v706 = vld.sshfl [vmem:[#allocation1] sm:$0xff pattern:$0x73625140]
      %v707 = vshrl.u32 %v706, 16
      %v709 = vshll.u32 %v706, 16
      %v711 = vrot.slane %v709, 1
      %v712 = vor.u32 %v707, %v711
      %v730 = vunpack.c.l.b16 %v688
      %v731 = vunpack.c.l.b16 %v689
      %v732 = vunpack.c.l.b16 %v690
      %v733 = vunpack.c.l.b16 %v691
      %v734 = vunpack.c.l.b16 %v692
      %v735 = vunpack.c.l.b16 %v693
      %v736 = vunpack.c.l.b16 %v694
      %v737 = vunpack.c.l.b16 %v695
      %v738 = vunpack.c.l.b16 %v696
      %v739 = vunpack.c.l.b16 %v697
      %v740 = vunpack.c.l.b16 %v698
      %v741 = vunpack.c.l.b16 %v699
      %v742 = vunpack.c.l.b16 %v700
      %v743 = vunpack.c.l.b16 %v701
      %v744 = vunpack.c.l.b16 %v702
      %v745 = vunpack.c.l.b16 %v703
      %v746 = vpack.c.b16 %v731, %v730
      %v747 = vpack.c.b16 %v733, %v732
      %v748 = vpack.c.b16 %v735, %v734
      %v749 = vpack.c.b16 %v737, %v736
      %v750 = vpack.c.b16 %v739, %v738
      %v751 = vpack.c.b16 %v741, %v740
      %v752 = vpack.c.b16 %v743, %v742
      %v753 = vpack.c.b16 %v745, %v744
      %762 = vmatpush.bf16.msra.mxu0 %v753
      %763 = vmatpush.bf16.msra.mxu0 %v752
      %764 = vmatpush.bf16.msra.mxu0 %v751
      %765 = vmatpush.bf16.msra.mxu0 %v750
      %766 = vmatpush.bf16.msra.mxu0 %v749
      %767 = vmatpush.bf16.msra.mxu0 %v748
      %768 = vmatpush.bf16.msra.mxu0 %v747
      %769 = vmatpush.bf16.msra.mxu0 %v746
      %770 = vmatmul.bf16.gmra.mxu0 %v712
      %v771 = vpop.f32.mrf.mxu0
      %v772 = vadd.f32 0.0, %v771
      %v773 = vpop.f32.mrf.mxu0
      %774 = vdwg.mxu0
      %v775 = vadd.f32 %v686, %v772
      %s776 = scalar_lea.vmem %s3, 320
      %v777 = vld [vmem:[%s776] sm:$0xf]
      %v778 = vld [vmem:[%s776 + $0x4] sm:$0xf]
      %v779 = vld [vmem:[%s776 + $0x8] sm:$0xf]
      %v780 = vld [vmem:[%s776 + $0xc] sm:$0xf]
      %v781 = vld [vmem:[%s776 + $0x10] sm:$0xf]
      %v782 = vld [vmem:[%s776 + $0x14] sm:$0xf]
      %v783 = vld [vmem:[%s776 + $0x18] sm:$0xf]
      %v784 = vld [vmem:[%s776 + $0x1c] sm:$0xf]
      %v785 = vld [vmem:[%s776 + $0x20] sm:$0xf]
      %v786 = vld [vmem:[%s776 + $0x24] sm:$0xf]
      %v787 = vld [vmem:[%s776 + $0x28] sm:$0xf]
      %v788 = vld [vmem:[%s776 + $0x2c] sm:$0xf]
      %v789 = vld [vmem:[%s776 + $0x30] sm:$0xf]
      %v790 = vld [vmem:[%s776 + $0x34] sm:$0xf]
      %v791 = vld [vmem:[%s776 + $0x38] sm:$0xf]
      %v792 = vld [vmem:[%s776 + $0x3c] sm:$0xf]
      %793 = vst [vmem:[#allocation1] ss:$4 sm:$0xff] %v607
      %v794 = vld.sshfl [vmem:[#allocation1] sm:$0xff pattern:$0x73625140]
      %v796 = vrot.slane %v794, 1
      %v814 = vunpack.c.l.b16 %v777
      %v815 = vunpack.c.l.b16 %v778
      %v816 = vunpack.c.l.b16 %v779
      %v817 = vunpack.c.l.b16 %v780
      %v818 = vunpack.c.l.b16 %v781
      %v819 = vunpack.c.l.b16 %v782
      %v820 = vunpack.c.l.b16 %v783
      %v821 = vunpack.c.l.b16 %v784
      %v822 = vunpack.c.l.b16 %v785
      %v823 = vunpack.c.l.b16 %v786
      %v824 = vunpack.c.l.b16 %v787
      %v825 = vunpack.c.l.b16 %v788
      %v826 = vunpack.c.l.b16 %v789
      %v827 = vunpack.c.l.b16 %v790
      %v828 = vunpack.c.l.b16 %v791
      %v829 = vunpack.c.l.b16 %v792
      %v830 = vpack.c.b16 %v815, %v814
      %v831 = vpack.c.b16 %v817, %v816
      %v832 = vpack.c.b16 %v819, %v818
      %v833 = vpack.c.b16 %v821, %v820
      %v834 = vpack.c.b16 %v823, %v822
      %v835 = vpack.c.b16 %v825, %v824
      %v836 = vpack.c.b16 %v827, %v826
      %v837 = vpack.c.b16 %v829, %v828
      %846 = vmatpush.bf16.msra.mxu0 %v837
      %847 = vmatpush.bf16.msra.mxu0 %v836
      %848 = vmatpush.bf16.msra.mxu0 %v835
      %849 = vmatpush.bf16.msra.mxu0 %v834
      %850 = vmatpush.bf16.msra.mxu0 %v833
      %851 = vmatpush.bf16.msra.mxu0 %v832
      %852 = vmatpush.bf16.msra.mxu0 %v831
      %853 = vmatpush.bf16.msra.mxu0 %v830
      %854 = vmatmul.bf16.gmra.mxu0 %v796
      %v855 = vpop.f32.mrf.mxu0
      %v856 = vadd.f32 0.0, %v855
      %v857 = vpop.f32.mrf.mxu0
      %858 = vdwg.mxu0
      %v859 = vadd.f32 %v775, %v856
      %v860 = vld [vmem:[%s348] sm:$0x3]
      %s861 = scalar_lea.vmem %s3, 384
      %v862 = vld [vmem:[%s861] sm:$0xf]
      %v863 = vld [vmem:[%s861 + $0x4] sm:$0xf]
      %v864 = vld [vmem:[%s861 + $0x8] sm:$0xf]
      %v865 = vld [vmem:[%s861 + $0xc] sm:$0xf]
      %v866 = vld [vmem:[%s861 + $0x10] sm:$0xf]
      %v867 = vld [vmem:[%s861 + $0x14] sm:$0xf]
      %v868 = vld [vmem:[%s861 + $0x18] sm:$0xf]
      %v869 = vld [vmem:[%s861 + $0x1c] sm:$0xf]
      %v870 = vld [vmem:[%s861 + $0x20] sm:$0xf]
      %v871 = vld [vmem:[%s861 + $0x24] sm:$0xf]
      %v872 = vld [vmem:[%s861 + $0x28] sm:$0xf]
      %v873 = vld [vmem:[%s861 + $0x2c] sm:$0xf]
      %v874 = vld [vmem:[%s861 + $0x30] sm:$0xf]
      %v875 = vld [vmem:[%s861 + $0x34] sm:$0xf]
      %v876 = vld [vmem:[%s861 + $0x38] sm:$0xf]
      %v877 = vld [vmem:[%s861 + $0x3c] sm:$0xf]
      %v894 = vunpack.c.l.b16 %v862
      %v895 = vunpack.c.l.b16 %v863
      %v896 = vunpack.c.l.b16 %v864
      %v897 = vunpack.c.l.b16 %v865
      %v898 = vunpack.c.l.b16 %v866
      %v899 = vunpack.c.l.b16 %v867
      %v900 = vunpack.c.l.b16 %v868
      %v901 = vunpack.c.l.b16 %v869
      %v902 = vunpack.c.l.b16 %v870
      %v903 = vunpack.c.l.b16 %v871
      %v904 = vunpack.c.l.b16 %v872
      %v905 = vunpack.c.l.b16 %v873
      %v906 = vunpack.c.l.b16 %v874
      %v907 = vunpack.c.l.b16 %v875
      %v908 = vunpack.c.l.b16 %v876
      %v909 = vunpack.c.l.b16 %v877
      %v910 = vpack.c.b16 %v895, %v894
      %v911 = vpack.c.b16 %v897, %v896
      %v912 = vpack.c.b16 %v899, %v898
      %v913 = vpack.c.b16 %v901, %v900
      %v914 = vpack.c.b16 %v903, %v902
      %v915 = vpack.c.b16 %v905, %v904
      %v916 = vpack.c.b16 %v907, %v906
      %v917 = vpack.c.b16 %v909, %v908
      %926 = vmatpush.bf16.msra.mxu0 %v917
      %927 = vmatpush.bf16.msra.mxu0 %v916
      %928 = vmatpush.bf16.msra.mxu0 %v915
      %929 = vmatpush.bf16.msra.mxu0 %v914
      %930 = vmatpush.bf16.msra.mxu0 %v913
      %931 = vmatpush.bf16.msra.mxu0 %v912
      %932 = vmatpush.bf16.msra.mxu0 %v911
      %933 = vmatpush.bf16.msra.mxu0 %v910
      %934 = vmatmul.bf16.gmra.mxu0 %v860
      %v935 = vpop.f32.mrf.mxu0
      %v936 = vadd.f32 0.0, %v935
      %v937 = vpop.f32.mrf.mxu0
      %938 = vdwg.mxu0
      %v939 = vadd.f32 %v859, %v936
      %s940 = scalar_lea.vmem %s3, 448
      %v941 = vld [vmem:[%s940] sm:$0xf]
      %v942 = vld [vmem:[%s940 + $0x4] sm:$0xf]
      %v943 = vld [vmem:[%s940 + $0x8] sm:$0xf]
      %v944 = vld [vmem:[%s940 + $0xc] sm:$0xf]
      %v945 = vld [vmem:[%s940 + $0x10] sm:$0xf]
      %v946 = vld [vmem:[%s940 + $0x14] sm:$0xf]
      %v947 = vld [vmem:[%s940 + $0x18] sm:$0xf]
      %v948 = vld [vmem:[%s940 + $0x1c] sm:$0xf]
      %v949 = vld [vmem:[%s940 + $0x20] sm:$0xf]
      %v950 = vld [vmem:[%s940 + $0x24] sm:$0xf]
      %v951 = vld [vmem:[%s940 + $0x28] sm:$0xf]
      %v952 = vld [vmem:[%s940 + $0x2c] sm:$0xf]
      %v953 = vld [vmem:[%s940 + $0x30] sm:$0xf]
      %v954 = vld [vmem:[%s940 + $0x34] sm:$0xf]
      %v955 = vld [vmem:[%s940 + $0x38] sm:$0xf]
      %v956 = vld [vmem:[%s940 + $0x3c] sm:$0xf]
      %958 = vst [vmem:[#allocation1] ss:$4 sm:$0xff] %v860
      %v959 = vld.sshfl [vmem:[#allocation1] sm:$0xff pattern:$0x73625140]
      %v960 = vshrl.u32 %v959, 16
      %v962 = vshll.u32 %v959, 16
      %v964 = vrot.slane %v962, 1
      %v965 = vor.u32 %v960, %v964
      %v983 = vunpack.c.l.b16 %v941
      %v984 = vunpack.c.l.b16 %v942
      %v985 = vunpack.c.l.b16 %v943
      %v986 = vunpack.c.l.b16 %v944
      %v987 = vunpack.c.l.b16 %v945
      %v988 = vunpack.c.l.b16 %v946
      %v989 = vunpack.c.l.b16 %v947
      %v990 = vunpack.c.l.b16 %v948
      %v991 = vunpack.c.l.b16 %v949
      %v992 = vunpack.c.l.b16 %v950
      %v993 = vunpack.c.l.b16 %v951
      %v994 = vunpack.c.l.b16 %v952
      %v995 = vunpack.c.l.b16 %v953
      %v996 = vunpack.c.l.b16 %v954
      %v997 = vunpack.c.l.b16 %v955
      %v998 = vunpack.c.l.b16 %v956
      %v999 = vpack.c.b16 %v984, %v983
      %v1000 = vpack.c.b16 %v986, %v985
      %v1001 = vpack.c.b16 %v988, %v987
      %v1002 = vpack.c.b16 %v990, %v989
      %v1003 = vpack.c.b16 %v992, %v991
      %v1004 = vpack.c.b16 %v994, %v993
      %v1005 = vpack.c.b16 %v996, %v995
      %v1006 = vpack.c.b16 %v998, %v997
      %1015 = vmatpush.bf16.msra.mxu0 %v1006
      %1016 = vmatpush.bf16.msra.mxu0 %v1005
      %1017 = vmatpush.bf16.msra.mxu0 %v1004
      %1018 = vmatpush.bf16.msra.mxu0 %v1003
      %1019 = vmatpush.bf16.msra.mxu0 %v1002
      %1020 = vmatpush.bf16.msra.mxu0 %v1001
      %1021 = vmatpush.bf16.msra.mxu0 %v1000
      %1022 = vmatpush.bf16.msra.mxu0 %v999
      %1023 = vmatmul.bf16.gmra.mxu0 %v965
      %v1024 = vpop.f32.mrf.mxu0
      %v1025 = vadd.f32 0.0, %v1024
      %v1026 = vpop.f32.mrf.mxu0
      %1027 = vdwg.mxu0
      %v1028 = vadd.f32 %v939, %v1025
      %s1029 = scalar_lea.vmem %s3, 512
      %v1030 = vld [vmem:[%s1029] sm:$0xf]
      %v1031 = vld [vmem:[%s1029 + $0x4] sm:$0xf]
      %v1032 = vld [vmem:[%s1029 + $0x8] sm:$0xf]
      %v1033 = vld [vmem:[%s1029 + $0xc] sm:$0xf]
      %v1034 = vld [vmem:[%s1029 + $0x10] sm:$0xf]
      %v1035 = vld [vmem:[%s1029 + $0x14] sm:$0xf]
      %v1036 = vld [vmem:[%s1029 + $0x18] sm:$0xf]
      %v1037 = vld [vmem:[%s1029 + $0x1c] sm:$0xf]
      %v1038 = vld [vmem:[%s1029 + $0x20] sm:$0xf]
      %v1039 = vld [vmem:[%s1029 + $0x24] sm:$0xf]
      %v1040 = vld [vmem:[%s1029 + $0x28] sm:$0xf]
      %v1041 = vld [vmem:[%s1029 + $0x2c] sm:$0xf]
      %v1042 = vld [vmem:[%s1029 + $0x30] sm:$0xf]
      %v1043 = vld [vmem:[%s1029 + $0x34] sm:$0xf]
      %v1044 = vld [vmem:[%s1029 + $0x38] sm:$0xf]
      %v1045 = vld [vmem:[%s1029 + $0x3c] sm:$0xf]
      %1046 = vst [vmem:[#allocation1] ss:$4 sm:$0xff] %v860
      %v1047 = vld.sshfl [vmem:[#allocation1] sm:$0xff pattern:$0x73625140]
      %v1049 = vrot.slane %v1047, 1
      %v1067 = vunpack.c.l.b16 %v1030
      %v1068 = vunpack.c.l.b16 %v1031
      %v1069 = vunpack.c.l.b16 %v1032
      %v1070 = vunpack.c.l.b16 %v1033
      %v1071 = vunpack.c.l.b16 %v1034
      %v1072 = vunpack.c.l.b16 %v1035
      %v1073 = vunpack.c.l.b16 %v1036
      %v1074 = vunpack.c.l.b16 %v1037
      %v1075 = vunpack.c.l.b16 %v1038
      %v1076 = vunpack.c.l.b16 %v1039
      %v1077 = vunpack.c.l.b16 %v1040
      %v1078 = vunpack.c.l.b16 %v1041
      %v1079 = vunpack.c.l.b16 %v1042
      %v1080 = vunpack.c.l.b16 %v1043
      %v1081 = vunpack.c.l.b16 %v1044
      %v1082 = vunpack.c.l.b16 %v1045
      %v1083 = vpack.c.b16 %v1068, %v1067
      %v1084 = vpack.c.b16 %v1070, %v1069
      %v1085 = vpack.c.b16 %v1072, %v1071
      %v1086 = vpack.c.b16 %v1074, %v1073
      %v1087 = vpack.c.b16 %v1076, %v1075
      %v1088 = vpack.c.b16 %v1078, %v1077
      %v1089 = vpack.c.b16 %v1080, %v1079
      %v1090 = vpack.c.b16 %v1082, %v1081
      %1099 = vmatpush.bf16.msra.mxu0 %v1090
      %1100 = vmatpush.bf16.msra.mxu0 %v1089
      %1101 = vmatpush.bf16.msra.mxu0 %v1088
      %1102 = vmatpush.bf16.msra.mxu0 %v1087
      %1103 = vmatpush.bf16.msra.mxu0 %v1086
      %1104 = vmatpush.bf16.msra.mxu0 %v1085
      %1105 = vmatpush.bf16.msra.mxu0 %v1084
      %1106 = vmatpush.bf16.msra.mxu0 %v1083
      %1107 = vmatmul.bf16.gmra.mxu0 %v1049
      %v1108 = vpop.f32.mrf.mxu0
      %v1109 = vadd.f32 0.0, %v1108
      %v1110 = vpop.f32.mrf.mxu0
      %1111 = vdwg.mxu0
      %v1112 = vadd.f32 %v1028, %v1109
      %v1113 = vld [vmem:[%s4] sm:$0x1]
      %v1115 = vperm.slane %v1113, 0
      %v1117 = vmul.f32 %v1112, %v1115
      %v1118 = vld [vmem:[%s5] sm:$0x1]
      %v1120 = vperm.slane %v1118, 0
      %v1122 = vadd.f32 %v1117, %v1120
      %v1123 = vpack.c.bf16 %v1122, %v1122
      %1124 = vst [vmem:[%s356] sm:$0x1] %v1123
      %p1125 = scmp.lt.s32.totalorder %s21, 1
      %s1126 = scalar_select %p1125, %s21, 1
      %p1127 = scmp.lt.s32.totalorder %s22, 1
      %s1128 = scalar_select %p1127, %s22, 1
      %s1129 = smul.addr %s1126, 2
      %s1130 = sadd.s32 %s1128, %s1129
      %s1131 = scalar_lea.vmem %s6, %s1130
      // Predicated region
      $region45: #{binary_resnet_bisrnet_down.25} parent=43 // pred_check
        %p1132 = pneg %p200
      $region46: #{binary_resnet_bisrnet_down.25} parent=43 // pred_check_branch
        %1134 = sbr.rel (%p1132) target = $region48
      $region47: #{binary_resnet_bisrnet_down.25} parent=43 // pred_region
        _
      $region48: #{binary_resnet_bisrnet_down.25} parent=43 // pred_fallthru
        _
    $region44: #{binary_resnet_bisrnet_down.25} parent=5 // pred_fallthru
      _
    %p1135 = scmp.le.s32.totalorder 2, %s12
    // Predicated region
    $region49: #{binary_resnet_bisrnet_down.25} parent=5 // pred_check
      %p1136 = pneg %p1135
    $region50: #{binary_resnet_bisrnet_down.25} parent=5 // pred_check_branch
      %1138 = sbr.rel (%p1136) target = $region52
    $region51: #{binary_resnet_bisrnet_down.25} parent=5 // pred_region
      %s1139 = ssub.s32 %s12, 2
      // Predicated region
      $region53: #{binary_resnet_bisrnet_down.25} parent=51 // pred_check
        %p1140 = pneg %p206
      $region54: #{binary_resnet_bisrnet_down.25} parent=51 // pred_check_branch
        %1142 = sbr.rel (%p1140) target = $region56
      $region55: #{binary_resnet_bisrnet_down.25} parent=51 // pred_region
        %p1143 = scmp.lt.s32.totalorder %s23, 1
        %s1144 = scalar_select %p1143, %s23, 1
        %p1145 = scmp.lt.s32.totalorder %s24, 1
        %s1146 = scalar_select %p1145, %s24, 1
        %s1147 = smul.addr %s1144, 2
        %s1148 = sadd.s32 %s1146, %s1147
        %s1149 = scalar_lea.vmem %s6, %s1148
      $region56: #{binary_resnet_bisrnet_down.25} parent=51 // pred_fallthru
        _
    $region52: #{binary_resnet_bisrnet_down.25} parent=5 // pred_fallthru
      _
  $region6: #{binary_resnet_bisrnet_down.25} parent=0 // loop_footer
    %s16 = sadd.s32 1, %s12
  $region7: #{binary_resnet_bisrnet_down.25} parent=0 // loop_footer_branch
    %11 = sbr.rel target = $region3
  $region8: #{binary_resnet_bisrnet_down.25} parent=0 // loop_exit
    _

</llo_original>
